<compile_context>
chip_gen: v7x
topology: tpu7x:2x2x1
jax: 0.10.0
libtpu: 0.0.40
codegen_flags: <defaults>
</compile_context>

<pallas_src>
import functools

import jax
import jax.numpy as jnp
import numpy as np
from jax import lax
from jax.experimental import pallas as pl
from jax.experimental.pallas import tpu as pltpu


def _cdiv(a: int, b: int) -> int:
    return -(-a // b)


def _round_down_128(n: int) -> int:
    return (n // 128) * 128


def _vq_kernel(x_ref, w_ref, wsq_ref, q_ref, idx_ref, msq_ref, *,
               hw_valid, dist_dtype, channels_major):
    """One (batch, spatial-tile) block against the full resident codebook.

    x_ref:   (1, C, T) if channels_major else (1, T, C)   activations (f32)
    w_ref:   (K, C)       codebook (f32, constant index_map -> resident)
    wsq_ref: (1, K)       precomputed ||w_k||^2 (hoisted out of the kernel)
    q_ref:   (1, T, C)    quantized rows (exact codebook rows, f32)
    idx_ref: (1, 1, T)    argmin codebook index per row (int32, lane-dense)
    msq_ref: (1, 1, 1, 1) partial sum of ||q_row - x_row||^2 over valid rows
    """
    j = pl.program_id(1)
    w = w_ref[...]                                            # (K, C) f32
    K = w.shape[0]

    if channels_major:
        # In-kernel (C, T) -> (T, C) transpose (XLU) replaces the XLA-level
        # NCHW->NHWC transpose and its full extra HBM read+write of x.
        x = jnp.transpose(x_ref[0], (1, 0))                   # (T, C) f32
    else:
        x = x_ref[0]                                          # (T, C) f32
    T = x.shape[0]

    # Shifted squared distance ||w||^2 - 2 x.w^T (argmin-equivalent to cdist).
    # bf16 operands keep the MXU on its fast native path; accumulation is f32.
    # Only argmin near-ties below bf16 input resolution can differ from f32.
    xw = lax.dot_general(x.astype(dist_dtype), w.astype(dist_dtype),
                         (((1,), (1,)), ((), ())),
                         preferred_element_type=jnp.float32)  # (T, K)
    d = wsq_ref[...] - 2.0 * xw                               # (T, K)

    idx = jnp.argmin(d, axis=1).astype(jnp.int32)             # (T,)

    # One-hot @ codebook == torch.matmul(encodings, weight): exact f32 gather.
    onehot = (lax.broadcasted_iota(jnp.int32, (T, K), 1)
              == idx[:, None]).astype(jnp.float32)            # (T, K)
    q = jnp.dot(onehot, w, preferred_element_type=jnp.float32)  # (T, C)

    q_ref[...] = q[None]
    idx_ref[...] = idx[None, None, :]

    # Fused MSE partial sum; rows past the true spatial extent (padding /
    # boundary blocks) are masked out so the wrapper never re-reads q or x.
    rows = j * T + lax.broadcasted_iota(jnp.int32, (T, 1), 0)  # (T, 1)
    diff = q - x
    msq_ref[...] = jnp.sum(
        jnp.where(rows < hw_valid, diff * diff, 0.0)).reshape(1, 1, 1, 1)


def vector_quantizer_forward(x, weight, commitment_cost=0.25, row_tile=1024,
                             dist_dtype=jnp.bfloat16, fuse_transpose=True):
    """Forward pass matching VectorQuantizer.forward semantics.

    Returns (quantized, loss, encoding_indices) like the PyTorch module.
    """
    B, C, H, W = x.shape
    K, Cw = weight.shape
    assert C == Cw, "channel dim must equal embedding_dim"

    x = x.astype(jnp.float32)
    weight = weight.astype(jnp.float32)

    HW = H * W
    N = B * HW

    # NCHW -> (B, C, HW) is a free row-major reshape; the per-row relayout
    # happens inside the kernel.
    x3 = x.reshape(B, C, HW)
    if HW < 128:
        HW_x = 128                       # tiny spatial extents: pad lane dim
        x3 = jnp.pad(x3, ((0, 0), (0, 0), (0, HW_x - HW)))
    else:
        HW_x = HW

    # Spatial tile: multiple of 128, as large as possible (default 1024) for
    # fewer grid steps / longer MXU bursts.  Keep >= 2 grid tiles when we can
    # so v7x's two TensorCores both get work on the parallel grid.
    t = max(128, _round_down_128(min(int(row_tile), HW_x)))
    n_hw = _cdiv(HW_x, t)
    if B * n_hw < 2 and HW_x >= 256:
        t = max(128, _round_down_128(HW_x // 2))
        n_hw = _cdiv(HW_x, t)

    # Hoisted ||w_k||^2, reused by every grid step (constant index_map block).
    wsq = jnp.sum(weight * weight, axis=1)[None, :]            # (1, K)

    if fuse_transpose:
        xin = x3                                                # (B, C, HW_x)
        x_spec = pl.BlockSpec((1, C, t), lambda b, j: (b, 0, j))
    else:
        # Fallback: wrapper-side transpose (extra HBM pass), only used if the
        # in-kernel XLU transpose is unsupported by the local toolchain.
        xin = jnp.transpose(x3, (0, 2, 1))                      # (B, HW_x, C)
        x_spec = pl.BlockSpec((1, t, C), lambda b, j: (b, j, 0))

    kernel = functools.partial(_vq_kernel, hw_valid=HW, dist_dtype=dist_dtype,
                               channels_major=fuse_transpose)

    q3, idx3, sqsum = pl.pallas_call(
        kernel,
        out_shape=(jax.ShapeDtypeStruct((B, HW_x, C), jnp.float32),
                   jax.ShapeDtypeStruct((B, 1, n_hw * t), jnp.int32),
                   jax.ShapeDtypeStruct((B, n_hw, 1, 1), jnp.float32)),
        grid_spec=pltpu.PrefetchScalarGridSpec(
            num_scalar_prefetch=0,
            grid=(B, n_hw),
            in_specs=[x_spec,
                      pl.BlockSpec((K, C), lambda b, j: (0, 0)),
                      pl.BlockSpec((1, K), lambda b, j: (0, 0))],
            out_specs=(pl.BlockSpec((1, t, C), lambda b, j: (b, j, 0)),
                       pl.BlockSpec((1, 1, t), lambda b, j: (b, 0, j)),
                       pl.BlockSpec((1, 1, 1, 1), lambda b, j: (b, j, 0, 0)))),
        compiler_params=pltpu.CompilerParams(
            dimension_semantics=("parallel", "parallel"),
            vmem_limit_bytes=32 * 1024 * 1024),
    )(xin, weight, wsq)

    # The reference does `.view(x.shape)` on the NHWC-flat quantized buffer
    # (no permute back), so a plain row-major reshape reproduces it exactly.
    q_rows = q3 if HW_x == HW else q3[:, :HW, :]
    quantized = q_rows.reshape(B, C, H, W)

    encoding_indices = idx3[:, 0, :HW].reshape(B, H, W)

    # loss = mse(q.detach(), x) * cc + mse(q, x.detach()); forward value is
    # (1 + cc) * mean((q - x)^2), assembled from the in-kernel partial sums.
    mse = jnp.sum(sqsum) / (N * C)
    loss = mse * commitment_cost + mse

    # Straight-through estimator: the forward value of x + (q - x).detach()
    # is `quantized` itself, so return the kernel output directly (saves a
    # third full activation-sized HBM pass and is bit-exact to codebook rows).
    # TODO(synk): wrap in jax.custom_vjp to route gradients straight through
    # to x (plus codebook/commitment grads) when training support is needed.
    return quantized, loss, encoding_indices


if __name__ == "__main__":
    key = jax.random.PRNGKey(0)
    k_x, k_w = jax.random.split(key)

    # Shapes consistent with the module: embedding_dim=64 channels,
    # num_embeddings=512 codebook entries.
    K, C = 512, 64
    commitment_cost = 0.25

    # nn.Embedding weight init: uniform(-1/num_embeddings, 1/num_embeddings).
    weight = jax.random.uniform(k_w, (K, C), dtype=jnp.float32,
                                minval=-1.0 / K, maxval=1.0 / K)

    def bf16_round(a):
        a32 = jnp.asarray(a, jnp.float32).astype(jnp.bfloat16).astype(jnp.float32)
        return np.asarray(a32).astype(np.float64)

    wn32 = np.asarray(weight)
    wn = wn32.astype(np.float64)
    wb = bf16_round(wn32)
    wsq32 = np.asarray(jnp.sum(weight * weight, axis=1)).astype(np.float64)

    # Case 0: two batches x one 256-row tile.  Case 1: tiny spatial extent
    # (H*W = 36 < 128, padded lane dim).  Case 2: single batch -> tile split
    # in two so a dual-TensorCore (v7x) grid still gets >= 2 parallel steps.
    for case, (B, H, W) in enumerate([(2, 16, 16), (2, 6, 6), (1, 16, 16)]):
        x = jax.random.normal(jax.random.fold_in(k_x, case),
                              (B, C, H, W), dtype=jnp.float32)

        try:
            quantized, loss, indices = vector_quantizer_forward(
                x, weight, commitment_cost=commitment_cost)
        except Exception:
            # Graceful degradation if the in-kernel XLU transpose does not
            # lower on this toolchain: retry with a wrapper-side transpose.
            quantized, loss, indices = vector_quantizer_forward(
                x, weight, commitment_cost=commitment_cost,
                fuse_transpose=False)
        jax.block_until_ready((quantized, loss, indices))

        # ---- correctness checks vs. host references ----
        xn = np.asarray(x).astype(np.float64)
        flat = np.transpose(xn, (0, 2, 3, 1)).reshape(-1, C)      # (N, C)
        N = flat.shape[0]
        rows = np.arange(N)
        idx_k = np.asarray(indices).reshape(-1)
        assert idx_k.min() >= 0 and idx_k.max() < K

        # Kernel-faithful distance: f32 ||w||^2 - 2 * (bf16 x) . (bf16 w)^T.
        d_kern = wsq32[None, :] - 2.0 * bf16_round(flat) @ wb.T
        idx_ref = d_kern.argmin(axis=1)
        best2 = np.partition(d_kern, 1, axis=1)
        clear = (best2[:, 1] - best2[:, 0]) > 1e-5
        np.testing.assert_array_equal(idx_k[clear], idx_ref[clear])
        assert np.all(d_kern[rows, idx_k] <= d_kern.min(axis=1) + 1e-6), \
            "kernel selected a non-nearest codebook entry (kernel metric)"

        # Sanity vs. the exact f64 cdist: bf16 input rounding can only move
        # the choice within a tiny distance band.
        d_exact = ((flat ** 2).sum(1)[:, None] - 2.0 * flat @ wn.T
                   + (wn ** 2).sum(1)[None, :])
        assert np.all(d_exact[rows, idx_k] <= d_exact.min(axis=1) + 2e-2), \
            "kernel selection too far from the true nearest codebook entry"

        # Quantized forward value == codebook rows (NHWC-flat) viewed as NCHW.
        q_ref = wn32[idx_k].reshape(B, C, H, W)
        np.testing.assert_allclose(np.asarray(quantized), q_ref,
                                   rtol=1e-5, atol=1e-6)

        # loss == (1 + commitment_cost) * mse(quantized_view, x), with the
        # squared-error reduction fused into the kernel.
        loss_ref = (1.0 + commitment_cost) * np.mean((wn[idx_k] - flat) ** 2)
        np.testing.assert_allclose(float(loss), loss_ref, rtol=5e-4, atol=1e-7)

        assert indices.shape == (B, H, W)
        assert quantized.shape == x.shape

    print("KERNEL_OK")
</pallas_src>

<mosaic_0001>
module attributes {stable_mosaic.version = 11 : i64} {
  func.func @_vq_kernel(%arg0: i32, %arg1: i32, %arg2: memref<1x64x256xf32, #tpu.memory_space<vmem>>, %arg3: memref<512x64xf32, #tpu.memory_space<vmem>>, %arg4: memref<1x512xf32, #tpu.memory_space<vmem>>, %arg5: memref<1x256x64xf32, #tpu.memory_space<vmem>>, %arg6: memref<1x1x256xi32, #tpu.memory_space<vmem>>, %arg7: memref<1x1x1x1xf32, #tpu.memory_space<vmem>>) attributes {dimension_semantics = [#tpu.dimension_semantics<parallel>, #tpu.dimension_semantics<parallel>], iteration_bounds = array<i64: 2, 1>, scalar_prefetch = 0 : i64, scratch_operands = 0 : i64, tpu.core_type = #tpu.core_type<tc>, window_params = [{transform_indices = @transform_0, window_bounds = array<i64: 1, 64, 256>}, {pipeline_mode = #tpu.pipeline_mode<synchronous>, transform_indices = @transform_1, window_bounds = array<i64: 512, 64>}, {pipeline_mode = #tpu.pipeline_mode<synchronous>, transform_indices = @transform_2, window_bounds = array<i64: 1, 512>}, {transform_indices = @transform_3, window_bounds = array<i64: 1, 256, 64>}, {transform_indices = @transform_4, window_bounds = array<i64: 1, 1, 256>}, {transform_indices = @transform_5, window_bounds = array<i64: 1, 1, 1, 1>}]} {
    %c0 = arith.constant 0 : index
    %c0_0 = arith.constant 0 : index
    %0 = vector.load %arg3[%c0, %c0_0] : memref<512x64xf32, #tpu.memory_space<vmem>>, vector<512x64xf32>
    %c0_1 = arith.constant 0 : index
    %c0_2 = arith.constant 0 : index
    %c0_3 = arith.constant 0 : index
    %1 = vector.load %arg2[%c0_1, %c0_2, %c0_3] : memref<1x64x256xf32, #tpu.memory_space<vmem>>, vector<1x64x256xf32>
    %2 = vector.shape_cast %1 : vector<1x64x256xf32> to vector<64x256xf32>
    %3 = tpu.transpose %2, [1, 0] : vector<64x256xf32> -> vector<256x64xf32>
    %4 = arith.truncf %3 : vector<256x64xf32> to vector<256x64xbf16>
    %5 = arith.truncf %0 : vector<512x64xf32> to vector<512x64xbf16>
    %cst = arith.constant dense<0.000000e+00> : vector<256x512xf32>
    %6 = tpu.matmul %4, %5, %cst {dimension_numbers = #tpu.dot_dimension_numbers<[1], [1], [0], [0], [0, 0, 1, 0], [], []>} : vector<256x64xbf16>, vector<512x64xbf16>, vector<256x512xf32> -> vector<256x512xf32>
    %c0_4 = arith.constant 0 : index
    %c0_5 = arith.constant 0 : index
    %7 = vector.load %arg4[%c0_4, %c0_5] : memref<1x512xf32, #tpu.memory_space<vmem>>, vector<1x512xf32>
    %cst_6 = arith.constant 2.000000e+00 : f32
    %8 = vector.broadcast %cst_6 : f32 to vector<256x512xf32>
    %9 = arith.mulf %8, %6 : vector<256x512xf32>
    %10 = vector.broadcast %7 : vector<1x512xf32> to vector<256x512xf32>
    %11 = arith.subf %10, %9 : vector<256x512xf32>
    %12 = tpu.reduce_index %11 {axis = 1 : i32, kind = #tpu.reduction_kind<arg_min>} : vector<256x512xf32> -> vector<256xi32>
    %13 = tpu.iota {dimensions = array<i32: 1>} : vector<256x512xi32>
    %14 = vector.shape_cast %12 : vector<256xi32> to vector<256x1xi32>
    %15 = vector.broadcast %14 : vector<256x1xi32> to vector<256x512xi32>
    %16 = arith.cmpi eq, %13, %15 : vector<256x512xi32>
    %17 = arith.extui %16 : vector<256x512xi1> to vector<256x512xi32>
    %18 = arith.sitofp %17 : vector<256x512xi32> to vector<256x512xf32>
    %cst_7 = arith.constant dense<0.000000e+00> : vector<256x64xf32>
    %19 = tpu.matmul %18, %0, %cst_7 {dimension_numbers = #tpu.dot_dimension_numbers<[1], [0], [0], [1], [0, 0, 1, 1], [], []>} : vector<256x512xf32>, vector<512x64xf32>, vector<256x64xf32> -> vector<256x64xf32>
    %20 = vector.shape_cast %19 : vector<256x64xf32> to vector<1x256x64xf32>
    %c0_8 = arith.constant 0 : index
    %c0_9 = arith.constant 0 : index
    %c0_10 = arith.constant 0 : index
    %21 = vector.load %arg5[%c0_8, %c0_9, %c0_10] : memref<1x256x64xf32, #tpu.memory_space<vmem>>, vector<1x256x64xf32>
    tpu.vector_store %arg5[%c0_8, %c0_9, %c0_10], %20 {strides = array<i32>} : memref<1x256x64xf32, #tpu.memory_space<vmem>>, vector<1x256x64xf32>,
    %22 = vector.shape_cast %12 : vector<256xi32> to vector<1x1x256xi32>
    %c0_11 = arith.constant 0 : index
    %c0_12 = arith.constant 0 : index
    %c0_13 = arith.constant 0 : index
    %23 = vector.load %arg6[%c0_11, %c0_12, %c0_13] : memref<1x1x256xi32, #tpu.memory_space<vmem>>, vector<1x1x256xi32>
    tpu.vector_store %arg6[%c0_11, %c0_12, %c0_13], %22 {strides = array<i32>} : memref<1x1x256xi32, #tpu.memory_space<vmem>>, vector<1x1x256xi32>,
    %c256_i32 = arith.constant 256 : i32
    %24 = arith.muli %arg1, %c256_i32 : i32
    %25 = tpu.iota {dimensions = array<i32: 0>} : vector<256x1xi32>
    %26 = vector.broadcast %24 : i32 to vector<256x1xi32>
    %27 = arith.addi %26, %25 : vector<256x1xi32>
    %28 = arith.subf %19, %3 : vector<256x64xf32>
    %c256_i32_14 = arith.constant 256 : i32
    %29 = vector.broadcast %c256_i32_14 : i32 to vector<256x1xi32>
    %30 = arith.cmpi slt, %27, %29 : vector<256x1xi32>
    %31 = arith.mulf %28, %28 : vector<256x64xf32>
    %cst_15 = arith.constant 0.000000e+00 : f32
    %32 = vector.shape_cast %30 : vector<256x1xi1> to vector<256x1xi1>
    %33 = vector.broadcast %32 : vector<256x1xi1> to vector<256x64xi1>
    %34 = vector.broadcast %cst_15 : f32 to vector<256x64xf32>
    %35 = arith.select %33, %31, %34 : vector<256x64xi1>, vector<256x64xf32>
    %36 = vector.shape_cast %35 : vector<256x64xf32> to vector<1x256x64xf32>
    %cst_16 = arith.constant dense<0.000000e+00> : vector<1xf32>
    %37 = vector.multi_reduction <add>, %36, %cst_16 [1, 2] : vector<1x256x64xf32> to vector<1xf32>
    %38 = vector.shape_cast %37 : vector<1xf32> to vector<1x1x1xf32>
    %39 = vector.extract %38[0, 0, 0] : f32 from vector<1x1x1xf32>
    %40 = vector.broadcast %39 : f32 to vector<1x1x1x1xf32>
    %c0_17 = arith.constant 0 : index
    %c0_18 = arith.constant 0 : index
    %c0_19 = arith.constant 0 : index
    %c0_20 = arith.constant 0 : index
    %41 = vector.load %arg7[%c0_17, %c0_18, %c0_19, %c0_20] : memref<1x1x1x1xf32, #tpu.memory_space<vmem>>, vector<1x1x1x1xf32>
    tpu.vector_store %arg7[%c0_17, %c0_18, %c0_19, %c0_20], %40 {strides = array<i32>} : memref<1x1x1x1xf32, #tpu.memory_space<vmem>>, vector<1x1x1x1xf32>,
    return
  }
  func.func @transform_0(%arg0: i32, %arg1: i32) -> (i32, i32, i32) {
    %c0_i32 = arith.constant 0 : i32
    %c0_i32_0 = arith.constant 0 : i32
    return %arg0, %c0_i32, %arg1 : i32, i32, i32
  }
  func.func @transform_1(%arg0: i32, %arg1: i32) -> (i32, i32) {
    %c0_i32 = arith.constant 0 : i32
    %c0_i32_0 = arith.constant 0 : i32
    %c0_i32_1 = arith.constant 0 : i32
    return %c0_i32, %c0_i32_0 : i32, i32
  }
  func.func @transform_2(%arg0: i32, %arg1: i32) -> (i32, i32) {
    %c0_i32 = arith.constant 0 : i32
    %c0_i32_0 = arith.constant 0 : i32
    %c0_i32_1 = arith.constant 0 : i32
    return %c0_i32, %c0_i32_0 : i32, i32
  }
  func.func @transform_3(%arg0: i32, %arg1: i32) -> (i32, i32, i32) {
    %c0_i32 = arith.constant 0 : i32
    %c0_i32_0 = arith.constant 0 : i32
    return %arg0, %arg1, %c0_i32 : i32, i32, i32
  }
  func.func @transform_4(%arg0: i32, %arg1: i32) -> (i32, i32, i32) {
    %c0_i32 = arith.constant 0 : i32
    %c0_i32_0 = arith.constant 0 : i32
    return %arg0, %c0_i32, %arg1 : i32, i32, i32
  }
  func.func @transform_5(%arg0: i32, %arg1: i32) -> (i32, i32, i32, i32) {
    %c0_i32 = arith.constant 0 : i32
    %c0_i32_0 = arith.constant 0 : i32
    %c0_i32_1 = arith.constant 0 : i32
    return %arg0, %arg1, %c0_i32, %c0_i32_0 : i32, i32, i32, i32
  }
}

module attributes {stable_mosaic.version = 11 : i64} {
  func.func @_vq_kernel(%arg0: i32, %arg1: i32, %arg2: memref<1x256x64xf32, #tpu.memory_space<vmem>>, %arg3: memref<512x64xf32, #tpu.memory_space<vmem>>, %arg4: memref<1x512xf32, #tpu.memory_space<vmem>>, %arg5: memref<1x256x64xf32, #tpu.memory_space<vmem>>, %arg6: memref<1x1x256xi32, #tpu.memory_space<vmem>>, %arg7: memref<1x1x1x1xf32, #tpu.memory_space<vmem>>) attributes {dimension_semantics = [#tpu.dimension_semantics<parallel>, #tpu.dimension_semantics<parallel>], iteration_bounds = array<i64: 2, 1>, scalar_prefetch = 0 : i64, scratch_operands = 0 : i64, tpu.core_type = #tpu.core_type<tc>, window_params = [{transform_indices = @transform_0, window_bounds = array<i64: 1, 256, 64>}, {pipeline_mode = #tpu.pipeline_mode<synchronous>, transform_indices = @transform_1, window_bounds = array<i64: 512, 64>}, {pipeline_mode = #tpu.pipeline_mode<synchronous>, transform_indices = @transform_2, window_bounds = array<i64: 1, 512>}, {transform_indices = @transform_3, window_bounds = array<i64: 1, 256, 64>}, {transform_indices = @transform_4, window_bounds = array<i64: 1, 1, 256>}, {transform_indices = @transform_5, window_bounds = array<i64: 1, 1, 1, 1>}]} {
    %c0 = arith.constant 0 : index
    %c0_0 = arith.constant 0 : index
    %0 = vector.load %arg3[%c0, %c0_0] : memref<512x64xf32, #tpu.memory_space<vmem>>, vector<512x64xf32>
    %c0_1 = arith.constant 0 : index
    %c0_2 = arith.constant 0 : index
    %c0_3 = arith.constant 0 : index
    %1 = vector.load %arg2[%c0_1, %c0_2, %c0_3] : memref<1x256x64xf32, #tpu.memory_space<vmem>>, vector<1x256x64xf32>
    %2 = vector.shape_cast %1 : vector<1x256x64xf32> to vector<256x64xf32>
    %3 = arith.truncf %2 : vector<256x64xf32> to vector<256x64xbf16>
    %4 = arith.truncf %0 : vector<512x64xf32> to vector<512x64xbf16>
    %cst = arith.constant dense<0.000000e+00> : vector<256x512xf32>
    %5 = tpu.matmul %3, %4, %cst {dimension_numbers = #tpu.dot_dimension_numbers<[1], [1], [0], [0], [0, 0, 1, 0], [], []>} : vector<256x64xbf16>, vector<512x64xbf16>, vector<256x512xf32> -> vector<256x512xf32>
    %c0_4 = arith.constant 0 : index
    %c0_5 = arith.constant 0 : index
    %6 = vector.load %arg4[%c0_4, %c0_5] : memref<1x512xf32, #tpu.memory_space<vmem>>, vector<1x512xf32>
    %cst_6 = arith.constant 2.000000e+00 : f32
    %7 = vector.broadcast %cst_6 : f32 to vector<256x512xf32>
    %8 = arith.mulf %7, %5 : vector<256x512xf32>
    %9 = vector.broadcast %6 : vector<1x512xf32> to vector<256x512xf32>
    %10 = arith.subf %9, %8 : vector<256x512xf32>
    %11 = tpu.reduce_index %10 {axis = 1 : i32, kind = #tpu.reduction_kind<arg_min>} : vector<256x512xf32> -> vector<256xi32>
    %12 = tpu.iota {dimensions = array<i32: 1>} : vector<256x512xi32>
    %13 = vector.shape_cast %11 : vector<256xi32> to vector<256x1xi32>
    %14 = vector.broadcast %13 : vector<256x1xi32> to vector<256x512xi32>
    %15 = arith.cmpi eq, %12, %14 : vector<256x512xi32>
    %16 = arith.extui %15 : vector<256x512xi1> to vector<256x512xi32>
    %17 = arith.sitofp %16 : vector<256x512xi32> to vector<256x512xf32>
    %cst_7 = arith.constant dense<0.000000e+00> : vector<256x64xf32>
    %18 = tpu.matmul %17, %0, %cst_7 {dimension_numbers = #tpu.dot_dimension_numbers<[1], [0], [0], [1], [0, 0, 1, 1], [], []>} : vector<256x512xf32>, vector<512x64xf32>, vector<256x64xf32> -> vector<256x64xf32>
    %19 = vector.shape_cast %18 : vector<256x64xf32> to vector<1x256x64xf32>
    %c0_8 = arith.constant 0 : index
    %c0_9 = arith.constant 0 : index
    %c0_10 = arith.constant 0 : index
    %20 = vector.load %arg5[%c0_8, %c0_9, %c0_10] : memref<1x256x64xf32, #tpu.memory_space<vmem>>, vector<1x256x64xf32>
    tpu.vector_store %arg5[%c0_8, %c0_9, %c0_10], %19 {strides = array<i32>} : memref<1x256x64xf32, #tpu.memory_space<vmem>>, vector<1x256x64xf32>,
    %21 = vector.shape_cast %11 : vector<256xi32> to vector<1x1x256xi32>
    %c0_11 = arith.constant 0 : index
    %c0_12 = arith.constant 0 : index
    %c0_13 = arith.constant 0 : index
    %22 = vector.load %arg6[%c0_11, %c0_12, %c0_13] : memref<1x1x256xi32, #tpu.memory_space<vmem>>, vector<1x1x256xi32>
    tpu.vector_store %arg6[%c0_11, %c0_12, %c0_13], %21 {strides = array<i32>} : memref<1x1x256xi32, #tpu.memory_space<vmem>>, vector<1x1x256xi32>,
    %c256_i32 = arith.constant 256 : i32
    %23 = arith.muli %arg1, %c256_i32 : i32
    %24 = tpu.iota {dimensions = array<i32: 0>} : vector<256x1xi32>
    %25 = vector.broadcast %23 : i32 to vector<256x1xi32>
    %26 = arith.addi %25, %24 : vector<256x1xi32>
    %27 = arith.subf %18, %2 : vector<256x64xf32>
    %c256_i32_14 = arith.constant 256 : i32
    %28 = vector.broadcast %c256_i32_14 : i32 to vector<256x1xi32>
    %29 = arith.cmpi slt, %26, %28 : vector<256x1xi32>
    %30 = arith.mulf %27, %27 : vector<256x64xf32>
    %cst_15 = arith.constant 0.000000e+00 : f32
    %31 = vector.shape_cast %29 : vector<256x1xi1> to vector<256x1xi1>
    %32 = vector.broadcast %31 : vector<256x1xi1> to vector<256x64xi1>
    %33 = vector.broadcast %cst_15 : f32 to vector<256x64xf32>
    %34 = arith.select %32, %30, %33 : vector<256x64xi1>, vector<256x64xf32>
    %35 = vector.shape_cast %34 : vector<256x64xf32> to vector<1x256x64xf32>
    %cst_16 = arith.constant dense<0.000000e+00> : vector<1xf32>
    %36 = vector.multi_reduction <add>, %35, %cst_16 [1, 2] : vector<1x256x64xf32> to vector<1xf32>
    %37 = vector.shape_cast %36 : vector<1xf32> to vector<1x1x1xf32>
    %38 = vector.extract %37[0, 0, 0] : f32 from vector<1x1x1xf32>
    %39 = vector.broadcast %38 : f32 to vector<1x1x1x1xf32>
    %c0_17 = arith.constant 0 : index
    %c0_18 = arith.constant 0 : index
    %c0_19 = arith.constant 0 : index
    %c0_20 = arith.constant 0 : index
    %40 = vector.load %arg7[%c0_17, %c0_18, %c0_19, %c0_20] : memref<1x1x1x1xf32, #tpu.memory_space<vmem>>, vector<1x1x1x1xf32>
    tpu.vector_store %arg7[%c0_17, %c0_18, %c0_19, %c0_20], %39 {strides = array<i32>} : memref<1x1x1x1xf32, #tpu.memory_space<vmem>>, vector<1x1x1x1xf32>,
    return
  }
  func.func @transform_0(%arg0: i32, %arg1: i32) -> (i32, i32, i32) {
    %c0_i32 = arith.constant 0 : i32
    %c0_i32_0 = arith.constant 0 : i32
    return %arg0, %arg1, %c0_i32 : i32, i32, i32
  }
  func.func @transform_1(%arg0: i32, %arg1: i32) -> (i32, i32) {
    %c0_i32 = arith.constant 0 : i32
    %c0_i32_0 = arith.constant 0 : i32
    %c0_i32_1 = arith.constant 0 : i32
    return %c0_i32, %c0_i32_0 : i32, i32
  }
  func.func @transform_2(%arg0: i32, %arg1: i32) -> (i32, i32) {
    %c0_i32 = arith.constant 0 : i32
    %c0_i32_0 = arith.constant 0 : i32
    %c0_i32_1 = arith.constant 0 : i32
    return %c0_i32, %c0_i32_0 : i32, i32
  }
  func.func @transform_3(%arg0: i32, %arg1: i32) -> (i32, i32, i32) {
    %c0_i32 = arith.constant 0 : i32
    %c0_i32_0 = arith.constant 0 : i32
    return %arg0, %arg1, %c0_i32 : i32, i32, i32
  }
  func.func @transform_4(%arg0: i32, %arg1: i32) -> (i32, i32, i32) {
    %c0_i32 = arith.constant 0 : i32
    %c0_i32_0 = arith.constant 0 : i32
    return %arg0, %c0_i32, %arg1 : i32, i32, i32
  }
  func.func @transform_5(%arg0: i32, %arg1: i32) -> (i32, i32, i32, i32) {
    %c0_i32 = arith.constant 0 : i32
    %c0_i32_0 = arith.constant 0 : i32
    %c0_i32_1 = arith.constant 0 : i32
    return %arg0, %arg1, %c0_i32, %c0_i32_0 : i32, i32, i32, i32
  }
}

</mosaic_0001>

<llo_original>
// kernel: tpu_custom_call.1
$region0: #{tpu_custom_call.1}
  #allocation0 [shape = 'u32[]', space=smem, size = 0x4, offset = 0x4, fixed_abs, tag = 'smem constant byte address 0x4 - core index']
  #allocation1 [shape = 'u32[144,128]{1,0:T(1,128)}', space=vmem, size = 0x12000, scoped, tag = 'internal scratch']
  %s0 = inlined_call_operand.vmem [shape: f32[2,64,256], index: 0, kind: input, shape index: {}]
  %s1 = inlined_call_operand.vmem [shape: f32[512,64], index: 1, kind: input, shape index: {}]
  %s2 = inlined_call_operand.vmem [shape: f32[1,512], index: 2, kind: input, shape index: {}]
  %s3 = inlined_call_operand.vmem [shape: f32[2,256,64], index: 3, kind: output, shape index: {0}]
  %s4 = inlined_call_operand.hbm [shape: s32[2,1,256], index: 4, kind: output, shape index: {1}]
  %s5 = inlined_call_operand.vmem [shape: f32[2,1,1,1], index: 5, kind: output, shape index: {2}]
  %6 = xla_tuple %s3, %s4, %s5
  %s7 = sld [smem:[#allocation0]]
  $region61: #{tpu_custom_call.1} parent=0
    _
  %s9 = ssub.s32 1, %s7
  %s10 = scalar_select 0, %s9, %s7
  $region1: #{tpu_custom_call.1} parent=0
    #allocation2 [shape = 'u8[2048]{0}', space=vmem, size = 0x800, scoped, tag = 'output window, operand 1']
    #allocation3 [shape = 's32[2]{0}', space=sflag, size = 0x8, scoped, tag = 'scoped memory for tpu_custom_call.1']
    %11 = vsyncpa [#allocation3], 0
    %s12 = scalar_lea.sflag [#allocation3], 1
    %13 = vsyncpa %s12, 0
    loop: start=0, step=1, limit=4
    $region2: #{tpu_custom_call.1} parent=1 // loop_pre_header
      _
    $region3: #{tpu_custom_call.1} parent=1 // loop_header
      %s15 = sphi 0, %s19
      %p16 = scmp.ge.s32.totalorder %s15, 4
      %s22 = sphi 0, %s34
      %s23 = sphi 0, %s30
      %s24 = sphi 0, %s22
      %s25 = sphi 0, %s23
      %s26 = sphi 0, %s24
      %s27 = sphi 0, %s25
      %s39 = sphi 0, %s41
      %s42 = sphi 0, %s39
      %s43 = sphi 0, %s42
      %s59 = sphi 0, %s43
      %s63 = sphi 0, %s63
      %s65 = sphi 0, %s63
      %s66 = sphi 0, %s65
      %s80 = sphi 0, %s66
      %s84 = sphi 0, %s84
      %s86 = sphi 0, %s84
      %s87 = sphi 0, %s86
      %s101 = sphi 0, %s87
      %s109 = sphi 0, %s111
      %s112 = sphi 0, %s109
      %s113 = sphi 0, %s112
      %s129 = sphi 0, %s113
      %s137 = sphi 0, %s139
      %s140 = sphi 0, %s137
      %s141 = sphi 0, %s140
      %s157 = sphi 0, %s141
      %s165 = sphi 0, %s167
      %s168 = sphi 0, %s165
      %s169 = sphi 0, %s168
      %s185 = sphi 0, %s169
    $region4: #{tpu_custom_call.1} parent=1 // loop_header_branch
      %18 = sbr.rel (%p16) target = $region8
    $region5: #{tpu_custom_call.1} parent=1 // loop_body
      %s20 = ssub.s32 %s15, 1
      %s21 = ssub.s32 %s15, 2
      %s28 = sadd.s32 1, %s23
      %p29 = scmp.ge.s32.totalorder %s28, 1
      %s30 = scalar_select %p29, 0, %s28
      %s31 = sadd.s32 1, %s22
      %s32 = scalar_select %p29, %s31, %s22
      %p33 = scmp.ge.s32.totalorder %s32, 2
      %s34 = scalar_select %p33, 0, %s32
      %s35 = ssub.s32 %s22, %s34
      %s36 = ssub.s32 %s23, %s30
      %s37 = sor.u32 %s35, %s36
      %p38 = scmp.eq.s32.totalorder %s37, 0
      %s40 = sadd.s32 %s39, 1
      %s41 = scalar_select %p38, %s39, %s40
      %p44 = pneg %p38
      %p45 = scmp.eq.s32.totalorder %s15, 1
      %p46 = por %p44, %p45
      %p47 = scmp.ne.s32.totalorder %s39, %s42
      %p48 = scmp.eq.s32.totalorder %s15, 0
      %p49 = por %p47, %p48
      %p50 = scmp.ne.s32.totalorder %s39, %s42
      %p51 = scmp.eq.s32.totalorder %s20, 1
      %p52 = por %p50, %p51
      %p53 = scmp.ne.s32.totalorder %s42, %s43
      %p54 = scmp.eq.s32.totalorder %s20, 0
      %p55 = por %p53, %p54
      %p56 = scmp.ne.s32.totalorder %s42, %s43
      %p57 = scmp.eq.s32.totalorder %s21, 1
      %p58 = por %p56, %p57
      %p60 = scmp.ne.s32.totalorder %s43, %s59
      %p61 = scmp.eq.s32.totalorder %s21, 0
      %p62 = por %p60, %p61
      %s64 = sadd.s32 %s63, 1
      %p67 = scmp.eq.s32.totalorder %s15, 1
      %p68 = scmp.ne.s32.totalorder %s63, %s65
      %p69 = scmp.eq.s32.totalorder %s15, 0
      %p70 = por %p68, %p69
      %p71 = scmp.ne.s32.totalorder %s63, %s65
      %p72 = scmp.eq.s32.totalorder %s20, 1
      %p73 = por %p71, %p72
      %p74 = scmp.ne.s32.totalorder %s65, %s66
      %p75 = scmp.eq.s32.totalorder %s20, 0
      %p76 = por %p74, %p75
      %p77 = scmp.ne.s32.totalorder %s65, %s66
      %p78 = scmp.eq.s32.totalorder %s21, 1
      %p79 = por %p77, %p78
      %p81 = scmp.ne.s32.totalorder %s66, %s80
      %p82 = scmp.eq.s32.totalorder %s21, 0
      %p83 = por %p81, %p82
      %s85 = sadd.s32 %s84, 1
      %p88 = scmp.eq.s32.totalorder %s15, 1
      %p89 = scmp.ne.s32.totalorder %s84, %s86
      %p90 = scmp.eq.s32.totalorder %s15, 0
      %p91 = por %p89, %p90
      %p92 = scmp.ne.s32.totalorder %s84, %s86
      %p93 = scmp.eq.s32.totalorder %s20, 1
      %p94 = por %p92, %p93
      %p95 = scmp.ne.s32.totalorder %s86, %s87
      %p96 = scmp.eq.s32.totalorder %s20, 0
      %p97 = por %p95, %p96
      %p98 = scmp.ne.s32.totalorder %s86, %s87
      %p99 = scmp.eq.s32.totalorder %s21, 1
      %p100 = por %p98, %p99
      %p102 = scmp.ne.s32.totalorder %s87, %s101
      %p103 = scmp.eq.s32.totalorder %s21, 0
      %p104 = por %p102, %p103
      %s105 = ssub.s32 %s22, %s34
      %s106 = ssub.s32 %s23, %s30
      %s107 = sor.u32 %s105, %s106
      %p108 = scmp.eq.s32.totalorder %s107, 0
      %s110 = sadd.s32 %s109, 1
      %s111 = scalar_select %p108, %s109, %s110
      %p114 = pneg %p108
      %p115 = scmp.eq.s32.totalorder %s15, 1
      %p116 = por %p114, %p115
      %p117 = scmp.ne.s32.totalorder %s109, %s112
      %p118 = scmp.eq.s32.totalorder %s15, 0
      %p119 = por %p117, %p118
      %p120 = scmp.ne.s32.totalorder %s109, %s112
      %p121 = scmp.eq.s32.totalorder %s20, 1
      %p122 = por %p120, %p121
      %p123 = scmp.ne.s32.totalorder %s112, %s113
      %p124 = scmp.eq.s32.totalorder %s20, 0
      %p125 = por %p123, %p124
      %p126 = scmp.ne.s32.totalorder %s112, %s113
      %p127 = scmp.eq.s32.totalorder %s21, 1
      %p128 = por %p126, %p127
      %p130 = scmp.ne.s32.totalorder %s113, %s129
      %p131 = scmp.eq.s32.totalorder %s21, 0
      %p132 = por %p130, %p131
      %s133 = ssub.s32 %s22, %s34
      %s134 = ssub.s32 %s23, %s30
      %s135 = sor.u32 %s133, %s134
      %p136 = scmp.eq.s32.totalorder %s135, 0
      %s138 = sadd.s32 %s137, 1
      %s139 = scalar_select %p136, %s137, %s138
      %p142 = pneg %p136
      %p143 = scmp.eq.s32.totalorder %s15, 1
      %p144 = por %p142, %p143
      %p145 = scmp.ne.s32.totalorder %s137, %s140
      %p146 = scmp.eq.s32.totalorder %s15, 0
      %p147 = por %p145, %p146
      %p148 = scmp.ne.s32.totalorder %s137, %s140
      %p149 = scmp.eq.s32.totalorder %s20, 1
      %p150 = por %p148, %p149
      %p151 = scmp.ne.s32.totalorder %s140, %s141
      %p152 = scmp.eq.s32.totalorder %s20, 0
      %p153 = por %p151, %p152
      %p154 = scmp.ne.s32.totalorder %s140, %s141
      %p155 = scmp.eq.s32.totalorder %s21, 1
      %p156 = por %p154, %p155
      %p158 = scmp.ne.s32.totalorder %s141, %s157
      %p159 = scmp.eq.s32.totalorder %s21, 0
      %p160 = por %p158, %p159
      %s161 = ssub.s32 %s22, %s34
      %s162 = ssub.s32 %s23, %s30
      %s163 = sor.u32 %s161, %s162
      %p164 = scmp.eq.s32.totalorder %s163, 0
      %s166 = sadd.s32 %s165, 1
      %s167 = scalar_select %p164, %s165, %s166
      %p170 = pneg %p164
      %p171 = scmp.eq.s32.totalorder %s15, 1
      %p172 = por %p170, %p171
      %p173 = scmp.ne.s32.totalorder %s165, %s168
      %p174 = scmp.eq.s32.totalorder %s15, 0
      %p175 = por %p173, %p174
      %p176 = scmp.ne.s32.totalorder %s165, %s168
      %p177 = scmp.eq.s32.totalorder %s20, 1
      %p178 = por %p176, %p177
      %p179 = scmp.ne.s32.totalorder %s168, %s169
      %p180 = scmp.eq.s32.totalorder %s20, 0
      %p181 = por %p179, %p180
      %p182 = scmp.ne.s32.totalorder %s168, %s169
      %p183 = scmp.eq.s32.totalorder %s21, 1
      %p184 = por %p182, %p183
      %p186 = scmp.ne.s32.totalorder %s169, %s185
      %p187 = scmp.eq.s32.totalorder %s21, 0
      %p188 = por %p186, %p187
      %p189 = scmp.le.s32.totalorder 1, %s15
      %p190 = scmp.lt.s32.totalorder %s15, 3
      %p191 = pnand %p189, %p190
      %p192 = pneg %p191
      // Predicated region
      $region9: #{tpu_custom_call.1} parent=5 // pred_check
        _
      $region10: #{tpu_custom_call.1} parent=5 // pred_check_branch
        %194 = sbr.rel (%p191) target = $region12
      $region11: #{tpu_custom_call.1} parent=5 // pred_region
        %s195 = ssub.s32 %s15, 1
        // Predicated region
        $region13: #{tpu_custom_call.1} parent=11 // pred_check
          %p196 = pneg %p76
        $region14: #{tpu_custom_call.1} parent=11 // pred_check_branch
          %198 = sbr.rel (%p196) target = $region16
        $region15: #{tpu_custom_call.1} parent=11 // pred_region
          _
        $region16: #{tpu_custom_call.1} parent=11 // pred_fallthru
          _
        // Predicated region
        $region17: #{tpu_custom_call.1} parent=11 // pred_check
          %p199 = pneg %p97
        $region18: #{tpu_custom_call.1} parent=11 // pred_check_branch
          %201 = sbr.rel (%p199) target = $region20
        $region19: #{tpu_custom_call.1} parent=11 // pred_region
          _
        $region20: #{tpu_custom_call.1} parent=11 // pred_fallthru
          _
      $region12: #{tpu_custom_call.1} parent=5 // pred_fallthru
        _
      %p202 = scmp.lt.s32.totalorder %s15, 2
      // Predicated region
      $region21: #{tpu_custom_call.1} parent=5 // pred_check
        %p203 = pneg %p202
      $region22: #{tpu_custom_call.1} parent=5 // pred_check_branch
        %205 = sbr.rel (%p203) target = $region24
      $region23: #{tpu_custom_call.1} parent=5 // pred_region
        // Predicated region
        $region25: #{tpu_custom_call.1} parent=23 // pred_check
          %p206 = pneg %p49
        $region26: #{tpu_custom_call.1} parent=23 // pred_check_branch
          %208 = sbr.rel (%p206) target = $region28
        $region27: #{tpu_custom_call.1} parent=23 // pred_region
          %s209 = smul.u32 2, %s23
          %p210 = scmp.lt.s32.totalorder %s22, 1
          %s211 = scalar_select %p210, %s22, 1
          %p212 = scmp.lt.s32.totalorder %s209, 1
          %s213 = scalar_select %p212, %s209, 1
          %s214 = smul.addr %s211, 16
          %s215 = sadd.s32 %s213, %s214
          %s216 = smul.addr %s215, 8
          %s217 = scalar_lea.vmem %s0, %s216
          %s218 = smul.u32 2, %s23
        $region28: #{tpu_custom_call.1} parent=23 // pred_fallthru
          _
      $region24: #{tpu_custom_call.1} parent=5 // pred_fallthru
        _
      %p219 = scmp.le.s32.totalorder 1, %s15
      %p220 = scmp.lt.s32.totalorder %s15, 3
      %p221 = pnand %p219, %p220
      %p222 = pneg %p221
      // Predicated region
      $region29: #{tpu_custom_call.1} parent=5 // pred_check
        _
      $region30: #{tpu_custom_call.1} parent=5 // pred_check_branch
        %224 = sbr.rel (%p221) target = $region32
      $region31: #{tpu_custom_call.1} parent=5 // pred_region
        %s225 = ssub.s32 %s15, 1
        %s226 = smul.u32 2, %s25
        %p227 = scmp.lt.s32.totalorder %s24, 1
        %s228 = scalar_select %p227, %s24, 1
        %p229 = scmp.lt.s32.totalorder %s226, 1
        %s230 = scalar_select %p229, %s226, 1
        %s231 = smul.addr %s228, 16
        %s232 = sadd.s32 %s230, %s231
        %s233 = smul.addr %s232, 8
        %s234 = scalar_lea.vmem %s0, %s233
        %p235 = pneg %p55
        %p236 = pneg %p52
        %p237 = pneg %p76
        %p238 = pneg %p73
        %p239 = pneg %p97
        %p240 = pneg %p94
        %p241 = pneg %p125
        %p242 = pneg %p122
        %s243 = smul.u32 32, %s25
        %p244 = scmp.lt.s32.totalorder %s24, 1
        %s245 = scalar_select %p244, %s24, 1
        %p246 = scmp.lt.s32.totalorder %s243, 31
        %s247 = scalar_select %p246, %s243, 31
        %s248 = smul.addr %s245, 32
        %s249 = sadd.s32 %s247, %s248
        %s250 = smul.addr %s249, 8
        %s251 = scalar_lea.vmem %s3, %s250
        %p252 = pneg %p153
        %p253 = pneg %p150
        %s254 = sand.u32 %s140, 1
        %s255 = scalar_lea.sflag [#allocation3], %s254
        %s256 = sand.u32 %s140, 1
        %s257 = smul.addr %s256, 2
        %s258 = scalar_lea.vmem [#allocation2], %s257
        %p259 = pneg %p181
        %p260 = pneg %p178
        %p261 = scmp.lt.s32.totalorder %s24, 1
        %s262 = scalar_select %p261, %s24, 1
        %p263 = scmp.lt.s32.totalorder %s25, 0
        %s264 = scalar_select %p263, %s25, 0
        %s265 = sadd.s32 %s264, %s262
        %s266 = scalar_lea.vmem %s5, %s265
        %s267 = smul.u32 2, %s25
        %p268 = scmp.lt.s32.totalorder %s24, 1
        %s269 = scalar_select %p268, %s24, 1
        %p270 = scmp.lt.s32.totalorder %s267, 1
        %s271 = scalar_select %p270, %s267, 1
        %s272 = smul.addr %s269, 16
        %s273 = sadd.s32 %s271, %s272
        %s274 = smul.addr %s273, 8
        %s275 = scalar_lea.vmem %s0, %s274
        %s276 = smul.u32 2, %s25
        %s277 = smul.u32 32, %s25
        %p278 = scmp.lt.s32.totalorder %s24, 1
        %s279 = scalar_select %p278, %s24, 1
        %p280 = scmp.lt.s32.totalorder %s277, 31
        %s281 = scalar_select %p280, %s277, 31
        %s282 = smul.addr %s279, 32
        %s283 = sadd.s32 %s281, %s282
        %s284 = smul.addr %s283, 8
        %s285 = scalar_lea.vmem %s3, %s284
        %s286 = smul.u32 32, %s25
        %s287 = smul.u32 2, %s25
        %p288 = scmp.lt.s32.totalorder %s24, 1
        %s289 = scalar_select %p288, %s24, 1
        %p290 = scmp.lt.s32.totalorder %s25, 0
        %s291 = scalar_select %p290, %s25, 0
        %s292 = sadd.s32 %s291, %s289
        %s293 = scalar_lea.vmem %s5, %s292
        %v295 = vld [vmem:[%s1] sm:$0xff]
        %v296 = vld [vmem:[%s1 + $0x8] sm:$0xff]
        %v297 = vld [vmem:[%s1 + $0x10] sm:$0xff]
        %v298 = vld [vmem:[%s1 + $0x18] sm:$0xff]
        %v299 = vld [vmem:[%s1 + $0x20] sm:$0xff]
        %v300 = vld [vmem:[%s1 + $0x28] sm:$0xff]
        %v301 = vld [vmem:[%s1 + $0x30] sm:$0xff]
        %v302 = vld [vmem:[%s1 + $0x38] sm:$0xff]
        %v303 = vld [vmem:[%s1 + $0x40] sm:$0xff]
        %v304 = vld [vmem:[%s1 + $0x48] sm:$0xff]
        %v305 = vld [vmem:[%s1 + $0x50] sm:$0xff]
        %v306 = vld [vmem:[%s1 + $0x58] sm:$0xff]
        %v307 = vld [vmem:[%s1 + $0x60] sm:$0xff]
        %v308 = vld [vmem:[%s1 + $0x68] sm:$0xff]
        %v309 = vld [vmem:[%s1 + $0x70] sm:$0xff]
        %v310 = vld [vmem:[%s1 + $0x78] sm:$0xff]
        %v311 = vld [vmem:[%s1 + $0x80] sm:$0xff]
        %v312 = vld [vmem:[%s1 + $0x88] sm:$0xff]
        %v313 = vld [vmem:[%s1 + $0x90] sm:$0xff]
        %v314 = vld [vmem:[%s1 + $0x98] sm:$0xff]
        %v315 = vld [vmem:[%s1 + $0xa0] sm:$0xff]
        %v316 = vld [vmem:[%s1 + $0xa8] sm:$0xff]
        %v317 = vld [vmem:[%s1 + $0xb0] sm:$0xff]
        %v318 = vld [vmem:[%s1 + $0xb8] sm:$0xff]
        %v319 = vld [vmem:[%s1 + $0xc0] sm:$0xff]
        %v320 = vld [vmem:[%s1 + $0xc8] sm:$0xff]
        %v321 = vld [vmem:[%s1 + $0xd0] sm:$0xff]
        %v322 = vld [vmem:[%s1 + $0xd8] sm:$0xff]
        %v323 = vld [vmem:[%s1 + $0xe0] sm:$0xff]
        %v324 = vld [vmem:[%s1 + $0xe8] sm:$0xff]
        %v325 = vld [vmem:[%s1 + $0xf0] sm:$0xff]
        %v326 = vld [vmem:[%s1 + $0xf8] sm:$0xff]
        %v327 = vld [vmem:[%s1 + $0x100] sm:$0xff]
        %v328 = vld [vmem:[%s1 + $0x108] sm:$0xff]
        %v329 = vld [vmem:[%s1 + $0x110] sm:$0xff]
        %v330 = vld [vmem:[%s1 + $0x118] sm:$0xff]
        %v331 = vld [vmem:[%s1 + $0x120] sm:$0xff]
        %v332 = vld [vmem:[%s1 + $0x128] sm:$0xff]
        %v333 = vld [vmem:[%s1 + $0x130] sm:$0xff]
        %v334 = vld [vmem:[%s1 + $0x138] sm:$0xff]
        %v335 = vld [vmem:[%s1 + $0x140] sm:$0xff]
        %v336 = vld [vmem:[%s1 + $0x148] sm:$0xff]
        %v337 = vld [vmem:[%s1 + $0x150] sm:$0xff]
        %v338 = vld [vmem:[%s1 + $0x158] sm:$0xff]
        %v339 = vld [vmem:[%s1 + $0x160] sm:$0xff]
        %v340 = vld [vmem:[%s1 + $0x168] sm:$0xff]
        %v341 = vld [vmem:[%s1 + $0x170] sm:$0xff]
        %v342 = vld [vmem:[%s1 + $0x178] sm:$0xff]
        %v343 = vld [vmem:[%s1 + $0x180] sm:$0xff]
        %v344 = vld [vmem:[%s1 + $0x188] sm:$0xff]
        %v345 = vld [vmem:[%s1 + $0x190] sm:$0xff]
        %v346 = vld [vmem:[%s1 + $0x198] sm:$0xff]
        %v347 = vld [vmem:[%s1 + $0x1a0] sm:$0xff]
        %v348 = vld [vmem:[%s1 + $0x1a8] sm:$0xff]
        %v349 = vld [vmem:[%s1 + $0x1b0] sm:$0xff]
        %v350 = vld [vmem:[%s1 + $0x1b8] sm:$0xff]
        %v351 = vld [vmem:[%s1 + $0x1c0] sm:$0xff]
        %v352 = vld [vmem:[%s1 + $0x1c8] sm:$0xff]
        %v353 = vld [vmem:[%s1 + $0x1d0] sm:$0xff]
        %v354 = vld [vmem:[%s1 + $0x1d8] sm:$0xff]
        %v355 = vld [vmem:[%s1 + $0x1e0] sm:$0xff]
        %v356 = vld [vmem:[%s1 + $0x1e8] sm:$0xff]
        %v357 = vld [vmem:[%s1 + $0x1f0] sm:$0xff]
        %v358 = vld [vmem:[%s1 + $0x1f8] sm:$0xff]
        %v359 = vld [vmem:[%s275] sm:$0xff]
        %v360 = vld [vmem:[%s275 + $0x8] sm:$0xff]
        %v361 = vld [vmem:[%s275 + $0x10] sm:$0xff]
        %v362 = vld [vmem:[%s275 + $0x18] sm:$0xff]
        %v363 = vld [vmem:[%s275 + $0x20] sm:$0xff]
        %v364 = vld [vmem:[%s275 + $0x28] sm:$0xff]
        %v365 = vld [vmem:[%s275 + $0x30] sm:$0xff]
        %v366 = vld [vmem:[%s275 + $0x38] sm:$0xff]
        %v367 = vld [vmem:[%s275 + $0x40] sm:$0xff]
        %v368 = vld [vmem:[%s275 + $0x48] sm:$0xff]
        %v369 = vld [vmem:[%s275 + $0x50] sm:$0xff]
        %v370 = vld [vmem:[%s275 + $0x58] sm:$0xff]
        %v371 = vld [vmem:[%s275 + $0x60] sm:$0xff]
        %v372 = vld [vmem:[%s275 + $0x68] sm:$0xff]
        %v373 = vld [vmem:[%s275 + $0x70] sm:$0xff]
        %v374 = vld [vmem:[%s275 + $0x78] sm:$0xff]
        %375 = vxpose.xlu0.b32.start [1/16] %v359, 128
        %376 = vxpose.xlu0.b32.cont [2/16] %v361, 128
        %377 = vxpose.xlu0.b32.cont [3/16] %v363, 128
        %378 = vxpose.xlu0.b32.cont [4/16] %v365, 128
        %379 = vxpose.xlu0.b32.cont [5/16] %v367, 128
        %380 = vxpose.xlu0.b32.cont [6/16] %v369, 128
        %381 = vxpose.xlu0.b32.cont [7/16] %v371, 128
        %382 = vxpose.xlu0.b32.cont [8/16] %v373, 128
        %383 = vxpose.xlu0.b32.cont [9/16] 0.0, 128
        %384 = vxpose.xlu0.b32.cont [10/16] 0.0, 128
        %385 = vxpose.xlu0.b32.cont [11/16] 0.0, 128
        %386 = vxpose.xlu0.b32.cont [12/16] 0.0, 128
        %387 = vxpose.xlu0.b32.cont [13/16] 0.0, 128
        %388 = vxpose.xlu0.b32.cont [14/16] 0.0, 128
        %389 = vxpose.xlu0.b32.cont [15/16] 0.0, 128
        %390 = vxpose.xlu0.b32.end [16/16] 0.0, 128
        %v391 = vpop.trf.xlu0
        %v392 = vpop.trf.xlu0
        %v393 = vpop.trf.xlu0
        %v394 = vpop.trf.xlu0
        %v395 = vpop.trf.xlu0
        %v396 = vpop.trf.xlu0
        %v397 = vpop.trf.xlu0
        %v398 = vpop.trf.xlu0
        %v399 = vpop.trf.xlu0
        %v400 = vpop.trf.xlu0
        %v401 = vpop.trf.xlu0
        %v402 = vpop.trf.xlu0
        %v403 = vpop.trf.xlu0
        %v404 = vpop.trf.xlu0
        %v405 = vpop.trf.xlu0
        %v406 = vpop.trf.xlu0
        %407 = vxpose.xlu0.b32.start [1/16] %v360, 128
        %408 = vxpose.xlu0.b32.cont [2/16] %v362, 128
        %409 = vxpose.xlu0.b32.cont [3/16] %v364, 128
        %410 = vxpose.xlu0.b32.cont [4/16] %v366, 128
        %411 = vxpose.xlu0.b32.cont [5/16] %v368, 128
        %412 = vxpose.xlu0.b32.cont [6/16] %v370, 128
        %413 = vxpose.xlu0.b32.cont [7/16] %v372, 128
        %414 = vxpose.xlu0.b32.cont [8/16] %v374, 128
        %415 = vxpose.xlu0.b32.cont [9/16] 0.0, 128
        %416 = vxpose.xlu0.b32.cont [10/16] 0.0, 128
        %417 = vxpose.xlu0.b32.cont [11/16] 0.0, 128
        %418 = vxpose.xlu0.b32.cont [12/16] 0.0, 128
        %419 = vxpose.xlu0.b32.cont [13/16] 0.0, 128
        %420 = vxpose.xlu0.b32.cont [14/16] 0.0, 128
        %421 = vxpose.xlu0.b32.cont [15/16] 0.0, 128
        %422 = vxpose.xlu0.b32.end [16/16] 0.0, 128
        %v423 = vpop.trf.xlu0
        %v424 = vpop.trf.xlu0
        %v425 = vpop.trf.xlu0
        %v426 = vpop.trf.xlu0
        %v427 = vpop.trf.xlu0
        %v428 = vpop.trf.xlu0
        %v429 = vpop.trf.xlu0
        %v430 = vpop.trf.xlu0
        %v431 = vpop.trf.xlu0
        %v432 = vpop.trf.xlu0
        %v433 = vpop.trf.xlu0
        %v434 = vpop.trf.xlu0
        %v435 = vpop.trf.xlu0
        %v436 = vpop.trf.xlu0
        %v437 = vpop.trf.xlu0
        %v438 = vpop.trf.xlu0
        %v439 = vpack.c.bf16 %v392, %v391
        %v440 = vpack.c.bf16 %v394, %v393
        %v441 = vpack.c.bf16 %v396, %v395
        %v442 = vpack.c.bf16 %v398, %v397
        %v443 = vpack.c.bf16 %v400, %v399
        %v444 = vpack.c.bf16 %v402, %v401
        %v445 = vpack.c.bf16 %v404, %v403
        %v446 = vpack.c.bf16 %v406, %v405
        %v447 = vpack.c.bf16 %v424, %v423
        %v448 = vpack.c.bf16 %v426, %v425
        %v449 = vpack.c.bf16 %v428, %v427
        %v450 = vpack.c.bf16 %v430, %v429
        %v451 = vpack.c.bf16 %v432, %v431
        %v452 = vpack.c.bf16 %v434, %v433
        %v453 = vpack.c.bf16 %v436, %v435
        %v454 = vpack.c.bf16 %v438, %v437
        %v455 = vpack.c.bf16 %v296, %v295
        %v456 = vpack.c.bf16 %v298, %v297
        %v457 = vpack.c.bf16 %v300, %v299
        %v458 = vpack.c.bf16 %v302, %v301
        %v459 = vpack.c.bf16 %v304, %v303
        %v460 = vpack.c.bf16 %v306, %v305
        %v461 = vpack.c.bf16 %v308, %v307
        %v462 = vpack.c.bf16 %v310, %v309
        %v463 = vpack.c.bf16 %v312, %v311
        %v464 = vpack.c.bf16 %v314, %v313
        %v465 = vpack.c.bf16 %v316, %v315
        %v466 = vpack.c.bf16 %v318, %v317
        %v467 = vpack.c.bf16 %v320, %v319
        %v468 = vpack.c.bf16 %v322, %v321
        %v469 = vpack.c.bf16 %v324, %v323
        %v470 = vpack.c.bf16 %v326, %v325
        %v471 = vpack.c.bf16 %v328, %v327
        %v472 = vpack.c.bf16 %v330, %v329
        %v473 = vpack.c.bf16 %v332, %v331
        %v474 = vpack.c.bf16 %v334, %v333
        %v475 = vpack.c.bf16 %v336, %v335
        %v476 = vpack.c.bf16 %v338, %v337
        %v477 = vpack.c.bf16 %v340, %v339
        %v478 = vpack.c.bf16 %v342, %v341
        %v479 = vpack.c.bf16 %v344, %v343
        %v480 = vpack.c.bf16 %v346, %v345
        %v481 = vpack.c.bf16 %v348, %v347
        %v482 = vpack.c.bf16 %v350, %v349
        %v483 = vpack.c.bf16 %v352, %v351
        %v484 = vpack.c.bf16 %v354, %v353
        %v485 = vpack.c.bf16 %v356, %v355
        %v486 = vpack.c.bf16 %v358, %v357
        %vm487 = vcmask 523264
        %v489 = vsel %vm487, %v439, 0
        %v492 = vsel %vm487, %v440, 0
        %v495 = vsel %vm487, %v441, 0
        %v498 = vsel %vm487, %v442, 0
        %v501 = vsel %vm487, %v443, 0
        %v504 = vsel %vm487, %v444, 0
        %v507 = vsel %vm487, %v445, 0
        %v510 = vsel %vm487, %v446, 0
        %v513 = vsel %vm487, %v447, 0
        %v516 = vsel %vm487, %v448, 0
        %v519 = vsel %vm487, %v449, 0
        %v522 = vsel %vm487, %v450, 0
        %v525 = vsel %vm487, %v451, 0
        %v528 = vsel %vm487, %v452, 0
        %v531 = vsel %vm487, %v453, 0
        %v534 = vsel %vm487, %v454, 0
        %v537 = vsel %vm487, %v455, 0
        %v540 = vsel %vm487, %v456, 0
        %v543 = vsel %vm487, %v457, 0
        %v546 = vsel %vm487, %v458, 0
        %v549 = vsel %vm487, %v459, 0
        %v552 = vsel %vm487, %v460, 0
        %v555 = vsel %vm487, %v461, 0
        %v558 = vsel %vm487, %v462, 0
        %v561 = vsel %vm487, %v463, 0
        %v564 = vsel %vm487, %v464, 0
        %v567 = vsel %vm487, %v465, 0
        %v570 = vsel %vm487, %v466, 0
        %v573 = vsel %vm487, %v467, 0
        %v576 = vsel %vm487, %v468, 0
        %v579 = vsel %vm487, %v469, 0
        %v582 = vsel %vm487, %v470, 0
        %v585 = vsel %vm487, %v471, 0
        %v588 = vsel %vm487, %v472, 0
        %v591 = vsel %vm487, %v473, 0
        %v594 = vsel %vm487, %v474, 0
        %v597 = vsel %vm487, %v475, 0
        %v600 = vsel %vm487, %v476, 0
        %v603 = vsel %vm487, %v477, 0
        %v606 = vsel %vm487, %v478, 0
        %v609 = vsel %vm487, %v479, 0
        %v612 = vsel %vm487, %v480, 0
        %v615 = vsel %vm487, %v481, 0
        %v618 = vsel %vm487, %v482, 0
        %v621 = vsel %vm487, %v483, 0
        %v624 = vsel %vm487, %v484, 0
        %v627 = vsel %vm487, %v485, 0
        %v630 = vsel %vm487, %v486, 0
        %632 = vmatprep.subr.bf16.mxu0 0
        %633 = vmatpush1.bf16.xpose.msra.mxu0 %v537
        %634 = vmatprep.subr.bf16.mxu0 0
        %635 = vmatpush1.bf16.xpose.msra.mxu0 %v540
        %636 = vmatprep.subr.bf16.mxu0 0
        %637 = vmatpush1.bf16.xpose.msra.mxu0 %v543
        %638 = vmatprep.subr.bf16.mxu0 0
        %639 = vmatpush1.bf16.xpose.msra.mxu0 %v546
        %640 = vmatprep.subr.bf16.mxu0 0
        %641 = vmatpush1.bf16.xpose.msra.mxu0 %v549
        %642 = vmatprep.subr.bf16.mxu0 0
        %643 = vmatpush1.bf16.xpose.msra.mxu0 %v552
        %644 = vmatprep.subr.bf16.mxu0 0
        %645 = vmatpush1.bf16.xpose.msra.mxu0 %v555
        %646 = vmatprep.subr.bf16.mxu0 0
        %647 = vmatpush1.bf16.xpose.msra.mxu0 %v558
        %648 = vmatprep.subr.bf16.mxu0 0
        %649 = vmatpush1.bf16.xpose.msra.mxu0 %v561
        %650 = vmatprep.subr.bf16.mxu0 0
        %651 = vmatpush1.bf16.xpose.msra.mxu0 %v564
        %652 = vmatprep.subr.bf16.mxu0 0
        %653 = vmatpush1.bf16.xpose.msra.mxu0 %v567
        %654 = vmatprep.subr.bf16.mxu0 0
        %655 = vmatpush1.bf16.xpose.msra.mxu0 %v570
        %656 = vmatprep.subr.bf16.mxu0 0
        %657 = vmatpush1.bf16.xpose.msra.mxu0 %v573
        %658 = vmatprep.subr.bf16.mxu0 0
        %659 = vmatpush1.bf16.xpose.msra.mxu0 %v576
        %660 = vmatprep.subr.bf16.mxu0 0
        %661 = vmatpush1.bf16.xpose.msra.mxu0 %v579
        %662 = vmatprep.subr.bf16.mxu0 0
        %663 = vmatpush1.bf16.xpose.msra.mxu0 %v582
        %664 = vmatprep.mubr.bf16.mxu0 0
        %665 = vmatmul.mubr.bf16.gmra.mrb[0].mxu0 %v489
        %v666 = vpop.f32.mrb[0].mxu0
        %v667 = vadd.f32 0.0, %v666
        %v668 = vpop.f32.mrb[0].mxu0
        %v669 = vadd.f32 0.0, %v668
        %v670 = vpop.f32.mrb[0].mxu0
        %v671 = vadd.f32 0.0, %v670
        %v672 = vpop.f32.mrb[0].mxu0
        %v673 = vadd.f32 0.0, %v672
        %674 = vmatprep.mubr.bf16.mxu0 0
        %675 = vmatmul.mubr.bf16.gmra.mrb[0].mxu0 %v492
        %v676 = vpop.f32.mrb[0].mxu0
        %v677 = vadd.f32 0.0, %v676
        %v678 = vpop.f32.mrb[0].mxu0
        %v679 = vadd.f32 0.0, %v678
        %v680 = vpop.f32.mrb[0].mxu0
        %v681 = vadd.f32 0.0, %v680
        %v682 = vpop.f32.mrb[0].mxu0
        %v683 = vadd.f32 0.0, %v682
        %684 = vmatprep.mubr.bf16.mxu0 0
        %685 = vmatmul.mubr.bf16.gmra.mrb[0].mxu0 %v495
        %v686 = vpop.f32.mrb[0].mxu0
        %v687 = vadd.f32 0.0, %v686
        %v688 = vpop.f32.mrb[0].mxu0
        %v689 = vadd.f32 0.0, %v688
        %v690 = vpop.f32.mrb[0].mxu0
        %v691 = vadd.f32 0.0, %v690
        %v692 = vpop.f32.mrb[0].mxu0
        %v693 = vadd.f32 0.0, %v692
        %694 = vmatprep.mubr.bf16.mxu0 0
        %695 = vmatmul.mubr.bf16.gmra.mrb[0].mxu0 %v498
        %v696 = vpop.f32.mrb[0].mxu0
        %v697 = vadd.f32 0.0, %v696
        %v698 = vpop.f32.mrb[0].mxu0
        %v699 = vadd.f32 0.0, %v698
        %v700 = vpop.f32.mrb[0].mxu0
        %v701 = vadd.f32 0.0, %v700
        %v702 = vpop.f32.mrb[0].mxu0
        %v703 = vadd.f32 0.0, %v702
        %704 = vmatprep.mubr.bf16.mxu0 0
        %705 = vmatmul.mubr.bf16.gmra.mrb[0].mxu0 %v501
        %v706 = vpop.f32.mrb[0].mxu0
        %v707 = vadd.f32 0.0, %v706
        %v708 = vpop.f32.mrb[0].mxu0
        %v709 = vadd.f32 0.0, %v708
        %v710 = vpop.f32.mrb[0].mxu0
        %v711 = vadd.f32 0.0, %v710
        %v712 = vpop.f32.mrb[0].mxu0
        %v713 = vadd.f32 0.0, %v712
        %714 = vmatprep.mubr.bf16.mxu0 0
        %715 = vmatmul.mubr.bf16.gmra.mrb[0].mxu0 %v504
        %v716 = vpop.f32.mrb[0].mxu0
        %v717 = vadd.f32 0.0, %v716
        %v718 = vpop.f32.mrb[0].mxu0
        %v719 = vadd.f32 0.0, %v718
        %v720 = vpop.f32.mrb[0].mxu0
        %v721 = vadd.f32 0.0, %v720
        %v722 = vpop.f32.mrb[0].mxu0
        %v723 = vadd.f32 0.0, %v722
        %724 = vmatprep.mubr.bf16.mxu0 0
        %725 = vmatmul.mubr.bf16.gmra.mrb[0].mxu0 %v507
        %v726 = vpop.f32.mrb[0].mxu0
        %v727 = vadd.f32 0.0, %v726
        %v728 = vpop.f32.mrb[0].mxu0
        %v729 = vadd.f32 0.0, %v728
        %v730 = vpop.f32.mrb[0].mxu0
        %v731 = vadd.f32 0.0, %v730
        %v732 = vpop.f32.mrb[0].mxu0
        %v733 = vadd.f32 0.0, %v732
        %734 = vmatprep.mubr.bf16.mxu0 0
        %735 = vmatmul.mubr.bf16.gmra.mrb[0].mxu0 %v510
        %v736 = vpop.f32.mrb[0].mxu0
        %v737 = vadd.f32 0.0, %v736
        %v738 = vpop.f32.mrb[0].mxu0
        %v739 = vadd.f32 0.0, %v738
        %v740 = vpop.f32.mrb[0].mxu0
        %v741 = vadd.f32 0.0, %v740
        %v742 = vpop.f32.mrb[0].mxu0
        %v743 = vadd.f32 0.0, %v742
        %744 = vmatprep.mubr.bf16.mxu0 0
        %745 = vmatmul.mubr.bf16.gmra.mrb[0].mxu0 %v513
        %v746 = vpop.f32.mrb[0].mxu0
        %v747 = vadd.f32 0.0, %v746
        %v748 = vpop.f32.mrb[0].mxu0
        %v749 = vadd.f32 0.0, %v748
        %v750 = vpop.f32.mrb[0].mxu0
        %v751 = vadd.f32 0.0, %v750
        %v752 = vpop.f32.mrb[0].mxu0
        %v753 = vadd.f32 0.0, %v752
        %754 = vmatprep.mubr.bf16.mxu0 0
        %755 = vmatmul.mubr.bf16.gmra.mrb[0].mxu0 %v516
        %v756 = vpop.f32.mrb[0].mxu0
        %v757 = vadd.f32 0.0, %v756
        %v758 = vpop.f32.mrb[0].mxu0
        %v759 = vadd.f32 0.0, %v758
        %v760 = vpop.f32.mrb[0].mxu0
        %v761 = vadd.f32 0.0, %v760
        %v762 = vpop.f32.mrb[0].mxu0
        %v763 = vadd.f32 0.0, %v762
        %764 = vmatprep.mubr.bf16.mxu0 0
        %765 = vmatmul.mubr.bf16.gmra.mrb[0].mxu0 %v519
        %v766 = vpop.f32.mrb[0].mxu0
        %v767 = vadd.f32 0.0, %v766
        %v768 = vpop.f32.mrb[0].mxu0
        %v769 = vadd.f32 0.0, %v768
        %v770 = vpop.f32.mrb[0].mxu0
        %v771 = vadd.f32 0.0, %v770
        %v772 = vpop.f32.mrb[0].mxu0
        %v773 = vadd.f32 0.0, %v772
        %774 = vmatprep.mubr.bf16.mxu0 0
        %775 = vmatmul.mubr.bf16.gmra.mrb[0].mxu0 %v522
        %v776 = vpop.f32.mrb[0].mxu0
        %v777 = vadd.f32 0.0, %v776
        %v778 = vpop.f32.mrb[0].mxu0
        %v779 = vadd.f32 0.0, %v778
        %v780 = vpop.f32.mrb[0].mxu0
        %v781 = vadd.f32 0.0, %v780
        %v782 = vpop.f32.mrb[0].mxu0
        %v783 = vadd.f32 0.0, %v782
        %784 = vmatprep.mubr.bf16.mxu0 0
        %785 = vmatmul.mubr.bf16.gmra.mrb[0].mxu0 %v525
        %v786 = vpop.f32.mrb[0].mxu0
        %v787 = vadd.f32 0.0, %v786
        %v788 = vpop.f32.mrb[0].mxu0
        %v789 = vadd.f32 0.0, %v788
        %v790 = vpop.f32.mrb[0].mxu0
        %v791 = vadd.f32 0.0, %v790
        %v792 = vpop.f32.mrb[0].mxu0
        %v793 = vadd.f32 0.0, %v792
        %794 = vmatprep.mubr.bf16.mxu0 0
        %795 = vmatmul.mubr.bf16.gmra.mrb[0].mxu0 %v528
        %v796 = vpop.f32.mrb[0].mxu0
        %v797 = vadd.f32 0.0, %v796
        %v798 = vpop.f32.mrb[0].mxu0
        %v799 = vadd.f32 0.0, %v798
        %v800 = vpop.f32.mrb[0].mxu0
        %v801 = vadd.f32 0.0, %v800
        %v802 = vpop.f32.mrb[0].mxu0
        %v803 = vadd.f32 0.0, %v802
        %804 = vmatprep.mubr.bf16.mxu0 0
        %805 = vmatmul.mubr.bf16.gmra.mrb[0].mxu0 %v531
        %v806 = vpop.f32.mrb[0].mxu0
        %v807 = vadd.f32 0.0, %v806
        %v808 = vpop.f32.mrb[0].mxu0
        %v809 = vadd.f32 0.0, %v808
        %v810 = vpop.f32.mrb[0].mxu0
        %v811 = vadd.f32 0.0, %v810
        %v812 = vpop.f32.mrb[0].mxu0
        %v813 = vadd.f32 0.0, %v812
        %814 = vmatprep.mubr.bf16.mxu0 0
        %815 = vmatmul.mubr.bf16.gmra.mrb[0].mxu0 %v534
        %v816 = vpop.f32.mrb[0].mxu0
        %v817 = vadd.f32 0.0, %v816
        %v818 = vpop.f32.mrb[0].mxu0
        %v819 = vadd.f32 0.0, %v818
        %v820 = vpop.f32.mrb[0].mxu0
        %v821 = vadd.f32 0.0, %v820
        %v822 = vpop.f32.mrb[0].mxu0
        %v823 = vadd.f32 0.0, %v822
        %824 = vdwg.mxu0
        %825 = vmatprep.subr.bf16.mxu0 0
        %826 = vmatpush1.bf16.xpose.msra.mxu0 %v585
        %827 = vmatprep.subr.bf16.mxu0 0
        %828 = vmatpush1.bf16.xpose.msra.mxu0 %v588
        %829 = vmatprep.subr.bf16.mxu0 0
        %830 = vmatpush1.bf16.xpose.msra.mxu0 %v591
        %831 = vmatprep.subr.bf16.mxu0 0
        %832 = vmatpush1.bf16.xpose.msra.mxu0 %v594
        %833 = vmatprep.subr.bf16.mxu0 0
        %834 = vmatpush1.bf16.xpose.msra.mxu0 %v597
        %835 = vmatprep.subr.bf16.mxu0 0
        %836 = vmatpush1.bf16.xpose.msra.mxu0 %v600
        %837 = vmatprep.subr.bf16.mxu0 0
        %838 = vmatpush1.bf16.xpose.msra.mxu0 %v603
        %839 = vmatprep.subr.bf16.mxu0 0
        %840 = vmatpush1.bf16.xpose.msra.mxu0 %v606
        %841 = vmatprep.subr.bf16.mxu0 0
        %842 = vmatpush1.bf16.xpose.msra.mxu0 %v609
        %843 = vmatprep.subr.bf16.mxu0 0
        %844 = vmatpush1.bf16.xpose.msra.mxu0 %v612
        %845 = vmatprep.subr.bf16.mxu0 0
        %846 = vmatpush1.bf16.xpose.msra.mxu0 %v615
        %847 = vmatprep.subr.bf16.mxu0 0
        %848 = vmatpush1.bf16.xpose.msra.mxu0 %v618
        %849 = vmatprep.subr.bf16.mxu0 0
        %850 = vmatpush1.bf16.xpose.msra.mxu0 %v621
        %851 = vmatprep.subr.bf16.mxu0 0
        %852 = vmatpush1.bf16.xpose.msra.mxu0 %v624
        %853 = vmatprep.subr.bf16.mxu0 0
        %854 = vmatpush1.bf16.xpose.msra.mxu0 %v627
        %855 = vmatprep.subr.bf16.mxu0 0
        %856 = vmatpush1.bf16.xpose.msra.mxu0 %v630
        %857 = vmatprep.mubr.bf16.mxu0 0
        %858 = vmatmul.mubr.bf16.gmra.mrb[0].mxu0 %v489
        %v859 = vpop.f32.mrb[0].mxu0
        %v860 = vadd.f32 0.0, %v859
        %v861 = vpop.f32.mrb[0].mxu0
        %v862 = vadd.f32 0.0, %v861
        %v863 = vpop.f32.mrb[0].mxu0
        %v864 = vadd.f32 0.0, %v863
        %v865 = vpop.f32.mrb[0].mxu0
        %v866 = vadd.f32 0.0, %v865
        %867 = vmatprep.mubr.bf16.mxu0 0
        %868 = vmatmul.mubr.bf16.gmra.mrb[0].mxu0 %v492
        %v869 = vpop.f32.mrb[0].mxu0
        %v870 = vadd.f32 0.0, %v869
        %v871 = vpop.f32.mrb[0].mxu0
        %v872 = vadd.f32 0.0, %v871
        %v873 = vpop.f32.mrb[0].mxu0
        %v874 = vadd.f32 0.0, %v873
        %v875 = vpop.f32.mrb[0].mxu0
        %v876 = vadd.f32 0.0, %v875
        %877 = vmatprep.mubr.bf16.mxu0 0
        %878 = vmatmul.mubr.bf16.gmra.mrb[0].mxu0 %v495
        %v879 = vpop.f32.mrb[0].mxu0
        %v880 = vadd.f32 0.0, %v879
        %v881 = vpop.f32.mrb[0].mxu0
        %v882 = vadd.f32 0.0, %v881
        %v883 = vpop.f32.mrb[0].mxu0
        %v884 = vadd.f32 0.0, %v883
        %v885 = vpop.f32.mrb[0].mxu0
        %v886 = vadd.f32 0.0, %v885
        %887 = vmatprep.mubr.bf16.mxu0 0
        %888 = vmatmul.mubr.bf16.gmra.mrb[0].mxu0 %v498
        %v889 = vpop.f32.mrb[0].mxu0
        %v890 = vadd.f32 0.0, %v889
        %v891 = vpop.f32.mrb[0].mxu0
        %v892 = vadd.f32 0.0, %v891
        %v893 = vpop.f32.mrb[0].mxu0
        %v894 = vadd.f32 0.0, %v893
        %v895 = vpop.f32.mrb[0].mxu0
        %v896 = vadd.f32 0.0, %v895
        %897 = vmatprep.mubr.bf16.mxu0 0
        %898 = vmatmul.mubr.bf16.gmra.mrb[0].mxu0 %v501
        %v899 = vpop.f32.mrb[0].mxu0
        %v900 = vadd.f32 0.0, %v899
        %v901 = vpop.f32.mrb[0].mxu0
        %v902 = vadd.f32 0.0, %v901
        %v903 = vpop.f32.mrb[0].mxu0
        %v904 = vadd.f32 0.0, %v903
        %v905 = vpop.f32.mrb[0].mxu0
        %v906 = vadd.f32 0.0, %v905
        %907 = vmatprep.mubr.bf16.mxu0 0
        %908 = vmatmul.mubr.bf16.gmra.mrb[0].mxu0 %v504
        %v909 = vpop.f32.mrb[0].mxu0
        %v910 = vadd.f32 0.0, %v909
        %v911 = vpop.f32.mrb[0].mxu0
        %v912 = vadd.f32 0.0, %v911
        %v913 = vpop.f32.mrb[0].mxu0
        %v914 = vadd.f32 0.0, %v913
        %v915 = vpop.f32.mrb[0].mxu0
        %v916 = vadd.f32 0.0, %v915
        %917 = vmatprep.mubr.bf16.mxu0 0
        %918 = vmatmul.mubr.bf16.gmra.mrb[0].mxu0 %v507
        %v919 = vpop.f32.mrb[0].mxu0
        %v920 = vadd.f32 0.0, %v919
        %v921 = vpop.f32.mrb[0].mxu0
        %v922 = vadd.f32 0.0, %v921
        %v923 = vpop.f32.mrb[0].mxu0
        %v924 = vadd.f32 0.0, %v923
        %v925 = vpop.f32.mrb[0].mxu0
        %v926 = vadd.f32 0.0, %v925
        %927 = vmatprep.mubr.bf16.mxu0 0
        %928 = vmatmul.mubr.bf16.gmra.mrb[0].mxu0 %v510
        %v929 = vpop.f32.mrb[0].mxu0
        %v930 = vadd.f32 0.0, %v929
        %v931 = vpop.f32.mrb[0].mxu0
        %v932 = vadd.f32 0.0, %v931
        %v933 = vpop.f32.mrb[0].mxu0
        %v934 = vadd.f32 0.0, %v933
        %v935 = vpop.f32.mrb[0].mxu0
        %v936 = vadd.f32 0.0, %v935
        %937 = vmatprep.mubr.bf16.mxu0 0
        %938 = vmatmul.mubr.bf16.gmra.mrb[0].mxu0 %v513
        %v939 = vpop.f32.mrb[0].mxu0
        %v940 = vadd.f32 0.0, %v939
        %v941 = vpop.f32.mrb[0].mxu0
        %v942 = vadd.f32 0.0, %v941
        %v943 = vpop.f32.mrb[0].mxu0
        %v944 = vadd.f32 0.0, %v943
        %v945 = vpop.f32.mrb[0].mxu0
        %v946 = vadd.f32 0.0, %v945
        %947 = vmatprep.mubr.bf16.mxu0 0
        %948 = vmatmul.mubr.bf16.gmra.mrb[0].mxu0 %v516
        %v949 = vpop.f32.mrb[0].mxu0
        %v950 = vadd.f32 0.0, %v949
        %v951 = vpop.f32.mrb[0].mxu0
        %v952 = vadd.f32 0.0, %v951
        %v953 = vpop.f32.mrb[0].mxu0
        %v954 = vadd.f32 0.0, %v953
        %v955 = vpop.f32.mrb[0].mxu0
        %v956 = vadd.f32 0.0, %v955
        %957 = vmatprep.mubr.bf16.mxu0 0
        %958 = vmatmul.mubr.bf16.gmra.mrb[0].mxu0 %v519
        %v959 = vpop.f32.mrb[0].mxu0
        %v960 = vadd.f32 0.0, %v959
        %v961 = vpop.f32.mrb[0].mxu0
        %v962 = vadd.f32 0.0, %v961
        %v963 = vpop.f32.mrb[0].mxu0
        %v964 = vadd.f32 0.0, %v963
        %v965 = vpop.f32.mrb[0].mxu0
        %v966 = vadd.f32 0.0, %v965
        %967 = vmatprep.mubr.bf16.mxu0 0
        %968 = vmatmul.mubr.bf16.gmra.mrb[0].mxu0 %v522
        %v969 = vpop.f32.mrb[0].mxu0
        %v970 = vadd.f32 0.0, %v969
        %v971 = vpop.f32.mrb[0].mxu0
        %v972 = vadd.f32 0.0, %v971
        %v973 = vpop.f32.mrb[0].mxu0
        %v974 = vadd.f32 0.0, %v973
        %v975 = vpop.f32.mrb[0].mxu0
        %v976 = vadd.f32 0.0, %v975
        %977 = vmatprep.mubr.bf16.mxu0 0
        %978 = vmatmul.mubr.bf16.gmra.mrb[0].mxu0 %v525
        %v979 = vpop.f32.mrb[0].mxu0
        %v980 = vadd.f32 0.0, %v979
        %v981 = vpop.f32.mrb[0].mxu0
        %v982 = vadd.f32 0.0, %v981
        %v983 = vpop.f32.mrb[0].mxu0
        %v984 = vadd.f32 0.0, %v983
        %v985 = vpop.f32.mrb[0].mxu0
        %v986 = vadd.f32 0.0, %v985
        %987 = vmatprep.mubr.bf16.mxu0 0
        %988 = vmatmul.mubr.bf16.gmra.mrb[0].mxu0 %v528
        %v989 = vpop.f32.mrb[0].mxu0
        %v990 = vadd.f32 0.0, %v989
        %v991 = vpop.f32.mrb[0].mxu0
        %v992 = vadd.f32 0.0, %v991
        %v993 = vpop.f32.mrb[0].mxu0
        %v994 = vadd.f32 0.0, %v993
        %v995 = vpop.f32.mrb[0].mxu0
        %v996 = vadd.f32 0.0, %v995
        %997 = vmatprep.mubr.bf16.mxu0 0
        %998 = vmatmul.mubr.bf16.gmra.mrb[0].mxu0 %v531
        %v999 = vpop.f32.mrb[0].mxu0
        %v1000 = vadd.f32 0.0, %v999
        %v1001 = vpop.f32.mrb[0].mxu0
        %v1002 = vadd.f32 0.0, %v1001
        %v1003 = vpop.f32.mrb[0].mxu0
        %v1004 = vadd.f32 0.0, %v1003
        %v1005 = vpop.f32.mrb[0].mxu0
        %v1006 = vadd.f32 0.0, %v1005
        %1007 = vmatprep.mubr.bf16.mxu0 0
        %1008 = vmatmul.mubr.bf16.gmra.mrb[0].mxu0 %v534
        %v1009 = vpop.f32.mrb[0].mxu0
        %v1010 = vadd.f32 0.0, %v1009
        %v1011 = vpop.f32.mrb[0].mxu0
        %v1012 = vadd.f32 0.0, %v1011
        %v1013 = vpop.f32.mrb[0].mxu0
        %v1014 = vadd.f32 0.0, %v1013
        %v1015 = vpop.f32.mrb[0].mxu0
        %v1016 = vadd.f32 0.0, %v1015
        %1017 = vdwg.mxu0
        %v1018 = vld [vmem:[%s2] sm:$0xf]
        %v1019 = vmul.f32 %v667, 2.0
        %v1020 = vmul.f32 %v669, 2.0
        %v1021 = vmul.f32 %v860, 2.0
        %v1022 = vmul.f32 %v862, 2.0
        %v1023 = vmul.f32 %v671, 2.0
        %v1024 = vmul.f32 %v673, 2.0
        %v1025 = vmul.f32 %v864, 2.0
        %v1026 = vmul.f32 %v866, 2.0
        %v1027 = vmul.f32 %v677, 2.0
        %v1028 = vmul.f32 %v679, 2.0
        %v1029 = vmul.f32 %v870, 2.0
        %v1030 = vmul.f32 %v872, 2.0
        %v1031 = vmul.f32 %v681, 2.0
        %v1032 = vmul.f32 %v683, 2.0
        %v1033 = vmul.f32 %v874, 2.0
        %v1034 = vmul.f32 %v876, 2.0
        %v1035 = vmul.f32 %v687, 2.0
        %v1036 = vmul.f32 %v689, 2.0
        %v1037 = vmul.f32 %v880, 2.0
        %v1038 = vmul.f32 %v882, 2.0
        %v1039 = vmul.f32 %v691, 2.0
        %v1040 = vmul.f32 %v693, 2.0
        %v1041 = vmul.f32 %v884, 2.0
        %v1042 = vmul.f32 %v886, 2.0
        %v1043 = vmul.f32 %v697, 2.0
        %v1044 = vmul.f32 %v699, 2.0
        %v1045 = vmul.f32 %v890, 2.0
        %v1046 = vmul.f32 %v892, 2.0
        %v1047 = vmul.f32 %v701, 2.0
        %v1048 = vmul.f32 %v703, 2.0
        %v1049 = vmul.f32 %v894, 2.0
        %v1050 = vmul.f32 %v896, 2.0
        %v1051 = vmul.f32 %v707, 2.0
        %v1052 = vmul.f32 %v709, 2.0
        %v1053 = vmul.f32 %v900, 2.0
        %v1054 = vmul.f32 %v902, 2.0
        %v1055 = vmul.f32 %v711, 2.0
        %v1056 = vmul.f32 %v713, 2.0
        %v1057 = vmul.f32 %v904, 2.0
        %v1058 = vmul.f32 %v906, 2.0
        %v1059 = vmul.f32 %v717, 2.0
        %v1060 = vmul.f32 %v719, 2.0
        %v1061 = vmul.f32 %v910, 2.0
        %v1062 = vmul.f32 %v912, 2.0
        %v1063 = vmul.f32 %v721, 2.0
        %v1064 = vmul.f32 %v723, 2.0
        %v1065 = vmul.f32 %v914, 2.0
        %v1066 = vmul.f32 %v916, 2.0
        %v1067 = vmul.f32 %v727, 2.0
        %v1068 = vmul.f32 %v729, 2.0
        %v1069 = vmul.f32 %v920, 2.0
        %v1070 = vmul.f32 %v922, 2.0
        %v1071 = vmul.f32 %v731, 2.0
        %v1072 = vmul.f32 %v733, 2.0
        %v1073 = vmul.f32 %v924, 2.0
        %v1074 = vmul.f32 %v926, 2.0
        %v1075 = vmul.f32 %v737, 2.0
        %v1076 = vmul.f32 %v739, 2.0
        %v1077 = vmul.f32 %v930, 2.0
        %v1078 = vmul.f32 %v932, 2.0
        %v1079 = vmul.f32 %v741, 2.0
        %v1080 = vmul.f32 %v743, 2.0
        %v1081 = vmul.f32 %v934, 2.0
        %v1082 = vmul.f32 %v936, 2.0
        %v1083 = vmul.f32 %v747, 2.0
        %v1084 = vmul.f32 %v749, 2.0
        %v1085 = vmul.f32 %v940, 2.0
        %v1086 = vmul.f32 %v942, 2.0
        %v1087 = vmul.f32 %v751, 2.0
        %v1088 = vmul.f32 %v753, 2.0
        %v1089 = vmul.f32 %v944, 2.0
        %v1090 = vmul.f32 %v946, 2.0
        %v1091 = vmul.f32 %v757, 2.0
        %v1092 = vmul.f32 %v759, 2.0
        %v1093 = vmul.f32 %v950, 2.0
        %v1094 = vmul.f32 %v952, 2.0
        %v1095 = vmul.f32 %v761, 2.0
        %v1096 = vmul.f32 %v763, 2.0
        %v1097 = vmul.f32 %v954, 2.0
        %v1098 = vmul.f32 %v956, 2.0
        %v1099 = vmul.f32 %v767, 2.0
        %v1100 = vmul.f32 %v769, 2.0
        %v1101 = vmul.f32 %v960, 2.0
        %v1102 = vmul.f32 %v962, 2.0
        %v1103 = vmul.f32 %v771, 2.0
        %v1104 = vmul.f32 %v773, 2.0
        %v1105 = vmul.f32 %v964, 2.0
        %v1106 = vmul.f32 %v966, 2.0
        %v1107 = vmul.f32 %v777, 2.0
        %v1108 = vmul.f32 %v779, 2.0
        %v1109 = vmul.f32 %v970, 2.0
        %v1110 = vmul.f32 %v972, 2.0
        %v1111 = vmul.f32 %v781, 2.0
        %v1112 = vmul.f32 %v783, 2.0
        %v1113 = vmul.f32 %v974, 2.0
        %v1114 = vmul.f32 %v976, 2.0
        %v1115 = vmul.f32 %v787, 2.0
        %v1116 = vmul.f32 %v789, 2.0
        %v1117 = vmul.f32 %v980, 2.0
        %v1118 = vmul.f32 %v982, 2.0
        %v1119 = vmul.f32 %v791, 2.0
        %v1120 = vmul.f32 %v793, 2.0
        %v1121 = vmul.f32 %v984, 2.0
        %v1122 = vmul.f32 %v986, 2.0
        %v1123 = vmul.f32 %v797, 2.0
        %v1124 = vmul.f32 %v799, 2.0
        %v1125 = vmul.f32 %v990, 2.0
        %v1126 = vmul.f32 %v992, 2.0
        %v1127 = vmul.f32 %v801, 2.0
        %v1128 = vmul.f32 %v803, 2.0
        %v1129 = vmul.f32 %v994, 2.0
        %v1130 = vmul.f32 %v996, 2.0
        %v1131 = vmul.f32 %v807, 2.0
        %v1132 = vmul.f32 %v809, 2.0
        %v1133 = vmul.f32 %v1000, 2.0
        %v1134 = vmul.f32 %v1002, 2.0
        %v1135 = vmul.f32 %v811, 2.0
        %v1136 = vmul.f32 %v813, 2.0
        %v1137 = vmul.f32 %v1004, 2.0
        %v1138 = vmul.f32 %v1006, 2.0
        %v1139 = vmul.f32 %v817, 2.0
        %v1140 = vmul.f32 %v819, 2.0
        %v1141 = vmul.f32 %v1010, 2.0
        %v1142 = vmul.f32 %v1012, 2.0
        %v1143 = vmul.f32 %v821, 2.0
        %v1144 = vmul.f32 %v823, 2.0
        %v1145 = vmul.f32 %v1014, 2.0
        %v1146 = vmul.f32 %v1016, 2.0
        %v1148 = vlaneseq
        %v1149 = vshrl.u32 %v1148, 7
        %v1150 = vsub.s32 0, %v1149
        %v1151 = vrot.slane %v1018, %v1150
        %v1152 = vlaneseq
        %v1153 = vshrl.u32 %v1152, 7
        %v1154 = vsub.s32 1, %v1153
        %v1155 = vrot.slane %v1018, %v1154
        %v1156 = vlaneseq
        %v1157 = vshrl.u32 %v1156, 7
        %v1158 = vsub.s32 2, %v1157
        %v1159 = vrot.slane %v1018, %v1158
        %v1160 = vlaneseq
        %v1161 = vshrl.u32 %v1160, 7
        %v1162 = vsub.s32 3, %v1161
        %v1163 = vrot.slane %v1018, %v1162
        %v1168 = vsub.f32 %v1151, %v1019
        %v1169 = vsub.f32 %v1155, %v1020
        %v1170 = vsub.f32 %v1159, %v1021
        %v1171 = vsub.f32 %v1163, %v1022
        %v1172 = vsub.f32 %v1151, %v1023
        %v1173 = vsub.f32 %v1155, %v1024
        %v1174 = vsub.f32 %v1159, %v1025
        %v1175 = vsub.f32 %v1163, %v1026
        %v1176 = vsub.f32 %v1151, %v1027
        %v1177 = vsub.f32 %v1155, %v1028
        %v1178 = vsub.f32 %v1159, %v1029
        %v1179 = vsub.f32 %v1163, %v1030
        %v1180 = vsub.f32 %v1151, %v1031
        %v1181 = vsub.f32 %v1155, %v1032
        %v1182 = vsub.f32 %v1159, %v1033
        %v1183 = vsub.f32 %v1163, %v1034
        %v1184 = vsub.f32 %v1151, %v1035
        %v1185 = vsub.f32 %v1155, %v1036
        %v1186 = vsub.f32 %v1159, %v1037
        %v1187 = vsub.f32 %v1163, %v1038
        %v1188 = vsub.f32 %v1151, %v1039
        %v1189 = vsub.f32 %v1155, %v1040
        %v1190 = vsub.f32 %v1159, %v1041
        %v1191 = vsub.f32 %v1163, %v1042
        %v1192 = vsub.f32 %v1151, %v1043
        %v1193 = vsub.f32 %v1155, %v1044
        %v1194 = vsub.f32 %v1159, %v1045
        %v1195 = vsub.f32 %v1163, %v1046
        %v1196 = vsub.f32 %v1151, %v1047
        %v1197 = vsub.f32 %v1155, %v1048
        %v1198 = vsub.f32 %v1159, %v1049
        %v1199 = vsub.f32 %v1163, %v1050
        %v1200 = vsub.f32 %v1151, %v1051
        %v1201 = vsub.f32 %v1155, %v1052
        %v1202 = vsub.f32 %v1159, %v1053
        %v1203 = vsub.f32 %v1163, %v1054
        %v1204 = vsub.f32 %v1151, %v1055
        %v1205 = vsub.f32 %v1155, %v1056
        %v1206 = vsub.f32 %v1159, %v1057
        %v1207 = vsub.f32 %v1163, %v1058
        %v1208 = vsub.f32 %v1151, %v1059
        %v1209 = vsub.f32 %v1155, %v1060
        %v1210 = vsub.f32 %v1159, %v1061
        %v1211 = vsub.f32 %v1163, %v1062
        %v1212 = vsub.f32 %v1151, %v1063
        %v1213 = vsub.f32 %v1155, %v1064
        %v1214 = vsub.f32 %v1159, %v1065
        %v1215 = vsub.f32 %v1163, %v1066
        %v1216 = vsub.f32 %v1151, %v1067
        %v1217 = vsub.f32 %v1155, %v1068
        %v1218 = vsub.f32 %v1159, %v1069
        %v1219 = vsub.f32 %v1163, %v1070
        %v1220 = vsub.f32 %v1151, %v1071
        %v1221 = vsub.f32 %v1155, %v1072
        %v1222 = vsub.f32 %v1159, %v1073
        %v1223 = vsub.f32 %v1163, %v1074
        %v1224 = vsub.f32 %v1151, %v1075
        %v1225 = vsub.f32 %v1155, %v1076
        %v1226 = vsub.f32 %v1159, %v1077
        %v1227 = vsub.f32 %v1163, %v1078
        %v1228 = vsub.f32 %v1151, %v1079
        %v1229 = vsub.f32 %v1155, %v1080
        %v1230 = vsub.f32 %v1159, %v1081
        %v1231 = vsub.f32 %v1163, %v1082
        %v1232 = vsub.f32 %v1151, %v1083
        %v1233 = vsub.f32 %v1155, %v1084
        %v1234 = vsub.f32 %v1159, %v1085
        %v1235 = vsub.f32 %v1163, %v1086
        %v1236 = vsub.f32 %v1151, %v1087
        %v1237 = vsub.f32 %v1155, %v1088
        %v1238 = vsub.f32 %v1159, %v1089
        %v1239 = vsub.f32 %v1163, %v1090
        %v1240 = vsub.f32 %v1151, %v1091
        %v1241 = vsub.f32 %v1155, %v1092
        %v1242 = vsub.f32 %v1159, %v1093
        %v1243 = vsub.f32 %v1163, %v1094
        %v1244 = vsub.f32 %v1151, %v1095
        %v1245 = vsub.f32 %v1155, %v1096
        %v1246 = vsub.f32 %v1159, %v1097
        %v1247 = vsub.f32 %v1163, %v1098
        %v1248 = vsub.f32 %v1151, %v1099
        %v1249 = vsub.f32 %v1155, %v1100
        %v1250 = vsub.f32 %v1159, %v1101
        %v1251 = vsub.f32 %v1163, %v1102
        %v1252 = vsub.f32 %v1151, %v1103
        %v1253 = vsub.f32 %v1155, %v1104
        %v1254 = vsub.f32 %v1159, %v1105
        %v1255 = vsub.f32 %v1163, %v1106
        %v1256 = vsub.f32 %v1151, %v1107
        %v1257 = vsub.f32 %v1155, %v1108
        %v1258 = vsub.f32 %v1159, %v1109
        %v1259 = vsub.f32 %v1163, %v1110
        %v1260 = vsub.f32 %v1151, %v1111
        %v1261 = vsub.f32 %v1155, %v1112
        %v1262 = vsub.f32 %v1159, %v1113
        %v1263 = vsub.f32 %v1163, %v1114
        %v1264 = vsub.f32 %v1151, %v1115
        %v1265 = vsub.f32 %v1155, %v1116
        %v1266 = vsub.f32 %v1159, %v1117
        %v1267 = vsub.f32 %v1163, %v1118
        %v1268 = vsub.f32 %v1151, %v1119
        %v1269 = vsub.f32 %v1155, %v1120
        %v1270 = vsub.f32 %v1159, %v1121
        %v1271 = vsub.f32 %v1163, %v1122
        %v1272 = vsub.f32 %v1151, %v1123
        %v1273 = vsub.f32 %v1155, %v1124
        %v1274 = vsub.f32 %v1159, %v1125
        %v1275 = vsub.f32 %v1163, %v1126
        %v1276 = vsub.f32 %v1151, %v1127
        %v1277 = vsub.f32 %v1155, %v1128
        %v1278 = vsub.f32 %v1159, %v1129
        %v1279 = vsub.f32 %v1163, %v1130
        %v1280 = vsub.f32 %v1151, %v1131
        %v1281 = vsub.f32 %v1155, %v1132
        %v1282 = vsub.f32 %v1159, %v1133
        %v1283 = vsub.f32 %v1163, %v1134
        %v1284 = vsub.f32 %v1151, %v1135
        %v1285 = vsub.f32 %v1155, %v1136
        %v1286 = vsub.f32 %v1159, %v1137
        %v1287 = vsub.f32 %v1163, %v1138
        %v1288 = vsub.f32 %v1151, %v1139
        %v1289 = vsub.f32 %v1155, %v1140
        %v1290 = vsub.f32 %v1159, %v1141
        %v1291 = vsub.f32 %v1163, %v1142
        %v1292 = vsub.f32 %v1151, %v1143
        %v1293 = vsub.f32 %v1155, %v1144
        %v1294 = vsub.f32 %v1159, %v1145
        %v1295 = vsub.f32 %v1163, %v1146
        %v1296 = vlaneseq
        %v1297 = vand.u32 %v1296, 127
        %v1298 = vadd.s32 %v1297, 128
        %vm1299 = vcmp.le.f32.partialorder %v1168, %v1169
        %v1300 = vsel %vm1299, %v1168, %v1169
        %v1301 = vsel %vm1299, %v1297, %v1298
        %v1302 = vadd.s32 %v1297, 256
        %vm1303 = vcmp.le.f32.partialorder %v1300, %v1170
        %v1304 = vsel %vm1303, %v1300, %v1170
        %v1305 = vsel %vm1303, %v1301, %v1302
        %v1306 = vadd.s32 %v1297, 384
        %vm1307 = vcmp.le.f32.partialorder %v1304, %v1171
        %v1308 = vsel %vm1307, %v1304, %v1171
        %v1309 = vsel %vm1307, %v1305, %v1306
        %1310 = vmin.index.xlane.f32.xlu0 %v1308
        %v1311 = vpop.xlane.xlu0 %1310
        %1312 = vset.pattern.permute.xlu0 %v1311
        %1313 = vperm.xlu0 %1312, %v1309
        %v1314 = vpop.permute.xlu0 %1313
        %vm1315 = vcmp.le.f32.partialorder %v1172, %v1173
        %v1316 = vsel %vm1315, %v1172, %v1173
        %v1317 = vsel %vm1315, %v1297, %v1298
        %vm1318 = vcmp.le.f32.partialorder %v1316, %v1174
        %v1319 = vsel %vm1318, %v1316, %v1174
        %v1320 = vsel %vm1318, %v1317, %v1302
        %vm1321 = vcmp.le.f32.partialorder %v1319, %v1175
        %v1322 = vsel %vm1321, %v1319, %v1175
        %v1323 = vsel %vm1321, %v1320, %v1306
        %1324 = vmin.index.xlane.f32.xlu0 %v1322
        %v1325 = vpop.xlane.xlu0 %1324
        %1326 = vset.pattern.permute.xlu0 %v1325
        %1327 = vperm.xlu0 %1326, %v1323
        %v1328 = vpop.permute.xlu0 %1327
        %vm1329 = vcmp.le.f32.partialorder %v1176, %v1177
        %v1330 = vsel %vm1329, %v1176, %v1177
        %v1331 = vsel %vm1329, %v1297, %v1298
        %vm1332 = vcmp.le.f32.partialorder %v1330, %v1178
        %v1333 = vsel %vm1332, %v1330, %v1178
        %v1334 = vsel %vm1332, %v1331, %v1302
        %vm1335 = vcmp.le.f32.partialorder %v1333, %v1179
        %v1336 = vsel %vm1335, %v1333, %v1179
        %v1337 = vsel %vm1335, %v1334, %v1306
        %1338 = vmin.index.xlane.f32.xlu0 %v1336
        %v1339 = vpop.xlane.xlu0 %1338
        %1340 = vset.pattern.permute.xlu0 %v1339
        %1341 = vperm.xlu0 %1340, %v1337
        %v1342 = vpop.permute.xlu0 %1341
        %vm1343 = vcmp.le.f32.partialorder %v1180, %v1181
        %v1344 = vsel %vm1343, %v1180, %v1181
        %v1345 = vsel %vm1343, %v1297, %v1298
        %vm1346 = vcmp.le.f32.partialorder %v1344, %v1182
        %v1347 = vsel %vm1346, %v1344, %v1182
        %v1348 = vsel %vm1346, %v1345, %v1302
        %vm1349 = vcmp.le.f32.partialorder %v1347, %v1183
        %v1350 = vsel %vm1349, %v1347, %v1183
        %v1351 = vsel %vm1349, %v1348, %v1306
        %1352 = vmin.index.xlane.f32.xlu0 %v1350
        %v1353 = vpop.xlane.xlu0 %1352
        %1354 = vset.pattern.permute.xlu0 %v1353
        %1355 = vperm.xlu0 %1354, %v1351
        %v1356 = vpop.permute.xlu0 %1355
        %vm1357 = vcmp.le.f32.partialorder %v1184, %v1185
        %v1358 = vsel %vm1357, %v1184, %v1185
        %v1359 = vsel %vm1357, %v1297, %v1298
        %vm1360 = vcmp.le.f32.partialorder %v1358, %v1186
        %v1361 = vsel %vm1360, %v1358, %v1186
        %v1362 = vsel %vm1360, %v1359, %v1302
        %vm1363 = vcmp.le.f32.partialorder %v1361, %v1187
        %v1364 = vsel %vm1363, %v1361, %v1187
        %v1365 = vsel %vm1363, %v1362, %v1306
        %1366 = vmin.index.xlane.f32.xlu0 %v1364
        %v1367 = vpop.xlane.xlu0 %1366
        %1368 = vset.pattern.permute.xlu0 %v1367
        %1369 = vperm.xlu0 %1368, %v1365
        %v1370 = vpop.permute.xlu0 %1369
        %vm1371 = vcmp.le.f32.partialorder %v1188, %v1189
        %v1372 = vsel %vm1371, %v1188, %v1189
        %v1373 = vsel %vm1371, %v1297, %v1298
        %vm1374 = vcmp.le.f32.partialorder %v1372, %v1190
        %v1375 = vsel %vm1374, %v1372, %v1190
        %v1376 = vsel %vm1374, %v1373, %v1302
        %vm1377 = vcmp.le.f32.partialorder %v1375, %v1191
        %v1378 = vsel %vm1377, %v1375, %v1191
        %v1379 = vsel %vm1377, %v1376, %v1306
        %1380 = vmin.index.xlane.f32.xlu0 %v1378
        %v1381 = vpop.xlane.xlu0 %1380
        %1382 = vset.pattern.permute.xlu0 %v1381
        %1383 = vperm.xlu0 %1382, %v1379
        %v1384 = vpop.permute.xlu0 %1383
        %vm1385 = vcmp.le.f32.partialorder %v1192, %v1193
        %v1386 = vsel %vm1385, %v1192, %v1193
        %v1387 = vsel %vm1385, %v1297, %v1298
        %vm1388 = vcmp.le.f32.partialorder %v1386, %v1194
        %v1389 = vsel %vm1388, %v1386, %v1194
        %v1390 = vsel %vm1388, %v1387, %v1302
        %vm1391 = vcmp.le.f32.partialorder %v1389, %v1195
        %v1392 = vsel %vm1391, %v1389, %v1195
        %v1393 = vsel %vm1391, %v1390, %v1306
        %1394 = vmin.index.xlane.f32.xlu0 %v1392
        %v1395 = vpop.xlane.xlu0 %1394
        %1396 = vset.pattern.permute.xlu0 %v1395
        %1397 = vperm.xlu0 %1396, %v1393
        %v1398 = vpop.permute.xlu0 %1397
        %vm1399 = vcmp.le.f32.partialorder %v1196, %v1197
        %v1400 = vsel %vm1399, %v1196, %v1197
        %v1401 = vsel %vm1399, %v1297, %v1298
        %vm1402 = vcmp.le.f32.partialorder %v1400, %v1198
        %v1403 = vsel %vm1402, %v1400, %v1198
        %v1404 = vsel %vm1402, %v1401, %v1302
        %vm1405 = vcmp.le.f32.partialorder %v1403, %v1199
        %v1406 = vsel %vm1405, %v1403, %v1199
        %v1407 = vsel %vm1405, %v1404, %v1306
        %1408 = vmin.index.xlane.f32.xlu0 %v1406
        %v1409 = vpop.xlane.xlu0 %1408
        %1410 = vset.pattern.permute.xlu0 %v1409
        %1411 = vperm.xlu0 %1410, %v1407
        %v1412 = vpop.permute.xlu0 %1411
        %vm1413 = vcmp.le.f32.partialorder %v1200, %v1201
        %v1414 = vsel %vm1413, %v1200, %v1201
        %v1415 = vsel %vm1413, %v1297, %v1298
        %vm1416 = vcmp.le.f32.partialorder %v1414, %v1202
        %v1417 = vsel %vm1416, %v1414, %v1202
        %v1418 = vsel %vm1416, %v1415, %v1302
        %vm1419 = vcmp.le.f32.partialorder %v1417, %v1203
        %v1420 = vsel %vm1419, %v1417, %v1203
        %v1421 = vsel %vm1419, %v1418, %v1306
        %1422 = vmin.index.xlane.f32.xlu0 %v1420
        %v1423 = vpop.xlane.xlu0 %1422
        %1424 = vset.pattern.permute.xlu0 %v1423
        %1425 = vperm.xlu0 %1424, %v1421
        %v1426 = vpop.permute.xlu0 %1425
        %vm1427 = vcmp.le.f32.partialorder %v1204, %v1205
        %v1428 = vsel %vm1427, %v1204, %v1205
        %v1429 = vsel %vm1427, %v1297, %v1298
        %vm1430 = vcmp.le.f32.partialorder %v1428, %v1206
        %v1431 = vsel %vm1430, %v1428, %v1206
        %v1432 = vsel %vm1430, %v1429, %v1302
        %vm1433 = vcmp.le.f32.partialorder %v1431, %v1207
        %v1434 = vsel %vm1433, %v1431, %v1207
        %v1435 = vsel %vm1433, %v1432, %v1306
        %1436 = vmin.index.xlane.f32.xlu0 %v1434
        %v1437 = vpop.xlane.xlu0 %1436
        %1438 = vset.pattern.permute.xlu0 %v1437
        %1439 = vperm.xlu0 %1438, %v1435
        %v1440 = vpop.permute.xlu0 %1439
        %vm1441 = vcmp.le.f32.partialorder %v1208, %v1209
        %v1442 = vsel %vm1441, %v1208, %v1209
        %v1443 = vsel %vm1441, %v1297, %v1298
        %vm1444 = vcmp.le.f32.partialorder %v1442, %v1210
        %v1445 = vsel %vm1444, %v1442, %v1210
        %v1446 = vsel %vm1444, %v1443, %v1302
        %vm1447 = vcmp.le.f32.partialorder %v1445, %v1211
        %v1448 = vsel %vm1447, %v1445, %v1211
        %v1449 = vsel %vm1447, %v1446, %v1306
        %1450 = vmin.index.xlane.f32.xlu0 %v1448
        %v1451 = vpop.xlane.xlu0 %1450
        %1452 = vset.pattern.permute.xlu0 %v1451
        %1453 = vperm.xlu0 %1452, %v1449
        %v1454 = vpop.permute.xlu0 %1453
        %vm1455 = vcmp.le.f32.partialorder %v1212, %v1213
        %v1456 = vsel %vm1455, %v1212, %v1213
        %v1457 = vsel %vm1455, %v1297, %v1298
        %vm1458 = vcmp.le.f32.partialorder %v1456, %v1214
        %v1459 = vsel %vm1458, %v1456, %v1214
        %v1460 = vsel %vm1458, %v1457, %v1302
        %vm1461 = vcmp.le.f32.partialorder %v1459, %v1215
        %v1462 = vsel %vm1461, %v1459, %v1215
        %v1463 = vsel %vm1461, %v1460, %v1306
        %1464 = vmin.index.xlane.f32.xlu0 %v1462
        %v1465 = vpop.xlane.xlu0 %1464
        %1466 = vset.pattern.permute.xlu0 %v1465
        %1467 = vperm.xlu0 %1466, %v1463
        %v1468 = vpop.permute.xlu0 %1467
        %vm1469 = vcmp.le.f32.partialorder %v1216, %v1217
        %v1470 = vsel %vm1469, %v1216, %v1217
        %v1471 = vsel %vm1469, %v1297, %v1298
        %vm1472 = vcmp.le.f32.partialorder %v1470, %v1218
        %v1473 = vsel %vm1472, %v1470, %v1218
        %v1474 = vsel %vm1472, %v1471, %v1302
        %vm1475 = vcmp.le.f32.partialorder %v1473, %v1219
        %v1476 = vsel %vm1475, %v1473, %v1219
        %v1477 = vsel %vm1475, %v1474, %v1306
        %1478 = vmin.index.xlane.f32.xlu0 %v1476
        %v1479 = vpop.xlane.xlu0 %1478
        %1480 = vset.pattern.permute.xlu0 %v1479
        %1481 = vperm.xlu0 %1480, %v1477
        %v1482 = vpop.permute.xlu0 %1481
        %vm1483 = vcmp.le.f32.partialorder %v1220, %v1221
        %v1484 = vsel %vm1483, %v1220, %v1221
        %v1485 = vsel %vm1483, %v1297, %v1298
        %vm1486 = vcmp.le.f32.partialorder %v1484, %v1222
        %v1487 = vsel %vm1486, %v1484, %v1222
        %v1488 = vsel %vm1486, %v1485, %v1302
        %vm1489 = vcmp.le.f32.partialorder %v1487, %v1223
        %v1490 = vsel %vm1489, %v1487, %v1223
        %v1491 = vsel %vm1489, %v1488, %v1306
        %1492 = vmin.index.xlane.f32.xlu0 %v1490
        %v1493 = vpop.xlane.xlu0 %1492
        %1494 = vset.pattern.permute.xlu0 %v1493
        %1495 = vperm.xlu0 %1494, %v1491
        %v1496 = vpop.permute.xlu0 %1495
        %vm1497 = vcmp.le.f32.partialorder %v1224, %v1225
        %v1498 = vsel %vm1497, %v1224, %v1225
        %v1499 = vsel %vm1497, %v1297, %v1298
        %vm1500 = vcmp.le.f32.partialorder %v1498, %v1226
        %v1501 = vsel %vm1500, %v1498, %v1226
        %v1502 = vsel %vm1500, %v1499, %v1302
        %vm1503 = vcmp.le.f32.partialorder %v1501, %v1227
        %v1504 = vsel %vm1503, %v1501, %v1227
        %v1505 = vsel %vm1503, %v1502, %v1306
        %1506 = vmin.index.xlane.f32.xlu0 %v1504
        %v1507 = vpop.xlane.xlu0 %1506
        %1508 = vset.pattern.permute.xlu0 %v1507
        %1509 = vperm.xlu0 %1508, %v1505
        %v1510 = vpop.permute.xlu0 %1509
        %vm1511 = vcmp.le.f32.partialorder %v1228, %v1229
        %v1512 = vsel %vm1511, %v1228, %v1229
        %v1513 = vsel %vm1511, %v1297, %v1298
        %vm1514 = vcmp.le.f32.partialorder %v1512, %v1230
        %v1515 = vsel %vm1514, %v1512, %v1230
        %v1516 = vsel %vm1514, %v1513, %v1302
        %vm1517 = vcmp.le.f32.partialorder %v1515, %v1231
        %v1518 = vsel %vm1517, %v1515, %v1231
        %v1519 = vsel %vm1517, %v1516, %v1306
        %1520 = vmin.index.xlane.f32.xlu0 %v1518
        %v1521 = vpop.xlane.xlu0 %1520
        %1522 = vset.pattern.permute.xlu0 %v1521
        %1523 = vperm.xlu0 %1522, %v1519
        %v1524 = vpop.permute.xlu0 %1523
        %vm1525 = vcmp.le.f32.partialorder %v1232, %v1233
        %v1526 = vsel %vm1525, %v1232, %v1233
        %v1527 = vsel %vm1525, %v1297, %v1298
        %vm1528 = vcmp.le.f32.partialorder %v1526, %v1234
        %v1529 = vsel %vm1528, %v1526, %v1234
        %v1530 = vsel %vm1528, %v1527, %v1302
        %vm1531 = vcmp.le.f32.partialorder %v1529, %v1235
        %v1532 = vsel %vm1531, %v1529, %v1235
        %v1533 = vsel %vm1531, %v1530, %v1306
        %1534 = vmin.index.xlane.f32.xlu0 %v1532
        %v1535 = vpop.xlane.xlu0 %1534
        %1536 = vset.pattern.permute.xlu0 %v1535
        %1537 = vperm.xlu0 %1536, %v1533
        %v1538 = vpop.permute.xlu0 %1537
        %vm1539 = vcmp.le.f32.partialorder %v1236, %v1237
        %v1540 = vsel %vm1539, %v1236, %v1237
        %v1541 = vsel %vm1539, %v1297, %v1298
        %vm1542 = vcmp.le.f32.partialorder %v1540, %v1238
        %v1543 = vsel %vm1542, %v1540, %v1238
        %v1544 = vsel %vm1542, %v1541, %v1302
        %vm1545 = vcmp.le.f32.partialorder %v1543, %v1239
        %v1546 = vsel %vm1545, %v1543, %v1239
        %v1547 = vsel %vm1545, %v1544, %v1306
        %1548 = vmin.index.xlane.f32.xlu0 %v1546
        %v1549 = vpop.xlane.xlu0 %1548
        %1550 = vset.pattern.permute.xlu0 %v1549
        %1551 = vperm.xlu0 %1550, %v1547
        %v1552 = vpop.permute.xlu0 %1551
        %vm1553 = vcmp.le.f32.partialorder %v1240, %v1241
        %v1554 = vsel %vm1553, %v1240, %v1241
        %v1555 = vsel %vm1553, %v1297, %v1298
        %vm1556 = vcmp.le.f32.partialorder %v1554, %v1242
        %v1557 = vsel %vm1556, %v1554, %v1242
        %v1558 = vsel %vm1556, %v1555, %v1302
        %vm1559 = vcmp.le.f32.partialorder %v1557, %v1243
        %v1560 = vsel %vm1559, %v1557, %v1243
        %v1561 = vsel %vm1559, %v1558, %v1306
        %1562 = vmin.index.xlane.f32.xlu0 %v1560
        %v1563 = vpop.xlane.xlu0 %1562
        %1564 = vset.pattern.permute.xlu0 %v1563
        %1565 = vperm.xlu0 %1564, %v1561
        %v1566 = vpop.permute.xlu0 %1565
        %vm1567 = vcmp.le.f32.partialorder %v1244, %v1245
        %v1568 = vsel %vm1567, %v1244, %v1245
        %v1569 = vsel %vm1567, %v1297, %v1298
        %vm1570 = vcmp.le.f32.partialorder %v1568, %v1246
        %v1571 = vsel %vm1570, %v1568, %v1246
        %v1572 = vsel %vm1570, %v1569, %v1302
        %vm1573 = vcmp.le.f32.partialorder %v1571, %v1247
        %v1574 = vsel %vm1573, %v1571, %v1247
        %v1575 = vsel %vm1573, %v1572, %v1306
        %1576 = vmin.index.xlane.f32.xlu0 %v1574
        %v1577 = vpop.xlane.xlu0 %1576
        %1578 = vset.pattern.permute.xlu0 %v1577
        %1579 = vperm.xlu0 %1578, %v1575
        %v1580 = vpop.permute.xlu0 %1579
        %vm1581 = vcmp.le.f32.partialorder %v1248, %v1249
        %v1582 = vsel %vm1581, %v1248, %v1249
        %v1583 = vsel %vm1581, %v1297, %v1298
        %vm1584 = vcmp.le.f32.partialorder %v1582, %v1250
        %v1585 = vsel %vm1584, %v1582, %v1250
        %v1586 = vsel %vm1584, %v1583, %v1302
        %vm1587 = vcmp.le.f32.partialorder %v1585, %v1251
        %v1588 = vsel %vm1587, %v1585, %v1251
        %v1589 = vsel %vm1587, %v1586, %v1306
        %1590 = vmin.index.xlane.f32.xlu0 %v1588
        %v1591 = vpop.xlane.xlu0 %1590
        %1592 = vset.pattern.permute.xlu0 %v1591
        %1593 = vperm.xlu0 %1592, %v1589
        %v1594 = vpop.permute.xlu0 %1593
        %vm1595 = vcmp.le.f32.partialorder %v1252, %v1253
        %v1596 = vsel %vm1595, %v1252, %v1253
        %v1597 = vsel %vm1595, %v1297, %v1298
        %vm1598 = vcmp.le.f32.partialorder %v1596, %v1254
        %v1599 = vsel %vm1598, %v1596, %v1254
        %v1600 = vsel %vm1598, %v1597, %v1302
        %vm1601 = vcmp.le.f32.partialorder %v1599, %v1255
        %v1602 = vsel %vm1601, %v1599, %v1255
        %v1603 = vsel %vm1601, %v1600, %v1306
        %1604 = vmin.index.xlane.f32.xlu0 %v1602
        %v1605 = vpop.xlane.xlu0 %1604
        %1606 = vset.pattern.permute.xlu0 %v1605
        %1607 = vperm.xlu0 %1606, %v1603
        %v1608 = vpop.permute.xlu0 %1607
        %vm1609 = vcmp.le.f32.partialorder %v1256, %v1257
        %v1610 = vsel %vm1609, %v1256, %v1257
        %v1611 = vsel %vm1609, %v1297, %v1298
        %vm1612 = vcmp.le.f32.partialorder %v1610, %v1258
        %v1613 = vsel %vm1612, %v1610, %v1258
        %v1614 = vsel %vm1612, %v1611, %v1302
        %vm1615 = vcmp.le.f32.partialorder %v1613, %v1259
        %v1616 = vsel %vm1615, %v1613, %v1259
        %v1617 = vsel %vm1615, %v1614, %v1306
        %1618 = vmin.index.xlane.f32.xlu0 %v1616
        %v1619 = vpop.xlane.xlu0 %1618
        %1620 = vset.pattern.permute.xlu0 %v1619
        %1621 = vperm.xlu0 %1620, %v1617
        %v1622 = vpop.permute.xlu0 %1621
        %vm1623 = vcmp.le.f32.partialorder %v1260, %v1261
        %v1624 = vsel %vm1623, %v1260, %v1261
        %v1625 = vsel %vm1623, %v1297, %v1298
        %vm1626 = vcmp.le.f32.partialorder %v1624, %v1262
        %v1627 = vsel %vm1626, %v1624, %v1262
        %v1628 = vsel %vm1626, %v1625, %v1302
        %vm1629 = vcmp.le.f32.partialorder %v1627, %v1263
        %v1630 = vsel %vm1629, %v1627, %v1263
        %v1631 = vsel %vm1629, %v1628, %v1306
        %1632 = vmin.index.xlane.f32.xlu0 %v1630
        %v1633 = vpop.xlane.xlu0 %1632
        %1634 = vset.pattern.permute.xlu0 %v1633
        %1635 = vperm.xlu0 %1634, %v1631
        %v1636 = vpop.permute.xlu0 %1635
        %vm1637 = vcmp.le.f32.partialorder %v1264, %v1265
        %v1638 = vsel %vm1637, %v1264, %v1265
        %v1639 = vsel %vm1637, %v1297, %v1298
        %vm1640 = vcmp.le.f32.partialorder %v1638, %v1266
        %v1641 = vsel %vm1640, %v1638, %v1266
        %v1642 = vsel %vm1640, %v1639, %v1302
        %vm1643 = vcmp.le.f32.partialorder %v1641, %v1267
        %v1644 = vsel %vm1643, %v1641, %v1267
        %v1645 = vsel %vm1643, %v1642, %v1306
        %1646 = vmin.index.xlane.f32.xlu0 %v1644
        %v1647 = vpop.xlane.xlu0 %1646
        %1648 = vset.pattern.permute.xlu0 %v1647
        %1649 = vperm.xlu0 %1648, %v1645
        %v1650 = vpop.permute.xlu0 %1649
        %vm1651 = vcmp.le.f32.partialorder %v1268, %v1269
        %v1652 = vsel %vm1651, %v1268, %v1269
        %v1653 = vsel %vm1651, %v1297, %v1298
        %vm1654 = vcmp.le.f32.partialorder %v1652, %v1270
        %v1655 = vsel %vm1654, %v1652, %v1270
        %v1656 = vsel %vm1654, %v1653, %v1302
        %vm1657 = vcmp.le.f32.partialorder %v1655, %v1271
        %v1658 = vsel %vm1657, %v1655, %v1271
        %v1659 = vsel %vm1657, %v1656, %v1306
        %1660 = vmin.index.xlane.f32.xlu0 %v1658
        %v1661 = vpop.xlane.xlu0 %1660
        %1662 = vset.pattern.permute.xlu0 %v1661
        %1663 = vperm.xlu0 %1662, %v1659
        %v1664 = vpop.permute.xlu0 %1663
        %vm1665 = vcmp.le.f32.partialorder %v1272, %v1273
        %v1666 = vsel %vm1665, %v1272, %v1273
        %v1667 = vsel %vm1665, %v1297, %v1298
        %vm1668 = vcmp.le.f32.partialorder %v1666, %v1274
        %v1669 = vsel %vm1668, %v1666, %v1274
        %v1670 = vsel %vm1668, %v1667, %v1302
        %vm1671 = vcmp.le.f32.partialorder %v1669, %v1275
        %v1672 = vsel %vm1671, %v1669, %v1275
        %v1673 = vsel %vm1671, %v1670, %v1306
        %1674 = vmin.index.xlane.f32.xlu0 %v1672
        %v1675 = vpop.xlane.xlu0 %1674
        %1676 = vset.pattern.permute.xlu0 %v1675
        %1677 = vperm.xlu0 %1676, %v1673
        %v1678 = vpop.permute.xlu0 %1677
        %vm1679 = vcmp.le.f32.partialorder %v1276, %v1277
        %v1680 = vsel %vm1679, %v1276, %v1277
        %v1681 = vsel %vm1679, %v1297, %v1298
        %vm1682 = vcmp.le.f32.partialorder %v1680, %v1278
        %v1683 = vsel %vm1682, %v1680, %v1278
        %v1684 = vsel %vm1682, %v1681, %v1302
        %vm1685 = vcmp.le.f32.partialorder %v1683, %v1279
        %v1686 = vsel %vm1685, %v1683, %v1279
        %v1687 = vsel %vm1685, %v1684, %v1306
        %1688 = vmin.index.xlane.f32.xlu0 %v1686
        %v1689 = vpop.xlane.xlu0 %1688
        %1690 = vset.pattern.permute.xlu0 %v1689
        %1691 = vperm.xlu0 %1690, %v1687
        %v1692 = vpop.permute.xlu0 %1691
        %vm1693 = vcmp.le.f32.partialorder %v1280, %v1281
        %v1694 = vsel %vm1693, %v1280, %v1281
        %v1695 = vsel %vm1693, %v1297, %v1298
        %vm1696 = vcmp.le.f32.partialorder %v1694, %v1282
        %v1697 = vsel %vm1696, %v1694, %v1282
        %v1698 = vsel %vm1696, %v1695, %v1302
        %vm1699 = vcmp.le.f32.partialorder %v1697, %v1283
        %v1700 = vsel %vm1699, %v1697, %v1283
        %v1701 = vsel %vm1699, %v1698, %v1306
        %1702 = vmin.index.xlane.f32.xlu0 %v1700
        %v1703 = vpop.xlane.xlu0 %1702
        %1704 = vset.pattern.permute.xlu0 %v1703
        %1705 = vperm.xlu0 %1704, %v1701
        %v1706 = vpop.permute.xlu0 %1705
        %vm1707 = vcmp.le.f32.partialorder %v1284, %v1285
        %v1708 = vsel %vm1707, %v1284, %v1285
        %v1709 = vsel %vm1707, %v1297, %v1298
        %vm1710 = vcmp.le.f32.partialorder %v1708, %v1286
        %v1711 = vsel %vm1710, %v1708, %v1286
        %v1712 = vsel %vm1710, %v1709, %v1302
        %vm1713 = vcmp.le.f32.partialorder %v1711, %v1287
        %v1714 = vsel %vm1713, %v1711, %v1287
        %v1715 = vsel %vm1713, %v1712, %v1306
        %1716 = vmin.index.xlane.f32.xlu0 %v1714
        %v1717 = vpop.xlane.xlu0 %1716
        %1718 = vset.pattern.permute.xlu0 %v1717
        %1719 = vperm.xlu0 %1718, %v1715
        %v1720 = vpop.permute.xlu0 %1719
        %vm1721 = vcmp.le.f32.partialorder %v1288, %v1289
        %v1722 = vsel %vm1721, %v1288, %v1289
        %v1723 = vsel %vm1721, %v1297, %v1298
        %vm1724 = vcmp.le.f32.partialorder %v1722, %v1290
        %v1725 = vsel %vm1724, %v1722, %v1290
        %v1726 = vsel %vm1724, %v1723, %v1302
        %vm1727 = vcmp.le.f32.partialorder %v1725, %v1291
        %v1728 = vsel %vm1727, %v1725, %v1291
        %v1729 = vsel %vm1727, %v1726, %v1306
        %1730 = vmin.index.xlane.f32.xlu0 %v1728
        %v1731 = vpop.xlane.xlu0 %1730
        %1732 = vset.pattern.permute.xlu0 %v1731
        %1733 = vperm.xlu0 %1732, %v1729
        %v1734 = vpop.permute.xlu0 %1733
        %vm1735 = vcmp.le.f32.partialorder %v1292, %v1293
        %v1736 = vsel %vm1735, %v1292, %v1293
        %v1737 = vsel %vm1735, %v1297, %v1298
        %vm1738 = vcmp.le.f32.partialorder %v1736, %v1294
        %v1739 = vsel %vm1738, %v1736, %v1294
        %v1740 = vsel %vm1738, %v1737, %v1302
        %vm1741 = vcmp.le.f32.partialorder %v1739, %v1295
        %v1742 = vsel %vm1741, %v1739, %v1295
        %v1743 = vsel %vm1741, %v1740, %v1306
        %1744 = vmin.index.xlane.f32.xlu0 %v1742
        %v1745 = vpop.xlane.xlu0 %1744
        %1746 = vset.pattern.permute.xlu0 %v1745
        %1747 = vperm.xlu0 %1746, %v1743
        %v1748 = vpop.permute.xlu0 %1747
        %vm1749 = vcmp.eq.s32.totalorder %v1297, %v1314
        %vm1750 = vcmp.eq.s32.totalorder %v1298, %v1314
        %vm1751 = vcmp.eq.s32.totalorder %v1302, %v1314
        %vm1752 = vcmp.eq.s32.totalorder %v1306, %v1314
        %vm1753 = vcmp.eq.s32.totalorder %v1297, %v1328
        %vm1754 = vcmp.eq.s32.totalorder %v1298, %v1328
        %vm1755 = vcmp.eq.s32.totalorder %v1302, %v1328
        %vm1756 = vcmp.eq.s32.totalorder %v1306, %v1328
        %vm1757 = vcmp.eq.s32.totalorder %v1297, %v1342
        %vm1758 = vcmp.eq.s32.totalorder %v1298, %v1342
        %vm1759 = vcmp.eq.s32.totalorder %v1302, %v1342
        %vm1760 = vcmp.eq.s32.totalorder %v1306, %v1342
        %vm1761 = vcmp.eq.s32.totalorder %v1297, %v1356
        %vm1762 = vcmp.eq.s32.totalorder %v1298, %v1356
        %vm1763 = vcmp.eq.s32.totalorder %v1302, %v1356
        %vm1764 = vcmp.eq.s32.totalorder %v1306, %v1356
        %vm1765 = vcmp.eq.s32.totalorder %v1297, %v1370
        %vm1766 = vcmp.eq.s32.totalorder %v1298, %v1370
        %vm1767 = vcmp.eq.s32.totalorder %v1302, %v1370
        %vm1768 = vcmp.eq.s32.totalorder %v1306, %v1370
        %vm1769 = vcmp.eq.s32.totalorder %v1297, %v1384
        %vm1770 = vcmp.eq.s32.totalorder %v1298, %v1384
        %vm1771 = vcmp.eq.s32.totalorder %v1302, %v1384
        %vm1772 = vcmp.eq.s32.totalorder %v1306, %v1384
        %vm1773 = vcmp.eq.s32.totalorder %v1297, %v1398
        %vm1774 = vcmp.eq.s32.totalorder %v1298, %v1398
        %vm1775 = vcmp.eq.s32.totalorder %v1302, %v1398
        %vm1776 = vcmp.eq.s32.totalorder %v1306, %v1398
        %vm1777 = vcmp.eq.s32.totalorder %v1297, %v1412
        %vm1778 = vcmp.eq.s32.totalorder %v1298, %v1412
        %vm1779 = vcmp.eq.s32.totalorder %v1302, %v1412
        %vm1780 = vcmp.eq.s32.totalorder %v1306, %v1412
        %vm1781 = vcmp.eq.s32.totalorder %v1297, %v1426
        %vm1782 = vcmp.eq.s32.totalorder %v1298, %v1426
        %vm1783 = vcmp.eq.s32.totalorder %v1302, %v1426
        %vm1784 = vcmp.eq.s32.totalorder %v1306, %v1426
        %vm1785 = vcmp.eq.s32.totalorder %v1297, %v1440
        %vm1786 = vcmp.eq.s32.totalorder %v1298, %v1440
        %vm1787 = vcmp.eq.s32.totalorder %v1302, %v1440
        %vm1788 = vcmp.eq.s32.totalorder %v1306, %v1440
        %vm1789 = vcmp.eq.s32.totalorder %v1297, %v1454
        %vm1790 = vcmp.eq.s32.totalorder %v1298, %v1454
        %vm1791 = vcmp.eq.s32.totalorder %v1302, %v1454
        %vm1792 = vcmp.eq.s32.totalorder %v1306, %v1454
        %vm1793 = vcmp.eq.s32.totalorder %v1297, %v1468
        %vm1794 = vcmp.eq.s32.totalorder %v1298, %v1468
        %vm1795 = vcmp.eq.s32.totalorder %v1302, %v1468
        %vm1796 = vcmp.eq.s32.totalorder %v1306, %v1468
        %vm1797 = vcmp.eq.s32.totalorder %v1297, %v1482
        %vm1798 = vcmp.eq.s32.totalorder %v1298, %v1482
        %vm1799 = vcmp.eq.s32.totalorder %v1302, %v1482
        %vm1800 = vcmp.eq.s32.totalorder %v1306, %v1482
        %vm1801 = vcmp.eq.s32.totalorder %v1297, %v1496
        %vm1802 = vcmp.eq.s32.totalorder %v1298, %v1496
        %vm1803 = vcmp.eq.s32.totalorder %v1302, %v1496
        %vm1804 = vcmp.eq.s32.totalorder %v1306, %v1496
        %vm1805 = vcmp.eq.s32.totalorder %v1297, %v1510
        %vm1806 = vcmp.eq.s32.totalorder %v1298, %v1510
        %vm1807 = vcmp.eq.s32.totalorder %v1302, %v1510
        %vm1808 = vcmp.eq.s32.totalorder %v1306, %v1510
        %vm1809 = vcmp.eq.s32.totalorder %v1297, %v1524
        %vm1810 = vcmp.eq.s32.totalorder %v1298, %v1524
        %vm1811 = vcmp.eq.s32.totalorder %v1302, %v1524
        %vm1812 = vcmp.eq.s32.totalorder %v1306, %v1524
        %vm1813 = vcmp.eq.s32.totalorder %v1297, %v1538
        %vm1814 = vcmp.eq.s32.totalorder %v1298, %v1538
        %vm1815 = vcmp.eq.s32.totalorder %v1302, %v1538
        %vm1816 = vcmp.eq.s32.totalorder %v1306, %v1538
        %vm1817 = vcmp.eq.s32.totalorder %v1297, %v1552
        %vm1818 = vcmp.eq.s32.totalorder %v1298, %v1552
        %vm1819 = vcmp.eq.s32.totalorder %v1302, %v1552
        %vm1820 = vcmp.eq.s32.totalorder %v1306, %v1552
        %vm1821 = vcmp.eq.s32.totalorder %v1297, %v1566
        %vm1822 = vcmp.eq.s32.totalorder %v1298, %v1566
        %vm1823 = vcmp.eq.s32.totalorder %v1302, %v1566
        %vm1824 = vcmp.eq.s32.totalorder %v1306, %v1566
        %vm1825 = vcmp.eq.s32.totalorder %v1297, %v1580
        %vm1826 = vcmp.eq.s32.totalorder %v1298, %v1580
        %vm1827 = vcmp.eq.s32.totalorder %v1302, %v1580
        %vm1828 = vcmp.eq.s32.totalorder %v1306, %v1580
        %vm1829 = vcmp.eq.s32.totalorder %v1297, %v1594
        %vm1830 = vcmp.eq.s32.totalorder %v1298, %v1594
        %vm1831 = vcmp.eq.s32.totalorder %v1302, %v1594
        %vm1832 = vcmp.eq.s32.totalorder %v1306, %v1594
        %vm1833 = vcmp.eq.s32.totalorder %v1297, %v1608
        %vm1834 = vcmp.eq.s32.totalorder %v1298, %v1608
        %vm1835 = vcmp.eq.s32.totalorder %v1302, %v1608
        %vm1836 = vcmp.eq.s32.totalorder %v1306, %v1608
        %vm1837 = vcmp.eq.s32.totalorder %v1297, %v1622
        %vm1838 = vcmp.eq.s32.totalorder %v1298, %v1622
        %vm1839 = vcmp.eq.s32.totalorder %v1302, %v1622
        %vm1840 = vcmp.eq.s32.totalorder %v1306, %v1622
        %vm1841 = vcmp.eq.s32.totalorder %v1297, %v1636
        %vm1842 = vcmp.eq.s32.totalorder %v1298, %v1636
        %vm1843 = vcmp.eq.s32.totalorder %v1302, %v1636
        %vm1844 = vcmp.eq.s32.totalorder %v1306, %v1636
        %vm1845 = vcmp.eq.s32.totalorder %v1297, %v1650
        %vm1846 = vcmp.eq.s32.totalorder %v1298, %v1650
        %vm1847 = vcmp.eq.s32.totalorder %v1302, %v1650
        %vm1848 = vcmp.eq.s32.totalorder %v1306, %v1650
        %vm1849 = vcmp.eq.s32.totalorder %v1297, %v1664
        %vm1850 = vcmp.eq.s32.totalorder %v1298, %v1664
        %vm1851 = vcmp.eq.s32.totalorder %v1302, %v1664
        %vm1852 = vcmp.eq.s32.totalorder %v1306, %v1664
        %vm1853 = vcmp.eq.s32.totalorder %v1297, %v1678
        %vm1854 = vcmp.eq.s32.totalorder %v1298, %v1678
        %vm1855 = vcmp.eq.s32.totalorder %v1302, %v1678
        %vm1856 = vcmp.eq.s32.totalorder %v1306, %v1678
        %vm1857 = vcmp.eq.s32.totalorder %v1297, %v1692
        %vm1858 = vcmp.eq.s32.totalorder %v1298, %v1692
        %vm1859 = vcmp.eq.s32.totalorder %v1302, %v1692
        %vm1860 = vcmp.eq.s32.totalorder %v1306, %v1692
        %vm1861 = vcmp.eq.s32.totalorder %v1297, %v1706
        %vm1862 = vcmp.eq.s32.totalorder %v1298, %v1706
        %vm1863 = vcmp.eq.s32.totalorder %v1302, %v1706
        %vm1864 = vcmp.eq.s32.totalorder %v1306, %v1706
        %vm1865 = vcmp.eq.s32.totalorder %v1297, %v1720
        %vm1866 = vcmp.eq.s32.totalorder %v1298, %v1720
        %vm1867 = vcmp.eq.s32.totalorder %v1302, %v1720
        %vm1868 = vcmp.eq.s32.totalorder %v1306, %v1720
        %vm1869 = vcmp.eq.s32.totalorder %v1297, %v1734
        %vm1870 = vcmp.eq.s32.totalorder %v1298, %v1734
        %vm1871 = vcmp.eq.s32.totalorder %v1302, %v1734
        %vm1872 = vcmp.eq.s32.totalorder %v1306, %v1734
        %vm1873 = vcmp.eq.s32.totalorder %v1297, %v1748
        %vm1874 = vcmp.eq.s32.totalorder %v1298, %v1748
        %vm1875 = vcmp.eq.s32.totalorder %v1302, %v1748
        %vm1876 = vcmp.eq.s32.totalorder %v1306, %v1748
        %v1877 = vsel %vm1749, 1, 0
        %v1878 = vsel %vm1750, 1, 0
        %v1879 = vsel %vm1751, 1, 0
        %v1880 = vsel %vm1752, 1, 0
        %v1881 = vsel %vm1753, 1, 0
        %v1882 = vsel %vm1754, 1, 0
        %v1883 = vsel %vm1755, 1, 0
        %v1884 = vsel %vm1756, 1, 0
        %v1885 = vsel %vm1757, 1, 0
        %v1886 = vsel %vm1758, 1, 0
        %v1887 = vsel %vm1759, 1, 0
        %v1888 = vsel %vm1760, 1, 0
        %v1889 = vsel %vm1761, 1, 0
        %v1890 = vsel %vm1762, 1, 0
        %v1891 = vsel %vm1763, 1, 0
        %v1892 = vsel %vm1764, 1, 0
        %v1893 = vsel %vm1765, 1, 0
        %v1894 = vsel %vm1766, 1, 0
        %v1895 = vsel %vm1767, 1, 0
        %v1896 = vsel %vm1768, 1, 0
        %v1897 = vsel %vm1769, 1, 0
        %v1898 = vsel %vm1770, 1, 0
        %v1899 = vsel %vm1771, 1, 0
        %v1900 = vsel %vm1772, 1, 0
        %v1901 = vsel %vm1773, 1, 0
        %v1902 = vsel %vm1774, 1, 0
        %v1903 = vsel %vm1775, 1, 0
        %v1904 = vsel %vm1776, 1, 0
        %v1905 = vsel %vm1777, 1, 0
        %v1906 = vsel %vm1778, 1, 0
        %v1907 = vsel %vm1779, 1, 0
        %v1908 = vsel %vm1780, 1, 0
        %v1909 = vsel %vm1781, 1, 0
        %v1910 = vsel %vm1782, 1, 0
        %v1911 = vsel %vm1783, 1, 0
        %v1912 = vsel %vm1784, 1, 0
        %v1913 = vsel %vm1785, 1, 0
        %v1914 = vsel %vm1786, 1, 0
        %v1915 = vsel %vm1787, 1, 0
        %v1916 = vsel %vm1788, 1, 0
        %v1917 = vsel %vm1789, 1, 0
        %v1918 = vsel %vm1790, 1, 0
        %v1919 = vsel %vm1791, 1, 0
        %v1920 = vsel %vm1792, 1, 0
        %v1921 = vsel %vm1793, 1, 0
        %v1922 = vsel %vm1794, 1, 0
        %v1923 = vsel %vm1795, 1, 0
        %v1924 = vsel %vm1796, 1, 0
        %v1925 = vsel %vm1797, 1, 0
        %v1926 = vsel %vm1798, 1, 0
        %v1927 = vsel %vm1799, 1, 0
        %v1928 = vsel %vm1800, 1, 0
        %v1929 = vsel %vm1801, 1, 0
        %v1930 = vsel %vm1802, 1, 0
        %v1931 = vsel %vm1803, 1, 0
        %v1932 = vsel %vm1804, 1, 0
        %v1933 = vsel %vm1805, 1, 0
        %v1934 = vsel %vm1806, 1, 0
        %v1935 = vsel %vm1807, 1, 0
        %v1936 = vsel %vm1808, 1, 0
        %v1937 = vsel %vm1809, 1, 0
        %v1938 = vsel %vm1810, 1, 0
        %v1939 = vsel %vm1811, 1, 0
        %v1940 = vsel %vm1812, 1, 0
        %v1941 = vsel %vm1813, 1, 0
        %v1942 = vsel %vm1814, 1, 0
        %v1943 = vsel %vm1815, 1, 0
        %v1944 = vsel %vm1816, 1, 0
        %v1945 = vsel %vm1817, 1, 0
        %v1946 = vsel %vm1818, 1, 0
        %v1947 = vsel %vm1819, 1, 0
        %v1948 = vsel %vm1820, 1, 0
        %v1949 = vsel %vm1821, 1, 0
        %v1950 = vsel %vm1822, 1, 0
        %v1951 = vsel %vm1823, 1, 0
        %v1952 = vsel %vm1824, 1, 0
        %v1953 = vsel %vm1825, 1, 0
        %v1954 = vsel %vm1826, 1, 0
        %v1955 = vsel %vm1827, 1, 0
        %v1956 = vsel %vm1828, 1, 0
        %v1957 = vsel %vm1829, 1, 0
        %v1958 = vsel %vm1830, 1, 0
        %v1959 = vsel %vm1831, 1, 0
        %v1960 = vsel %vm1832, 1, 0
        %v1961 = vsel %vm1833, 1, 0
        %v1962 = vsel %vm1834, 1, 0
        %v1963 = vsel %vm1835, 1, 0
        %v1964 = vsel %vm1836, 1, 0
        %v1965 = vsel %vm1837, 1, 0
        %v1966 = vsel %vm1838, 1, 0
        %v1967 = vsel %vm1839, 1, 0
        %v1968 = vsel %vm1840, 1, 0
        %v1969 = vsel %vm1841, 1, 0
        %v1970 = vsel %vm1842, 1, 0
        %v1971 = vsel %vm1843, 1, 0
        %v1972 = vsel %vm1844, 1, 0
        %v1973 = vsel %vm1845, 1, 0
        %v1974 = vsel %vm1846, 1, 0
        %v1975 = vsel %vm1847, 1, 0
        %v1976 = vsel %vm1848, 1, 0
        %v1977 = vsel %vm1849, 1, 0
        %v1978 = vsel %vm1850, 1, 0
        %v1979 = vsel %vm1851, 1, 0
        %v1980 = vsel %vm1852, 1, 0
        %v1981 = vsel %vm1853, 1, 0
        %v1982 = vsel %vm1854, 1, 0
        %v1983 = vsel %vm1855, 1, 0
        %v1984 = vsel %vm1856, 1, 0
        %v1985 = vsel %vm1857, 1, 0
        %v1986 = vsel %vm1858, 1, 0
        %v1987 = vsel %vm1859, 1, 0
        %v1988 = vsel %vm1860, 1, 0
        %v1989 = vsel %vm1861, 1, 0
        %v1990 = vsel %vm1862, 1, 0
        %v1991 = vsel %vm1863, 1, 0
        %v1992 = vsel %vm1864, 1, 0
        %v1993 = vsel %vm1865, 1, 0
        %v1994 = vsel %vm1866, 1, 0
        %v1995 = vsel %vm1867, 1, 0
        %v1996 = vsel %vm1868, 1, 0
        %v1997 = vsel %vm1869, 1, 0
        %v1998 = vsel %vm1870, 1, 0
        %v1999 = vsel %vm1871, 1, 0
        %v2000 = vsel %vm1872, 1, 0
        %v2001 = vsel %vm1873, 1, 0
        %v2002 = vsel %vm1874, 1, 0
        %v2003 = vsel %vm1875, 1, 0
        %v2004 = vsel %vm1876, 1, 0
        %v2005 = vcvt.s32.f32 %v1877
        %v2006 = vcvt.s32.f32 %v1878
        %v2007 = vcvt.s32.f32 %v1879
        %v2008 = vcvt.s32.f32 %v1880
        %v2009 = vcvt.s32.f32 %v1881
        %v2010 = vcvt.s32.f32 %v1882
        %v2011 = vcvt.s32.f32 %v1883
        %v2012 = vcvt.s32.f32 %v1884
        %v2013 = vcvt.s32.f32 %v1885
        %v2014 = vcvt.s32.f32 %v1886
        %v2015 = vcvt.s32.f32 %v1887
        %v2016 = vcvt.s32.f32 %v1888
        %v2017 = vcvt.s32.f32 %v1889
        %v2018 = vcvt.s32.f32 %v1890
        %v2019 = vcvt.s32.f32 %v1891
        %v2020 = vcvt.s32.f32 %v1892
        %v2021 = vcvt.s32.f32 %v1893
        %v2022 = vcvt.s32.f32 %v1894
        %v2023 = vcvt.s32.f32 %v1895
        %v2024 = vcvt.s32.f32 %v1896
        %v2025 = vcvt.s32.f32 %v1897
        %v2026 = vcvt.s32.f32 %v1898
        %v2027 = vcvt.s32.f32 %v1899
        %v2028 = vcvt.s32.f32 %v1900
        %v2029 = vcvt.s32.f32 %v1901
        %v2030 = vcvt.s32.f32 %v1902
        %v2031 = vcvt.s32.f32 %v1903
        %v2032 = vcvt.s32.f32 %v1904
        %v2033 = vcvt.s32.f32 %v1905
        %v2034 = vcvt.s32.f32 %v1906
        %v2035 = vcvt.s32.f32 %v1907
        %v2036 = vcvt.s32.f32 %v1908
        %v2037 = vcvt.s32.f32 %v1909
        %v2038 = vcvt.s32.f32 %v1910
        %v2039 = vcvt.s32.f32 %v1911
        %v2040 = vcvt.s32.f32 %v1912
        %v2041 = vcvt.s32.f32 %v1913
        %v2042 = vcvt.s32.f32 %v1914
        %v2043 = vcvt.s32.f32 %v1915
        %v2044 = vcvt.s32.f32 %v1916
        %v2045 = vcvt.s32.f32 %v1917
        %v2046 = vcvt.s32.f32 %v1918
        %v2047 = vcvt.s32.f32 %v1919
        %v2048 = vcvt.s32.f32 %v1920
        %v2049 = vcvt.s32.f32 %v1921
        %v2050 = vcvt.s32.f32 %v1922
        %v2051 = vcvt.s32.f32 %v1923
        %v2052 = vcvt.s32.f32 %v1924
        %v2053 = vcvt.s32.f32 %v1925
        %v2054 = vcvt.s32.f32 %v1926
        %v2055 = vcvt.s32.f32 %v1927
        %v2056 = vcvt.s32.f32 %v1928
        %v2057 = vcvt.s32.f32 %v1929
        %v2058 = vcvt.s32.f32 %v1930
        %v2059 = vcvt.s32.f32 %v1931
        %v2060 = vcvt.s32.f32 %v1932
        %v2061 = vcvt.s32.f32 %v1933
        %v2062 = vcvt.s32.f32 %v1934
        %v2063 = vcvt.s32.f32 %v1935
        %v2064 = vcvt.s32.f32 %v1936
        %v2065 = vcvt.s32.f32 %v1937
        %v2066 = vcvt.s32.f32 %v1938
        %v2067 = vcvt.s32.f32 %v1939
        %v2068 = vcvt.s32.f32 %v1940
        %v2069 = vcvt.s32.f32 %v1941
        %v2070 = vcvt.s32.f32 %v1942
        %v2071 = vcvt.s32.f32 %v1943
        %v2072 = vcvt.s32.f32 %v1944
        %v2073 = vcvt.s32.f32 %v1945
        %v2074 = vcvt.s32.f32 %v1946
        %v2075 = vcvt.s32.f32 %v1947
        %v2076 = vcvt.s32.f32 %v1948
        %v2077 = vcvt.s32.f32 %v1949
        %v2078 = vcvt.s32.f32 %v1950
        %v2079 = vcvt.s32.f32 %v1951
        %v2080 = vcvt.s32.f32 %v1952
        %v2081 = vcvt.s32.f32 %v1953
        %v2082 = vcvt.s32.f32 %v1954
        %v2083 = vcvt.s32.f32 %v1955
        %v2084 = vcvt.s32.f32 %v1956
        %v2085 = vcvt.s32.f32 %v1957
        %v2086 = vcvt.s32.f32 %v1958
        %v2087 = vcvt.s32.f32 %v1959
        %v2088 = vcvt.s32.f32 %v1960
        %v2089 = vcvt.s32.f32 %v1961
        %v2090 = vcvt.s32.f32 %v1962
        %v2091 = vcvt.s32.f32 %v1963
        %v2092 = vcvt.s32.f32 %v1964
        %v2093 = vcvt.s32.f32 %v1965
        %v2094 = vcvt.s32.f32 %v1966
        %v2095 = vcvt.s32.f32 %v1967
        %v2096 = vcvt.s32.f32 %v1968
        %v2097 = vcvt.s32.f32 %v1969
        %v2098 = vcvt.s32.f32 %v1970
        %v2099 = vcvt.s32.f32 %v1971
        %v2100 = vcvt.s32.f32 %v1972
        %v2101 = vcvt.s32.f32 %v1973
        %v2102 = vcvt.s32.f32 %v1974
        %v2103 = vcvt.s32.f32 %v1975
        %v2104 = vcvt.s32.f32 %v1976
        %v2105 = vcvt.s32.f32 %v1977
        %v2106 = vcvt.s32.f32 %v1978
        %v2107 = vcvt.s32.f32 %v1979
        %v2108 = vcvt.s32.f32 %v1980
        %v2109 = vcvt.s32.f32 %v1981
        %v2110 = vcvt.s32.f32 %v1982
        %v2111 = vcvt.s32.f32 %v1983
        %v2112 = vcvt.s32.f32 %v1984
        %v2113 = vcvt.s32.f32 %v1985
        %v2114 = vcvt.s32.f32 %v1986
        %v2115 = vcvt.s32.f32 %v1987
        %v2116 = vcvt.s32.f32 %v1988
        %v2117 = vcvt.s32.f32 %v1989
        %v2118 = vcvt.s32.f32 %v1990
        %v2119 = vcvt.s32.f32 %v1991
        %v2120 = vcvt.s32.f32 %v1992
        %v2121 = vcvt.s32.f32 %v1993
        %v2122 = vcvt.s32.f32 %v1994
        %v2123 = vcvt.s32.f32 %v1995
        %v2124 = vcvt.s32.f32 %v1996
        %v2125 = vcvt.s32.f32 %v1997
        %v2126 = vcvt.s32.f32 %v1998
        %v2127 = vcvt.s32.f32 %v1999
        %v2128 = vcvt.s32.f32 %v2000
        %v2129 = vcvt.s32.f32 %v2001
        %v2130 = vcvt.s32.f32 %v2002
        %v2131 = vcvt.s32.f32 %v2003
        %v2132 = vcvt.s32.f32 %v2004
        %2133 = vmatprep.subr.mxu0 0.0
        %2134 = vmatpush1.msra.mxu0 %v295
        %2135 = vmatprep.subr.mxu0 0.0
        %2136 = vmatpush1.msra.mxu0 %v296
        %2137 = vmatprep.subr.mxu0 0.0
        %2138 = vmatpush1.msra.mxu0 %v297
        %2139 = vmatprep.subr.mxu0 0.0
        %2140 = vmatpush1.msra.mxu0 %v298
        %2141 = vmatprep.subr.mxu0 0.0
        %2142 = vmatpush1.msra.mxu0 %v299
        %2143 = vmatprep.subr.mxu0 0.0
        %2144 = vmatpush1.msra.mxu0 %v300
        %2145 = vmatprep.subr.mxu0 0.0
        %2146 = vmatpush1.msra.mxu0 %v301
        %2147 = vmatprep.subr.mxu0 0.0
        %2148 = vmatpush1.msra.mxu0 %v302
        %2149 = vmatprep.subr.mxu0 0.0
        %2150 = vmatpush1.msra.mxu0 %v303
        %2151 = vmatprep.subr.mxu0 0.0
        %2152 = vmatpush1.msra.mxu0 %v304
        %2153 = vmatprep.subr.mxu0 0.0
        %2154 = vmatpush1.msra.mxu0 %v305
        %2155 = vmatprep.subr.mxu0 0.0
        %2156 = vmatpush1.msra.mxu0 %v306
        %2157 = vmatprep.subr.mxu0 0.0
        %2158 = vmatpush1.msra.mxu0 %v307
        %2159 = vmatprep.subr.mxu0 0.0
        %2160 = vmatpush1.msra.mxu0 %v308
        %2161 = vmatprep.subr.mxu0 0.0
        %2162 = vmatpush1.msra.mxu0 %v309
        %2163 = vmatprep.subr.mxu0 0.0
        %2164 = vmatpush1.msra.mxu0 %v310
        %2165 = vmatprep.subr.mxu0 0.0
        %2166 = vmatpush1.msra.mxu0 %v311
        %2167 = vmatprep.subr.mxu0 0.0
        %2168 = vmatpush1.msra.mxu0 %v312
        %2169 = vmatprep.subr.mxu0 0.0
        %2170 = vmatpush1.msra.mxu0 %v313
        %2171 = vmatprep.subr.mxu0 0.0
        %2172 = vmatpush1.msra.mxu0 %v314
        %2173 = vmatprep.subr.mxu0 0.0
        %2174 = vmatpush1.msra.mxu0 %v315
        %2175 = vmatprep.subr.mxu0 0.0
        %2176 = vmatpush1.msra.mxu0 %v316
        %2177 = vmatprep.subr.mxu0 0.0
        %2178 = vmatpush1.msra.mxu0 %v317
        %2179 = vmatprep.subr.mxu0 0.0
        %2180 = vmatpush1.msra.mxu0 %v318
        %2181 = vmatprep.subr.mxu0 0.0
        %2182 = vmatpush1.msra.mxu0 %v319
        %2183 = vmatprep.subr.mxu0 0.0
        %2184 = vmatpush1.msra.mxu0 %v320
        %2185 = vmatprep.subr.mxu0 0.0
        %2186 = vmatpush1.msra.mxu0 %v321
        %2187 = vmatprep.subr.mxu0 0.0
        %2188 = vmatpush1.msra.mxu0 %v322
        %2189 = vmatprep.subr.mxu0 0.0
        %2190 = vmatpush1.msra.mxu0 %v323
        %2191 = vmatprep.subr.mxu0 0.0
        %2192 = vmatpush1.msra.mxu0 %v324
        %2193 = vmatprep.subr.mxu0 0.0
        %2194 = vmatpush1.msra.mxu0 %v325
        %2195 = vmatprep.subr.mxu0 0.0
        %2196 = vmatpush1.msra.mxu0 %v326
        %2197 = vmatprep.mubr.f32.mxu0 %v2006
        %2198 = vmatmul.mubr.f32.gmra.mrb[0].mxu0 %v2005
        %v2199 = vpop.f32.mrb[0].mxu0
        %v2200 = vadd.f32 0.0, %v2199
        %v2201 = vpop.f32.mrb[0].mxu0
        %2202 = vmatprep.mubr.f32.mxu0 %v2010
        %2203 = vmatmul.mubr.f32.gmra.mrb[0].mxu0 %v2009
        %v2204 = vpop.f32.mrb[0].mxu0
        %v2205 = vadd.f32 0.0, %v2204
        %v2206 = vpop.f32.mrb[0].mxu0
        %2207 = vmatprep.mubr.f32.mxu0 %v2014
        %2208 = vmatmul.mubr.f32.gmra.mrb[0].mxu0 %v2013
        %v2209 = vpop.f32.mrb[0].mxu0
        %v2210 = vadd.f32 0.0, %v2209
        %v2211 = vpop.f32.mrb[0].mxu0
        %2212 = vmatprep.mubr.f32.mxu0 %v2018
        %2213 = vmatmul.mubr.f32.gmra.mrb[0].mxu0 %v2017
        %v2214 = vpop.f32.mrb[0].mxu0
        %v2215 = vadd.f32 0.0, %v2214
        %v2216 = vpop.f32.mrb[0].mxu0
        %2217 = vmatprep.mubr.f32.mxu0 %v2022
        %2218 = vmatmul.mubr.f32.gmra.mrb[0].mxu0 %v2021
        %v2219 = vpop.f32.mrb[0].mxu0
        %v2220 = vadd.f32 0.0, %v2219
        %v2221 = vpop.f32.mrb[0].mxu0
        %2222 = vmatprep.mubr.f32.mxu0 %v2026
        %2223 = vmatmul.mubr.f32.gmra.mrb[0].mxu0 %v2025
        %v2224 = vpop.f32.mrb[0].mxu0
        %v2225 = vadd.f32 0.0, %v2224
        %v2226 = vpop.f32.mrb[0].mxu0
        %2227 = vmatprep.mubr.f32.mxu0 %v2030
        %2228 = vmatmul.mubr.f32.gmra.mrb[0].mxu0 %v2029
        %v2229 = vpop.f32.mrb[0].mxu0
        %v2230 = vadd.f32 0.0, %v2229
        %v2231 = vpop.f32.mrb[0].mxu0
        %2232 = vmatprep.mubr.f32.mxu0 %v2034
        %2233 = vmatmul.mubr.f32.gmra.mrb[0].mxu0 %v2033
        %v2234 = vpop.f32.mrb[0].mxu0
        %v2235 = vadd.f32 0.0, %v2234
        %v2236 = vpop.f32.mrb[0].mxu0
        %2237 = vmatprep.mubr.f32.mxu0 %v2038
        %2238 = vmatmul.mubr.f32.gmra.mrb[0].mxu0 %v2037
        %v2239 = vpop.f32.mrb[0].mxu0
        %v2240 = vadd.f32 0.0, %v2239
        %v2241 = vpop.f32.mrb[0].mxu0
        %2242 = vmatprep.mubr.f32.mxu0 %v2042
        %2243 = vmatmul.mubr.f32.gmra.mrb[0].mxu0 %v2041
        %v2244 = vpop.f32.mrb[0].mxu0
        %v2245 = vadd.f32 0.0, %v2244
        %v2246 = vpop.f32.mrb[0].mxu0
        %2247 = vmatprep.mubr.f32.mxu0 %v2046
        %2248 = vmatmul.mubr.f32.gmra.mrb[0].mxu0 %v2045
        %v2249 = vpop.f32.mrb[0].mxu0
        %v2250 = vadd.f32 0.0, %v2249
        %v2251 = vpop.f32.mrb[0].mxu0
        %2252 = vmatprep.mubr.f32.mxu0 %v2050
        %2253 = vmatmul.mubr.f32.gmra.mrb[0].mxu0 %v2049
        %v2254 = vpop.f32.mrb[0].mxu0
        %v2255 = vadd.f32 0.0, %v2254
        %v2256 = vpop.f32.mrb[0].mxu0
        %2257 = vmatprep.mubr.f32.mxu0 %v2054
        %2258 = vmatmul.mubr.f32.gmra.mrb[0].mxu0 %v2053
        %v2259 = vpop.f32.mrb[0].mxu0
        %v2260 = vadd.f32 0.0, %v2259
        %v2261 = vpop.f32.mrb[0].mxu0
        %2262 = vmatprep.mubr.f32.mxu0 %v2058
        %2263 = vmatmul.mubr.f32.gmra.mrb[0].mxu0 %v2057
        %v2264 = vpop.f32.mrb[0].mxu0
        %v2265 = vadd.f32 0.0, %v2264
        %v2266 = vpop.f32.mrb[0].mxu0
        %2267 = vmatprep.mubr.f32.mxu0 %v2062
        %2268 = vmatmul.mubr.f32.gmra.mrb[0].mxu0 %v2061
        %v2269 = vpop.f32.mrb[0].mxu0
        %v2270 = vadd.f32 0.0, %v2269
        %v2271 = vpop.f32.mrb[0].mxu0
        %2272 = vmatprep.mubr.f32.mxu0 %v2066
        %2273 = vmatmul.mubr.f32.gmra.mrb[0].mxu0 %v2065
        %v2274 = vpop.f32.mrb[0].mxu0
        %v2275 = vadd.f32 0.0, %v2274
        %v2276 = vpop.f32.mrb[0].mxu0
        %2277 = vmatprep.mubr.f32.mxu0 %v2070
        %2278 = vmatmul.mubr.f32.gmra.mrb[0].mxu0 %v2069
        %v2279 = vpop.f32.mrb[0].mxu0
        %v2280 = vadd.f32 0.0, %v2279
        %v2281 = vpop.f32.mrb[0].mxu0
        %2282 = vmatprep.mubr.f32.mxu0 %v2074
        %2283 = vmatmul.mubr.f32.gmra.mrb[0].mxu0 %v2073
        %v2284 = vpop.f32.mrb[0].mxu0
        %v2285 = vadd.f32 0.0, %v2284
        %v2286 = vpop.f32.mrb[0].mxu0
        %2287 = vmatprep.mubr.f32.mxu0 %v2078
        %2288 = vmatmul.mubr.f32.gmra.mrb[0].mxu0 %v2077
        %v2289 = vpop.f32.mrb[0].mxu0
        %v2290 = vadd.f32 0.0, %v2289
        %v2291 = vpop.f32.mrb[0].mxu0
        %2292 = vmatprep.mubr.f32.mxu0 %v2082
        %2293 = vmatmul.mubr.f32.gmra.mrb[0].mxu0 %v2081
        %v2294 = vpop.f32.mrb[0].mxu0
        %v2295 = vadd.f32 0.0, %v2294
        %v2296 = vpop.f32.mrb[0].mxu0
        %2297 = vmatprep.mubr.f32.mxu0 %v2086
        %2298 = vmatmul.mubr.f32.gmra.mrb[0].mxu0 %v2085
        %v2299 = vpop.f32.mrb[0].mxu0
        %v2300 = vadd.f32 0.0, %v2299
        %v2301 = vpop.f32.mrb[0].mxu0
        %2302 = vmatprep.mubr.f32.mxu0 %v2090
        %2303 = vmatmul.mubr.f32.gmra.mrb[0].mxu0 %v2089
        %v2304 = vpop.f32.mrb[0].mxu0
        %v2305 = vadd.f32 0.0, %v2304
        %v2306 = vpop.f32.mrb[0].mxu0
        %2307 = vmatprep.mubr.f32.mxu0 %v2094
        %2308 = vmatmul.mubr.f32.gmra.mrb[0].mxu0 %v2093
        %v2309 = vpop.f32.mrb[0].mxu0
        %v2310 = vadd.f32 0.0, %v2309
        %v2311 = vpop.f32.mrb[0].mxu0
        %2312 = vmatprep.mubr.f32.mxu0 %v2098
        %2313 = vmatmul.mubr.f32.gmra.mrb[0].mxu0 %v2097
        %v2314 = vpop.f32.mrb[0].mxu0
        %v2315 = vadd.f32 0.0, %v2314
        %v2316 = vpop.f32.mrb[0].mxu0
        %2317 = vmatprep.mubr.f32.mxu0 %v2102
        %2318 = vmatmul.mubr.f32.gmra.mrb[0].mxu0 %v2101
        %v2319 = vpop.f32.mrb[0].mxu0
        %v2320 = vadd.f32 0.0, %v2319
        %v2321 = vpop.f32.mrb[0].mxu0
        %2322 = vmatprep.mubr.f32.mxu0 %v2106
        %2323 = vmatmul.mubr.f32.gmra.mrb[0].mxu0 %v2105
        %v2324 = vpop.f32.mrb[0].mxu0
        %v2325 = vadd.f32 0.0, %v2324
        %v2326 = vpop.f32.mrb[0].mxu0
        %2327 = vmatprep.mubr.f32.mxu0 %v2110
        %2328 = vmatmul.mubr.f32.gmra.mrb[0].mxu0 %v2109
        %v2329 = vpop.f32.mrb[0].mxu0
        %v2330 = vadd.f32 0.0, %v2329
        %v2331 = vpop.f32.mrb[0].mxu0
        %2332 = vmatprep.mubr.f32.mxu0 %v2114
        %2333 = vmatmul.mubr.f32.gmra.mrb[0].mxu0 %v2113
        %v2334 = vpop.f32.mrb[0].mxu0
        %v2335 = vadd.f32 0.0, %v2334
        %v2336 = vpop.f32.mrb[0].mxu0
        %2337 = vmatprep.mubr.f32.mxu0 %v2118
        %2338 = vmatmul.mubr.f32.gmra.mrb[0].mxu0 %v2117
        %v2339 = vpop.f32.mrb[0].mxu0
        %v2340 = vadd.f32 0.0, %v2339
        %v2341 = vpop.f32.mrb[0].mxu0
        %2342 = vmatprep.mubr.f32.mxu0 %v2122
        %2343 = vmatmul.mubr.f32.gmra.mrb[0].mxu0 %v2121
        %v2344 = vpop.f32.mrb[0].mxu0
        %v2345 = vadd.f32 0.0, %v2344
        %v2346 = vpop.f32.mrb[0].mxu0
        %2347 = vmatprep.mubr.f32.mxu0 %v2126
        %2348 = vmatmul.mubr.f32.gmra.mrb[0].mxu0 %v2125
        %v2349 = vpop.f32.mrb[0].mxu0
        %v2350 = vadd.f32 0.0, %v2349
        %v2351 = vpop.f32.mrb[0].mxu0
        %2352 = vmatprep.mubr.f32.mxu0 %v2130
        %2353 = vmatmul.mubr.f32.gmra.mrb[0].mxu0 %v2129
        %v2354 = vpop.f32.mrb[0].mxu0
        %v2355 = vadd.f32 0.0, %v2354
        %v2356 = vpop.f32.mrb[0].mxu0
        %2357 = vdwg.mxu0
        %2358 = vmatprep.subr.mxu0 0.0
        %2359 = vmatpush1.msra.mxu0 %v327
        %2360 = vmatprep.subr.mxu0 0.0
        %2361 = vmatpush1.msra.mxu0 %v328
        %2362 = vmatprep.subr.mxu0 0.0
        %2363 = vmatpush1.msra.mxu0 %v329
        %2364 = vmatprep.subr.mxu0 0.0
        %2365 = vmatpush1.msra.mxu0 %v330
        %2366 = vmatprep.subr.mxu0 0.0
        %2367 = vmatpush1.msra.mxu0 %v331
        %2368 = vmatprep.subr.mxu0 0.0
        %2369 = vmatpush1.msra.mxu0 %v332
        %2370 = vmatprep.subr.mxu0 0.0
        %2371 = vmatpush1.msra.mxu0 %v333
        %2372 = vmatprep.subr.mxu0 0.0
        %2373 = vmatpush1.msra.mxu0 %v334
        %2374 = vmatprep.subr.mxu0 0.0
        %2375 = vmatpush1.msra.mxu0 %v335
        %2376 = vmatprep.subr.mxu0 0.0
        %2377 = vmatpush1.msra.mxu0 %v336
        %2378 = vmatprep.subr.mxu0 0.0
        %2379 = vmatpush1.msra.mxu0 %v337
        %2380 = vmatprep.subr.mxu0 0.0
        %2381 = vmatpush1.msra.mxu0 %v338
        %2382 = vmatprep.subr.mxu0 0.0
        %2383 = vmatpush1.msra.mxu0 %v339
        %2384 = vmatprep.subr.mxu0 0.0
        %2385 = vmatpush1.msra.mxu0 %v340
        %2386 = vmatprep.subr.mxu0 0.0
        %2387 = vmatpush1.msra.mxu0 %v341
        %2388 = vmatprep.subr.mxu0 0.0
        %2389 = vmatpush1.msra.mxu0 %v342
        %2390 = vmatprep.subr.mxu0 0.0
        %2391 = vmatpush1.msra.mxu0 %v343
        %2392 = vmatprep.subr.mxu0 0.0
        %2393 = vmatpush1.msra.mxu0 %v344
        %2394 = vmatprep.subr.mxu0 0.0
        %2395 = vmatpush1.msra.mxu0 %v345
        %2396 = vmatprep.subr.mxu0 0.0
        %2397 = vmatpush1.msra.mxu0 %v346
        %2398 = vmatprep.subr.mxu0 0.0
        %2399 = vmatpush1.msra.mxu0 %v347
        %2400 = vmatprep.subr.mxu0 0.0
        %2401 = vmatpush1.msra.mxu0 %v348
        %2402 = vmatprep.subr.mxu0 0.0
        %2403 = vmatpush1.msra.mxu0 %v349
        %2404 = vmatprep.subr.mxu0 0.0
        %2405 = vmatpush1.msra.mxu0 %v350
        %2406 = vmatprep.subr.mxu0 0.0
        %2407 = vmatpush1.msra.mxu0 %v351
        %2408 = vmatprep.subr.mxu0 0.0
        %2409 = vmatpush1.msra.mxu0 %v352
        %2410 = vmatprep.subr.mxu0 0.0
        %2411 = vmatpush1.msra.mxu0 %v353
        %2412 = vmatprep.subr.mxu0 0.0
        %2413 = vmatpush1.msra.mxu0 %v354
        %2414 = vmatprep.subr.mxu0 0.0
        %2415 = vmatpush1.msra.mxu0 %v355
        %2416 = vmatprep.subr.mxu0 0.0
        %2417 = vmatpush1.msra.mxu0 %v356
        %2418 = vmatprep.subr.mxu0 0.0
        %2419 = vmatpush1.msra.mxu0 %v357
        %2420 = vmatprep.subr.mxu0 0.0
        %2421 = vmatpush1.msra.mxu0 %v358
        %2422 = vmatprep.mubr.f32.mxu0 %v2008
        %2423 = vmatmul.mubr.f32.gmra.mrb[0].mxu0 %v2007
        %v2424 = vpop.f32.mrb[0].mxu0
        %v2425 = vadd.f32 %v2200, %v2424
        %v2426 = vpop.f32.mrb[0].mxu0
        %2427 = vmatprep.mubr.f32.mxu0 %v2012
        %2428 = vmatmul.mubr.f32.gmra.mrb[0].mxu0 %v2011
        %v2429 = vpop.f32.mrb[0].mxu0
        %v2430 = vadd.f32 %v2205, %v2429
        %v2431 = vpop.f32.mrb[0].mxu0
        %2432 = vmatprep.mubr.f32.mxu0 %v2016
        %2433 = vmatmul.mubr.f32.gmra.mrb[0].mxu0 %v2015
        %v2434 = vpop.f32.mrb[0].mxu0
        %v2435 = vadd.f32 %v2210, %v2434
        %v2436 = vpop.f32.mrb[0].mxu0
        %2437 = vmatprep.mubr.f32.mxu0 %v2020
        %2438 = vmatmul.mubr.f32.gmra.mrb[0].mxu0 %v2019
        %v2439 = vpop.f32.mrb[0].mxu0
        %v2440 = vadd.f32 %v2215, %v2439
        %v2441 = vpop.f32.mrb[0].mxu0
        %2442 = vmatprep.mubr.f32.mxu0 %v2024
        %2443 = vmatmul.mubr.f32.gmra.mrb[0].mxu0 %v2023
        %v2444 = vpop.f32.mrb[0].mxu0
        %v2445 = vadd.f32 %v2220, %v2444
        %v2446 = vpop.f32.mrb[0].mxu0
        %2447 = vmatprep.mubr.f32.mxu0 %v2028
        %2448 = vmatmul.mubr.f32.gmra.mrb[0].mxu0 %v2027
        %v2449 = vpop.f32.mrb[0].mxu0
        %v2450 = vadd.f32 %v2225, %v2449
        %v2451 = vpop.f32.mrb[0].mxu0
        %2452 = vmatprep.mubr.f32.mxu0 %v2032
        %2453 = vmatmul.mubr.f32.gmra.mrb[0].mxu0 %v2031
        %v2454 = vpop.f32.mrb[0].mxu0
        %v2455 = vadd.f32 %v2230, %v2454
        %v2456 = vpop.f32.mrb[0].mxu0
        %2457 = vmatprep.mubr.f32.mxu0 %v2036
        %2458 = vmatmul.mubr.f32.gmra.mrb[0].mxu0 %v2035
        %v2459 = vpop.f32.mrb[0].mxu0
        %v2460 = vadd.f32 %v2235, %v2459
        %v2461 = vpop.f32.mrb[0].mxu0
        %2462 = vmatprep.mubr.f32.mxu0 %v2040
        %2463 = vmatmul.mubr.f32.gmra.mrb[0].mxu0 %v2039
        %v2464 = vpop.f32.mrb[0].mxu0
        %v2465 = vadd.f32 %v2240, %v2464
        %v2466 = vpop.f32.mrb[0].mxu0
        %2467 = vmatprep.mubr.f32.mxu0 %v2044
        %2468 = vmatmul.mubr.f32.gmra.mrb[0].mxu0 %v2043
        %v2469 = vpop.f32.mrb[0].mxu0
        %v2470 = vadd.f32 %v2245, %v2469
        %v2471 = vpop.f32.mrb[0].mxu0
        %2472 = vmatprep.mubr.f32.mxu0 %v2048
        %2473 = vmatmul.mubr.f32.gmra.mrb[0].mxu0 %v2047
        %v2474 = vpop.f32.mrb[0].mxu0
        %v2475 = vadd.f32 %v2250, %v2474
        %v2476 = vpop.f32.mrb[0].mxu0
        %2477 = vmatprep.mubr.f32.mxu0 %v2052
        %2478 = vmatmul.mubr.f32.gmra.mrb[0].mxu0 %v2051
        %v2479 = vpop.f32.mrb[0].mxu0
        %v2480 = vadd.f32 %v2255, %v2479
        %v2481 = vpop.f32.mrb[0].mxu0
        %2482 = vmatprep.mubr.f32.mxu0 %v2056
        %2483 = vmatmul.mubr.f32.gmra.mrb[0].mxu0 %v2055
        %v2484 = vpop.f32.mrb[0].mxu0
        %v2485 = vadd.f32 %v2260, %v2484
        %v2486 = vpop.f32.mrb[0].mxu0
        %2487 = vmatprep.mubr.f32.mxu0 %v2060
        %2488 = vmatmul.mubr.f32.gmra.mrb[0].mxu0 %v2059
        %v2489 = vpop.f32.mrb[0].mxu0
        %v2490 = vadd.f32 %v2265, %v2489
        %v2491 = vpop.f32.mrb[0].mxu0
        %2492 = vmatprep.mubr.f32.mxu0 %v2064
        %2493 = vmatmul.mubr.f32.gmra.mrb[0].mxu0 %v2063
        %v2494 = vpop.f32.mrb[0].mxu0
        %v2495 = vadd.f32 %v2270, %v2494
        %v2496 = vpop.f32.mrb[0].mxu0
        %2497 = vmatprep.mubr.f32.mxu0 %v2068
        %2498 = vmatmul.mubr.f32.gmra.mrb[0].mxu0 %v2067
        %v2499 = vpop.f32.mrb[0].mxu0
        %v2500 = vadd.f32 %v2275, %v2499
        %v2501 = vpop.f32.mrb[0].mxu0
        %2502 = vmatprep.mubr.f32.mxu0 %v2072
        %2503 = vmatmul.mubr.f32.gmra.mrb[0].mxu0 %v2071
        %v2504 = vpop.f32.mrb[0].mxu0
        %v2505 = vadd.f32 %v2280, %v2504
        %v2506 = vpop.f32.mrb[0].mxu0
        %2507 = vmatprep.mubr.f32.mxu0 %v2076
        %2508 = vmatmul.mubr.f32.gmra.mrb[0].mxu0 %v2075
        %v2509 = vpop.f32.mrb[0].mxu0
        %v2510 = vadd.f32 %v2285, %v2509
        %v2511 = vpop.f32.mrb[0].mxu0
        %2512 = vmatprep.mubr.f32.mxu0 %v2080
        %2513 = vmatmul.mubr.f32.gmra.mrb[0].mxu0 %v2079
        %v2514 = vpop.f32.mrb[0].mxu0
        %v2515 = vadd.f32 %v2290, %v2514
        %v2516 = vpop.f32.mrb[0].mxu0
        %2517 = vmatprep.mubr.f32.mxu0 %v2084
        %2518 = vmatmul.mubr.f32.gmra.mrb[0].mxu0 %v2083
        %v2519 = vpop.f32.mrb[0].mxu0
        %v2520 = vadd.f32 %v2295, %v2519
        %v2521 = vpop.f32.mrb[0].mxu0
        %2522 = vmatprep.mubr.f32.mxu0 %v2088
        %2523 = vmatmul.mubr.f32.gmra.mrb[0].mxu0 %v2087
        %v2524 = vpop.f32.mrb[0].mxu0
        %v2525 = vadd.f32 %v2300, %v2524
        %v2526 = vpop.f32.mrb[0].mxu0
        %2527 = vmatprep.mubr.f32.mxu0 %v2092
        %2528 = vmatmul.mubr.f32.gmra.mrb[0].mxu0 %v2091
        %v2529 = vpop.f32.mrb[0].mxu0
        %v2530 = vadd.f32 %v2305, %v2529
        %v2531 = vpop.f32.mrb[0].mxu0
        %2532 = vmatprep.mubr.f32.mxu0 %v2096
        %2533 = vmatmul.mubr.f32.gmra.mrb[0].mxu0 %v2095
        %v2534 = vpop.f32.mrb[0].mxu0
        %v2535 = vadd.f32 %v2310, %v2534
        %v2536 = vpop.f32.mrb[0].mxu0
        %2537 = vmatprep.mubr.f32.mxu0 %v2100
        %2538 = vmatmul.mubr.f32.gmra.mrb[0].mxu0 %v2099
        %v2539 = vpop.f32.mrb[0].mxu0
        %v2540 = vadd.f32 %v2315, %v2539
        %v2541 = vpop.f32.mrb[0].mxu0
        %2542 = vmatprep.mubr.f32.mxu0 %v2104
        %2543 = vmatmul.mubr.f32.gmra.mrb[0].mxu0 %v2103
        %v2544 = vpop.f32.mrb[0].mxu0
        %v2545 = vadd.f32 %v2320, %v2544
        %v2546 = vpop.f32.mrb[0].mxu0
        %2547 = vmatprep.mubr.f32.mxu0 %v2108
        %2548 = vmatmul.mubr.f32.gmra.mrb[0].mxu0 %v2107
        %v2549 = vpop.f32.mrb[0].mxu0
        %v2550 = vadd.f32 %v2325, %v2549
        %v2551 = vpop.f32.mrb[0].mxu0
        %2552 = vmatprep.mubr.f32.mxu0 %v2112
        %2553 = vmatmul.mubr.f32.gmra.mrb[0].mxu0 %v2111
        %v2554 = vpop.f32.mrb[0].mxu0
        %v2555 = vadd.f32 %v2330, %v2554
        %v2556 = vpop.f32.mrb[0].mxu0
        %2557 = vmatprep.mubr.f32.mxu0 %v2116
        %2558 = vmatmul.mubr.f32.gmra.mrb[0].mxu0 %v2115
        %v2559 = vpop.f32.mrb[0].mxu0
        %v2560 = vadd.f32 %v2335, %v2559
        %v2561 = vpop.f32.mrb[0].mxu0
        %2562 = vmatprep.mubr.f32.mxu0 %v2120
        %2563 = vmatmul.mubr.f32.gmra.mrb[0].mxu0 %v2119
        %v2564 = vpop.f32.mrb[0].mxu0
        %v2565 = vadd.f32 %v2340, %v2564
        %v2566 = vpop.f32.mrb[0].mxu0
        %2567 = vmatprep.mubr.f32.mxu0 %v2124
        %2568 = vmatmul.mubr.f32.gmra.mrb[0].mxu0 %v2123
        %v2569 = vpop.f32.mrb[0].mxu0
        %v2570 = vadd.f32 %v2345, %v2569
        %v2571 = vpop.f32.mrb[0].mxu0
        %2572 = vmatprep.mubr.f32.mxu0 %v2128
        %2573 = vmatmul.mubr.f32.gmra.mrb[0].mxu0 %v2127
        %v2574 = vpop.f32.mrb[0].mxu0
        %v2575 = vadd.f32 %v2350, %v2574
        %v2576 = vpop.f32.mrb[0].mxu0
        %2577 = vmatprep.mubr.f32.mxu0 %v2132
        %2578 = vmatmul.mubr.f32.gmra.mrb[0].mxu0 %v2131
        %v2579 = vpop.f32.mrb[0].mxu0
        %v2580 = vadd.f32 %v2355, %v2579
        %v2581 = vpop.f32.mrb[0].mxu0
        %2582 = vdwg.mxu0
        %2583 = vst.msk [vmem:[%s285] sm:$0xff] %vm487, %v2425
        %2584 = vst.msk [vmem:[%s285 + $0x8] sm:$0xff] %vm487, %v2430
        %2585 = vst.msk [vmem:[%s285 + $0x10] sm:$0xff] %vm487, %v2435
        %2586 = vst.msk [vmem:[%s285 + $0x18] sm:$0xff] %vm487, %v2440
        %2587 = vst.msk [vmem:[%s285 + $0x20] sm:$0xff] %vm487, %v2445
        %2588 = vst.msk [vmem:[%s285 + $0x28] sm:$0xff] %vm487, %v2450
        %2589 = vst.msk [vmem:[%s285 + $0x30] sm:$0xff] %vm487, %v2455
        %2590 = vst.msk [vmem:[%s285 + $0x38] sm:$0xff] %vm487, %v2460
        %2591 = vst.msk [vmem:[%s285 + $0x40] sm:$0xff] %vm487, %v2465
        %2592 = vst.msk [vmem:[%s285 + $0x48] sm:$0xff] %vm487, %v2470
        %2593 = vst.msk [vmem:[%s285 + $0x50] sm:$0xff] %vm487, %v2475
        %2594 = vst.msk [vmem:[%s285 + $0x58] sm:$0xff] %vm487, %v2480
        %2595 = vst.msk [vmem:[%s285 + $0x60] sm:$0xff] %vm487, %v2485
        %2596 = vst.msk [vmem:[%s285 + $0x68] sm:$0xff] %vm487, %v2490
        %2597 = vst.msk [vmem:[%s285 + $0x70] sm:$0xff] %vm487, %v2495
        %2598 = vst.msk [vmem:[%s285 + $0x78] sm:$0xff] %vm487, %v2500
        %2599 = vst.msk [vmem:[%s285 + $0x80] sm:$0xff] %vm487, %v2505
        %2600 = vst.msk [vmem:[%s285 + $0x88] sm:$0xff] %vm487, %v2510
        %2601 = vst.msk [vmem:[%s285 + $0x90] sm:$0xff] %vm487, %v2515
        %2602 = vst.msk [vmem:[%s285 + $0x98] sm:$0xff] %vm487, %v2520
        %2603 = vst.msk [vmem:[%s285 + $0xa0] sm:$0xff] %vm487, %v2525
        %2604 = vst.msk [vmem:[%s285 + $0xa8] sm:$0xff] %vm487, %v2530
        %2605 = vst.msk [vmem:[%s285 + $0xb0] sm:$0xff] %vm487, %v2535
        %2606 = vst.msk [vmem:[%s285 + $0xb8] sm:$0xff] %vm487, %v2540
        %2607 = vst.msk [vmem:[%s285 + $0xc0] sm:$0xff] %vm487, %v2545
        %2608 = vst.msk [vmem:[%s285 + $0xc8] sm:$0xff] %vm487, %v2550
        %2609 = vst.msk [vmem:[%s285 + $0xd0] sm:$0xff] %vm487, %v2555
        %2610 = vst.msk [vmem:[%s285 + $0xd8] sm:$0xff] %vm487, %v2560
        %2611 = vst.msk [vmem:[%s285 + $0xe0] sm:$0xff] %vm487, %v2565
        %2612 = vst.msk [vmem:[%s285 + $0xe8] sm:$0xff] %vm487, %v2570
        %2613 = vst.msk [vmem:[%s285 + $0xf0] sm:$0xff] %vm487, %v2575
        %2614 = vst.msk [vmem:[%s285 + $0xf8] sm:$0xff] %vm487, %v2580
        %v2615 = vlaneseq
        %v2616 = vshrl.u32 %v2615, 7
        %v2617 = vsub.s32 0, %v2616
        %v2618 = vrot.slane %v1314, %v2617
        %v2619 = vlaneseq
        %v2620 = vshrl.u32 %v2619, 7
        %v2621 = vsub.s32 1, %v2620
        %v2622 = vrot.slane %v1314, %v2621
        %v2623 = vlaneseq
        %v2624 = vshrl.u32 %v2623, 7
        %v2625 = vsub.s32 2, %v2624
        %v2626 = vrot.slane %v1314, %v2625
        %v2627 = vlaneseq
        %v2628 = vshrl.u32 %v2627, 7
        %v2629 = vsub.s32 3, %v2628
        %v2630 = vrot.slane %v1314, %v2629
        %v2631 = vlaneseq
        %v2632 = vshrl.u32 %v2631, 7
        %v2633 = vsub.s32 4, %v2632
        %v2634 = vrot.slane %v1314, %v2633
        %v2635 = vlaneseq
        %v2636 = vshrl.u32 %v2635, 7
        %v2637 = vsub.s32 5, %v2636
        %v2638 = vrot.slane %v1314, %v2637
        %v2639 = vlaneseq
        %v2640 = vshrl.u32 %v2639, 7
        %v2641 = vsub.s32 6, %v2640
        %v2642 = vrot.slane %v1314, %v2641
        %v2643 = vlaneseq
        %v2644 = vshrl.u32 %v2643, 7
        %v2645 = vsub.s32 7, %v2644
        %v2646 = vrot.slane %v1314, %v2645
        %v2647 = vlaneseq
        %v2648 = vshrl.u32 %v2647, 7
        %v2649 = vsub.s32 0, %v2648
        %v2650 = vrot.slane %v1328, %v2649
        %v2651 = vlaneseq
        %v2652 = vshrl.u32 %v2651, 7
        %v2653 = vsub.s32 1, %v2652
        %v2654 = vrot.slane %v1328, %v2653
        %v2655 = vlaneseq
        %v2656 = vshrl.u32 %v2655, 7
        %v2657 = vsub.s32 2, %v2656
        %v2658 = vrot.slane %v1328, %v2657
        %v2659 = vlaneseq
        %v2660 = vshrl.u32 %v2659, 7
        %v2661 = vsub.s32 3, %v2660
        %v2662 = vrot.slane %v1328, %v2661
        %v2663 = vlaneseq
        %v2664 = vshrl.u32 %v2663, 7
        %v2665 = vsub.s32 4, %v2664
        %v2666 = vrot.slane %v1328, %v2665
        %v2667 = vlaneseq
        %v2668 = vshrl.u32 %v2667, 7
        %v2669 = vsub.s32 5, %v2668
        %v2670 = vrot.slane %v1328, %v2669
        %v2671 = vlaneseq
        %v2672 = vshrl.u32 %v2671, 7
        %v2673 = vsub.s32 6, %v2672
        %v2674 = vrot.slane %v1328, %v2673
        %v2675 = vlaneseq
        %v2676 = vshrl.u32 %v2675, 7
        %v2677 = vsub.s32 7, %v2676
        %v2678 = vrot.slane %v1328, %v2677
        %v2679 = vlaneseq
        %v2680 = vshrl.u32 %v2679, 7
        %v2681 = vsub.s32 0, %v2680
        %v2682 = vrot.slane %v1342, %v2681
        %v2683 = vlaneseq
        %v2684 = vshrl.u32 %v2683, 7
        %v2685 = vsub.s32 1, %v2684
        %v2686 = vrot.slane %v1342, %v2685
        %v2687 = vlaneseq
        %v2688 = vshrl.u32 %v2687, 7
        %v2689 = vsub.s32 2, %v2688
        %v2690 = vrot.slane %v1342, %v2689
        %v2691 = vlaneseq
        %v2692 = vshrl.u32 %v2691, 7
        %v2693 = vsub.s32 3, %v2692
        %v2694 = vrot.slane %v1342, %v2693
        %v2695 = vlaneseq
        %v2696 = vshrl.u32 %v2695, 7
        %v2697 = vsub.s32 4, %v2696
        %v2698 = vrot.slane %v1342, %v2697
        %v2699 = vlaneseq
        %v2700 = vshrl.u32 %v2699, 7
        %v2701 = vsub.s32 5, %v2700
        %v2702 = vrot.slane %v1342, %v2701
        %v2703 = vlaneseq
        %v2704 = vshrl.u32 %v2703, 7
        %v2705 = vsub.s32 6, %v2704
        %v2706 = vrot.slane %v1342, %v2705
        %v2707 = vlaneseq
        %v2708 = vshrl.u32 %v2707, 7
        %v2709 = vsub.s32 7, %v2708
        %v2710 = vrot.slane %v1342, %v2709
        %v2711 = vlaneseq
        %v2712 = vshrl.u32 %v2711, 7
        %v2713 = vsub.s32 0, %v2712
        %v2714 = vrot.slane %v1356, %v2713
        %v2715 = vlaneseq
        %v2716 = vshrl.u32 %v2715, 7
        %v2717 = vsub.s32 1, %v2716
        %v2718 = vrot.slane %v1356, %v2717
        %v2719 = vlaneseq
        %v2720 = vshrl.u32 %v2719, 7
        %v2721 = vsub.s32 2, %v2720
        %v2722 = vrot.slane %v1356, %v2721
        %v2723 = vlaneseq
        %v2724 = vshrl.u32 %v2723, 7
        %v2725 = vsub.s32 3, %v2724
        %v2726 = vrot.slane %v1356, %v2725
        %v2727 = vlaneseq
        %v2728 = vshrl.u32 %v2727, 7
        %v2729 = vsub.s32 4, %v2728
        %v2730 = vrot.slane %v1356, %v2729
        %v2731 = vlaneseq
        %v2732 = vshrl.u32 %v2731, 7
        %v2733 = vsub.s32 5, %v2732
        %v2734 = vrot.slane %v1356, %v2733
        %v2735 = vlaneseq
        %v2736 = vshrl.u32 %v2735, 7
        %v2737 = vsub.s32 6, %v2736
        %v2738 = vrot.slane %v1356, %v2737
        %v2739 = vlaneseq
        %v2740 = vshrl.u32 %v2739, 7
        %v2741 = vsub.s32 7, %v2740
        %v2742 = vrot.slane %v1356, %v2741
        %v2743 = vlaneseq
        %v2744 = vshrl.u32 %v2743, 7
        %v2745 = vsub.s32 0, %v2744
        %v2746 = vrot.slane %v1370, %v2745
        %v2747 = vlaneseq
        %v2748 = vshrl.u32 %v2747, 7
        %v2749 = vsub.s32 1, %v2748
        %v2750 = vrot.slane %v1370, %v2749
        %v2751 = vlaneseq
        %v2752 = vshrl.u32 %v2751, 7
        %v2753 = vsub.s32 2, %v2752
        %v2754 = vrot.slane %v1370, %v2753
        %v2755 = vlaneseq
        %v2756 = vshrl.u32 %v2755, 7
        %v2757 = vsub.s32 3, %v2756
        %v2758 = vrot.slane %v1370, %v2757
        %v2759 = vlaneseq
        %v2760 = vshrl.u32 %v2759, 7
        %v2761 = vsub.s32 4, %v2760
        %v2762 = vrot.slane %v1370, %v2761
        %v2763 = vlaneseq
        %v2764 = vshrl.u32 %v2763, 7
        %v2765 = vsub.s32 5, %v2764
        %v2766 = vrot.slane %v1370, %v2765
        %v2767 = vlaneseq
        %v2768 = vshrl.u32 %v2767, 7
        %v2769 = vsub.s32 6, %v2768
        %v2770 = vrot.slane %v1370, %v2769
        %v2771 = vlaneseq
        %v2772 = vshrl.u32 %v2771, 7
        %v2773 = vsub.s32 7, %v2772
        %v2774 = vrot.slane %v1370, %v2773
        %v2775 = vlaneseq
        %v2776 = vshrl.u32 %v2775, 7
        %v2777 = vsub.s32 0, %v2776
        %v2778 = vrot.slane %v1384, %v2777
        %v2779 = vlaneseq
        %v2780 = vshrl.u32 %v2779, 7
        %v2781 = vsub.s32 1, %v2780
        %v2782 = vrot.slane %v1384, %v2781
        %v2783 = vlaneseq
        %v2784 = vshrl.u32 %v2783, 7
        %v2785 = vsub.s32 2, %v2784
        %v2786 = vrot.slane %v1384, %v2785
        %v2787 = vlaneseq
        %v2788 = vshrl.u32 %v2787, 7
        %v2789 = vsub.s32 3, %v2788
        %v2790 = vrot.slane %v1384, %v2789
        %v2791 = vlaneseq
        %v2792 = vshrl.u32 %v2791, 7
        %v2793 = vsub.s32 4, %v2792
        %v2794 = vrot.slane %v1384, %v2793
        %v2795 = vlaneseq
        %v2796 = vshrl.u32 %v2795, 7
        %v2797 = vsub.s32 5, %v2796
        %v2798 = vrot.slane %v1384, %v2797
        %v2799 = vlaneseq
        %v2800 = vshrl.u32 %v2799, 7
        %v2801 = vsub.s32 6, %v2800
        %v2802 = vrot.slane %v1384, %v2801
        %v2803 = vlaneseq
        %v2804 = vshrl.u32 %v2803, 7
        %v2805 = vsub.s32 7, %v2804
        %v2806 = vrot.slane %v1384, %v2805
        %v2807 = vlaneseq
        %v2808 = vshrl.u32 %v2807, 7
        %v2809 = vsub.s32 0, %v2808
        %v2810 = vrot.slane %v1398, %v2809
        %v2811 = vlaneseq
        %v2812 = vshrl.u32 %v2811, 7
        %v2813 = vsub.s32 1, %v2812
        %v2814 = vrot.slane %v1398, %v2813
        %v2815 = vlaneseq
        %v2816 = vshrl.u32 %v2815, 7
        %v2817 = vsub.s32 2, %v2816
        %v2818 = vrot.slane %v1398, %v2817
        %v2819 = vlaneseq
        %v2820 = vshrl.u32 %v2819, 7
        %v2821 = vsub.s32 3, %v2820
        %v2822 = vrot.slane %v1398, %v2821
        %v2823 = vlaneseq
        %v2824 = vshrl.u32 %v2823, 7
        %v2825 = vsub.s32 4, %v2824
        %v2826 = vrot.slane %v1398, %v2825
        %v2827 = vlaneseq
        %v2828 = vshrl.u32 %v2827, 7
        %v2829 = vsub.s32 5, %v2828
        %v2830 = vrot.slane %v1398, %v2829
        %v2831 = vlaneseq
        %v2832 = vshrl.u32 %v2831, 7
        %v2833 = vsub.s32 6, %v2832
        %v2834 = vrot.slane %v1398, %v2833
        %v2835 = vlaneseq
        %v2836 = vshrl.u32 %v2835, 7
        %v2837 = vsub.s32 7, %v2836
        %v2838 = vrot.slane %v1398, %v2837
        %v2839 = vlaneseq
        %v2840 = vshrl.u32 %v2839, 7
        %v2841 = vsub.s32 0, %v2840
        %v2842 = vrot.slane %v1412, %v2841
        %v2843 = vlaneseq
        %v2844 = vshrl.u32 %v2843, 7
        %v2845 = vsub.s32 1, %v2844
        %v2846 = vrot.slane %v1412, %v2845
        %v2847 = vlaneseq
        %v2848 = vshrl.u32 %v2847, 7
        %v2849 = vsub.s32 2, %v2848
        %v2850 = vrot.slane %v1412, %v2849
        %v2851 = vlaneseq
        %v2852 = vshrl.u32 %v2851, 7
        %v2853 = vsub.s32 3, %v2852
        %v2854 = vrot.slane %v1412, %v2853
        %v2855 = vlaneseq
        %v2856 = vshrl.u32 %v2855, 7
        %v2857 = vsub.s32 4, %v2856
        %v2858 = vrot.slane %v1412, %v2857
        %v2859 = vlaneseq
        %v2860 = vshrl.u32 %v2859, 7
        %v2861 = vsub.s32 5, %v2860
        %v2862 = vrot.slane %v1412, %v2861
        %v2863 = vlaneseq
        %v2864 = vshrl.u32 %v2863, 7
        %v2865 = vsub.s32 6, %v2864
        %v2866 = vrot.slane %v1412, %v2865
        %v2867 = vlaneseq
        %v2868 = vshrl.u32 %v2867, 7
        %v2869 = vsub.s32 7, %v2868
        %v2870 = vrot.slane %v1412, %v2869
        %v2871 = vlaneseq
        %v2872 = vshrl.u32 %v2871, 7
        %v2873 = vsub.s32 0, %v2872
        %v2874 = vrot.slane %v1426, %v2873
        %v2875 = vlaneseq
        %v2876 = vshrl.u32 %v2875, 7
        %v2877 = vsub.s32 1, %v2876
        %v2878 = vrot.slane %v1426, %v2877
        %v2879 = vlaneseq
        %v2880 = vshrl.u32 %v2879, 7
        %v2881 = vsub.s32 2, %v2880
        %v2882 = vrot.slane %v1426, %v2881
        %v2883 = vlaneseq
        %v2884 = vshrl.u32 %v2883, 7
        %v2885 = vsub.s32 3, %v2884
        %v2886 = vrot.slane %v1426, %v2885
        %v2887 = vlaneseq
        %v2888 = vshrl.u32 %v2887, 7
        %v2889 = vsub.s32 4, %v2888
        %v2890 = vrot.slane %v1426, %v2889
        %v2891 = vlaneseq
        %v2892 = vshrl.u32 %v2891, 7
        %v2893 = vsub.s32 5, %v2892
        %v2894 = vrot.slane %v1426, %v2893
        %v2895 = vlaneseq
        %v2896 = vshrl.u32 %v2895, 7
        %v2897 = vsub.s32 6, %v2896
        %v2898 = vrot.slane %v1426, %v2897
        %v2899 = vlaneseq
        %v2900 = vshrl.u32 %v2899, 7
        %v2901 = vsub.s32 7, %v2900
        %v2902 = vrot.slane %v1426, %v2901
        %v2903 = vlaneseq
        %v2904 = vshrl.u32 %v2903, 7
        %v2905 = vsub.s32 0, %v2904
        %v2906 = vrot.slane %v1440, %v2905
        %v2907 = vlaneseq
        %v2908 = vshrl.u32 %v2907, 7
        %v2909 = vsub.s32 1, %v2908
        %v2910 = vrot.slane %v1440, %v2909
        %v2911 = vlaneseq
        %v2912 = vshrl.u32 %v2911, 7
        %v2913 = vsub.s32 2, %v2912
        %v2914 = vrot.slane %v1440, %v2913
        %v2915 = vlaneseq
        %v2916 = vshrl.u32 %v2915, 7
        %v2917 = vsub.s32 3, %v2916
        %v2918 = vrot.slane %v1440, %v2917
        %v2919 = vlaneseq
        %v2920 = vshrl.u32 %v2919, 7
        %v2921 = vsub.s32 4, %v2920
        %v2922 = vrot.slane %v1440, %v2921
        %v2923 = vlaneseq
        %v2924 = vshrl.u32 %v2923, 7
        %v2925 = vsub.s32 5, %v2924
        %v2926 = vrot.slane %v1440, %v2925
        %v2927 = vlaneseq
        %v2928 = vshrl.u32 %v2927, 7
        %v2929 = vsub.s32 6, %v2928
        %v2930 = vrot.slane %v1440, %v2929
        %v2931 = vlaneseq
        %v2932 = vshrl.u32 %v2931, 7
        %v2933 = vsub.s32 7, %v2932
        %v2934 = vrot.slane %v1440, %v2933
        %v2935 = vlaneseq
        %v2936 = vshrl.u32 %v2935, 7
        %v2937 = vsub.s32 0, %v2936
        %v2938 = vrot.slane %v1454, %v2937
        %v2939 = vlaneseq
        %v2940 = vshrl.u32 %v2939, 7
        %v2941 = vsub.s32 1, %v2940
        %v2942 = vrot.slane %v1454, %v2941
        %v2943 = vlaneseq
        %v2944 = vshrl.u32 %v2943, 7
        %v2945 = vsub.s32 2, %v2944
        %v2946 = vrot.slane %v1454, %v2945
        %v2947 = vlaneseq
        %v2948 = vshrl.u32 %v2947, 7
        %v2949 = vsub.s32 3, %v2948
        %v2950 = vrot.slane %v1454, %v2949
        %v2951 = vlaneseq
        %v2952 = vshrl.u32 %v2951, 7
        %v2953 = vsub.s32 4, %v2952
        %v2954 = vrot.slane %v1454, %v2953
        %v2955 = vlaneseq
        %v2956 = vshrl.u32 %v2955, 7
        %v2957 = vsub.s32 5, %v2956
        %v2958 = vrot.slane %v1454, %v2957
        %v2959 = vlaneseq
        %v2960 = vshrl.u32 %v2959, 7
        %v2961 = vsub.s32 6, %v2960
        %v2962 = vrot.slane %v1454, %v2961
        %v2963 = vlaneseq
        %v2964 = vshrl.u32 %v2963, 7
        %v2965 = vsub.s32 7, %v2964
        %v2966 = vrot.slane %v1454, %v2965
        %v2967 = vlaneseq
        %v2968 = vshrl.u32 %v2967, 7
        %v2969 = vsub.s32 0, %v2968
        %v2970 = vrot.slane %v1468, %v2969
        %v2971 = vlaneseq
        %v2972 = vshrl.u32 %v2971, 7
        %v2973 = vsub.s32 1, %v2972
        %v2974 = vrot.slane %v1468, %v2973
        %v2975 = vlaneseq
        %v2976 = vshrl.u32 %v2975, 7
        %v2977 = vsub.s32 2, %v2976
        %v2978 = vrot.slane %v1468, %v2977
        %v2979 = vlaneseq
        %v2980 = vshrl.u32 %v2979, 7
        %v2981 = vsub.s32 3, %v2980
        %v2982 = vrot.slane %v1468, %v2981
        %v2983 = vlaneseq
        %v2984 = vshrl.u32 %v2983, 7
        %v2985 = vsub.s32 4, %v2984
        %v2986 = vrot.slane %v1468, %v2985
        %v2987 = vlaneseq
        %v2988 = vshrl.u32 %v2987, 7
        %v2989 = vsub.s32 5, %v2988
        %v2990 = vrot.slane %v1468, %v2989
        %v2991 = vlaneseq
        %v2992 = vshrl.u32 %v2991, 7
        %v2993 = vsub.s32 6, %v2992
        %v2994 = vrot.slane %v1468, %v2993
        %v2995 = vlaneseq
        %v2996 = vshrl.u32 %v2995, 7
        %v2997 = vsub.s32 7, %v2996
        %v2998 = vrot.slane %v1468, %v2997
        %v2999 = vlaneseq
        %v3000 = vshrl.u32 %v2999, 7
        %v3001 = vsub.s32 0, %v3000
        %v3002 = vrot.slane %v1482, %v3001
        %v3003 = vlaneseq
        %v3004 = vshrl.u32 %v3003, 7
        %v3005 = vsub.s32 1, %v3004
        %v3006 = vrot.slane %v1482, %v3005
        %v3007 = vlaneseq
        %v3008 = vshrl.u32 %v3007, 7
        %v3009 = vsub.s32 2, %v3008
        %v3010 = vrot.slane %v1482, %v3009
        %v3011 = vlaneseq
        %v3012 = vshrl.u32 %v3011, 7
        %v3013 = vsub.s32 3, %v3012
        %v3014 = vrot.slane %v1482, %v3013
        %v3015 = vlaneseq
        %v3016 = vshrl.u32 %v3015, 7
        %v3017 = vsub.s32 4, %v3016
        %v3018 = vrot.slane %v1482, %v3017
        %v3019 = vlaneseq
        %v3020 = vshrl.u32 %v3019, 7
        %v3021 = vsub.s32 5, %v3020
        %v3022 = vrot.slane %v1482, %v3021
        %v3023 = vlaneseq
        %v3024 = vshrl.u32 %v3023, 7
        %v3025 = vsub.s32 6, %v3024
        %v3026 = vrot.slane %v1482, %v3025
        %v3027 = vlaneseq
        %v3028 = vshrl.u32 %v3027, 7
        %v3029 = vsub.s32 7, %v3028
        %v3030 = vrot.slane %v1482, %v3029
        %v3031 = vlaneseq
        %v3032 = vshrl.u32 %v3031, 7
        %v3033 = vsub.s32 0, %v3032
        %v3034 = vrot.slane %v1496, %v3033
        %v3035 = vlaneseq
        %v3036 = vshrl.u32 %v3035, 7
        %v3037 = vsub.s32 1, %v3036
        %v3038 = vrot.slane %v1496, %v3037
        %v3039 = vlaneseq
        %v3040 = vshrl.u32 %v3039, 7
        %v3041 = vsub.s32 2, %v3040
        %v3042 = vrot.slane %v1496, %v3041
        %v3043 = vlaneseq
        %v3044 = vshrl.u32 %v3043, 7
        %v3045 = vsub.s32 3, %v3044
        %v3046 = vrot.slane %v1496, %v3045
        %v3047 = vlaneseq
        %v3048 = vshrl.u32 %v3047, 7
        %v3049 = vsub.s32 4, %v3048
        %v3050 = vrot.slane %v1496, %v3049
        %v3051 = vlaneseq
        %v3052 = vshrl.u32 %v3051, 7
        %v3053 = vsub.s32 5, %v3052
        %v3054 = vrot.slane %v1496, %v3053
        %v3055 = vlaneseq
        %v3056 = vshrl.u32 %v3055, 7
        %v3057 = vsub.s32 6, %v3056
        %v3058 = vrot.slane %v1496, %v3057
        %v3059 = vlaneseq
        %v3060 = vshrl.u32 %v3059, 7
        %v3061 = vsub.s32 7, %v3060
        %v3062 = vrot.slane %v1496, %v3061
        %v3063 = vlaneseq
        %v3064 = vshrl.u32 %v3063, 7
        %v3065 = vsub.s32 0, %v3064
        %v3066 = vrot.slane %v1510, %v3065
        %v3067 = vlaneseq
        %v3068 = vshrl.u32 %v3067, 7
        %v3069 = vsub.s32 1, %v3068
        %v3070 = vrot.slane %v1510, %v3069
        %v3071 = vlaneseq
        %v3072 = vshrl.u32 %v3071, 7
        %v3073 = vsub.s32 2, %v3072
        %v3074 = vrot.slane %v1510, %v3073
        %v3075 = vlaneseq
        %v3076 = vshrl.u32 %v3075, 7
        %v3077 = vsub.s32 3, %v3076
        %v3078 = vrot.slane %v1510, %v3077
        %v3079 = vlaneseq
        %v3080 = vshrl.u32 %v3079, 7
        %v3081 = vsub.s32 4, %v3080
        %v3082 = vrot.slane %v1510, %v3081
        %v3083 = vlaneseq
        %v3084 = vshrl.u32 %v3083, 7
        %v3085 = vsub.s32 5, %v3084
        %v3086 = vrot.slane %v1510, %v3085
        %v3087 = vlaneseq
        %v3088 = vshrl.u32 %v3087, 7
        %v3089 = vsub.s32 6, %v3088
        %v3090 = vrot.slane %v1510, %v3089
        %v3091 = vlaneseq
        %v3092 = vshrl.u32 %v3091, 7
        %v3093 = vsub.s32 7, %v3092
        %v3094 = vrot.slane %v1510, %v3093
        %v3095 = vlaneseq
        %v3096 = vshrl.u32 %v3095, 7
        %v3097 = vsub.s32 0, %v3096
        %v3098 = vrot.slane %v1524, %v3097
        %v3099 = vlaneseq
        %v3100 = vshrl.u32 %v3099, 7
        %v3101 = vsub.s32 1, %v3100
        %v3102 = vrot.slane %v1524, %v3101
        %v3103 = vlaneseq
        %v3104 = vshrl.u32 %v3103, 7
        %v3105 = vsub.s32 2, %v3104
        %v3106 = vrot.slane %v1524, %v3105
        %v3107 = vlaneseq
        %v3108 = vshrl.u32 %v3107, 7
        %v3109 = vsub.s32 3, %v3108
        %v3110 = vrot.slane %v1524, %v3109
        %v3111 = vlaneseq
        %v3112 = vshrl.u32 %v3111, 7
        %v3113 = vsub.s32 4, %v3112
        %v3114 = vrot.slane %v1524, %v3113
        %v3115 = vlaneseq
        %v3116 = vshrl.u32 %v3115, 7
        %v3117 = vsub.s32 5, %v3116
        %v3118 = vrot.slane %v1524, %v3117
        %v3119 = vlaneseq
        %v3120 = vshrl.u32 %v3119, 7
        %v3121 = vsub.s32 6, %v3120
        %v3122 = vrot.slane %v1524, %v3121
        %v3123 = vlaneseq
        %v3124 = vshrl.u32 %v3123, 7
        %v3125 = vsub.s32 7, %v3124
        %v3126 = vrot.slane %v1524, %v3125
        %v3127 = vlaneseq
        %v3128 = vshrl.u32 %v3127, 7
        %v3129 = vsub.s32 0, %v3128
        %v3130 = vrot.slane %v1538, %v3129
        %v3131 = vlaneseq
        %v3132 = vshrl.u32 %v3131, 7
        %v3133 = vsub.s32 1, %v3132
        %v3134 = vrot.slane %v1538, %v3133
        %v3135 = vlaneseq
        %v3136 = vshrl.u32 %v3135, 7
        %v3137 = vsub.s32 2, %v3136
        %v3138 = vrot.slane %v1538, %v3137
        %v3139 = vlaneseq
        %v3140 = vshrl.u32 %v3139, 7
        %v3141 = vsub.s32 3, %v3140
        %v3142 = vrot.slane %v1538, %v3141
        %v3143 = vlaneseq
        %v3144 = vshrl.u32 %v3143, 7
        %v3145 = vsub.s32 4, %v3144
        %v3146 = vrot.slane %v1538, %v3145
        %v3147 = vlaneseq
        %v3148 = vshrl.u32 %v3147, 7
        %v3149 = vsub.s32 5, %v3148
        %v3150 = vrot.slane %v1538, %v3149
        %v3151 = vlaneseq
        %v3152 = vshrl.u32 %v3151, 7
        %v3153 = vsub.s32 6, %v3152
        %v3154 = vrot.slane %v1538, %v3153
        %v3155 = vlaneseq
        %v3156 = vshrl.u32 %v3155, 7
        %v3157 = vsub.s32 7, %v3156
        %v3158 = vrot.slane %v1538, %v3157
        %v3159 = vlaneseq
        %v3160 = vshrl.u32 %v3159, 7
        %v3161 = vsub.s32 0, %v3160
        %v3162 = vrot.slane %v1552, %v3161
        %v3163 = vlaneseq
        %v3164 = vshrl.u32 %v3163, 7
        %v3165 = vsub.s32 1, %v3164
        %v3166 = vrot.slane %v1552, %v3165
        %v3167 = vlaneseq
        %v3168 = vshrl.u32 %v3167, 7
        %v3169 = vsub.s32 2, %v3168
        %v3170 = vrot.slane %v1552, %v3169
        %v3171 = vlaneseq
        %v3172 = vshrl.u32 %v3171, 7
        %v3173 = vsub.s32 3, %v3172
        %v3174 = vrot.slane %v1552, %v3173
        %v3175 = vlaneseq
        %v3176 = vshrl.u32 %v3175, 7
        %v3177 = vsub.s32 4, %v3176
        %v3178 = vrot.slane %v1552, %v3177
        %v3179 = vlaneseq
        %v3180 = vshrl.u32 %v3179, 7
        %v3181 = vsub.s32 5, %v3180
        %v3182 = vrot.slane %v1552, %v3181
        %v3183 = vlaneseq
        %v3184 = vshrl.u32 %v3183, 7
        %v3185 = vsub.s32 6, %v3184
        %v3186 = vrot.slane %v1552, %v3185
        %v3187 = vlaneseq
        %v3188 = vshrl.u32 %v3187, 7
        %v3189 = vsub.s32 7, %v3188
        %v3190 = vrot.slane %v1552, %v3189
        %v3191 = vlaneseq
        %v3192 = vshrl.u32 %v3191, 7
        %v3193 = vsub.s32 0, %v3192
        %v3194 = vrot.slane %v1566, %v3193
        %v3195 = vlaneseq
        %v3196 = vshrl.u32 %v3195, 7
        %v3197 = vsub.s32 1, %v3196
        %v3198 = vrot.slane %v1566, %v3197
        %v3199 = vlaneseq
        %v3200 = vshrl.u32 %v3199, 7
        %v3201 = vsub.s32 2, %v3200
        %v3202 = vrot.slane %v1566, %v3201
        %v3203 = vlaneseq
        %v3204 = vshrl.u32 %v3203, 7
        %v3205 = vsub.s32 3, %v3204
        %v3206 = vrot.slane %v1566, %v3205
        %v3207 = vlaneseq
        %v3208 = vshrl.u32 %v3207, 7
        %v3209 = vsub.s32 4, %v3208
        %v3210 = vrot.slane %v1566, %v3209
        %v3211 = vlaneseq
        %v3212 = vshrl.u32 %v3211, 7
        %v3213 = vsub.s32 5, %v3212
        %v3214 = vrot.slane %v1566, %v3213
        %v3215 = vlaneseq
        %v3216 = vshrl.u32 %v3215, 7
        %v3217 = vsub.s32 6, %v3216
        %v3218 = vrot.slane %v1566, %v3217
        %v3219 = vlaneseq
        %v3220 = vshrl.u32 %v3219, 7
        %v3221 = vsub.s32 7, %v3220
        %v3222 = vrot.slane %v1566, %v3221
        %v3223 = vlaneseq
        %v3224 = vshrl.u32 %v3223, 7
        %v3225 = vsub.s32 0, %v3224
        %v3226 = vrot.slane %v1580, %v3225
        %v3227 = vlaneseq
        %v3228 = vshrl.u32 %v3227, 7
        %v3229 = vsub.s32 1, %v3228
        %v3230 = vrot.slane %v1580, %v3229
        %v3231 = vlaneseq
        %v3232 = vshrl.u32 %v3231, 7
        %v3233 = vsub.s32 2, %v3232
        %v3234 = vrot.slane %v1580, %v3233
        %v3235 = vlaneseq
        %v3236 = vshrl.u32 %v3235, 7
        %v3237 = vsub.s32 3, %v3236
        %v3238 = vrot.slane %v1580, %v3237
        %v3239 = vlaneseq
        %v3240 = vshrl.u32 %v3239, 7
        %v3241 = vsub.s32 4, %v3240
        %v3242 = vrot.slane %v1580, %v3241
        %v3243 = vlaneseq
        %v3244 = vshrl.u32 %v3243, 7
        %v3245 = vsub.s32 5, %v3244
        %v3246 = vrot.slane %v1580, %v3245
        %v3247 = vlaneseq
        %v3248 = vshrl.u32 %v3247, 7
        %v3249 = vsub.s32 6, %v3248
        %v3250 = vrot.slane %v1580, %v3249
        %v3251 = vlaneseq
        %v3252 = vshrl.u32 %v3251, 7
        %v3253 = vsub.s32 7, %v3252
        %v3254 = vrot.slane %v1580, %v3253
        %v3255 = vlaneseq
        %v3256 = vshrl.u32 %v3255, 7
        %v3257 = vsub.s32 0, %v3256
        %v3258 = vrot.slane %v1594, %v3257
        %v3259 = vlaneseq
        %v3260 = vshrl.u32 %v3259, 7
        %v3261 = vsub.s32 1, %v3260
        %v3262 = vrot.slane %v1594, %v3261
        %v3263 = vlaneseq
        %v3264 = vshrl.u32 %v3263, 7
        %v3265 = vsub.s32 2, %v3264
        %v3266 = vrot.slane %v1594, %v3265
        %v3267 = vlaneseq
        %v3268 = vshrl.u32 %v3267, 7
        %v3269 = vsub.s32 3, %v3268
        %v3270 = vrot.slane %v1594, %v3269
        %v3271 = vlaneseq
        %v3272 = vshrl.u32 %v3271, 7
        %v3273 = vsub.s32 4, %v3272
        %v3274 = vrot.slane %v1594, %v3273
        %v3275 = vlaneseq
        %v3276 = vshrl.u32 %v3275, 7
        %v3277 = vsub.s32 5, %v3276
        %v3278 = vrot.slane %v1594, %v3277
        %v3279 = vlaneseq
        %v3280 = vshrl.u32 %v3279, 7
        %v3281 = vsub.s32 6, %v3280
        %v3282 = vrot.slane %v1594, %v3281
        %v3283 = vlaneseq
        %v3284 = vshrl.u32 %v3283, 7
        %v3285 = vsub.s32 7, %v3284
        %v3286 = vrot.slane %v1594, %v3285
        %v3287 = vlaneseq
        %v3288 = vshrl.u32 %v3287, 7
        %v3289 = vsub.s32 0, %v3288
        %v3290 = vrot.slane %v1608, %v3289
        %v3291 = vlaneseq
        %v3292 = vshrl.u32 %v3291, 7
        %v3293 = vsub.s32 1, %v3292
        %v3294 = vrot.slane %v1608, %v3293
        %v3295 = vlaneseq
        %v3296 = vshrl.u32 %v3295, 7
        %v3297 = vsub.s32 2, %v3296
        %v3298 = vrot.slane %v1608, %v3297
        %v3299 = vlaneseq
        %v3300 = vshrl.u32 %v3299, 7
        %v3301 = vsub.s32 3, %v3300
        %v3302 = vrot.slane %v1608, %v3301
        %v3303 = vlaneseq
        %v3304 = vshrl.u32 %v3303, 7
        %v3305 = vsub.s32 4, %v3304
        %v3306 = vrot.slane %v1608, %v3305
        %v3307 = vlaneseq
        %v3308 = vshrl.u32 %v3307, 7
        %v3309 = vsub.s32 5, %v3308
        %v3310 = vrot.slane %v1608, %v3309
        %v3311 = vlaneseq
        %v3312 = vshrl.u32 %v3311, 7
        %v3313 = vsub.s32 6, %v3312
        %v3314 = vrot.slane %v1608, %v3313
        %v3315 = vlaneseq
        %v3316 = vshrl.u32 %v3315, 7
        %v3317 = vsub.s32 7, %v3316
        %v3318 = vrot.slane %v1608, %v3317
        %v3319 = vlaneseq
        %v3320 = vshrl.u32 %v3319, 7
        %v3321 = vsub.s32 0, %v3320
        %v3322 = vrot.slane %v1622, %v3321
        %v3323 = vlaneseq
        %v3324 = vshrl.u32 %v3323, 7
        %v3325 = vsub.s32 1, %v3324
        %v3326 = vrot.slane %v1622, %v3325
        %v3327 = vlaneseq
        %v3328 = vshrl.u32 %v3327, 7
        %v3329 = vsub.s32 2, %v3328
        %v3330 = vrot.slane %v1622, %v3329
        %v3331 = vlaneseq
        %v3332 = vshrl.u32 %v3331, 7
        %v3333 = vsub.s32 3, %v3332
        %v3334 = vrot.slane %v1622, %v3333
        %v3335 = vlaneseq
        %v3336 = vshrl.u32 %v3335, 7
        %v3337 = vsub.s32 4, %v3336
        %v3338 = vrot.slane %v1622, %v3337
        %v3339 = vlaneseq
        %v3340 = vshrl.u32 %v3339, 7
        %v3341 = vsub.s32 5, %v3340
        %v3342 = vrot.slane %v1622, %v3341
        %v3343 = vlaneseq
        %v3344 = vshrl.u32 %v3343, 7
        %v3345 = vsub.s32 6, %v3344
        %v3346 = vrot.slane %v1622, %v3345
        %v3347 = vlaneseq
        %v3348 = vshrl.u32 %v3347, 7
        %v3349 = vsub.s32 7, %v3348
        %v3350 = vrot.slane %v1622, %v3349
        %v3351 = vlaneseq
        %v3352 = vshrl.u32 %v3351, 7
        %v3353 = vsub.s32 0, %v3352
        %v3354 = vrot.slane %v1636, %v3353
        %v3355 = vlaneseq
        %v3356 = vshrl.u32 %v3355, 7
        %v3357 = vsub.s32 1, %v3356
        %v3358 = vrot.slane %v1636, %v3357
        %v3359 = vlaneseq
        %v3360 = vshrl.u32 %v3359, 7
        %v3361 = vsub.s32 2, %v3360
        %v3362 = vrot.slane %v1636, %v3361
        %v3363 = vlaneseq
        %v3364 = vshrl.u32 %v3363, 7
        %v3365 = vsub.s32 3, %v3364
        %v3366 = vrot.slane %v1636, %v3365
        %v3367 = vlaneseq
        %v3368 = vshrl.u32 %v3367, 7
        %v3369 = vsub.s32 4, %v3368
        %v3370 = vrot.slane %v1636, %v3369
        %v3371 = vlaneseq
        %v3372 = vshrl.u32 %v3371, 7
        %v3373 = vsub.s32 5, %v3372
        %v3374 = vrot.slane %v1636, %v3373
        %v3375 = vlaneseq
        %v3376 = vshrl.u32 %v3375, 7
        %v3377 = vsub.s32 6, %v3376
        %v3378 = vrot.slane %v1636, %v3377
        %v3379 = vlaneseq
        %v3380 = vshrl.u32 %v3379, 7
        %v3381 = vsub.s32 7, %v3380
        %v3382 = vrot.slane %v1636, %v3381
        %v3383 = vlaneseq
        %v3384 = vshrl.u32 %v3383, 7
        %v3385 = vsub.s32 0, %v3384
        %v3386 = vrot.slane %v1650, %v3385
        %v3387 = vlaneseq
        %v3388 = vshrl.u32 %v3387, 7
        %v3389 = vsub.s32 1, %v3388
        %v3390 = vrot.slane %v1650, %v3389
        %v3391 = vlaneseq
        %v3392 = vshrl.u32 %v3391, 7
        %v3393 = vsub.s32 2, %v3392
        %v3394 = vrot.slane %v1650, %v3393
        %v3395 = vlaneseq
        %v3396 = vshrl.u32 %v3395, 7
        %v3397 = vsub.s32 3, %v3396
        %v3398 = vrot.slane %v1650, %v3397
        %v3399 = vlaneseq
        %v3400 = vshrl.u32 %v3399, 7
        %v3401 = vsub.s32 4, %v3400
        %v3402 = vrot.slane %v1650, %v3401
        %v3403 = vlaneseq
        %v3404 = vshrl.u32 %v3403, 7
        %v3405 = vsub.s32 5, %v3404
        %v3406 = vrot.slane %v1650, %v3405
        %v3407 = vlaneseq
        %v3408 = vshrl.u32 %v3407, 7
        %v3409 = vsub.s32 6, %v3408
        %v3410 = vrot.slane %v1650, %v3409
        %v3411 = vlaneseq
        %v3412 = vshrl.u32 %v3411, 7
        %v3413 = vsub.s32 7, %v3412
        %v3414 = vrot.slane %v1650, %v3413
        %v3415 = vlaneseq
        %v3416 = vshrl.u32 %v3415, 7
        %v3417 = vsub.s32 0, %v3416
        %v3418 = vrot.slane %v1664, %v3417
        %v3419 = vlaneseq
        %v3420 = vshrl.u32 %v3419, 7
        %v3421 = vsub.s32 1, %v3420
        %v3422 = vrot.slane %v1664, %v3421
        %v3423 = vlaneseq
        %v3424 = vshrl.u32 %v3423, 7
        %v3425 = vsub.s32 2, %v3424
        %v3426 = vrot.slane %v1664, %v3425
        %v3427 = vlaneseq
        %v3428 = vshrl.u32 %v3427, 7
        %v3429 = vsub.s32 3, %v3428
        %v3430 = vrot.slane %v1664, %v3429
        %v3431 = vlaneseq
        %v3432 = vshrl.u32 %v3431, 7
        %v3433 = vsub.s32 4, %v3432
        %v3434 = vrot.slane %v1664, %v3433
        %v3435 = vlaneseq
        %v3436 = vshrl.u32 %v3435, 7
        %v3437 = vsub.s32 5, %v3436
        %v3438 = vrot.slane %v1664, %v3437
        %v3439 = vlaneseq
        %v3440 = vshrl.u32 %v3439, 7
        %v3441 = vsub.s32 6, %v3440
        %v3442 = vrot.slane %v1664, %v3441
        %v3443 = vlaneseq
        %v3444 = vshrl.u32 %v3443, 7
        %v3445 = vsub.s32 7, %v3444
        %v3446 = vrot.slane %v1664, %v3445
        %v3447 = vlaneseq
        %v3448 = vshrl.u32 %v3447, 7
        %v3449 = vsub.s32 0, %v3448
        %v3450 = vrot.slane %v1678, %v3449
        %v3451 = vlaneseq
        %v3452 = vshrl.u32 %v3451, 7
        %v3453 = vsub.s32 1, %v3452
        %v3454 = vrot.slane %v1678, %v3453
        %v3455 = vlaneseq
        %v3456 = vshrl.u32 %v3455, 7
        %v3457 = vsub.s32 2, %v3456
        %v3458 = vrot.slane %v1678, %v3457
        %v3459 = vlaneseq
        %v3460 = vshrl.u32 %v3459, 7
        %v3461 = vsub.s32 3, %v3460
        %v3462 = vrot.slane %v1678, %v3461
        %v3463 = vlaneseq
        %v3464 = vshrl.u32 %v3463, 7
        %v3465 = vsub.s32 4, %v3464
        %v3466 = vrot.slane %v1678, %v3465
        %v3467 = vlaneseq
        %v3468 = vshrl.u32 %v3467, 7
        %v3469 = vsub.s32 5, %v3468
        %v3470 = vrot.slane %v1678, %v3469
        %v3471 = vlaneseq
        %v3472 = vshrl.u32 %v3471, 7
        %v3473 = vsub.s32 6, %v3472
        %v3474 = vrot.slane %v1678, %v3473
        %v3475 = vlaneseq
        %v3476 = vshrl.u32 %v3475, 7
        %v3477 = vsub.s32 7, %v3476
        %v3478 = vrot.slane %v1678, %v3477
        %v3479 = vlaneseq
        %v3480 = vshrl.u32 %v3479, 7
        %v3481 = vsub.s32 0, %v3480
        %v3482 = vrot.slane %v1692, %v3481
        %v3483 = vlaneseq
        %v3484 = vshrl.u32 %v3483, 7
        %v3485 = vsub.s32 1, %v3484
        %v3486 = vrot.slane %v1692, %v3485
        %v3487 = vlaneseq
        %v3488 = vshrl.u32 %v3487, 7
        %v3489 = vsub.s32 2, %v3488
        %v3490 = vrot.slane %v1692, %v3489
        %v3491 = vlaneseq
        %v3492 = vshrl.u32 %v3491, 7
        %v3493 = vsub.s32 3, %v3492
        %v3494 = vrot.slane %v1692, %v3493
        %v3495 = vlaneseq
        %v3496 = vshrl.u32 %v3495, 7
        %v3497 = vsub.s32 4, %v3496
        %v3498 = vrot.slane %v1692, %v3497
        %v3499 = vlaneseq
        %v3500 = vshrl.u32 %v3499, 7
        %v3501 = vsub.s32 5, %v3500
        %v3502 = vrot.slane %v1692, %v3501
        %v3503 = vlaneseq
        %v3504 = vshrl.u32 %v3503, 7
        %v3505 = vsub.s32 6, %v3504
        %v3506 = vrot.slane %v1692, %v3505
        %v3507 = vlaneseq
        %v3508 = vshrl.u32 %v3507, 7
        %v3509 = vsub.s32 7, %v3508
        %v3510 = vrot.slane %v1692, %v3509
        %v3511 = vlaneseq
        %v3512 = vshrl.u32 %v3511, 7
        %v3513 = vsub.s32 0, %v3512
        %v3514 = vrot.slane %v1706, %v3513
        %v3515 = vlaneseq
        %v3516 = vshrl.u32 %v3515, 7
        %v3517 = vsub.s32 1, %v3516
        %v3518 = vrot.slane %v1706, %v3517
        %v3519 = vlaneseq
        %v3520 = vshrl.u32 %v3519, 7
        %v3521 = vsub.s32 2, %v3520
        %v3522 = vrot.slane %v1706, %v3521
        %v3523 = vlaneseq
        %v3524 = vshrl.u32 %v3523, 7
        %v3525 = vsub.s32 3, %v3524
        %v3526 = vrot.slane %v1706, %v3525
        %v3527 = vlaneseq
        %v3528 = vshrl.u32 %v3527, 7
        %v3529 = vsub.s32 4, %v3528
        %v3530 = vrot.slane %v1706, %v3529
        %v3531 = vlaneseq
        %v3532 = vshrl.u32 %v3531, 7
        %v3533 = vsub.s32 5, %v3532
        %v3534 = vrot.slane %v1706, %v3533
        %v3535 = vlaneseq
        %v3536 = vshrl.u32 %v3535, 7
        %v3537 = vsub.s32 6, %v3536
        %v3538 = vrot.slane %v1706, %v3537
        %v3539 = vlaneseq
        %v3540 = vshrl.u32 %v3539, 7
        %v3541 = vsub.s32 7, %v3540
        %v3542 = vrot.slane %v1706, %v3541
        %v3543 = vlaneseq
        %v3544 = vshrl.u32 %v3543, 7
        %v3545 = vsub.s32 0, %v3544
        %v3546 = vrot.slane %v1720, %v3545
        %v3547 = vlaneseq
        %v3548 = vshrl.u32 %v3547, 7
        %v3549 = vsub.s32 1, %v3548
        %v3550 = vrot.slane %v1720, %v3549
        %v3551 = vlaneseq
        %v3552 = vshrl.u32 %v3551, 7
        %v3553 = vsub.s32 2, %v3552
        %v3554 = vrot.slane %v1720, %v3553
        %v3555 = vlaneseq
        %v3556 = vshrl.u32 %v3555, 7
        %v3557 = vsub.s32 3, %v3556
        %v3558 = vrot.slane %v1720, %v3557
        %v3559 = vlaneseq
        %v3560 = vshrl.u32 %v3559, 7
        %v3561 = vsub.s32 4, %v3560
        %v3562 = vrot.slane %v1720, %v3561
        %v3563 = vlaneseq
        %v3564 = vshrl.u32 %v3563, 7
        %v3565 = vsub.s32 5, %v3564
        %v3566 = vrot.slane %v1720, %v3565
        %v3567 = vlaneseq
        %v3568 = vshrl.u32 %v3567, 7
        %v3569 = vsub.s32 6, %v3568
        %v3570 = vrot.slane %v1720, %v3569
        %v3571 = vlaneseq
        %v3572 = vshrl.u32 %v3571, 7
        %v3573 = vsub.s32 7, %v3572
        %v3574 = vrot.slane %v1720, %v3573
        %v3575 = vlaneseq
        %v3576 = vshrl.u32 %v3575, 7
        %v3577 = vsub.s32 0, %v3576
        %v3578 = vrot.slane %v1734, %v3577
        %v3579 = vlaneseq
        %v3580 = vshrl.u32 %v3579, 7
        %v3581 = vsub.s32 1, %v3580
        %v3582 = vrot.slane %v1734, %v3581
        %v3583 = vlaneseq
        %v3584 = vshrl.u32 %v3583, 7
        %v3585 = vsub.s32 2, %v3584
        %v3586 = vrot.slane %v1734, %v3585
        %v3587 = vlaneseq
        %v3588 = vshrl.u32 %v3587, 7
        %v3589 = vsub.s32 3, %v3588
        %v3590 = vrot.slane %v1734, %v3589
        %v3591 = vlaneseq
        %v3592 = vshrl.u32 %v3591, 7
        %v3593 = vsub.s32 4, %v3592
        %v3594 = vrot.slane %v1734, %v3593
        %v3595 = vlaneseq
        %v3596 = vshrl.u32 %v3595, 7
        %v3597 = vsub.s32 5, %v3596
        %v3598 = vrot.slane %v1734, %v3597
        %v3599 = vlaneseq
        %v3600 = vshrl.u32 %v3599, 7
        %v3601 = vsub.s32 6, %v3600
        %v3602 = vrot.slane %v1734, %v3601
        %v3603 = vlaneseq
        %v3604 = vshrl.u32 %v3603, 7
        %v3605 = vsub.s32 7, %v3604
        %v3606 = vrot.slane %v1734, %v3605
        %v3607 = vlaneseq
        %v3608 = vshrl.u32 %v3607, 7
        %v3609 = vsub.s32 0, %v3608
        %v3610 = vrot.slane %v1748, %v3609
        %v3611 = vlaneseq
        %v3612 = vshrl.u32 %v3611, 7
        %v3613 = vsub.s32 1, %v3612
        %v3614 = vrot.slane %v1748, %v3613
        %v3615 = vlaneseq
        %v3616 = vshrl.u32 %v3615, 7
        %v3617 = vsub.s32 2, %v3616
        %v3618 = vrot.slane %v1748, %v3617
        %v3619 = vlaneseq
        %v3620 = vshrl.u32 %v3619, 7
        %v3621 = vsub.s32 3, %v3620
        %v3622 = vrot.slane %v1748, %v3621
        %v3623 = vlaneseq
        %v3624 = vshrl.u32 %v3623, 7
        %v3625 = vsub.s32 4, %v3624
        %v3626 = vrot.slane %v1748, %v3625
        %v3627 = vlaneseq
        %v3628 = vshrl.u32 %v3627, 7
        %v3629 = vsub.s32 5, %v3628
        %v3630 = vrot.slane %v1748, %v3629
        %v3631 = vlaneseq
        %v3632 = vshrl.u32 %v3631, 7
        %v3633 = vsub.s32 6, %v3632
        %v3634 = vrot.slane %v1748, %v3633
        %v3635 = vlaneseq
        %v3636 = vshrl.u32 %v3635, 7
        %v3637 = vsub.s32 7, %v3636
        %v3638 = vrot.slane %v1748, %v3637
        %v3639 = vcombine.low %v2618, %v2622
        %v3640 = vcombine.low %v2626, %v2630
        %v3641 = vcombine.low %v2634, %v2638
        %v3642 = vcombine.low %v2642, %v2646
        %v3644 = vunpack.c.l.s4 1966171168
        %v3645 = vunpack.c.0.s8 %v3644
        %v3646 = vlaneseq
        %v3647 = vshrl.u32 %v3646, 7
        %v3648 = vsub.s32 %v3645, %v3647
        %v3649 = vrot.slane %v3639, %v3648
        %v3651 = vunpack.c.l.s4 1966171168
        %v3652 = vunpack.c.0.s8 %v3651
        %v3653 = vlaneseq
        %v3654 = vshrl.u32 %v3653, 7
        %v3655 = vsub.s32 %v3652, %v3654
        %v3656 = vrot.slane %v3640, %v3655
        %v3658 = vunpack.c.l.s4 1966171168
        %v3659 = vunpack.c.0.s8 %v3658
        %v3660 = vlaneseq
        %v3661 = vshrl.u32 %v3660, 7
        %v3662 = vsub.s32 %v3659, %v3661
        %v3663 = vrot.slane %v3641, %v3662
        %v3665 = vunpack.c.l.s4 1966171168
        %v3666 = vunpack.c.0.s8 %v3665
        %v3667 = vlaneseq
        %v3668 = vshrl.u32 %v3667, 7
        %v3669 = vsub.s32 %v3666, %v3668
        %v3670 = vrot.slane %v3642, %v3669
        %v3671 = vcombine.low %v3649, %v3656
        %v3672 = vcombine.low %v3663, %v3670
        %v3674 = vunpack.c.l.s4 1966171168
        %v3675 = vunpack.c.0.s8 %v3674
        %v3676 = vlaneseq
        %v3677 = vshrl.u32 %v3676, 7
        %v3678 = vsub.s32 %v3675, %v3677
        %v3679 = vrot.slane %v3671, %v3678
        %v3681 = vunpack.c.l.s4 1966171168
        %v3682 = vunpack.c.0.s8 %v3681
        %v3683 = vlaneseq
        %v3684 = vshrl.u32 %v3683, 7
        %v3685 = vsub.s32 %v3682, %v3684
        %v3686 = vrot.slane %v3672, %v3685
        %v3687 = vcombine.low %v3679, %v3686
        %v3688 = vcombine.low %v2650, %v2654
        %v3689 = vcombine.low %v2658, %v2662
        %v3690 = vcombine.low %v2666, %v2670
        %v3691 = vcombine.low %v2674, %v2678
        %v3693 = vunpack.c.l.s4 1966171168
        %v3694 = vunpack.c.0.s8 %v3693
        %v3695 = vlaneseq
        %v3696 = vshrl.u32 %v3695, 7
        %v3697 = vsub.s32 %v3694, %v3696
        %v3698 = vrot.slane %v3688, %v3697
        %v3700 = vunpack.c.l.s4 1966171168
        %v3701 = vunpack.c.0.s8 %v3700
        %v3702 = vlaneseq
        %v3703 = vshrl.u32 %v3702, 7
        %v3704 = vsub.s32 %v3701, %v3703
        %v3705 = vrot.slane %v3689, %v3704
        %v3707 = vunpack.c.l.s4 1966171168
        %v3708 = vunpack.c.0.s8 %v3707
        %v3709 = vlaneseq
        %v3710 = vshrl.u32 %v3709, 7
        %v3711 = vsub.s32 %v3708, %v3710
        %v3712 = vrot.slane %v3690, %v3711
        %v3714 = vunpack.c.l.s4 1966171168
        %v3715 = vunpack.c.0.s8 %v3714
        %v3716 = vlaneseq
        %v3717 = vshrl.u32 %v3716, 7
        %v3718 = vsub.s32 %v3715, %v3717
        %v3719 = vrot.slane %v3691, %v3718
        %v3720 = vcombine.low %v3698, %v3705
        %v3721 = vcombine.low %v3712, %v3719
        %v3723 = vunpack.c.l.s4 1966171168
        %v3724 = vunpack.c.0.s8 %v3723
        %v3725 = vlaneseq
        %v3726 = vshrl.u32 %v3725, 7
        %v3727 = vsub.s32 %v3724, %v3726
        %v3728 = vrot.slane %v3720, %v3727
        %v3730 = vunpack.c.l.s4 1966171168
        %v3731 = vunpack.c.0.s8 %v3730
        %v3732 = vlaneseq
        %v3733 = vshrl.u32 %v3732, 7
        %v3734 = vsub.s32 %v3731, %v3733
        %v3735 = vrot.slane %v3721, %v3734
        %v3736 = vcombine.low %v3728, %v3735
        %v3737 = vcombine.low %v2682, %v2686
        %v3738 = vcombine.low %v2690, %v2694
        %v3739 = vcombine.low %v2698, %v2702
        %v3740 = vcombine.low %v2706, %v2710
        %v3742 = vunpack.c.l.s4 1966171168
        %v3743 = vunpack.c.0.s8 %v3742
        %v3744 = vlaneseq
        %v3745 = vshrl.u32 %v3744, 7
        %v3746 = vsub.s32 %v3743, %v3745
        %v3747 = vrot.slane %v3737, %v3746
        %v3749 = vunpack.c.l.s4 1966171168
        %v3750 = vunpack.c.0.s8 %v3749
        %v3751 = vlaneseq
        %v3752 = vshrl.u32 %v3751, 7
        %v3753 = vsub.s32 %v3750, %v3752
        %v3754 = vrot.slane %v3738, %v3753
        %v3756 = vunpack.c.l.s4 1966171168
        %v3757 = vunpack.c.0.s8 %v3756
        %v3758 = vlaneseq
        %v3759 = vshrl.u32 %v3758, 7
        %v3760 = vsub.s32 %v3757, %v3759
        %v3761 = vrot.slane %v3739, %v3760
        %v3763 = vunpack.c.l.s4 1966171168
        %v3764 = vunpack.c.0.s8 %v3763
        %v3765 = vlaneseq
        %v3766 = vshrl.u32 %v3765, 7
        %v3767 = vsub.s32 %v3764, %v3766
        %v3768 = vrot.slane %v3740, %v3767
        %v3769 = vcombine.low %v3747, %v3754
        %v3770 = vcombine.low %v3761, %v3768
        %v3772 = vunpack.c.l.s4 1966171168
        %v3773 = vunpack.c.0.s8 %v3772
        %v3774 = vlaneseq
        %v3775 = vshrl.u32 %v3774, 7
        %v3776 = vsub.s32 %v3773, %v3775
        %v3777 = vrot.slane %v3769, %v3776
        %v3779 = vunpack.c.l.s4 1966171168
        %v3780 = vunpack.c.0.s8 %v3779
        %v3781 = vlaneseq
        %v3782 = vshrl.u32 %v3781, 7
        %v3783 = vsub.s32 %v3780, %v3782
        %v3784 = vrot.slane %v3770, %v3783
        %v3785 = vcombine.low %v3777, %v3784
        %v3786 = vcombine.low %v2714, %v2718
        %v3787 = vcombine.low %v2722, %v2726
        %v3788 = vcombine.low %v2730, %v2734
        %v3789 = vcombine.low %v2738, %v2742
        %v3791 = vunpack.c.l.s4 1966171168
        %v3792 = vunpack.c.0.s8 %v3791
        %v3793 = vlaneseq
        %v3794 = vshrl.u32 %v3793, 7
        %v3795 = vsub.s32 %v3792, %v3794
        %v3796 = vrot.slane %v3786, %v3795
        %v3798 = vunpack.c.l.s4 1966171168
        %v3799 = vunpack.c.0.s8 %v3798
        %v3800 = vlaneseq
        %v3801 = vshrl.u32 %v3800, 7
        %v3802 = vsub.s32 %v3799, %v3801
        %v3803 = vrot.slane %v3787, %v3802
        %v3805 = vunpack.c.l.s4 1966171168
        %v3806 = vunpack.c.0.s8 %v3805
        %v3807 = vlaneseq
        %v3808 = vshrl.u32 %v3807, 7
        %v3809 = vsub.s32 %v3806, %v3808
        %v3810 = vrot.slane %v3788, %v3809
        %v3812 = vunpack.c.l.s4 1966171168
        %v3813 = vunpack.c.0.s8 %v3812
        %v3814 = vlaneseq
        %v3815 = vshrl.u32 %v3814, 7
        %v3816 = vsub.s32 %v3813, %v3815
        %v3817 = vrot.slane %v3789, %v3816
        %v3818 = vcombine.low %v3796, %v3803
        %v3819 = vcombine.low %v3810, %v3817
        %v3821 = vunpack.c.l.s4 1966171168
        %v3822 = vunpack.c.0.s8 %v3821
        %v3823 = vlaneseq
        %v3824 = vshrl.u32 %v3823, 7
        %v3825 = vsub.s32 %v3822, %v3824
        %v3826 = vrot.slane %v3818, %v3825
        %v3828 = vunpack.c.l.s4 1966171168
        %v3829 = vunpack.c.0.s8 %v3828
        %v3830 = vlaneseq
        %v3831 = vshrl.u32 %v3830, 7
        %v3832 = vsub.s32 %v3829, %v3831
        %v3833 = vrot.slane %v3819, %v3832
        %v3834 = vcombine.low %v3826, %v3833
        %v3835 = vcombine.low %v2746, %v2750
        %v3836 = vcombine.low %v2754, %v2758
        %v3837 = vcombine.low %v2762, %v2766
        %v3838 = vcombine.low %v2770, %v2774
        %v3840 = vunpack.c.l.s4 1966171168
        %v3841 = vunpack.c.0.s8 %v3840
        %v3842 = vlaneseq
        %v3843 = vshrl.u32 %v3842, 7
        %v3844 = vsub.s32 %v3841, %v3843
        %v3845 = vrot.slane %v3835, %v3844
        %v3847 = vunpack.c.l.s4 1966171168
        %v3848 = vunpack.c.0.s8 %v3847
        %v3849 = vlaneseq
        %v3850 = vshrl.u32 %v3849, 7
        %v3851 = vsub.s32 %v3848, %v3850
        %v3852 = vrot.slane %v3836, %v3851
        %v3854 = vunpack.c.l.s4 1966171168
        %v3855 = vunpack.c.0.s8 %v3854
        %v3856 = vlaneseq
        %v3857 = vshrl.u32 %v3856, 7
        %v3858 = vsub.s32 %v3855, %v3857
        %v3859 = vrot.slane %v3837, %v3858
        %v3861 = vunpack.c.l.s4 1966171168
        %v3862 = vunpack.c.0.s8 %v3861
        %v3863 = vlaneseq
        %v3864 = vshrl.u32 %v3863, 7
        %v3865 = vsub.s32 %v3862, %v3864
        %v3866 = vrot.slane %v3838, %v3865
        %v3867 = vcombine.low %v3845, %v3852
        %v3868 = vcombine.low %v3859, %v3866
        %v3870 = vunpack.c.l.s4 1966171168
        %v3871 = vunpack.c.0.s8 %v3870
        %v3872 = vlaneseq
        %v3873 = vshrl.u32 %v3872, 7
        %v3874 = vsub.s32 %v3871, %v3873
        %v3875 = vrot.slane %v3867, %v3874
        %v3877 = vunpack.c.l.s4 1966171168
        %v3878 = vunpack.c.0.s8 %v3877
        %v3879 = vlaneseq
        %v3880 = vshrl.u32 %v3879, 7
        %v3881 = vsub.s32 %v3878, %v3880
        %v3882 = vrot.slane %v3868, %v3881
        %v3883 = vcombine.low %v3875, %v3882
        %v3884 = vcombine.low %v2778, %v2782
        %v3885 = vcombine.low %v2786, %v2790
        %v3886 = vcombine.low %v2794, %v2798
        %v3887 = vcombine.low %v2802, %v2806
        %v3889 = vunpack.c.l.s4 1966171168
        %v3890 = vunpack.c.0.s8 %v3889
        %v3891 = vlaneseq
        %v3892 = vshrl.u32 %v3891, 7
        %v3893 = vsub.s32 %v3890, %v3892
        %v3894 = vrot.slane %v3884, %v3893
        %v3896 = vunpack.c.l.s4 1966171168
        %v3897 = vunpack.c.0.s8 %v3896
        %v3898 = vlaneseq
        %v3899 = vshrl.u32 %v3898, 7
        %v3900 = vsub.s32 %v3897, %v3899
        %v3901 = vrot.slane %v3885, %v3900
        %v3903 = vunpack.c.l.s4 1966171168
        %v3904 = vunpack.c.0.s8 %v3903
        %v3905 = vlaneseq
        %v3906 = vshrl.u32 %v3905, 7
        %v3907 = vsub.s32 %v3904, %v3906
        %v3908 = vrot.slane %v3886, %v3907
        %v3910 = vunpack.c.l.s4 1966171168
        %v3911 = vunpack.c.0.s8 %v3910
        %v3912 = vlaneseq
        %v3913 = vshrl.u32 %v3912, 7
        %v3914 = vsub.s32 %v3911, %v3913
        %v3915 = vrot.slane %v3887, %v3914
        %v3916 = vcombine.low %v3894, %v3901
        %v3917 = vcombine.low %v3908, %v3915
        %v3919 = vunpack.c.l.s4 1966171168
        %v3920 = vunpack.c.0.s8 %v3919
        %v3921 = vlaneseq
        %v3922 = vshrl.u32 %v3921, 7
        %v3923 = vsub.s32 %v3920, %v3922
        %v3924 = vrot.slane %v3916, %v3923
        %v3926 = vunpack.c.l.s4 1966171168
        %v3927 = vunpack.c.0.s8 %v3926
        %v3928 = vlaneseq
        %v3929 = vshrl.u32 %v3928, 7
        %v3930 = vsub.s32 %v3927, %v3929
        %v3931 = vrot.slane %v3917, %v3930
        %v3932 = vcombine.low %v3924, %v3931
        %v3933 = vcombine.low %v2810, %v2814
        %v3934 = vcombine.low %v2818, %v2822
        %v3935 = vcombine.low %v2826, %v2830
        %v3936 = vcombine.low %v2834, %v2838
        %v3938 = vunpack.c.l.s4 1966171168
        %v3939 = vunpack.c.0.s8 %v3938
        %v3940 = vlaneseq
        %v3941 = vshrl.u32 %v3940, 7
        %v3942 = vsub.s32 %v3939, %v3941
        %v3943 = vrot.slane %v3933, %v3942
        %v3945 = vunpack.c.l.s4 1966171168
        %v3946 = vunpack.c.0.s8 %v3945
        %v3947 = vlaneseq
        %v3948 = vshrl.u32 %v3947, 7
        %v3949 = vsub.s32 %v3946, %v3948
        %v3950 = vrot.slane %v3934, %v3949
        %v3952 = vunpack.c.l.s4 1966171168
        %v3953 = vunpack.c.0.s8 %v3952
        %v3954 = vlaneseq
        %v3955 = vshrl.u32 %v3954, 7
        %v3956 = vsub.s32 %v3953, %v3955
        %v3957 = vrot.slane %v3935, %v3956
        %v3959 = vunpack.c.l.s4 1966171168
        %v3960 = vunpack.c.0.s8 %v3959
        %v3961 = vlaneseq
        %v3962 = vshrl.u32 %v3961, 7
        %v3963 = vsub.s32 %v3960, %v3962
        %v3964 = vrot.slane %v3936, %v3963
        %v3965 = vcombine.low %v3943, %v3950
        %v3966 = vcombine.low %v3957, %v3964
        %v3968 = vunpack.c.l.s4 1966171168
        %v3969 = vunpack.c.0.s8 %v3968
        %v3970 = vlaneseq
        %v3971 = vshrl.u32 %v3970, 7
        %v3972 = vsub.s32 %v3969, %v3971
        %v3973 = vrot.slane %v3965, %v3972
        %v3975 = vunpack.c.l.s4 1966171168
        %v3976 = vunpack.c.0.s8 %v3975
        %v3977 = vlaneseq
        %v3978 = vshrl.u32 %v3977, 7
        %v3979 = vsub.s32 %v3976, %v3978
        %v3980 = vrot.slane %v3966, %v3979
        %v3981 = vcombine.low %v3973, %v3980
        %v3982 = vcombine.low %v2842, %v2846
        %v3983 = vcombine.low %v2850, %v2854
        %v3984 = vcombine.low %v2858, %v2862
        %v3985 = vcombine.low %v2866, %v2870
        %v3987 = vunpack.c.l.s4 1966171168
        %v3988 = vunpack.c.0.s8 %v3987
        %v3989 = vlaneseq
        %v3990 = vshrl.u32 %v3989, 7
        %v3991 = vsub.s32 %v3988, %v3990
        %v3992 = vrot.slane %v3982, %v3991
        %v3994 = vunpack.c.l.s4 1966171168
        %v3995 = vunpack.c.0.s8 %v3994
        %v3996 = vlaneseq
        %v3997 = vshrl.u32 %v3996, 7
        %v3998 = vsub.s32 %v3995, %v3997
        %v3999 = vrot.slane %v3983, %v3998
        %v4001 = vunpack.c.l.s4 1966171168
        %v4002 = vunpack.c.0.s8 %v4001
        %v4003 = vlaneseq
        %v4004 = vshrl.u32 %v4003, 7
        %v4005 = vsub.s32 %v4002, %v4004
        %v4006 = vrot.slane %v3984, %v4005
        %v4008 = vunpack.c.l.s4 1966171168
        %v4009 = vunpack.c.0.s8 %v4008
        %v4010 = vlaneseq
        %v4011 = vshrl.u32 %v4010, 7
        %v4012 = vsub.s32 %v4009, %v4011
        %v4013 = vrot.slane %v3985, %v4012
        %v4014 = vcombine.low %v3992, %v3999
        %v4015 = vcombine.low %v4006, %v4013
        %v4017 = vunpack.c.l.s4 1966171168
        %v4018 = vunpack.c.0.s8 %v4017
        %v4019 = vlaneseq
        %v4020 = vshrl.u32 %v4019, 7
        %v4021 = vsub.s32 %v4018, %v4020
        %v4022 = vrot.slane %v4014, %v4021
        %v4024 = vunpack.c.l.s4 1966171168
        %v4025 = vunpack.c.0.s8 %v4024
        %v4026 = vlaneseq
        %v4027 = vshrl.u32 %v4026, 7
        %v4028 = vsub.s32 %v4025, %v4027
        %v4029 = vrot.slane %v4015, %v4028
        %v4030 = vcombine.low %v4022, %v4029
        %v4031 = vcombine.low %v2874, %v2878
        %v4032 = vcombine.low %v2882, %v2886
        %v4033 = vcombine.low %v2890, %v2894
        %v4034 = vcombine.low %v2898, %v2902
        %v4036 = vunpack.c.l.s4 1966171168
        %v4037 = vunpack.c.0.s8 %v4036
        %v4038 = vlaneseq
        %v4039 = vshrl.u32 %v4038, 7
        %v4040 = vsub.s32 %v4037, %v4039
        %v4041 = vrot.slane %v4031, %v4040
        %v4043 = vunpack.c.l.s4 1966171168
        %v4044 = vunpack.c.0.s8 %v4043
        %v4045 = vlaneseq
        %v4046 = vshrl.u32 %v4045, 7
        %v4047 = vsub.s32 %v4044, %v4046
        %v4048 = vrot.slane %v4032, %v4047
        %v4050 = vunpack.c.l.s4 1966171168
        %v4051 = vunpack.c.0.s8 %v4050
        %v4052 = vlaneseq
        %v4053 = vshrl.u32 %v4052, 7
        %v4054 = vsub.s32 %v4051, %v4053
        %v4055 = vrot.slane %v4033, %v4054
        %v4057 = vunpack.c.l.s4 1966171168
        %v4058 = vunpack.c.0.s8 %v4057
        %v4059 = vlaneseq
        %v4060 = vshrl.u32 %v4059, 7
        %v4061 = vsub.s32 %v4058, %v4060
        %v4062 = vrot.slane %v4034, %v4061
        %v4063 = vcombine.low %v4041, %v4048
        %v4064 = vcombine.low %v4055, %v4062
        %v4066 = vunpack.c.l.s4 1966171168
        %v4067 = vunpack.c.0.s8 %v4066
        %v4068 = vlaneseq
        %v4069 = vshrl.u32 %v4068, 7
        %v4070 = vsub.s32 %v4067, %v4069
        %v4071 = vrot.slane %v4063, %v4070
        %v4073 = vunpack.c.l.s4 1966171168
        %v4074 = vunpack.c.0.s8 %v4073
        %v4075 = vlaneseq
        %v4076 = vshrl.u32 %v4075, 7
        %v4077 = vsub.s32 %v4074, %v4076
        %v4078 = vrot.slane %v4064, %v4077
        %v4079 = vcombine.low %v4071, %v4078
        %v4080 = vcombine.low %v2906, %v2910
        %v4081 = vcombine.low %v2914, %v2918
        %v4082 = vcombine.low %v2922, %v2926
        %v4083 = vcombine.low %v2930, %v2934
        %v4085 = vunpack.c.l.s4 1966171168
        %v4086 = vunpack.c.0.s8 %v4085
        %v4087 = vlaneseq
        %v4088 = vshrl.u32 %v4087, 7
        %v4089 = vsub.s32 %v4086, %v4088
        %v4090 = vrot.slane %v4080, %v4089
        %v4092 = vunpack.c.l.s4 1966171168
        %v4093 = vunpack.c.0.s8 %v4092
        %v4094 = vlaneseq
        %v4095 = vshrl.u32 %v4094, 7
        %v4096 = vsub.s32 %v4093, %v4095
        %v4097 = vrot.slane %v4081, %v4096
        %v4099 = vunpack.c.l.s4 1966171168
        %v4100 = vunpack.c.0.s8 %v4099
        %v4101 = vlaneseq
        %v4102 = vshrl.u32 %v4101, 7
        %v4103 = vsub.s32 %v4100, %v4102
        %v4104 = vrot.slane %v4082, %v4103
        %v4106 = vunpack.c.l.s4 1966171168
        %v4107 = vunpack.c.0.s8 %v4106
        %v4108 = vlaneseq
        %v4109 = vshrl.u32 %v4108, 7
        %v4110 = vsub.s32 %v4107, %v4109
        %v4111 = vrot.slane %v4083, %v4110
        %v4112 = vcombine.low %v4090, %v4097
        %v4113 = vcombine.low %v4104, %v4111
        %v4115 = vunpack.c.l.s4 1966171168
        %v4116 = vunpack.c.0.s8 %v4115
        %v4117 = vlaneseq
        %v4118 = vshrl.u32 %v4117, 7
        %v4119 = vsub.s32 %v4116, %v4118
        %v4120 = vrot.slane %v4112, %v4119
        %v4122 = vunpack.c.l.s4 1966171168
        %v4123 = vunpack.c.0.s8 %v4122
        %v4124 = vlaneseq
        %v4125 = vshrl.u32 %v4124, 7
        %v4126 = vsub.s32 %v4123, %v4125
        %v4127 = vrot.slane %v4113, %v4126
        %v4128 = vcombine.low %v4120, %v4127
        %v4129 = vcombine.low %v2938, %v2942
        %v4130 = vcombine.low %v2946, %v2950
        %v4131 = vcombine.low %v2954, %v2958
        %v4132 = vcombine.low %v2962, %v2966
        %v4134 = vunpack.c.l.s4 1966171168
        %v4135 = vunpack.c.0.s8 %v4134
        %v4136 = vlaneseq
        %v4137 = vshrl.u32 %v4136, 7
        %v4138 = vsub.s32 %v4135, %v4137
        %v4139 = vrot.slane %v4129, %v4138
        %v4141 = vunpack.c.l.s4 1966171168
        %v4142 = vunpack.c.0.s8 %v4141
        %v4143 = vlaneseq
        %v4144 = vshrl.u32 %v4143, 7
        %v4145 = vsub.s32 %v4142, %v4144
        %v4146 = vrot.slane %v4130, %v4145
        %v4148 = vunpack.c.l.s4 1966171168
        %v4149 = vunpack.c.0.s8 %v4148
        %v4150 = vlaneseq
        %v4151 = vshrl.u32 %v4150, 7
        %v4152 = vsub.s32 %v4149, %v4151
        %v4153 = vrot.slane %v4131, %v4152
        %v4155 = vunpack.c.l.s4 1966171168
        %v4156 = vunpack.c.0.s8 %v4155
        %v4157 = vlaneseq
        %v4158 = vshrl.u32 %v4157, 7
        %v4159 = vsub.s32 %v4156, %v4158
        %v4160 = vrot.slane %v4132, %v4159
        %v4161 = vcombine.low %v4139, %v4146
        %v4162 = vcombine.low %v4153, %v4160
        %v4164 = vunpack.c.l.s4 1966171168
        %v4165 = vunpack.c.0.s8 %v4164
        %v4166 = vlaneseq
        %v4167 = vshrl.u32 %v4166, 7
        %v4168 = vsub.s32 %v4165, %v4167
        %v4169 = vrot.slane %v4161, %v4168
        %v4171 = vunpack.c.l.s4 1966171168
        %v4172 = vunpack.c.0.s8 %v4171
        %v4173 = vlaneseq
        %v4174 = vshrl.u32 %v4173, 7
        %v4175 = vsub.s32 %v4172, %v4174
        %v4176 = vrot.slane %v4162, %v4175
        %v4177 = vcombine.low %v4169, %v4176
        %v4178 = vcombine.low %v2970, %v2974
        %v4179 = vcombine.low %v2978, %v2982
        %v4180 = vcombine.low %v2986, %v2990
        %v4181 = vcombine.low %v2994, %v2998
        %v4183 = vunpack.c.l.s4 1966171168
        %v4184 = vunpack.c.0.s8 %v4183
        %v4185 = vlaneseq
        %v4186 = vshrl.u32 %v4185, 7
        %v4187 = vsub.s32 %v4184, %v4186
        %v4188 = vrot.slane %v4178, %v4187
        %v4190 = vunpack.c.l.s4 1966171168
        %v4191 = vunpack.c.0.s8 %v4190
        %v4192 = vlaneseq
        %v4193 = vshrl.u32 %v4192, 7
        %v4194 = vsub.s32 %v4191, %v4193
        %v4195 = vrot.slane %v4179, %v4194
        %v4197 = vunpack.c.l.s4 1966171168
        %v4198 = vunpack.c.0.s8 %v4197
        %v4199 = vlaneseq
        %v4200 = vshrl.u32 %v4199, 7
        %v4201 = vsub.s32 %v4198, %v4200
        %v4202 = vrot.slane %v4180, %v4201
        %v4204 = vunpack.c.l.s4 1966171168
        %v4205 = vunpack.c.0.s8 %v4204
        %v4206 = vlaneseq
        %v4207 = vshrl.u32 %v4206, 7
        %v4208 = vsub.s32 %v4205, %v4207
        %v4209 = vrot.slane %v4181, %v4208
        %v4210 = vcombine.low %v4188, %v4195
        %v4211 = vcombine.low %v4202, %v4209
        %v4213 = vunpack.c.l.s4 1966171168
        %v4214 = vunpack.c.0.s8 %v4213
        %v4215 = vlaneseq
        %v4216 = vshrl.u32 %v4215, 7
        %v4217 = vsub.s32 %v4214, %v4216
        %v4218 = vrot.slane %v4210, %v4217
        %v4220 = vunpack.c.l.s4 1966171168
        %v4221 = vunpack.c.0.s8 %v4220
        %v4222 = vlaneseq
        %v4223 = vshrl.u32 %v4222, 7
        %v4224 = vsub.s32 %v4221, %v4223
        %v4225 = vrot.slane %v4211, %v4224
        %v4226 = vcombine.low %v4218, %v4225
        %v4227 = vcombine.low %v3002, %v3006
        %v4228 = vcombine.low %v3010, %v3014
        %v4229 = vcombine.low %v3018, %v3022
        %v4230 = vcombine.low %v3026, %v3030
        %v4232 = vunpack.c.l.s4 1966171168
        %v4233 = vunpack.c.0.s8 %v4232
        %v4234 = vlaneseq
        %v4235 = vshrl.u32 %v4234, 7
        %v4236 = vsub.s32 %v4233, %v4235
        %v4237 = vrot.slane %v4227, %v4236
        %v4239 = vunpack.c.l.s4 1966171168
        %v4240 = vunpack.c.0.s8 %v4239
        %v4241 = vlaneseq
        %v4242 = vshrl.u32 %v4241, 7
        %v4243 = vsub.s32 %v4240, %v4242
        %v4244 = vrot.slane %v4228, %v4243
        %v4246 = vunpack.c.l.s4 1966171168
        %v4247 = vunpack.c.0.s8 %v4246
        %v4248 = vlaneseq
        %v4249 = vshrl.u32 %v4248, 7
        %v4250 = vsub.s32 %v4247, %v4249
        %v4251 = vrot.slane %v4229, %v4250
        %v4253 = vunpack.c.l.s4 1966171168
        %v4254 = vunpack.c.0.s8 %v4253
        %v4255 = vlaneseq
        %v4256 = vshrl.u32 %v4255, 7
        %v4257 = vsub.s32 %v4254, %v4256
        %v4258 = vrot.slane %v4230, %v4257
        %v4259 = vcombine.low %v4237, %v4244
        %v4260 = vcombine.low %v4251, %v4258
        %v4262 = vunpack.c.l.s4 1966171168
        %v4263 = vunpack.c.0.s8 %v4262
        %v4264 = vlaneseq
        %v4265 = vshrl.u32 %v4264, 7
        %v4266 = vsub.s32 %v4263, %v4265
        %v4267 = vrot.slane %v4259, %v4266
        %v4269 = vunpack.c.l.s4 1966171168
        %v4270 = vunpack.c.0.s8 %v4269
        %v4271 = vlaneseq
        %v4272 = vshrl.u32 %v4271, 7
        %v4273 = vsub.s32 %v4270, %v4272
        %v4274 = vrot.slane %v4260, %v4273
        %v4275 = vcombine.low %v4267, %v4274
        %v4276 = vcombine.low %v3034, %v3038
        %v4277 = vcombine.low %v3042, %v3046
        %v4278 = vcombine.low %v3050, %v3054
        %v4279 = vcombine.low %v3058, %v3062
        %v4281 = vunpack.c.l.s4 1966171168
        %v4282 = vunpack.c.0.s8 %v4281
        %v4283 = vlaneseq
        %v4284 = vshrl.u32 %v4283, 7
        %v4285 = vsub.s32 %v4282, %v4284
        %v4286 = vrot.slane %v4276, %v4285
        %v4288 = vunpack.c.l.s4 1966171168
        %v4289 = vunpack.c.0.s8 %v4288
        %v4290 = vlaneseq
        %v4291 = vshrl.u32 %v4290, 7
        %v4292 = vsub.s32 %v4289, %v4291
        %v4293 = vrot.slane %v4277, %v4292
        %v4295 = vunpack.c.l.s4 1966171168
        %v4296 = vunpack.c.0.s8 %v4295
        %v4297 = vlaneseq
        %v4298 = vshrl.u32 %v4297, 7
        %v4299 = vsub.s32 %v4296, %v4298
        %v4300 = vrot.slane %v4278, %v4299
        %v4302 = vunpack.c.l.s4 1966171168
        %v4303 = vunpack.c.0.s8 %v4302
        %v4304 = vlaneseq
        %v4305 = vshrl.u32 %v4304, 7
        %v4306 = vsub.s32 %v4303, %v4305
        %v4307 = vrot.slane %v4279, %v4306
        %v4308 = vcombine.low %v4286, %v4293
        %v4309 = vcombine.low %v4300, %v4307
        %v4311 = vunpack.c.l.s4 1966171168
        %v4312 = vunpack.c.0.s8 %v4311
        %v4313 = vlaneseq
        %v4314 = vshrl.u32 %v4313, 7
        %v4315 = vsub.s32 %v4312, %v4314
        %v4316 = vrot.slane %v4308, %v4315
        %v4318 = vunpack.c.l.s4 1966171168
        %v4319 = vunpack.c.0.s8 %v4318
        %v4320 = vlaneseq
        %v4321 = vshrl.u32 %v4320, 7
        %v4322 = vsub.s32 %v4319, %v4321
        %v4323 = vrot.slane %v4309, %v4322
        %v4324 = vcombine.low %v4316, %v4323
        %v4325 = vcombine.low %v3066, %v3070
        %v4326 = vcombine.low %v3074, %v3078
        %v4327 = vcombine.low %v3082, %v3086
        %v4328 = vcombine.low %v3090, %v3094
        %v4330 = vunpack.c.l.s4 1966171168
        %v4331 = vunpack.c.0.s8 %v4330
        %v4332 = vlaneseq
        %v4333 = vshrl.u32 %v4332, 7
        %v4334 = vsub.s32 %v4331, %v4333
        %v4335 = vrot.slane %v4325, %v4334
        %v4337 = vunpack.c.l.s4 1966171168
        %v4338 = vunpack.c.0.s8 %v4337
        %v4339 = vlaneseq
        %v4340 = vshrl.u32 %v4339, 7
        %v4341 = vsub.s32 %v4338, %v4340
        %v4342 = vrot.slane %v4326, %v4341
        %v4344 = vunpack.c.l.s4 1966171168
        %v4345 = vunpack.c.0.s8 %v4344
        %v4346 = vlaneseq
        %v4347 = vshrl.u32 %v4346, 7
        %v4348 = vsub.s32 %v4345, %v4347
        %v4349 = vrot.slane %v4327, %v4348
        %v4351 = vunpack.c.l.s4 1966171168
        %v4352 = vunpack.c.0.s8 %v4351
        %v4353 = vlaneseq
        %v4354 = vshrl.u32 %v4353, 7
        %v4355 = vsub.s32 %v4352, %v4354
        %v4356 = vrot.slane %v4328, %v4355
        %v4357 = vcombine.low %v4335, %v4342
        %v4358 = vcombine.low %v4349, %v4356
        %v4360 = vunpack.c.l.s4 1966171168
        %v4361 = vunpack.c.0.s8 %v4360
        %v4362 = vlaneseq
        %v4363 = vshrl.u32 %v4362, 7
        %v4364 = vsub.s32 %v4361, %v4363
        %v4365 = vrot.slane %v4357, %v4364
        %v4367 = vunpack.c.l.s4 1966171168
        %v4368 = vunpack.c.0.s8 %v4367
        %v4369 = vlaneseq
        %v4370 = vshrl.u32 %v4369, 7
        %v4371 = vsub.s32 %v4368, %v4370
        %v4372 = vrot.slane %v4358, %v4371
        %v4373 = vcombine.low %v4365, %v4372
        %v4374 = vcombine.low %v3098, %v3102
        %v4375 = vcombine.low %v3106, %v3110
        %v4376 = vcombine.low %v3114, %v3118
        %v4377 = vcombine.low %v3122, %v3126
        %v4379 = vunpack.c.l.s4 1966171168
        %v4380 = vunpack.c.0.s8 %v4379
        %v4381 = vlaneseq
        %v4382 = vshrl.u32 %v4381, 7
        %v4383 = vsub.s32 %v4380, %v4382
        %v4384 = vrot.slane %v4374, %v4383
        %v4386 = vunpack.c.l.s4 1966171168
        %v4387 = vunpack.c.0.s8 %v4386
        %v4388 = vlaneseq
        %v4389 = vshrl.u32 %v4388, 7
        %v4390 = vsub.s32 %v4387, %v4389
        %v4391 = vrot.slane %v4375, %v4390
        %v4393 = vunpack.c.l.s4 1966171168
        %v4394 = vunpack.c.0.s8 %v4393
        %v4395 = vlaneseq
        %v4396 = vshrl.u32 %v4395, 7
        %v4397 = vsub.s32 %v4394, %v4396
        %v4398 = vrot.slane %v4376, %v4397
        %v4400 = vunpack.c.l.s4 1966171168
        %v4401 = vunpack.c.0.s8 %v4400
        %v4402 = vlaneseq
        %v4403 = vshrl.u32 %v4402, 7
        %v4404 = vsub.s32 %v4401, %v4403
        %v4405 = vrot.slane %v4377, %v4404
        %v4406 = vcombine.low %v4384, %v4391
        %v4407 = vcombine.low %v4398, %v4405
        %v4409 = vunpack.c.l.s4 1966171168
        %v4410 = vunpack.c.0.s8 %v4409
        %v4411 = vlaneseq
        %v4412 = vshrl.u32 %v4411, 7
        %v4413 = vsub.s32 %v4410, %v4412
        %v4414 = vrot.slane %v4406, %v4413
        %v4416 = vunpack.c.l.s4 1966171168
        %v4417 = vunpack.c.0.s8 %v4416
        %v4418 = vlaneseq
        %v4419 = vshrl.u32 %v4418, 7
        %v4420 = vsub.s32 %v4417, %v4419
        %v4421 = vrot.slane %v4407, %v4420
        %v4422 = vcombine.low %v4414, %v4421
        %v4423 = vcombine.low %v3130, %v3134
        %v4424 = vcombine.low %v3138, %v3142
        %v4425 = vcombine.low %v3146, %v3150
        %v4426 = vcombine.low %v3154, %v3158
        %v4428 = vunpack.c.l.s4 1966171168
        %v4429 = vunpack.c.0.s8 %v4428
        %v4430 = vlaneseq
        %v4431 = vshrl.u32 %v4430, 7
        %v4432 = vsub.s32 %v4429, %v4431
        %v4433 = vrot.slane %v4423, %v4432
        %v4435 = vunpack.c.l.s4 1966171168
        %v4436 = vunpack.c.0.s8 %v4435
        %v4437 = vlaneseq
        %v4438 = vshrl.u32 %v4437, 7
        %v4439 = vsub.s32 %v4436, %v4438
        %v4440 = vrot.slane %v4424, %v4439
        %v4442 = vunpack.c.l.s4 1966171168
        %v4443 = vunpack.c.0.s8 %v4442
        %v4444 = vlaneseq
        %v4445 = vshrl.u32 %v4444, 7
        %v4446 = vsub.s32 %v4443, %v4445
        %v4447 = vrot.slane %v4425, %v4446
        %v4449 = vunpack.c.l.s4 1966171168
        %v4450 = vunpack.c.0.s8 %v4449
        %v4451 = vlaneseq
        %v4452 = vshrl.u32 %v4451, 7
        %v4453 = vsub.s32 %v4450, %v4452
        %v4454 = vrot.slane %v4426, %v4453
        %v4455 = vcombine.low %v4433, %v4440
        %v4456 = vcombine.low %v4447, %v4454
        %v4458 = vunpack.c.l.s4 1966171168
        %v4459 = vunpack.c.0.s8 %v4458
        %v4460 = vlaneseq
        %v4461 = vshrl.u32 %v4460, 7
        %v4462 = vsub.s32 %v4459, %v4461
        %v4463 = vrot.slane %v4455, %v4462
        %v4465 = vunpack.c.l.s4 1966171168
        %v4466 = vunpack.c.0.s8 %v4465
        %v4467 = vlaneseq
        %v4468 = vshrl.u32 %v4467, 7
        %v4469 = vsub.s32 %v4466, %v4468
        %v4470 = vrot.slane %v4456, %v4469
        %v4471 = vcombine.low %v4463, %v4470
        %v4472 = vcombine.low %v3162, %v3166
        %v4473 = vcombine.low %v3170, %v3174
        %v4474 = vcombine.low %v3178, %v3182
        %v4475 = vcombine.low %v3186, %v3190
        %v4477 = vunpack.c.l.s4 1966171168
        %v4478 = vunpack.c.0.s8 %v4477
        %v4479 = vlaneseq
        %v4480 = vshrl.u32 %v4479, 7
        %v4481 = vsub.s32 %v4478, %v4480
        %v4482 = vrot.slane %v4472, %v4481
        %v4484 = vunpack.c.l.s4 1966171168
        %v4485 = vunpack.c.0.s8 %v4484
        %v4486 = vlaneseq
        %v4487 = vshrl.u32 %v4486, 7
        %v4488 = vsub.s32 %v4485, %v4487
        %v4489 = vrot.slane %v4473, %v4488
        %v4491 = vunpack.c.l.s4 1966171168
        %v4492 = vunpack.c.0.s8 %v4491
        %v4493 = vlaneseq
        %v4494 = vshrl.u32 %v4493, 7
        %v4495 = vsub.s32 %v4492, %v4494
        %v4496 = vrot.slane %v4474, %v4495
        %v4498 = vunpack.c.l.s4 1966171168
        %v4499 = vunpack.c.0.s8 %v4498
        %v4500 = vlaneseq
        %v4501 = vshrl.u32 %v4500, 7
        %v4502 = vsub.s32 %v4499, %v4501
        %v4503 = vrot.slane %v4475, %v4502
        %v4504 = vcombine.low %v4482, %v4489
        %v4505 = vcombine.low %v4496, %v4503
        %v4507 = vunpack.c.l.s4 1966171168
        %v4508 = vunpack.c.0.s8 %v4507
        %v4509 = vlaneseq
        %v4510 = vshrl.u32 %v4509, 7
        %v4511 = vsub.s32 %v4508, %v4510
        %v4512 = vrot.slane %v4504, %v4511
        %v4514 = vunpack.c.l.s4 1966171168
        %v4515 = vunpack.c.0.s8 %v4514
        %v4516 = vlaneseq
        %v4517 = vshrl.u32 %v4516, 7
        %v4518 = vsub.s32 %v4515, %v4517
        %v4519 = vrot.slane %v4505, %v4518
        %v4520 = vcombine.low %v4512, %v4519
        %v4521 = vcombine.low %v3194, %v3198
        %v4522 = vcombine.low %v3202, %v3206
        %v4523 = vcombine.low %v3210, %v3214
        %v4524 = vcombine.low %v3218, %v3222
        %v4526 = vunpack.c.l.s4 1966171168
        %v4527 = vunpack.c.0.s8 %v4526
        %v4528 = vlaneseq
        %v4529 = vshrl.u32 %v4528, 7
        %v4530 = vsub.s32 %v4527, %v4529
        %v4531 = vrot.slane %v4521, %v4530
        %v4533 = vunpack.c.l.s4 1966171168
        %v4534 = vunpack.c.0.s8 %v4533
        %v4535 = vlaneseq
        %v4536 = vshrl.u32 %v4535, 7
        %v4537 = vsub.s32 %v4534, %v4536
        %v4538 = vrot.slane %v4522, %v4537
        %v4540 = vunpack.c.l.s4 1966171168
        %v4541 = vunpack.c.0.s8 %v4540
        %v4542 = vlaneseq
        %v4543 = vshrl.u32 %v4542, 7
        %v4544 = vsub.s32 %v4541, %v4543
        %v4545 = vrot.slane %v4523, %v4544
        %v4547 = vunpack.c.l.s4 1966171168
        %v4548 = vunpack.c.0.s8 %v4547
        %v4549 = vlaneseq
        %v4550 = vshrl.u32 %v4549, 7
        %v4551 = vsub.s32 %v4548, %v4550
        %v4552 = vrot.slane %v4524, %v4551
        %v4553 = vcombine.low %v4531, %v4538
        %v4554 = vcombine.low %v4545, %v4552
        %v4556 = vunpack.c.l.s4 1966171168
        %v4557 = vunpack.c.0.s8 %v4556
        %v4558 = vlaneseq
        %v4559 = vshrl.u32 %v4558, 7
        %v4560 = vsub.s32 %v4557, %v4559
        %v4561 = vrot.slane %v4553, %v4560
        %v4563 = vunpack.c.l.s4 1966171168
        %v4564 = vunpack.c.0.s8 %v4563
        %v4565 = vlaneseq
        %v4566 = vshrl.u32 %v4565, 7
        %v4567 = vsub.s32 %v4564, %v4566
        %v4568 = vrot.slane %v4554, %v4567
        %v4569 = vcombine.low %v4561, %v4568
        %v4570 = vcombine.low %v3226, %v3230
        %v4571 = vcombine.low %v3234, %v3238
        %v4572 = vcombine.low %v3242, %v3246
        %v4573 = vcombine.low %v3250, %v3254
        %v4575 = vunpack.c.l.s4 1966171168
        %v4576 = vunpack.c.0.s8 %v4575
        %v4577 = vlaneseq
        %v4578 = vshrl.u32 %v4577, 7
        %v4579 = vsub.s32 %v4576, %v4578
        %v4580 = vrot.slane %v4570, %v4579
        %v4582 = vunpack.c.l.s4 1966171168
        %v4583 = vunpack.c.0.s8 %v4582
        %v4584 = vlaneseq
        %v4585 = vshrl.u32 %v4584, 7
        %v4586 = vsub.s32 %v4583, %v4585
        %v4587 = vrot.slane %v4571, %v4586
        %v4589 = vunpack.c.l.s4 1966171168
        %v4590 = vunpack.c.0.s8 %v4589
        %v4591 = vlaneseq
        %v4592 = vshrl.u32 %v4591, 7
        %v4593 = vsub.s32 %v4590, %v4592
        %v4594 = vrot.slane %v4572, %v4593
        %v4596 = vunpack.c.l.s4 1966171168
        %v4597 = vunpack.c.0.s8 %v4596
        %v4598 = vlaneseq
        %v4599 = vshrl.u32 %v4598, 7
        %v4600 = vsub.s32 %v4597, %v4599
        %v4601 = vrot.slane %v4573, %v4600
        %v4602 = vcombine.low %v4580, %v4587
        %v4603 = vcombine.low %v4594, %v4601
        %v4605 = vunpack.c.l.s4 1966171168
        %v4606 = vunpack.c.0.s8 %v4605
        %v4607 = vlaneseq
        %v4608 = vshrl.u32 %v4607, 7
        %v4609 = vsub.s32 %v4606, %v4608
        %v4610 = vrot.slane %v4602, %v4609
        %v4612 = vunpack.c.l.s4 1966171168
        %v4613 = vunpack.c.0.s8 %v4612
        %v4614 = vlaneseq
        %v4615 = vshrl.u32 %v4614, 7
        %v4616 = vsub.s32 %v4613, %v4615
        %v4617 = vrot.slane %v4603, %v4616
        %v4618 = vcombine.low %v4610, %v4617
        %v4619 = vcombine.low %v3258, %v3262
        %v4620 = vcombine.low %v3266, %v3270
        %v4621 = vcombine.low %v3274, %v3278
        %v4622 = vcombine.low %v3282, %v3286
        %v4624 = vunpack.c.l.s4 1966171168
        %v4625 = vunpack.c.0.s8 %v4624
        %v4626 = vlaneseq
        %v4627 = vshrl.u32 %v4626, 7
        %v4628 = vsub.s32 %v4625, %v4627
        %v4629 = vrot.slane %v4619, %v4628
        %v4631 = vunpack.c.l.s4 1966171168
        %v4632 = vunpack.c.0.s8 %v4631
        %v4633 = vlaneseq
        %v4634 = vshrl.u32 %v4633, 7
        %v4635 = vsub.s32 %v4632, %v4634
        %v4636 = vrot.slane %v4620, %v4635
        %v4638 = vunpack.c.l.s4 1966171168
        %v4639 = vunpack.c.0.s8 %v4638
        %v4640 = vlaneseq
        %v4641 = vshrl.u32 %v4640, 7
        %v4642 = vsub.s32 %v4639, %v4641
        %v4643 = vrot.slane %v4621, %v4642
        %v4645 = vunpack.c.l.s4 1966171168
        %v4646 = vunpack.c.0.s8 %v4645
        %v4647 = vlaneseq
        %v4648 = vshrl.u32 %v4647, 7
        %v4649 = vsub.s32 %v4646, %v4648
        %v4650 = vrot.slane %v4622, %v4649
        %v4651 = vcombine.low %v4629, %v4636
        %v4652 = vcombine.low %v4643, %v4650
        %v4654 = vunpack.c.l.s4 1966171168
        %v4655 = vunpack.c.0.s8 %v4654
        %v4656 = vlaneseq
        %v4657 = vshrl.u32 %v4656, 7
        %v4658 = vsub.s32 %v4655, %v4657
        %v4659 = vrot.slane %v4651, %v4658
        %v4661 = vunpack.c.l.s4 1966171168
        %v4662 = vunpack.c.0.s8 %v4661
        %v4663 = vlaneseq
        %v4664 = vshrl.u32 %v4663, 7
        %v4665 = vsub.s32 %v4662, %v4664
        %v4666 = vrot.slane %v4652, %v4665
        %v4667 = vcombine.low %v4659, %v4666
        %v4668 = vcombine.low %v3290, %v3294
        %v4669 = vcombine.low %v3298, %v3302
        %v4670 = vcombine.low %v3306, %v3310
        %v4671 = vcombine.low %v3314, %v3318
        %v4673 = vunpack.c.l.s4 1966171168
        %v4674 = vunpack.c.0.s8 %v4673
        %v4675 = vlaneseq
        %v4676 = vshrl.u32 %v4675, 7
        %v4677 = vsub.s32 %v4674, %v4676
        %v4678 = vrot.slane %v4668, %v4677
        %v4680 = vunpack.c.l.s4 1966171168
        %v4681 = vunpack.c.0.s8 %v4680
        %v4682 = vlaneseq
        %v4683 = vshrl.u32 %v4682, 7
        %v4684 = vsub.s32 %v4681, %v4683
        %v4685 = vrot.slane %v4669, %v4684
        %v4687 = vunpack.c.l.s4 1966171168
        %v4688 = vunpack.c.0.s8 %v4687
        %v4689 = vlaneseq
        %v4690 = vshrl.u32 %v4689, 7
        %v4691 = vsub.s32 %v4688, %v4690
        %v4692 = vrot.slane %v4670, %v4691
        %v4694 = vunpack.c.l.s4 1966171168
        %v4695 = vunpack.c.0.s8 %v4694
        %v4696 = vlaneseq
        %v4697 = vshrl.u32 %v4696, 7
        %v4698 = vsub.s32 %v4695, %v4697
        %v4699 = vrot.slane %v4671, %v4698
        %v4700 = vcombine.low %v4678, %v4685
        %v4701 = vcombine.low %v4692, %v4699
        %v4703 = vunpack.c.l.s4 1966171168
        %v4704 = vunpack.c.0.s8 %v4703
        %v4705 = vlaneseq
        %v4706 = vshrl.u32 %v4705, 7
        %v4707 = vsub.s32 %v4704, %v4706
        %v4708 = vrot.slane %v4700, %v4707
        %v4710 = vunpack.c.l.s4 1966171168
        %v4711 = vunpack.c.0.s8 %v4710
        %v4712 = vlaneseq
        %v4713 = vshrl.u32 %v4712, 7
        %v4714 = vsub.s32 %v4711, %v4713
        %v4715 = vrot.slane %v4701, %v4714
        %v4716 = vcombine.low %v4708, %v4715
        %v4717 = vcombine.low %v3322, %v3326
        %v4718 = vcombine.low %v3330, %v3334
        %v4719 = vcombine.low %v3338, %v3342
        %v4720 = vcombine.low %v3346, %v3350
        %v4722 = vunpack.c.l.s4 1966171168
        %v4723 = vunpack.c.0.s8 %v4722
        %v4724 = vlaneseq
        %v4725 = vshrl.u32 %v4724, 7
        %v4726 = vsub.s32 %v4723, %v4725
        %v4727 = vrot.slane %v4717, %v4726
        %v4729 = vunpack.c.l.s4 1966171168
        %v4730 = vunpack.c.0.s8 %v4729
        %v4731 = vlaneseq
        %v4732 = vshrl.u32 %v4731, 7
        %v4733 = vsub.s32 %v4730, %v4732
        %v4734 = vrot.slane %v4718, %v4733
        %v4736 = vunpack.c.l.s4 1966171168
        %v4737 = vunpack.c.0.s8 %v4736
        %v4738 = vlaneseq
        %v4739 = vshrl.u32 %v4738, 7
        %v4740 = vsub.s32 %v4737, %v4739
        %v4741 = vrot.slane %v4719, %v4740
        %v4743 = vunpack.c.l.s4 1966171168
        %v4744 = vunpack.c.0.s8 %v4743
        %v4745 = vlaneseq
        %v4746 = vshrl.u32 %v4745, 7
        %v4747 = vsub.s32 %v4744, %v4746
        %v4748 = vrot.slane %v4720, %v4747
        %v4749 = vcombine.low %v4727, %v4734
        %v4750 = vcombine.low %v4741, %v4748
        %v4752 = vunpack.c.l.s4 1966171168
        %v4753 = vunpack.c.0.s8 %v4752
        %v4754 = vlaneseq
        %v4755 = vshrl.u32 %v4754, 7
        %v4756 = vsub.s32 %v4753, %v4755
        %v4757 = vrot.slane %v4749, %v4756
        %v4759 = vunpack.c.l.s4 1966171168
        %v4760 = vunpack.c.0.s8 %v4759
        %v4761 = vlaneseq
        %v4762 = vshrl.u32 %v4761, 7
        %v4763 = vsub.s32 %v4760, %v4762
        %v4764 = vrot.slane %v4750, %v4763
        %v4765 = vcombine.low %v4757, %v4764
        %v4766 = vcombine.low %v3354, %v3358
        %v4767 = vcombine.low %v3362, %v3366
        %v4768 = vcombine.low %v3370, %v3374
        %v4769 = vcombine.low %v3378, %v3382
        %v4771 = vunpack.c.l.s4 1966171168
        %v4772 = vunpack.c.0.s8 %v4771
        %v4773 = vlaneseq
        %v4774 = vshrl.u32 %v4773, 7
        %v4775 = vsub.s32 %v4772, %v4774
        %v4776 = vrot.slane %v4766, %v4775
        %v4778 = vunpack.c.l.s4 1966171168
        %v4779 = vunpack.c.0.s8 %v4778
        %v4780 = vlaneseq
        %v4781 = vshrl.u32 %v4780, 7
        %v4782 = vsub.s32 %v4779, %v4781
        %v4783 = vrot.slane %v4767, %v4782
        %v4785 = vunpack.c.l.s4 1966171168
        %v4786 = vunpack.c.0.s8 %v4785
        %v4787 = vlaneseq
        %v4788 = vshrl.u32 %v4787, 7
        %v4789 = vsub.s32 %v4786, %v4788
        %v4790 = vrot.slane %v4768, %v4789
        %v4792 = vunpack.c.l.s4 1966171168
        %v4793 = vunpack.c.0.s8 %v4792
        %v4794 = vlaneseq
        %v4795 = vshrl.u32 %v4794, 7
        %v4796 = vsub.s32 %v4793, %v4795
        %v4797 = vrot.slane %v4769, %v4796
        %v4798 = vcombine.low %v4776, %v4783
        %v4799 = vcombine.low %v4790, %v4797
        %v4801 = vunpack.c.l.s4 1966171168
        %v4802 = vunpack.c.0.s8 %v4801
        %v4803 = vlaneseq
        %v4804 = vshrl.u32 %v4803, 7
        %v4805 = vsub.s32 %v4802, %v4804
        %v4806 = vrot.slane %v4798, %v4805
        %v4808 = vunpack.c.l.s4 1966171168
        %v4809 = vunpack.c.0.s8 %v4808
        %v4810 = vlaneseq
        %v4811 = vshrl.u32 %v4810, 7
        %v4812 = vsub.s32 %v4809, %v4811
        %v4813 = vrot.slane %v4799, %v4812
        %v4814 = vcombine.low %v4806, %v4813
        %v4815 = vcombine.low %v3386, %v3390
        %v4816 = vcombine.low %v3394, %v3398
        %v4817 = vcombine.low %v3402, %v3406
        %v4818 = vcombine.low %v3410, %v3414
        %v4820 = vunpack.c.l.s4 1966171168
        %v4821 = vunpack.c.0.s8 %v4820
        %v4822 = vlaneseq
        %v4823 = vshrl.u32 %v4822, 7
        %v4824 = vsub.s32 %v4821, %v4823
        %v4825 = vrot.slane %v4815, %v4824
        %v4827 = vunpack.c.l.s4 1966171168
        %v4828 = vunpack.c.0.s8 %v4827
        %v4829 = vlaneseq
        %v4830 = vshrl.u32 %v4829, 7
        %v4831 = vsub.s32 %v4828, %v4830
        %v4832 = vrot.slane %v4816, %v4831
        %v4834 = vunpack.c.l.s4 1966171168
        %v4835 = vunpack.c.0.s8 %v4834
        %v4836 = vlaneseq
        %v4837 = vshrl.u32 %v4836, 7
        %v4838 = vsub.s32 %v4835, %v4837
        %v4839 = vrot.slane %v4817, %v4838
        %v4841 = vunpack.c.l.s4 1966171168
        %v4842 = vunpack.c.0.s8 %v4841
        %v4843 = vlaneseq
        %v4844 = vshrl.u32 %v4843, 7
        %v4845 = vsub.s32 %v4842, %v4844
        %v4846 = vrot.slane %v4818, %v4845
        %v4847 = vcombine.low %v4825, %v4832
        %v4848 = vcombine.low %v4839, %v4846
        %v4850 = vunpack.c.l.s4 1966171168
        %v4851 = vunpack.c.0.s8 %v4850
        %v4852 = vlaneseq
        %v4853 = vshrl.u32 %v4852, 7
        %v4854 = vsub.s32 %v4851, %v4853
        %v4855 = vrot.slane %v4847, %v4854
        %v4857 = vunpack.c.l.s4 1966171168
        %v4858 = vunpack.c.0.s8 %v4857
        %v4859 = vlaneseq
        %v4860 = vshrl.u32 %v4859, 7
        %v4861 = vsub.s32 %v4858, %v4860
        %v4862 = vrot.slane %v4848, %v4861
        %v4863 = vcombine.low %v4855, %v4862
        %v4864 = vcombine.low %v3418, %v3422
        %v4865 = vcombine.low %v3426, %v3430
        %v4866 = vcombine.low %v3434, %v3438
        %v4867 = vcombine.low %v3442, %v3446
        %v4869 = vunpack.c.l.s4 1966171168
        %v4870 = vunpack.c.0.s8 %v4869
        %v4871 = vlaneseq
        %v4872 = vshrl.u32 %v4871, 7
        %v4873 = vsub.s32 %v4870, %v4872
        %v4874 = vrot.slane %v4864, %v4873
        %v4876 = vunpack.c.l.s4 1966171168
        %v4877 = vunpack.c.0.s8 %v4876
        %v4878 = vlaneseq
        %v4879 = vshrl.u32 %v4878, 7
        %v4880 = vsub.s32 %v4877, %v4879
        %v4881 = vrot.slane %v4865, %v4880
        %v4883 = vunpack.c.l.s4 1966171168
        %v4884 = vunpack.c.0.s8 %v4883
        %v4885 = vlaneseq
        %v4886 = vshrl.u32 %v4885, 7
        %v4887 = vsub.s32 %v4884, %v4886
        %v4888 = vrot.slane %v4866, %v4887
        %v4890 = vunpack.c.l.s4 1966171168
        %v4891 = vunpack.c.0.s8 %v4890
        %v4892 = vlaneseq
        %v4893 = vshrl.u32 %v4892, 7
        %v4894 = vsub.s32 %v4891, %v4893
        %v4895 = vrot.slane %v4867, %v4894
        %v4896 = vcombine.low %v4874, %v4881
        %v4897 = vcombine.low %v4888, %v4895
        %v4899 = vunpack.c.l.s4 1966171168
        %v4900 = vunpack.c.0.s8 %v4899
        %v4901 = vlaneseq
        %v4902 = vshrl.u32 %v4901, 7
        %v4903 = vsub.s32 %v4900, %v4902
        %v4904 = vrot.slane %v4896, %v4903
        %v4906 = vunpack.c.l.s4 1966171168
        %v4907 = vunpack.c.0.s8 %v4906
        %v4908 = vlaneseq
        %v4909 = vshrl.u32 %v4908, 7
        %v4910 = vsub.s32 %v4907, %v4909
        %v4911 = vrot.slane %v4897, %v4910
        %v4912 = vcombine.low %v4904, %v4911
        %v4913 = vcombine.low %v3450, %v3454
        %v4914 = vcombine.low %v3458, %v3462
        %v4915 = vcombine.low %v3466, %v3470
        %v4916 = vcombine.low %v3474, %v3478
        %v4918 = vunpack.c.l.s4 1966171168
        %v4919 = vunpack.c.0.s8 %v4918
        %v4920 = vlaneseq
        %v4921 = vshrl.u32 %v4920, 7
        %v4922 = vsub.s32 %v4919, %v4921
        %v4923 = vrot.slane %v4913, %v4922
        %v4925 = vunpack.c.l.s4 1966171168
        %v4926 = vunpack.c.0.s8 %v4925
        %v4927 = vlaneseq
        %v4928 = vshrl.u32 %v4927, 7
        %v4929 = vsub.s32 %v4926, %v4928
        %v4930 = vrot.slane %v4914, %v4929
        %v4932 = vunpack.c.l.s4 1966171168
        %v4933 = vunpack.c.0.s8 %v4932
        %v4934 = vlaneseq
        %v4935 = vshrl.u32 %v4934, 7
        %v4936 = vsub.s32 %v4933, %v4935
        %v4937 = vrot.slane %v4915, %v4936
        %v4939 = vunpack.c.l.s4 1966171168
        %v4940 = vunpack.c.0.s8 %v4939
        %v4941 = vlaneseq
        %v4942 = vshrl.u32 %v4941, 7
        %v4943 = vsub.s32 %v4940, %v4942
        %v4944 = vrot.slane %v4916, %v4943
        %v4945 = vcombine.low %v4923, %v4930
        %v4946 = vcombine.low %v4937, %v4944
        %v4948 = vunpack.c.l.s4 1966171168
        %v4949 = vunpack.c.0.s8 %v4948
        %v4950 = vlaneseq
        %v4951 = vshrl.u32 %v4950, 7
        %v4952 = vsub.s32 %v4949, %v4951
        %v4953 = vrot.slane %v4945, %v4952
        %v4955 = vunpack.c.l.s4 1966171168
        %v4956 = vunpack.c.0.s8 %v4955
        %v4957 = vlaneseq
        %v4958 = vshrl.u32 %v4957, 7
        %v4959 = vsub.s32 %v4956, %v4958
        %v4960 = vrot.slane %v4946, %v4959
        %v4961 = vcombine.low %v4953, %v4960
        %v4962 = vcombine.low %v3482, %v3486
        %v4963 = vcombine.low %v3490, %v3494
        %v4964 = vcombine.low %v3498, %v3502
        %v4965 = vcombine.low %v3506, %v3510
        %v4967 = vunpack.c.l.s4 1966171168
        %v4968 = vunpack.c.0.s8 %v4967
        %v4969 = vlaneseq
        %v4970 = vshrl.u32 %v4969, 7
        %v4971 = vsub.s32 %v4968, %v4970
        %v4972 = vrot.slane %v4962, %v4971
        %v4974 = vunpack.c.l.s4 1966171168
        %v4975 = vunpack.c.0.s8 %v4974
        %v4976 = vlaneseq
        %v4977 = vshrl.u32 %v4976, 7
        %v4978 = vsub.s32 %v4975, %v4977
        %v4979 = vrot.slane %v4963, %v4978
        %v4981 = vunpack.c.l.s4 1966171168
        %v4982 = vunpack.c.0.s8 %v4981
        %v4983 = vlaneseq
        %v4984 = vshrl.u32 %v4983, 7
        %v4985 = vsub.s32 %v4982, %v4984
        %v4986 = vrot.slane %v4964, %v4985
        %v4988 = vunpack.c.l.s4 1966171168
        %v4989 = vunpack.c.0.s8 %v4988
        %v4990 = vlaneseq
        %v4991 = vshrl.u32 %v4990, 7
        %v4992 = vsub.s32 %v4989, %v4991
        %v4993 = vrot.slane %v4965, %v4992
        %v4994 = vcombine.low %v4972, %v4979
        %v4995 = vcombine.low %v4986, %v4993
        %v4997 = vunpack.c.l.s4 1966171168
        %v4998 = vunpack.c.0.s8 %v4997
        %v4999 = vlaneseq
        %v5000 = vshrl.u32 %v4999, 7
        %v5001 = vsub.s32 %v4998, %v5000
        %v5002 = vrot.slane %v4994, %v5001
        %v5004 = vunpack.c.l.s4 1966171168
        %v5005 = vunpack.c.0.s8 %v5004
        %v5006 = vlaneseq
        %v5007 = vshrl.u32 %v5006, 7
        %v5008 = vsub.s32 %v5005, %v5007
        %v5009 = vrot.slane %v4995, %v5008
        %v5010 = vcombine.low %v5002, %v5009
        %v5011 = vcombine.low %v3514, %v3518
        %v5012 = vcombine.low %v3522, %v3526
        %v5013 = vcombine.low %v3530, %v3534
        %v5014 = vcombine.low %v3538, %v3542
        %v5016 = vunpack.c.l.s4 1966171168
        %v5017 = vunpack.c.0.s8 %v5016
        %v5018 = vlaneseq
        %v5019 = vshrl.u32 %v5018, 7
        %v5020 = vsub.s32 %v5017, %v5019
        %v5021 = vrot.slane %v5011, %v5020
        %v5023 = vunpack.c.l.s4 1966171168
        %v5024 = vunpack.c.0.s8 %v5023
        %v5025 = vlaneseq
        %v5026 = vshrl.u32 %v5025, 7
        %v5027 = vsub.s32 %v5024, %v5026
        %v5028 = vrot.slane %v5012, %v5027
        %v5030 = vunpack.c.l.s4 1966171168
        %v5031 = vunpack.c.0.s8 %v5030
        %v5032 = vlaneseq
        %v5033 = vshrl.u32 %v5032, 7
        %v5034 = vsub.s32 %v5031, %v5033
        %v5035 = vrot.slane %v5013, %v5034
        %v5037 = vunpack.c.l.s4 1966171168
        %v5038 = vunpack.c.0.s8 %v5037
        %v5039 = vlaneseq
        %v5040 = vshrl.u32 %v5039, 7
        %v5041 = vsub.s32 %v5038, %v5040
        %v5042 = vrot.slane %v5014, %v5041
        %v5043 = vcombine.low %v5021, %v5028
        %v5044 = vcombine.low %v5035, %v5042
        %v5046 = vunpack.c.l.s4 1966171168
        %v5047 = vunpack.c.0.s8 %v5046
        %v5048 = vlaneseq
        %v5049 = vshrl.u32 %v5048, 7
        %v5050 = vsub.s32 %v5047, %v5049
        %v5051 = vrot.slane %v5043, %v5050
        %v5053 = vunpack.c.l.s4 1966171168
        %v5054 = vunpack.c.0.s8 %v5053
        %v5055 = vlaneseq
        %v5056 = vshrl.u32 %v5055, 7
        %v5057 = vsub.s32 %v5054, %v5056
        %v5058 = vrot.slane %v5044, %v5057
        %v5059 = vcombine.low %v5051, %v5058
        %v5060 = vcombine.low %v3546, %v3550
        %v5061 = vcombine.low %v3554, %v3558
        %v5062 = vcombine.low %v3562, %v3566
        %v5063 = vcombine.low %v3570, %v3574
        %v5065 = vunpack.c.l.s4 1966171168
        %v5066 = vunpack.c.0.s8 %v5065
        %v5067 = vlaneseq
        %v5068 = vshrl.u32 %v5067, 7
        %v5069 = vsub.s32 %v5066, %v5068
        %v5070 = vrot.slane %v5060, %v5069
        %v5072 = vunpack.c.l.s4 1966171168
        %v5073 = vunpack.c.0.s8 %v5072
        %v5074 = vlaneseq
        %v5075 = vshrl.u32 %v5074, 7
        %v5076 = vsub.s32 %v5073, %v5075
        %v5077 = vrot.slane %v5061, %v5076
        %v5079 = vunpack.c.l.s4 1966171168
        %v5080 = vunpack.c.0.s8 %v5079
        %v5081 = vlaneseq
        %v5082 = vshrl.u32 %v5081, 7
        %v5083 = vsub.s32 %v5080, %v5082
        %v5084 = vrot.slane %v5062, %v5083
        %v5086 = vunpack.c.l.s4 1966171168
        %v5087 = vunpack.c.0.s8 %v5086
        %v5088 = vlaneseq
        %v5089 = vshrl.u32 %v5088, 7
        %v5090 = vsub.s32 %v5087, %v5089
        %v5091 = vrot.slane %v5063, %v5090
        %v5092 = vcombine.low %v5070, %v5077
        %v5093 = vcombine.low %v5084, %v5091
        %v5095 = vunpack.c.l.s4 1966171168
        %v5096 = vunpack.c.0.s8 %v5095
        %v5097 = vlaneseq
        %v5098 = vshrl.u32 %v5097, 7
        %v5099 = vsub.s32 %v5096, %v5098
        %v5100 = vrot.slane %v5092, %v5099
        %v5102 = vunpack.c.l.s4 1966171168
        %v5103 = vunpack.c.0.s8 %v5102
        %v5104 = vlaneseq
        %v5105 = vshrl.u32 %v5104, 7
        %v5106 = vsub.s32 %v5103, %v5105
        %v5107 = vrot.slane %v5093, %v5106
        %v5108 = vcombine.low %v5100, %v5107
        %v5109 = vcombine.low %v3578, %v3582
        %v5110 = vcombine.low %v3586, %v3590
        %v5111 = vcombine.low %v3594, %v3598
        %v5112 = vcombine.low %v3602, %v3606
        %v5114 = vunpack.c.l.s4 1966171168
        %v5115 = vunpack.c.0.s8 %v5114
        %v5116 = vlaneseq
        %v5117 = vshrl.u32 %v5116, 7
        %v5118 = vsub.s32 %v5115, %v5117
        %v5119 = vrot.slane %v5109, %v5118
        %v5121 = vunpack.c.l.s4 1966171168
        %v5122 = vunpack.c.0.s8 %v5121
        %v5123 = vlaneseq
        %v5124 = vshrl.u32 %v5123, 7
        %v5125 = vsub.s32 %v5122, %v5124
        %v5126 = vrot.slane %v5110, %v5125
        %v5128 = vunpack.c.l.s4 1966171168
        %v5129 = vunpack.c.0.s8 %v5128
        %v5130 = vlaneseq
        %v5131 = vshrl.u32 %v5130, 7
        %v5132 = vsub.s32 %v5129, %v5131
        %v5133 = vrot.slane %v5111, %v5132
        %v5135 = vunpack.c.l.s4 1966171168
        %v5136 = vunpack.c.0.s8 %v5135
        %v5137 = vlaneseq
        %v5138 = vshrl.u32 %v5137, 7
        %v5139 = vsub.s32 %v5136, %v5138
        %v5140 = vrot.slane %v5112, %v5139
        %v5141 = vcombine.low %v5119, %v5126
        %v5142 = vcombine.low %v5133, %v5140
        %v5144 = vunpack.c.l.s4 1966171168
        %v5145 = vunpack.c.0.s8 %v5144
        %v5146 = vlaneseq
        %v5147 = vshrl.u32 %v5146, 7
        %v5148 = vsub.s32 %v5145, %v5147
        %v5149 = vrot.slane %v5141, %v5148
        %v5151 = vunpack.c.l.s4 1966171168
        %v5152 = vunpack.c.0.s8 %v5151
        %v5153 = vlaneseq
        %v5154 = vshrl.u32 %v5153, 7
        %v5155 = vsub.s32 %v5152, %v5154
        %v5156 = vrot.slane %v5142, %v5155
        %v5157 = vcombine.low %v5149, %v5156
        %v5158 = vcombine.low %v3610, %v3614
        %v5159 = vcombine.low %v3618, %v3622
        %v5160 = vcombine.low %v3626, %v3630
        %v5161 = vcombine.low %v3634, %v3638
        %v5163 = vunpack.c.l.s4 1966171168
        %v5164 = vunpack.c.0.s8 %v5163
        %v5165 = vlaneseq
        %v5166 = vshrl.u32 %v5165, 7
        %v5167 = vsub.s32 %v5164, %v5166
        %v5168 = vrot.slane %v5158, %v5167
        %v5170 = vunpack.c.l.s4 1966171168
        %v5171 = vunpack.c.0.s8 %v5170
        %v5172 = vlaneseq
        %v5173 = vshrl.u32 %v5172, 7
        %v5174 = vsub.s32 %v5171, %v5173
        %v5175 = vrot.slane %v5159, %v5174
        %v5177 = vunpack.c.l.s4 1966171168
        %v5178 = vunpack.c.0.s8 %v5177
        %v5179 = vlaneseq
        %v5180 = vshrl.u32 %v5179, 7
        %v5181 = vsub.s32 %v5178, %v5180
        %v5182 = vrot.slane %v5160, %v5181
        %v5184 = vunpack.c.l.s4 1966171168
        %v5185 = vunpack.c.0.s8 %v5184
        %v5186 = vlaneseq
        %v5187 = vshrl.u32 %v5186, 7
        %v5188 = vsub.s32 %v5185, %v5187
        %v5189 = vrot.slane %v5161, %v5188
        %v5190 = vcombine.low %v5168, %v5175
        %v5191 = vcombine.low %v5182, %v5189
        %v5193 = vunpack.c.l.s4 1966171168
        %v5194 = vunpack.c.0.s8 %v5193
        %v5195 = vlaneseq
        %v5196 = vshrl.u32 %v5195, 7
        %v5197 = vsub.s32 %v5194, %v5196
        %v5198 = vrot.slane %v5190, %v5197
        %v5200 = vunpack.c.l.s4 1966171168
        %v5201 = vunpack.c.0.s8 %v5200
        %v5202 = vlaneseq
        %v5203 = vshrl.u32 %v5202, 7
        %v5204 = vsub.s32 %v5201, %v5203
        %v5205 = vrot.slane %v5191, %v5204
        %v5206 = vcombine.low %v5198, %v5205
        %5207 = vset.pattern.permute.xlu0 0
        %5208 = vperm.xlu0 %5207, %v3687
        %v5209 = vpop.permute.xlu0 %5208
        %5210 = vset.pattern.permute.xlu0 0
        %5211 = vperm.xlu0 %5210, %v3736
        %v5212 = vpop.permute.xlu0 %5211
        %5213 = vset.pattern.permute.xlu0 0
        %5214 = vperm.xlu0 %5213, %v3785
        %v5215 = vpop.permute.xlu0 %5214
        %5216 = vset.pattern.permute.xlu0 0
        %5217 = vperm.xlu0 %5216, %v3834
        %v5218 = vpop.permute.xlu0 %5217
        %5219 = vset.pattern.permute.xlu0 0
        %5220 = vperm.xlu0 %5219, %v3883
        %v5221 = vpop.permute.xlu0 %5220
        %5222 = vset.pattern.permute.xlu0 0
        %5223 = vperm.xlu0 %5222, %v3932
        %v5224 = vpop.permute.xlu0 %5223
        %5225 = vset.pattern.permute.xlu0 0
        %5226 = vperm.xlu0 %5225, %v3981
        %v5227 = vpop.permute.xlu0 %5226
        %5228 = vset.pattern.permute.xlu0 0
        %5229 = vperm.xlu0 %5228, %v4030
        %v5230 = vpop.permute.xlu0 %5229
        %5231 = vset.pattern.permute.xlu0 0
        %5232 = vperm.xlu0 %5231, %v4079
        %v5233 = vpop.permute.xlu0 %5232
        %5234 = vset.pattern.permute.xlu0 0
        %5235 = vperm.xlu0 %5234, %v4128
        %v5236 = vpop.permute.xlu0 %5235
        %5237 = vset.pattern.permute.xlu0 0
        %5238 = vperm.xlu0 %5237, %v4177
        %v5239 = vpop.permute.xlu0 %5238
        %5240 = vset.pattern.permute.xlu0 0
        %5241 = vperm.xlu0 %5240, %v4226
        %v5242 = vpop.permute.xlu0 %5241
        %5243 = vset.pattern.permute.xlu0 0
        %5244 = vperm.xlu0 %5243, %v4275
        %v5245 = vpop.permute.xlu0 %5244
        %5246 = vset.pattern.permute.xlu0 0
        %5247 = vperm.xlu0 %5246, %v4324
        %v5248 = vpop.permute.xlu0 %5247
        %5249 = vset.pattern.permute.xlu0 0
        %5250 = vperm.xlu0 %5249, %v4373
        %v5251 = vpop.permute.xlu0 %5250
        %5252 = vset.pattern.permute.xlu0 0
        %5253 = vperm.xlu0 %5252, %v4422
        %v5254 = vpop.permute.xlu0 %5253
        %5255 = vset.pattern.permute.xlu0 0
        %5256 = vperm.xlu0 %5255, %v4471
        %v5257 = vpop.permute.xlu0 %5256
        %5258 = vset.pattern.permute.xlu0 0
        %5259 = vperm.xlu0 %5258, %v4520
        %v5260 = vpop.permute.xlu0 %5259
        %5261 = vset.pattern.permute.xlu0 0
        %5262 = vperm.xlu0 %5261, %v4569
        %v5263 = vpop.permute.xlu0 %5262
        %5264 = vset.pattern.permute.xlu0 0
        %5265 = vperm.xlu0 %5264, %v4618
        %v5266 = vpop.permute.xlu0 %5265
        %5267 = vset.pattern.permute.xlu0 0
        %5268 = vperm.xlu0 %5267, %v4667
        %v5269 = vpop.permute.xlu0 %5268
        %5270 = vset.pattern.permute.xlu0 0
        %5271 = vperm.xlu0 %5270, %v4716
        %v5272 = vpop.permute.xlu0 %5271
        %5273 = vset.pattern.permute.xlu0 0
        %5274 = vperm.xlu0 %5273, %v4765
        %v5275 = vpop.permute.xlu0 %5274
        %5276 = vset.pattern.permute.xlu0 0
        %5277 = vperm.xlu0 %5276, %v4814
        %v5278 = vpop.permute.xlu0 %5277
        %5279 = vset.pattern.permute.xlu0 0
        %5280 = vperm.xlu0 %5279, %v4863
        %v5281 = vpop.permute.xlu0 %5280
        %5282 = vset.pattern.permute.xlu0 0
        %5283 = vperm.xlu0 %5282, %v4912
        %v5284 = vpop.permute.xlu0 %5283
        %5285 = vset.pattern.permute.xlu0 0
        %5286 = vperm.xlu0 %5285, %v4961
        %v5287 = vpop.permute.xlu0 %5286
        %5288 = vset.pattern.permute.xlu0 0
        %5289 = vperm.xlu0 %5288, %v5010
        %v5290 = vpop.permute.xlu0 %5289
        %5291 = vset.pattern.permute.xlu0 0
        %5292 = vperm.xlu0 %5291, %v5059
        %v5293 = vpop.permute.xlu0 %5292
        %5294 = vset.pattern.permute.xlu0 0
        %5295 = vperm.xlu0 %5294, %v5108
        %v5296 = vpop.permute.xlu0 %5295
        %5297 = vset.pattern.permute.xlu0 0
        %5298 = vperm.xlu0 %5297, %v5157
        %v5299 = vpop.permute.xlu0 %5298
        %5300 = vset.pattern.permute.xlu0 0
        %5301 = vperm.xlu0 %5300, %v5206
        %v5302 = vpop.permute.xlu0 %5301
        %v5303 = vlaneseq
        %v5304 = vshrl.u32 %v5303, 7
        %v5305 = vsub.s32 %v1297, %v5304
        %v5306 = vrot.slane %v5209, %v5305
        %v5307 = vadd.s32 %v1297, 4294967288
        %v5308 = vlaneseq
        %v5309 = vshrl.u32 %v5308, 7
        %v5310 = vsub.s32 %v5307, %v5309
        %v5311 = vrot.slane %v5212, %v5310
        %vm5312 = vcmask 130112
        %v5313 = vsel %vm5312, %v5311, %v5306
        %v5314 = vadd.s32 %v1297, 4294967280
        %v5315 = vlaneseq
        %v5316 = vshrl.u32 %v5315, 7
        %v5317 = vsub.s32 %v5314, %v5316
        %v5318 = vrot.slane %v5215, %v5317
        %vm5319 = vcmask 195712
        %v5320 = vsel %vm5319, %v5318, %v5313
        %v5321 = vadd.s32 %v1297, 4294967272
        %v5322 = vlaneseq
        %v5323 = vshrl.u32 %v5322, 7
        %v5324 = vsub.s32 %v5321, %v5323
        %v5325 = vrot.slane %v5218, %v5324
        %vm5326 = vcmask 261312
        %v5327 = vsel %vm5326, %v5325, %v5320
        %v5328 = vadd.s32 %v1297, 4294967264
        %v5329 = vlaneseq
        %v5330 = vshrl.u32 %v5329, 7
        %v5331 = vsub.s32 %v5328, %v5330
        %v5332 = vrot.slane %v5221, %v5331
        %vm5333 = vcmask 326912
        %v5334 = vsel %vm5333, %v5332, %v5327
        %v5335 = vadd.s32 %v1297, 4294967256
        %v5336 = vlaneseq
        %v5337 = vshrl.u32 %v5336, 7
        %v5338 = vsub.s32 %v5335, %v5337
        %v5339 = vrot.slane %v5224, %v5338
        %vm5340 = vcmask 392512
        %v5341 = vsel %vm5340, %v5339, %v5334
        %v5342 = vadd.s32 %v1297, 4294967248
        %v5343 = vlaneseq
        %v5344 = vshrl.u32 %v5343, 7
        %v5345 = vsub.s32 %v5342, %v5344
        %v5346 = vrot.slane %v5227, %v5345
        %vm5347 = vcmask 458112
        %v5348 = vsel %vm5347, %v5346, %v5341
        %v5349 = vadd.s32 %v1297, 4294967240
        %v5350 = vlaneseq
        %v5351 = vshrl.u32 %v5350, 7
        %v5352 = vsub.s32 %v5349, %v5351
        %v5353 = vrot.slane %v5230, %v5352
        %vm5354 = vcmask 523712
        %v5355 = vsel %vm5354, %v5353, %v5348
        %v5356 = vadd.s32 %v1297, 4294967232
        %v5357 = vlaneseq
        %v5358 = vshrl.u32 %v5357, 7
        %v5359 = vsub.s32 %v5356, %v5358
        %v5360 = vrot.slane %v5233, %v5359
        %vm5361 = vcmask 589312
        %v5362 = vsel %vm5361, %v5360, %v5355
        %v5363 = vadd.s32 %v1297, 4294967224
        %v5364 = vlaneseq
        %v5365 = vshrl.u32 %v5364, 7
        %v5366 = vsub.s32 %v5363, %v5365
        %v5367 = vrot.slane %v5236, %v5366
        %vm5368 = vcmask 654912
        %v5369 = vsel %vm5368, %v5367, %v5362
        %v5370 = vadd.s32 %v1297, 4294967216
        %v5371 = vlaneseq
        %v5372 = vshrl.u32 %v5371, 7
        %v5373 = vsub.s32 %v5370, %v5372
        %v5374 = vrot.slane %v5239, %v5373
        %vm5375 = vcmask 720512
        %v5376 = vsel %vm5375, %v5374, %v5369
        %v5377 = vadd.s32 %v1297, 4294967208
        %v5378 = vlaneseq
        %v5379 = vshrl.u32 %v5378, 7
        %v5380 = vsub.s32 %v5377, %v5379
        %v5381 = vrot.slane %v5242, %v5380
        %vm5382 = vcmask 786112
        %v5383 = vsel %vm5382, %v5381, %v5376
        %v5384 = vadd.s32 %v1297, 4294967200
        %v5385 = vlaneseq
        %v5386 = vshrl.u32 %v5385, 7
        %v5387 = vsub.s32 %v5384, %v5386
        %v5388 = vrot.slane %v5245, %v5387
        %vm5389 = vcmask 851712
        %v5390 = vsel %vm5389, %v5388, %v5383
        %v5391 = vadd.s32 %v1297, 4294967192
        %v5392 = vlaneseq
        %v5393 = vshrl.u32 %v5392, 7
        %v5394 = vsub.s32 %v5391, %v5393
        %v5395 = vrot.slane %v5248, %v5394
        %vm5396 = vcmask 917312
        %v5397 = vsel %vm5396, %v5395, %v5390
        %v5398 = vadd.s32 %v1297, 4294967184
        %v5399 = vlaneseq
        %v5400 = vshrl.u32 %v5399, 7
        %v5401 = vsub.s32 %v5398, %v5400
        %v5402 = vrot.slane %v5251, %v5401
        %vm5403 = vcmask 982912
        %v5404 = vsel %vm5403, %v5402, %v5397
        %v5405 = vadd.s32 %v1297, 4294967176
        %v5406 = vlaneseq
        %v5407 = vshrl.u32 %v5406, 7
        %v5408 = vsub.s32 %v5405, %v5407
        %v5409 = vrot.slane %v5254, %v5408
        %vm5410 = vcmask 1048512
        %v5411 = vsel %vm5410, %v5409, %v5404
        %v5412 = vlaneseq
        %v5413 = vshrl.u32 %v5412, 7
        %v5414 = vsub.s32 %v1297, %v5413
        %v5415 = vrot.slane %v5257, %v5414
        %v5416 = vlaneseq
        %v5417 = vshrl.u32 %v5416, 7
        %v5418 = vsub.s32 %v5307, %v5417
        %v5419 = vrot.slane %v5260, %v5418
        %v5420 = vsel %vm5312, %v5419, %v5415
        %v5421 = vlaneseq
        %v5422 = vshrl.u32 %v5421, 7
        %v5423 = vsub.s32 %v5314, %v5422
        %v5424 = vrot.slane %v5263, %v5423
        %v5425 = vsel %vm5319, %v5424, %v5420
        %v5426 = vlaneseq
        %v5427 = vshrl.u32 %v5426, 7
        %v5428 = vsub.s32 %v5321, %v5427
        %v5429 = vrot.slane %v5266, %v5428
        %v5430 = vsel %vm5326, %v5429, %v5425
        %v5431 = vlaneseq
        %v5432 = vshrl.u32 %v5431, 7
        %v5433 = vsub.s32 %v5328, %v5432
        %v5434 = vrot.slane %v5269, %v5433
        %v5435 = vsel %vm5333, %v5434, %v5430
        %v5436 = vlaneseq
        %v5437 = vshrl.u32 %v5436, 7
        %v5438 = vsub.s32 %v5335, %v5437
        %v5439 = vrot.slane %v5272, %v5438
        %v5440 = vsel %vm5340, %v5439, %v5435
        %v5441 = vlaneseq
        %v5442 = vshrl.u32 %v5441, 7
        %v5443 = vsub.s32 %v5342, %v5442
        %v5444 = vrot.slane %v5275, %v5443
        %v5445 = vsel %vm5347, %v5444, %v5440
        %v5446 = vlaneseq
        %v5447 = vshrl.u32 %v5446, 7
        %v5448 = vsub.s32 %v5349, %v5447
        %v5449 = vrot.slane %v5278, %v5448
        %v5450 = vsel %vm5354, %v5449, %v5445
        %v5451 = vlaneseq
        %v5452 = vshrl.u32 %v5451, 7
        %v5453 = vsub.s32 %v5356, %v5452
        %v5454 = vrot.slane %v5281, %v5453
        %v5455 = vsel %vm5361, %v5454, %v5450
        %v5456 = vlaneseq
        %v5457 = vshrl.u32 %v5456, 7
        %v5458 = vsub.s32 %v5363, %v5457
        %v5459 = vrot.slane %v5284, %v5458
        %v5460 = vsel %vm5368, %v5459, %v5455
        %v5461 = vlaneseq
        %v5462 = vshrl.u32 %v5461, 7
        %v5463 = vsub.s32 %v5370, %v5462
        %v5464 = vrot.slane %v5287, %v5463
        %v5465 = vsel %vm5375, %v5464, %v5460
        %v5466 = vlaneseq
        %v5467 = vshrl.u32 %v5466, 7
        %v5468 = vsub.s32 %v5377, %v5467
        %v5469 = vrot.slane %v5290, %v5468
        %v5470 = vsel %vm5382, %v5469, %v5465
        %v5471 = vlaneseq
        %v5472 = vshrl.u32 %v5471, 7
        %v5473 = vsub.s32 %v5384, %v5472
        %v5474 = vrot.slane %v5293, %v5473
        %v5475 = vsel %vm5389, %v5474, %v5470
        %v5476 = vlaneseq
        %v5477 = vshrl.u32 %v5476, 7
        %v5478 = vsub.s32 %v5391, %v5477
        %v5479 = vrot.slane %v5296, %v5478
        %v5480 = vsel %vm5396, %v5479, %v5475
        %v5481 = vlaneseq
        %v5482 = vshrl.u32 %v5481, 7
        %v5483 = vsub.s32 %v5398, %v5482
        %v5484 = vrot.slane %v5299, %v5483
        %v5485 = vsel %vm5403, %v5484, %v5480
        %v5486 = vlaneseq
        %v5487 = vshrl.u32 %v5486, 7
        %v5488 = vsub.s32 %v5405, %v5487
        %v5489 = vrot.slane %v5302, %v5488
        %v5490 = vsel %vm5410, %v5489, %v5485
        %v5491 = vcombine.low %v5411, %v5490
        %v5493 = vunpack.c.l.s4 1966171168
        %v5494 = vunpack.c.0.s8 %v5493
        %v5495 = vlaneseq
        %v5496 = vshrl.u32 %v5495, 7
        %v5497 = vsub.s32 %v5494, %v5496
        %v5498 = vrot.slane %v5491, %v5497
        %v5500 = vunpack.c.l.s4 1966171168
        %v5501 = vunpack.c.0.s8 %v5500
        %v5502 = vlaneseq
        %v5503 = vshrl.u32 %v5502, 7
        %v5504 = vsub.s32 %v5501, %v5503
        %v5505 = vrot.slane %v5498, %v5504
        %v5506 = vlaneseq
        %vm5507 = vcmp.ge.s32.totalorder %v5506, 0
        %vm5508 = vcmp.lt.s32.totalorder %v5506, 256
        %vm5509 = vmand %vm5507, %vm5508
        %5510 = vst.msk [vmem:[%s258] sm:$0x3] %vm5509, %v5505
        %s5511 = smul.u32 %s25, 256
        %v5512 = vlaneseq
        %v5513 = vshrl.u32 %v5512, 7
        %v5514 = vadd.s32 %v5513, 8
        %v5515 = vadd.s32 %v5513, 16
        %v5516 = vadd.s32 %v5513, 24
        %v5517 = vadd.s32 %v5513, 32
        %v5518 = vadd.s32 %v5513, 40
        %v5519 = vadd.s32 %v5513, 48
        %v5520 = vadd.s32 %v5513, 56
        %v5521 = vadd.s32 %v5513, 64
        %v5522 = vadd.s32 %v5513, 72
        %v5523 = vadd.s32 %v5513, 80
        %v5524 = vadd.s32 %v5513, 88
        %v5525 = vadd.s32 %v5513, 96
        %v5526 = vadd.s32 %v5513, 104
        %v5527 = vadd.s32 %v5513, 112
        %v5528 = vadd.s32 %v5513, 120
        %v5529 = vadd.s32 %v5513, 128
        %v5530 = vadd.s32 %v5513, 136
        %v5531 = vadd.s32 %v5513, 144
        %v5532 = vadd.s32 %v5513, 152
        %v5533 = vadd.s32 %v5513, 160
        %v5534 = vadd.s32 %v5513, 168
        %v5535 = vadd.s32 %v5513, 176
        %v5536 = vadd.s32 %v5513, 184
        %v5537 = vadd.s32 %v5513, 192
        %v5538 = vadd.s32 %v5513, 200
        %v5539 = vadd.s32 %v5513, 208
        %v5540 = vadd.s32 %v5513, 216
        %v5541 = vadd.s32 %v5513, 224
        %v5542 = vadd.s32 %v5513, 232
        %v5543 = vadd.s32 %v5513, 240
        %v5544 = vadd.s32 %v5513, 248
        %v5545 = vstv %s5511
        %v5546 = vadd.s32 %v5545, %v5513
        %v5547 = vadd.s32 %v5545, %v5514
        %v5548 = vadd.s32 %v5545, %v5515
        %v5549 = vadd.s32 %v5545, %v5516
        %v5550 = vadd.s32 %v5545, %v5517
        %v5551 = vadd.s32 %v5545, %v5518
        %v5552 = vadd.s32 %v5545, %v5519
        %v5553 = vadd.s32 %v5545, %v5520
        %v5554 = vadd.s32 %v5545, %v5521
        %v5555 = vadd.s32 %v5545, %v5522
        %v5556 = vadd.s32 %v5545, %v5523
        %v5557 = vadd.s32 %v5545, %v5524
        %v5558 = vadd.s32 %v5545, %v5525
        %v5559 = vadd.s32 %v5545, %v5526
        %v5560 = vadd.s32 %v5545, %v5527
        %v5561 = vadd.s32 %v5545, %v5528
        %v5562 = vadd.s32 %v5545, %v5529
        %v5563 = vadd.s32 %v5545, %v5530
        %v5564 = vadd.s32 %v5545, %v5531
        %v5565 = vadd.s32 %v5545, %v5532
        %v5566 = vadd.s32 %v5545, %v5533
        %v5567 = vadd.s32 %v5545, %v5534
        %v5568 = vadd.s32 %v5545, %v5535
        %v5569 = vadd.s32 %v5545, %v5536
        %v5570 = vadd.s32 %v5545, %v5537
        %v5571 = vadd.s32 %v5545, %v5538
        %v5572 = vadd.s32 %v5545, %v5539
        %v5573 = vadd.s32 %v5545, %v5540
        %v5574 = vadd.s32 %v5545, %v5541
        %v5575 = vadd.s32 %v5545, %v5542
        %v5576 = vadd.s32 %v5545, %v5543
        %v5577 = vadd.s32 %v5545, %v5544
        %v5578 = vsub.f32 %v2425, %v391
        %v5579 = vsub.f32 %v2430, %v392
        %v5580 = vsub.f32 %v2435, %v393
        %v5581 = vsub.f32 %v2440, %v394
        %v5582 = vsub.f32 %v2445, %v395
        %v5583 = vsub.f32 %v2450, %v396
        %v5584 = vsub.f32 %v2455, %v397
        %v5585 = vsub.f32 %v2460, %v398
        %v5586 = vsub.f32 %v2465, %v399
        %v5587 = vsub.f32 %v2470, %v400
        %v5588 = vsub.f32 %v2475, %v401
        %v5589 = vsub.f32 %v2480, %v402
        %v5590 = vsub.f32 %v2485, %v403
        %v5591 = vsub.f32 %v2490, %v404
        %v5592 = vsub.f32 %v2495, %v405
        %v5593 = vsub.f32 %v2500, %v406
        %v5594 = vsub.f32 %v2505, %v423
        %v5595 = vsub.f32 %v2510, %v424
        %v5596 = vsub.f32 %v2515, %v425
        %v5597 = vsub.f32 %v2520, %v426
        %v5598 = vsub.f32 %v2525, %v427
        %v5599 = vsub.f32 %v2530, %v428
        %v5600 = vsub.f32 %v2535, %v429
        %v5601 = vsub.f32 %v2540, %v430
        %v5602 = vsub.f32 %v2545, %v431
        %v5603 = vsub.f32 %v2550, %v432
        %v5604 = vsub.f32 %v2555, %v433
        %v5605 = vsub.f32 %v2560, %v434
        %v5606 = vsub.f32 %v2565, %v435
        %v5607 = vsub.f32 %v2570, %v436
        %v5608 = vsub.f32 %v2575, %v437
        %v5609 = vsub.f32 %v2580, %v438
        %vm5610 = vcmp.lt.s32.totalorder %v5546, 256
        %vm5611 = vcmp.lt.s32.totalorder %v5547, 256
        %vm5612 = vcmp.lt.s32.totalorder %v5548, 256
        %vm5613 = vcmp.lt.s32.totalorder %v5549, 256
        %vm5614 = vcmp.lt.s32.totalorder %v5550, 256
        %vm5615 = vcmp.lt.s32.totalorder %v5551, 256
        %vm5616 = vcmp.lt.s32.totalorder %v5552, 256
        %vm5617 = vcmp.lt.s32.totalorder %v5553, 256
        %vm5618 = vcmp.lt.s32.totalorder %v5554, 256
        %vm5619 = vcmp.lt.s32.totalorder %v5555, 256
        %vm5620 = vcmp.lt.s32.totalorder %v5556, 256
        %vm5621 = vcmp.lt.s32.totalorder %v5557, 256
        %vm5622 = vcmp.lt.s32.totalorder %v5558, 256
        %vm5623 = vcmp.lt.s32.totalorder %v5559, 256
        %vm5624 = vcmp.lt.s32.totalorder %v5560, 256
        %vm5625 = vcmp.lt.s32.totalorder %v5561, 256
        %vm5626 = vcmp.lt.s32.totalorder %v5562, 256
        %vm5627 = vcmp.lt.s32.totalorder %v5563, 256
        %vm5628 = vcmp.lt.s32.totalorder %v5564, 256
        %vm5629 = vcmp.lt.s32.totalorder %v5565, 256
        %vm5630 = vcmp.lt.s32.totalorder %v5566, 256
        %vm5631 = vcmp.lt.s32.totalorder %v5567, 256
        %vm5632 = vcmp.lt.s32.totalorder %v5568, 256
        %vm5633 = vcmp.lt.s32.totalorder %v5569, 256
        %vm5634 = vcmp.lt.s32.totalorder %v5570, 256
        %vm5635 = vcmp.lt.s32.totalorder %v5571, 256
        %vm5636 = vcmp.lt.s32.totalorder %v5572, 256
        %vm5637 = vcmp.lt.s32.totalorder %v5573, 256
        %vm5638 = vcmp.lt.s32.totalorder %v5574, 256
        %vm5639 = vcmp.lt.s32.totalorder %v5575, 256
        %vm5640 = vcmp.lt.s32.totalorder %v5576, 256
        %vm5641 = vcmp.lt.s32.totalorder %v5577, 256
        %v5642 = vmul.f32 %v5578, %v5578
        %v5643 = vmul.f32 %v5579, %v5579
        %v5644 = vmul.f32 %v5580, %v5580
        %v5645 = vmul.f32 %v5581, %v5581
        %v5646 = vmul.f32 %v5582, %v5582
        %v5647 = vmul.f32 %v5583, %v5583
        %v5648 = vmul.f32 %v5584, %v5584
        %v5649 = vmul.f32 %v5585, %v5585
        %v5650 = vmul.f32 %v5586, %v5586
        %v5651 = vmul.f32 %v5587, %v5587
        %v5652 = vmul.f32 %v5588, %v5588
        %v5653 = vmul.f32 %v5589, %v5589
        %v5654 = vmul.f32 %v5590, %v5590
        %v5655 = vmul.f32 %v5591, %v5591
        %v5656 = vmul.f32 %v5592, %v5592
        %v5657 = vmul.f32 %v5593, %v5593
        %v5658 = vmul.f32 %v5594, %v5594
        %v5659 = vmul.f32 %v5595, %v5595
        %v5660 = vmul.f32 %v5596, %v5596
        %v5661 = vmul.f32 %v5597, %v5597
        %v5662 = vmul.f32 %v5598, %v5598
        %v5663 = vmul.f32 %v5599, %v5599
        %v5664 = vmul.f32 %v5600, %v5600
        %v5665 = vmul.f32 %v5601, %v5601
        %v5666 = vmul.f32 %v5602, %v5602
        %v5667 = vmul.f32 %v5603, %v5603
        %v5668 = vmul.f32 %v5604, %v5604
        %v5669 = vmul.f32 %v5605, %v5605
        %v5670 = vmul.f32 %v5606, %v5606
        %v5671 = vmul.f32 %v5607, %v5607
        %v5672 = vmul.f32 %v5608, %v5608
        %v5673 = vmul.f32 %v5609, %v5609
        %v5674 = vsel %vm5610, 1, 0
        %v5675 = vsel %vm5611, 1, 0
        %v5676 = vsel %vm5612, 1, 0
        %v5677 = vsel %vm5613, 1, 0
        %v5678 = vsel %vm5614, 1, 0
        %v5679 = vsel %vm5615, 1, 0
        %v5680 = vsel %vm5616, 1, 0
        %v5681 = vsel %vm5617, 1, 0
        %v5682 = vsel %vm5618, 1, 0
        %v5683 = vsel %vm5619, 1, 0
        %v5684 = vsel %vm5620, 1, 0
        %v5685 = vsel %vm5621, 1, 0
        %v5686 = vsel %vm5622, 1, 0
        %v5687 = vsel %vm5623, 1, 0
        %v5688 = vsel %vm5624, 1, 0
        %v5689 = vsel %vm5625, 1, 0
        %v5690 = vsel %vm5626, 1, 0
        %v5691 = vsel %vm5627, 1, 0
        %v5692 = vsel %vm5628, 1, 0
        %v5693 = vsel %vm5629, 1, 0
        %v5694 = vsel %vm5630, 1, 0
        %v5695 = vsel %vm5631, 1, 0
        %v5696 = vsel %vm5632, 1, 0
        %v5697 = vsel %vm5633, 1, 0
        %v5698 = vsel %vm5634, 1, 0
        %v5699 = vsel %vm5635, 1, 0
        %v5700 = vsel %vm5636, 1, 0
        %v5701 = vsel %vm5637, 1, 0
        %v5702 = vsel %vm5638, 1, 0
        %v5703 = vsel %vm5639, 1, 0
        %v5704 = vsel %vm5640, 1, 0
        %v5705 = vsel %vm5641, 1, 0
        %vm5706 = vcmp.eq.s32.totalorder %v5674, 1
        %vm5707 = vcmp.eq.s32.totalorder %v5675, 1
        %vm5708 = vcmp.eq.s32.totalorder %v5676, 1
        %vm5709 = vcmp.eq.s32.totalorder %v5677, 1
        %vm5710 = vcmp.eq.s32.totalorder %v5678, 1
        %vm5711 = vcmp.eq.s32.totalorder %v5679, 1
        %vm5712 = vcmp.eq.s32.totalorder %v5680, 1
        %vm5713 = vcmp.eq.s32.totalorder %v5681, 1
        %vm5714 = vcmp.eq.s32.totalorder %v5682, 1
        %vm5715 = vcmp.eq.s32.totalorder %v5683, 1
        %vm5716 = vcmp.eq.s32.totalorder %v5684, 1
        %vm5717 = vcmp.eq.s32.totalorder %v5685, 1
        %vm5718 = vcmp.eq.s32.totalorder %v5686, 1
        %vm5719 = vcmp.eq.s32.totalorder %v5687, 1
        %vm5720 = vcmp.eq.s32.totalorder %v5688, 1
        %vm5721 = vcmp.eq.s32.totalorder %v5689, 1
        %vm5722 = vcmp.eq.s32.totalorder %v5690, 1
        %vm5723 = vcmp.eq.s32.totalorder %v5691, 1
        %vm5724 = vcmp.eq.s32.totalorder %v5692, 1
        %vm5725 = vcmp.eq.s32.totalorder %v5693, 1
        %vm5726 = vcmp.eq.s32.totalorder %v5694, 1
        %vm5727 = vcmp.eq.s32.totalorder %v5695, 1
        %vm5728 = vcmp.eq.s32.totalorder %v5696, 1
        %vm5729 = vcmp.eq.s32.totalorder %v5697, 1
        %vm5730 = vcmp.eq.s32.totalorder %v5698, 1
        %vm5731 = vcmp.eq.s32.totalorder %v5699, 1
        %vm5732 = vcmp.eq.s32.totalorder %v5700, 1
        %vm5733 = vcmp.eq.s32.totalorder %v5701, 1
        %vm5734 = vcmp.eq.s32.totalorder %v5702, 1
        %vm5735 = vcmp.eq.s32.totalorder %v5703, 1
        %vm5736 = vcmp.eq.s32.totalorder %v5704, 1
        %vm5737 = vcmp.eq.s32.totalorder %v5705, 1
        %v5738 = vsel %vm5706, %v5642, 0.0
        %v5739 = vsel %vm5707, %v5643, 0.0
        %v5740 = vsel %vm5708, %v5644, 0.0
        %v5741 = vsel %vm5709, %v5645, 0.0
        %v5742 = vsel %vm5710, %v5646, 0.0
        %v5743 = vsel %vm5711, %v5647, 0.0
        %v5744 = vsel %vm5712, %v5648, 0.0
        %v5745 = vsel %vm5713, %v5649, 0.0
        %v5746 = vsel %vm5714, %v5650, 0.0
        %v5747 = vsel %vm5715, %v5651, 0.0
        %v5748 = vsel %vm5716, %v5652, 0.0
        %v5749 = vsel %vm5717, %v5653, 0.0
        %v5750 = vsel %vm5718, %v5654, 0.0
        %v5751 = vsel %vm5719, %v5655, 0.0
        %v5752 = vsel %vm5720, %v5656, 0.0
        %v5753 = vsel %vm5721, %v5657, 0.0
        %v5754 = vsel %vm5722, %v5658, 0.0
        %v5755 = vsel %vm5723, %v5659, 0.0
        %v5756 = vsel %vm5724, %v5660, 0.0
        %v5757 = vsel %vm5725, %v5661, 0.0
        %v5758 = vsel %vm5726, %v5662, 0.0
        %v5759 = vsel %vm5727, %v5663, 0.0
        %v5760 = vsel %vm5728, %v5664, 0.0
        %v5761 = vsel %vm5729, %v5665, 0.0
        %v5762 = vsel %vm5730, %v5666, 0.0
        %v5763 = vsel %vm5731, %v5667, 0.0
        %v5764 = vsel %vm5732, %v5668, 0.0
        %v5765 = vsel %vm5733, %v5669, 0.0
        %v5766 = vsel %vm5734, %v5670, 0.0
        %v5767 = vsel %vm5735, %v5671, 0.0
        %v5768 = vsel %vm5736, %v5672, 0.0
        %v5769 = vsel %vm5737, %v5673, 0.0
        %v5770 = vsel %vm487, %v5738, 0.0
        %v5771 = vsel %vm487, %v5739, 0.0
        %v5772 = vadd.f32 %v5770, %v5771
        %v5773 = vsel %vm487, %v5740, 0.0
        %v5774 = vadd.f32 %v5772, %v5773
        %v5775 = vsel %vm487, %v5741, 0.0
        %v5776 = vadd.f32 %v5774, %v5775
        %v5777 = vsel %vm487, %v5742, 0.0
        %v5778 = vadd.f32 %v5776, %v5777
        %v5779 = vsel %vm487, %v5743, 0.0
        %v5780 = vadd.f32 %v5778, %v5779
        %v5781 = vsel %vm487, %v5744, 0.0
        %v5782 = vadd.f32 %v5780, %v5781
        %v5783 = vsel %vm487, %v5745, 0.0
        %v5784 = vadd.f32 %v5782, %v5783
        %v5785 = vsel %vm487, %v5746, 0.0
        %v5786 = vadd.f32 %v5784, %v5785
        %v5787 = vsel %vm487, %v5747, 0.0
        %v5788 = vadd.f32 %v5786, %v5787
        %v5789 = vsel %vm487, %v5748, 0.0
        %v5790 = vadd.f32 %v5788, %v5789
        %v5791 = vsel %vm487, %v5749, 0.0
        %v5792 = vadd.f32 %v5790, %v5791
        %v5793 = vsel %vm487, %v5750, 0.0
        %v5794 = vadd.f32 %v5792, %v5793
        %v5795 = vsel %vm487, %v5751, 0.0
        %v5796 = vadd.f32 %v5794, %v5795
        %v5797 = vsel %vm487, %v5752, 0.0
        %v5798 = vadd.f32 %v5796, %v5797
        %v5799 = vsel %vm487, %v5753, 0.0
        %v5800 = vadd.f32 %v5798, %v5799
        %v5801 = vsel %vm487, %v5754, 0.0
        %v5802 = vadd.f32 %v5800, %v5801
        %v5803 = vsel %vm487, %v5755, 0.0
        %v5804 = vadd.f32 %v5802, %v5803
        %v5805 = vsel %vm487, %v5756, 0.0
        %v5806 = vadd.f32 %v5804, %v5805
        %v5807 = vsel %vm487, %v5757, 0.0
        %v5808 = vadd.f32 %v5806, %v5807
        %v5809 = vsel %vm487, %v5758, 0.0
        %v5810 = vadd.f32 %v5808, %v5809
        %v5811 = vsel %vm487, %v5759, 0.0
        %v5812 = vadd.f32 %v5810, %v5811
        %v5813 = vsel %vm487, %v5760, 0.0
        %v5814 = vadd.f32 %v5812, %v5813
        %v5815 = vsel %vm487, %v5761, 0.0
        %v5816 = vadd.f32 %v5814, %v5815
        %v5817 = vsel %vm487, %v5762, 0.0
        %v5818 = vadd.f32 %v5816, %v5817
        %v5819 = vsel %vm487, %v5763, 0.0
        %v5820 = vadd.f32 %v5818, %v5819
        %v5821 = vsel %vm487, %v5764, 0.0
        %v5822 = vadd.f32 %v5820, %v5821
        %v5823 = vsel %vm487, %v5765, 0.0
        %v5824 = vadd.f32 %v5822, %v5823
        %v5825 = vsel %vm487, %v5766, 0.0
        %v5826 = vadd.f32 %v5824, %v5825
        %v5827 = vsel %vm487, %v5767, 0.0
        %v5828 = vadd.f32 %v5826, %v5827
        %v5829 = vsel %vm487, %v5768, 0.0
        %v5830 = vadd.f32 %v5828, %v5829
        %v5831 = vsel %vm487, %v5769, 0.0
        %v5832 = vadd.f32 %v5830, %v5831
        %5833 = vadd.xlane.f32.xlu0 %v5832
        %v5834 = vpop.xlane.xlu0 %5833
        %v5835 = vrot.slane %v5834, 4
        %v5836 = vadd.f32 %v5834, %v5835
        %v5837 = vrot.slane %v5836, 2
        %v5838 = vadd.f32 %v5836, %v5837
        %v5839 = vrot.slane %v5838, 1
        %v5840 = vadd.f32 %v5838, %v5839
        %s5841 = vtos %v5840
        %v5842 = vstv %s5841
        %vm5843 = vcmask 0
        %5844 = vst.msk [vmem:[%s293] sm:$0x1] %vm5843, %v5842
        %s5845 = smul.u32 32, %s25
        %p5846 = scmp.lt.s32.totalorder %s24, 1
        %s5847 = scalar_select %p5846, %s24, 1
        %p5848 = scmp.lt.s32.totalorder %s5845, 31
        %s5849 = scalar_select %p5848, %s5845, 31
        %s5850 = smul.addr %s5847, 32
        %s5851 = sadd.s32 %s5849, %s5850
        %s5852 = smul.addr %s5851, 8
        %s5853 = scalar_lea.vmem %s3, %s5852
        %s5854 = sand.u32 %s140, 1
        %s5855 = scalar_lea.sflag [#allocation3], %s5854
        %s5856 = sand.u32 %s140, 1
        %s5857 = smul.addr %s5856, 2
        %s5858 = scalar_lea.vmem [#allocation2], %s5857
        %p5859 = scmp.lt.s32.totalorder %s24, 1
        %s5860 = scalar_select %p5859, %s24, 1
        %p5861 = scmp.lt.s32.totalorder %s25, 0
        %s5862 = scalar_select %p5861, %s25, 0
        %s5863 = sadd.s32 %s5862, %s5860
        %s5864 = scalar_lea.vmem %s5, %s5863
        // Predicated region
        $region33: #{tpu_custom_call.1} parent=31 // pred_check
          %p5865 = pneg %p122
        $region34: #{tpu_custom_call.1} parent=31 // pred_check_branch
          %5867 = sbr.rel (%p5865) target = $region36
        $region35: #{tpu_custom_call.1} parent=31 // pred_region
          %s5868 = smul.u32 32, %s25
        $region36: #{tpu_custom_call.1} parent=31 // pred_fallthru
          _
        // Predicated region
        $region37: #{tpu_custom_call.1} parent=31 // pred_check
          %p5869 = pneg %p150
        $region38: #{tpu_custom_call.1} parent=31 // pred_check_branch
          %5871 = sbr.rel (%p5869) target = $region40
        $region39: #{tpu_custom_call.1} parent=31 // pred_region
          %s5872 = smul.u32 2, %s25
          %s5874 = ssub.s32 32, 32
          %5875 = vsyncadd %s5855, %s5874
          %s5876 = smul.addr %s24, 2
          %s5877 = sadd.s32 %s5872, %s5876
          %s5878 = smul.addr %s5877, 16
          %s5879 = scalar_lea.hbm %s4, %s5878
          %s5881 = sshll.u32 %s5858, 4
          %s5882 = int_to_ptr.vmem [resolvable:$true] %s5881
          %5884 = dma.vmem_to_hbm [thread:$0]  %s5882, 32, %s5879, %s5855
        $region40: #{tpu_custom_call.1} parent=31 // pred_fallthru
          _
        // Predicated region
        $region41: #{tpu_custom_call.1} parent=31 // pred_check
          %p5885 = pneg %p178
        $region42: #{tpu_custom_call.1} parent=31 // pred_check_branch
          %5887 = sbr.rel (%p5885) target = $region44
        $region43: #{tpu_custom_call.1} parent=31 // pred_region
          _
        $region44: #{tpu_custom_call.1} parent=31 // pred_fallthru
          _
      $region32: #{tpu_custom_call.1} parent=5 // pred_fallthru
        _
      %p5888 = scmp.le.s32.totalorder 2, %s15
      // Predicated region
      $region45: #{tpu_custom_call.1} parent=5 // pred_check
        %p5889 = pneg %p5888
      $region46: #{tpu_custom_call.1} parent=5 // pred_check_branch
        %5891 = sbr.rel (%p5889) target = $region48
      $region47: #{tpu_custom_call.1} parent=5 // pred_region
        %s5892 = ssub.s32 %s15, 2
        // Predicated region
        $region49: #{tpu_custom_call.1} parent=47 // pred_check
          %p5893 = pneg %p128
        $region50: #{tpu_custom_call.1} parent=47 // pred_check_branch
          %5895 = sbr.rel (%p5893) target = $region52
        $region51: #{tpu_custom_call.1} parent=47 // pred_region
          %s5896 = smul.u32 32, %s27
          %p5897 = scmp.lt.s32.totalorder %s26, 1
          %s5898 = scalar_select %p5897, %s26, 1
          %p5899 = scmp.lt.s32.totalorder %s5896, 31
          %s5900 = scalar_select %p5899, %s5896, 31
          %s5901 = smul.addr %s5898, 32
          %s5902 = sadd.s32 %s5900, %s5901
          %s5903 = smul.addr %s5902, 8
          %s5904 = scalar_lea.vmem %s3, %s5903
        $region52: #{tpu_custom_call.1} parent=47 // pred_fallthru
          _
        // Predicated region
        $region53: #{tpu_custom_call.1} parent=47 // pred_check
          %p5905 = pneg %p156
        $region54: #{tpu_custom_call.1} parent=47 // pred_check_branch
          %5907 = sbr.rel (%p5905) target = $region56
        $region55: #{tpu_custom_call.1} parent=47 // pred_region
          %s5908 = sand.u32 %s141, 1
          %s5909 = scalar_lea.sflag [#allocation3], %s5908
          %s5910 = sand.u32 %s141, 1
          %s5911 = smul.addr %s5910, 2
          %s5912 = scalar_lea.vmem [#allocation2], %s5911
          %5913 = dma.done %s5909, 32
        $region56: #{tpu_custom_call.1} parent=47 // pred_fallthru
          _
        // Predicated region
        $region57: #{tpu_custom_call.1} parent=47 // pred_check
          %p5914 = pneg %p184
        $region58: #{tpu_custom_call.1} parent=47 // pred_check_branch
          %5916 = sbr.rel (%p5914) target = $region60
        $region59: #{tpu_custom_call.1} parent=47 // pred_region
          %p5917 = scmp.lt.s32.totalorder %s26, 1
          %s5918 = scalar_select %p5917, %s26, 1
          %p5919 = scmp.lt.s32.totalorder %s27, 0
          %s5920 = scalar_select %p5919, %s27, 0
          %s5921 = sadd.s32 %s5920, %s5918
          %s5922 = scalar_lea.vmem %s5, %s5921
        $region60: #{tpu_custom_call.1} parent=47 // pred_fallthru
          _
      $region48: #{tpu_custom_call.1} parent=5 // pred_fallthru
        _
    $region6: #{tpu_custom_call.1} parent=1 // loop_footer
      %s19 = sadd.s32 1, %s15
    $region7: #{tpu_custom_call.1} parent=1 // loop_footer_branch
      %14 = sbr.rel target = $region3
    $region8: #{tpu_custom_call.1} parent=1 // loop_exit
      _
    %5923 = vsyncpa [#allocation3], 1
    %s5924 = scalar_lea.sflag [#allocation3], 1
    %5925 = vsyncpa %s5924, 1

// kernel: tpu_custom_call.1
$region0: #{tpu_custom_call.1}
  #allocation0 [shape = 'u32[]', space=smem, size = 0x4, offset = 0x4, fixed_abs, tag = 'smem constant byte address 0x4 - core index']
  #allocation1 [shape = 'u32[144,128]{1,0:T(1,128)}', space=vmem, size = 0x12000, scoped, tag = 'internal scratch']
  %s0 = inlined_call_operand.vmem [shape: f32[2,256,64], index: 0, kind: input, shape index: {}]
  %s1 = inlined_call_operand.vmem [shape: f32[512,64], index: 1, kind: input, shape index: {}]
  %s2 = inlined_call_operand.vmem [shape: f32[1,512], index: 2, kind: input, shape index: {}]
  %s3 = inlined_call_operand.vmem [shape: f32[2,256,64], index: 3, kind: output, shape index: {0}]
  %s4 = inlined_call_operand.hbm [shape: s32[2,1,256], index: 4, kind: output, shape index: {1}]
  %s5 = inlined_call_operand.vmem [shape: f32[2,1,1,1], index: 5, kind: output, shape index: {2}]
  %6 = xla_tuple %s3, %s4, %s5
  %s7 = sld [smem:[#allocation0]]
  $region61: #{tpu_custom_call.1} parent=0
    _
  %s9 = ssub.s32 1, %s7
  %s10 = scalar_select 0, %s9, %s7
  $region1: #{tpu_custom_call.1} parent=0
    #allocation2 [shape = 'u8[2048]{0}', space=vmem, size = 0x800, scoped, tag = 'output window, operand 1']
    #allocation3 [shape = 's32[2]{0}', space=sflag, size = 0x8, scoped, tag = 'scoped memory for tpu_custom_call.1']
    %11 = vsyncpa [#allocation3], 0
    %s12 = scalar_lea.sflag [#allocation3], 1
    %13 = vsyncpa %s12, 0
    loop: start=0, step=1, limit=4
    $region2: #{tpu_custom_call.1} parent=1 // loop_pre_header
      _
    $region3: #{tpu_custom_call.1} parent=1 // loop_header
      %s15 = sphi 0, %s19
      %p16 = scmp.ge.s32.totalorder %s15, 4
      %s22 = sphi 0, %s34
      %s23 = sphi 0, %s30
      %s24 = sphi 0, %s22
      %s25 = sphi 0, %s23
      %s26 = sphi 0, %s24
      %s27 = sphi 0, %s25
      %s39 = sphi 0, %s41
      %s42 = sphi 0, %s39
      %s43 = sphi 0, %s42
      %s59 = sphi 0, %s43
      %s63 = sphi 0, %s63
      %s65 = sphi 0, %s63
      %s66 = sphi 0, %s65
      %s80 = sphi 0, %s66
      %s84 = sphi 0, %s84
      %s86 = sphi 0, %s84
      %s87 = sphi 0, %s86
      %s101 = sphi 0, %s87
      %s109 = sphi 0, %s111
      %s112 = sphi 0, %s109
      %s113 = sphi 0, %s112
      %s129 = sphi 0, %s113
      %s137 = sphi 0, %s139
      %s140 = sphi 0, %s137
      %s141 = sphi 0, %s140
      %s157 = sphi 0, %s141
      %s165 = sphi 0, %s167
      %s168 = sphi 0, %s165
      %s169 = sphi 0, %s168
      %s185 = sphi 0, %s169
    $region4: #{tpu_custom_call.1} parent=1 // loop_header_branch
      %18 = sbr.rel (%p16) target = $region8
    $region5: #{tpu_custom_call.1} parent=1 // loop_body
      %s20 = ssub.s32 %s15, 1
      %s21 = ssub.s32 %s15, 2
      %s28 = sadd.s32 1, %s23
      %p29 = scmp.ge.s32.totalorder %s28, 1
      %s30 = scalar_select %p29, 0, %s28
      %s31 = sadd.s32 1, %s22
      %s32 = scalar_select %p29, %s31, %s22
      %p33 = scmp.ge.s32.totalorder %s32, 2
      %s34 = scalar_select %p33, 0, %s32
      %s35 = ssub.s32 %s22, %s34
      %s36 = ssub.s32 %s23, %s30
      %s37 = sor.u32 %s35, %s36
      %p38 = scmp.eq.s32.totalorder %s37, 0
      %s40 = sadd.s32 %s39, 1
      %s41 = scalar_select %p38, %s39, %s40
      %p44 = pneg %p38
      %p45 = scmp.eq.s32.totalorder %s15, 1
      %p46 = por %p44, %p45
      %p47 = scmp.ne.s32.totalorder %s39, %s42
      %p48 = scmp.eq.s32.totalorder %s15, 0
      %p49 = por %p47, %p48
      %p50 = scmp.ne.s32.totalorder %s39, %s42
      %p51 = scmp.eq.s32.totalorder %s20, 1
      %p52 = por %p50, %p51
      %p53 = scmp.ne.s32.totalorder %s42, %s43
      %p54 = scmp.eq.s32.totalorder %s20, 0
      %p55 = por %p53, %p54
      %p56 = scmp.ne.s32.totalorder %s42, %s43
      %p57 = scmp.eq.s32.totalorder %s21, 1
      %p58 = por %p56, %p57
      %p60 = scmp.ne.s32.totalorder %s43, %s59
      %p61 = scmp.eq.s32.totalorder %s21, 0
      %p62 = por %p60, %p61
      %s64 = sadd.s32 %s63, 1
      %p67 = scmp.eq.s32.totalorder %s15, 1
      %p68 = scmp.ne.s32.totalorder %s63, %s65
      %p69 = scmp.eq.s32.totalorder %s15, 0
      %p70 = por %p68, %p69
      %p71 = scmp.ne.s32.totalorder %s63, %s65
      %p72 = scmp.eq.s32.totalorder %s20, 1
      %p73 = por %p71, %p72
      %p74 = scmp.ne.s32.totalorder %s65, %s66
      %p75 = scmp.eq.s32.totalorder %s20, 0
      %p76 = por %p74, %p75
      %p77 = scmp.ne.s32.totalorder %s65, %s66
      %p78 = scmp.eq.s32.totalorder %s21, 1
      %p79 = por %p77, %p78
      %p81 = scmp.ne.s32.totalorder %s66, %s80
      %p82 = scmp.eq.s32.totalorder %s21, 0
      %p83 = por %p81, %p82
      %s85 = sadd.s32 %s84, 1
      %p88 = scmp.eq.s32.totalorder %s15, 1
      %p89 = scmp.ne.s32.totalorder %s84, %s86
      %p90 = scmp.eq.s32.totalorder %s15, 0
      %p91 = por %p89, %p90
      %p92 = scmp.ne.s32.totalorder %s84, %s86
      %p93 = scmp.eq.s32.totalorder %s20, 1
      %p94 = por %p92, %p93
      %p95 = scmp.ne.s32.totalorder %s86, %s87
      %p96 = scmp.eq.s32.totalorder %s20, 0
      %p97 = por %p95, %p96
      %p98 = scmp.ne.s32.totalorder %s86, %s87
      %p99 = scmp.eq.s32.totalorder %s21, 1
      %p100 = por %p98, %p99
      %p102 = scmp.ne.s32.totalorder %s87, %s101
      %p103 = scmp.eq.s32.totalorder %s21, 0
      %p104 = por %p102, %p103
      %s105 = ssub.s32 %s22, %s34
      %s106 = ssub.s32 %s23, %s30
      %s107 = sor.u32 %s105, %s106
      %p108 = scmp.eq.s32.totalorder %s107, 0
      %s110 = sadd.s32 %s109, 1
      %s111 = scalar_select %p108, %s109, %s110
      %p114 = pneg %p108
      %p115 = scmp.eq.s32.totalorder %s15, 1
      %p116 = por %p114, %p115
      %p117 = scmp.ne.s32.totalorder %s109, %s112
      %p118 = scmp.eq.s32.totalorder %s15, 0
      %p119 = por %p117, %p118
      %p120 = scmp.ne.s32.totalorder %s109, %s112
      %p121 = scmp.eq.s32.totalorder %s20, 1
      %p122 = por %p120, %p121
      %p123 = scmp.ne.s32.totalorder %s112, %s113
      %p124 = scmp.eq.s32.totalorder %s20, 0
      %p125 = por %p123, %p124
      %p126 = scmp.ne.s32.totalorder %s112, %s113
      %p127 = scmp.eq.s32.totalorder %s21, 1
      %p128 = por %p126, %p127
      %p130 = scmp.ne.s32.totalorder %s113, %s129
      %p131 = scmp.eq.s32.totalorder %s21, 0
      %p132 = por %p130, %p131
      %s133 = ssub.s32 %s22, %s34
      %s134 = ssub.s32 %s23, %s30
      %s135 = sor.u32 %s133, %s134
      %p136 = scmp.eq.s32.totalorder %s135, 0
      %s138 = sadd.s32 %s137, 1
      %s139 = scalar_select %p136, %s137, %s138
      %p142 = pneg %p136
      %p143 = scmp.eq.s32.totalorder %s15, 1
      %p144 = por %p142, %p143
      %p145 = scmp.ne.s32.totalorder %s137, %s140
      %p146 = scmp.eq.s32.totalorder %s15, 0
      %p147 = por %p145, %p146
      %p148 = scmp.ne.s32.totalorder %s137, %s140
      %p149 = scmp.eq.s32.totalorder %s20, 1
      %p150 = por %p148, %p149
      %p151 = scmp.ne.s32.totalorder %s140, %s141
      %p152 = scmp.eq.s32.totalorder %s20, 0
      %p153 = por %p151, %p152
      %p154 = scmp.ne.s32.totalorder %s140, %s141
      %p155 = scmp.eq.s32.totalorder %s21, 1
      %p156 = por %p154, %p155
      %p158 = scmp.ne.s32.totalorder %s141, %s157
      %p159 = scmp.eq.s32.totalorder %s21, 0
      %p160 = por %p158, %p159
      %s161 = ssub.s32 %s22, %s34
      %s162 = ssub.s32 %s23, %s30
      %s163 = sor.u32 %s161, %s162
      %p164 = scmp.eq.s32.totalorder %s163, 0
      %s166 = sadd.s32 %s165, 1
      %s167 = scalar_select %p164, %s165, %s166
      %p170 = pneg %p164
      %p171 = scmp.eq.s32.totalorder %s15, 1
      %p172 = por %p170, %p171
      %p173 = scmp.ne.s32.totalorder %s165, %s168
      %p174 = scmp.eq.s32.totalorder %s15, 0
      %p175 = por %p173, %p174
      %p176 = scmp.ne.s32.totalorder %s165, %s168
      %p177 = scmp.eq.s32.totalorder %s20, 1
      %p178 = por %p176, %p177
      %p179 = scmp.ne.s32.totalorder %s168, %s169
      %p180 = scmp.eq.s32.totalorder %s20, 0
      %p181 = por %p179, %p180
      %p182 = scmp.ne.s32.totalorder %s168, %s169
      %p183 = scmp.eq.s32.totalorder %s21, 1
      %p184 = por %p182, %p183
      %p186 = scmp.ne.s32.totalorder %s169, %s185
      %p187 = scmp.eq.s32.totalorder %s21, 0
      %p188 = por %p186, %p187
      %p189 = scmp.le.s32.totalorder 1, %s15
      %p190 = scmp.lt.s32.totalorder %s15, 3
      %p191 = pnand %p189, %p190
      %p192 = pneg %p191
      // Predicated region
      $region9: #{tpu_custom_call.1} parent=5 // pred_check
        _
      $region10: #{tpu_custom_call.1} parent=5 // pred_check_branch
        %194 = sbr.rel (%p191) target = $region12
      $region11: #{tpu_custom_call.1} parent=5 // pred_region
        %s195 = ssub.s32 %s15, 1
        // Predicated region
        $region13: #{tpu_custom_call.1} parent=11 // pred_check
          %p196 = pneg %p76
        $region14: #{tpu_custom_call.1} parent=11 // pred_check_branch
          %198 = sbr.rel (%p196) target = $region16
        $region15: #{tpu_custom_call.1} parent=11 // pred_region
          _
        $region16: #{tpu_custom_call.1} parent=11 // pred_fallthru
          _
        // Predicated region
        $region17: #{tpu_custom_call.1} parent=11 // pred_check
          %p199 = pneg %p97
        $region18: #{tpu_custom_call.1} parent=11 // pred_check_branch
          %201 = sbr.rel (%p199) target = $region20
        $region19: #{tpu_custom_call.1} parent=11 // pred_region
          _
        $region20: #{tpu_custom_call.1} parent=11 // pred_fallthru
          _
      $region12: #{tpu_custom_call.1} parent=5 // pred_fallthru
        _
      %p202 = scmp.lt.s32.totalorder %s15, 2
      // Predicated region
      $region21: #{tpu_custom_call.1} parent=5 // pred_check
        %p203 = pneg %p202
      $region22: #{tpu_custom_call.1} parent=5 // pred_check_branch
        %205 = sbr.rel (%p203) target = $region24
      $region23: #{tpu_custom_call.1} parent=5 // pred_region
        // Predicated region
        $region25: #{tpu_custom_call.1} parent=23 // pred_check
          %p206 = pneg %p49
        $region26: #{tpu_custom_call.1} parent=23 // pred_check_branch
          %208 = sbr.rel (%p206) target = $region28
        $region27: #{tpu_custom_call.1} parent=23 // pred_region
          %s209 = smul.u32 32, %s23
          %p210 = scmp.lt.s32.totalorder %s22, 1
          %s211 = scalar_select %p210, %s22, 1
          %p212 = scmp.lt.s32.totalorder %s209, 31
          %s213 = scalar_select %p212, %s209, 31
          %s214 = smul.addr %s211, 32
          %s215 = sadd.s32 %s213, %s214
          %s216 = smul.addr %s215, 8
          %s217 = scalar_lea.vmem %s0, %s216
          %s218 = smul.u32 32, %s23
        $region28: #{tpu_custom_call.1} parent=23 // pred_fallthru
          _
      $region24: #{tpu_custom_call.1} parent=5 // pred_fallthru
        _
      %p219 = scmp.le.s32.totalorder 1, %s15
      %p220 = scmp.lt.s32.totalorder %s15, 3
      %p221 = pnand %p219, %p220
      %p222 = pneg %p221
      // Predicated region
      $region29: #{tpu_custom_call.1} parent=5 // pred_check
        _
      $region30: #{tpu_custom_call.1} parent=5 // pred_check_branch
        %224 = sbr.rel (%p221) target = $region32
      $region31: #{tpu_custom_call.1} parent=5 // pred_region
        %s225 = ssub.s32 %s15, 1
        %s226 = smul.u32 32, %s25
        %p227 = scmp.lt.s32.totalorder %s24, 1
        %s228 = scalar_select %p227, %s24, 1
        %p229 = scmp.lt.s32.totalorder %s226, 31
        %s230 = scalar_select %p229, %s226, 31
        %s231 = smul.addr %s228, 32
        %s232 = sadd.s32 %s230, %s231
        %s233 = smul.addr %s232, 8
        %s234 = scalar_lea.vmem %s0, %s233
        %p235 = pneg %p55
        %p236 = pneg %p52
        %p237 = pneg %p76
        %p238 = pneg %p73
        %p239 = pneg %p97
        %p240 = pneg %p94
        %p241 = pneg %p125
        %p242 = pneg %p122
        %s243 = smul.u32 32, %s25
        %p244 = scmp.lt.s32.totalorder %s24, 1
        %s245 = scalar_select %p244, %s24, 1
        %p246 = scmp.lt.s32.totalorder %s243, 31
        %s247 = scalar_select %p246, %s243, 31
        %s248 = smul.addr %s245, 32
        %s249 = sadd.s32 %s247, %s248
        %s250 = smul.addr %s249, 8
        %s251 = scalar_lea.vmem %s3, %s250
        %p252 = pneg %p153
        %p253 = pneg %p150
        %s254 = sand.u32 %s140, 1
        %s255 = scalar_lea.sflag [#allocation3], %s254
        %s256 = sand.u32 %s140, 1
        %s257 = smul.addr %s256, 2
        %s258 = scalar_lea.vmem [#allocation2], %s257
        %p259 = pneg %p181
        %p260 = pneg %p178
        %p261 = scmp.lt.s32.totalorder %s24, 1
        %s262 = scalar_select %p261, %s24, 1
        %p263 = scmp.lt.s32.totalorder %s25, 0
        %s264 = scalar_select %p263, %s25, 0
        %s265 = sadd.s32 %s264, %s262
        %s266 = scalar_lea.vmem %s5, %s265
        %s267 = smul.u32 32, %s25
        %p268 = scmp.lt.s32.totalorder %s24, 1
        %s269 = scalar_select %p268, %s24, 1
        %p270 = scmp.lt.s32.totalorder %s267, 31
        %s271 = scalar_select %p270, %s267, 31
        %s272 = smul.addr %s269, 32
        %s273 = sadd.s32 %s271, %s272
        %s274 = smul.addr %s273, 8
        %s275 = scalar_lea.vmem %s0, %s274
        %s276 = smul.u32 32, %s25
        %s277 = smul.u32 32, %s25
        %p278 = scmp.lt.s32.totalorder %s24, 1
        %s279 = scalar_select %p278, %s24, 1
        %p280 = scmp.lt.s32.totalorder %s277, 31
        %s281 = scalar_select %p280, %s277, 31
        %s282 = smul.addr %s279, 32
        %s283 = sadd.s32 %s281, %s282
        %s284 = smul.addr %s283, 8
        %s285 = scalar_lea.vmem %s3, %s284
        %s286 = smul.u32 32, %s25
        %s287 = smul.u32 2, %s25
        %p288 = scmp.lt.s32.totalorder %s24, 1
        %s289 = scalar_select %p288, %s24, 1
        %p290 = scmp.lt.s32.totalorder %s25, 0
        %s291 = scalar_select %p290, %s25, 0
        %s292 = sadd.s32 %s291, %s289
        %s293 = scalar_lea.vmem %s5, %s292
        %v295 = vld [vmem:[%s1] sm:$0xff]
        %v296 = vld [vmem:[%s1 + $0x8] sm:$0xff]
        %v297 = vld [vmem:[%s1 + $0x10] sm:$0xff]
        %v298 = vld [vmem:[%s1 + $0x18] sm:$0xff]
        %v299 = vld [vmem:[%s1 + $0x20] sm:$0xff]
        %v300 = vld [vmem:[%s1 + $0x28] sm:$0xff]
        %v301 = vld [vmem:[%s1 + $0x30] sm:$0xff]
        %v302 = vld [vmem:[%s1 + $0x38] sm:$0xff]
        %v303 = vld [vmem:[%s1 + $0x40] sm:$0xff]
        %v304 = vld [vmem:[%s1 + $0x48] sm:$0xff]
        %v305 = vld [vmem:[%s1 + $0x50] sm:$0xff]
        %v306 = vld [vmem:[%s1 + $0x58] sm:$0xff]
        %v307 = vld [vmem:[%s1 + $0x60] sm:$0xff]
        %v308 = vld [vmem:[%s1 + $0x68] sm:$0xff]
        %v309 = vld [vmem:[%s1 + $0x70] sm:$0xff]
        %v310 = vld [vmem:[%s1 + $0x78] sm:$0xff]
        %v311 = vld [vmem:[%s1 + $0x80] sm:$0xff]
        %v312 = vld [vmem:[%s1 + $0x88] sm:$0xff]
        %v313 = vld [vmem:[%s1 + $0x90] sm:$0xff]
        %v314 = vld [vmem:[%s1 + $0x98] sm:$0xff]
        %v315 = vld [vmem:[%s1 + $0xa0] sm:$0xff]
        %v316 = vld [vmem:[%s1 + $0xa8] sm:$0xff]
        %v317 = vld [vmem:[%s1 + $0xb0] sm:$0xff]
        %v318 = vld [vmem:[%s1 + $0xb8] sm:$0xff]
        %v319 = vld [vmem:[%s1 + $0xc0] sm:$0xff]
        %v320 = vld [vmem:[%s1 + $0xc8] sm:$0xff]
        %v321 = vld [vmem:[%s1 + $0xd0] sm:$0xff]
        %v322 = vld [vmem:[%s1 + $0xd8] sm:$0xff]
        %v323 = vld [vmem:[%s1 + $0xe0] sm:$0xff]
        %v324 = vld [vmem:[%s1 + $0xe8] sm:$0xff]
        %v325 = vld [vmem:[%s1 + $0xf0] sm:$0xff]
        %v326 = vld [vmem:[%s1 + $0xf8] sm:$0xff]
        %v327 = vld [vmem:[%s1 + $0x100] sm:$0xff]
        %v328 = vld [vmem:[%s1 + $0x108] sm:$0xff]
        %v329 = vld [vmem:[%s1 + $0x110] sm:$0xff]
        %v330 = vld [vmem:[%s1 + $0x118] sm:$0xff]
        %v331 = vld [vmem:[%s1 + $0x120] sm:$0xff]
        %v332 = vld [vmem:[%s1 + $0x128] sm:$0xff]
        %v333 = vld [vmem:[%s1 + $0x130] sm:$0xff]
        %v334 = vld [vmem:[%s1 + $0x138] sm:$0xff]
        %v335 = vld [vmem:[%s1 + $0x140] sm:$0xff]
        %v336 = vld [vmem:[%s1 + $0x148] sm:$0xff]
        %v337 = vld [vmem:[%s1 + $0x150] sm:$0xff]
        %v338 = vld [vmem:[%s1 + $0x158] sm:$0xff]
        %v339 = vld [vmem:[%s1 + $0x160] sm:$0xff]
        %v340 = vld [vmem:[%s1 + $0x168] sm:$0xff]
        %v341 = vld [vmem:[%s1 + $0x170] sm:$0xff]
        %v342 = vld [vmem:[%s1 + $0x178] sm:$0xff]
        %v343 = vld [vmem:[%s1 + $0x180] sm:$0xff]
        %v344 = vld [vmem:[%s1 + $0x188] sm:$0xff]
        %v345 = vld [vmem:[%s1 + $0x190] sm:$0xff]
        %v346 = vld [vmem:[%s1 + $0x198] sm:$0xff]
        %v347 = vld [vmem:[%s1 + $0x1a0] sm:$0xff]
        %v348 = vld [vmem:[%s1 + $0x1a8] sm:$0xff]
        %v349 = vld [vmem:[%s1 + $0x1b0] sm:$0xff]
        %v350 = vld [vmem:[%s1 + $0x1b8] sm:$0xff]
        %v351 = vld [vmem:[%s1 + $0x1c0] sm:$0xff]
        %v352 = vld [vmem:[%s1 + $0x1c8] sm:$0xff]
        %v353 = vld [vmem:[%s1 + $0x1d0] sm:$0xff]
        %v354 = vld [vmem:[%s1 + $0x1d8] sm:$0xff]
        %v355 = vld [vmem:[%s1 + $0x1e0] sm:$0xff]
        %v356 = vld [vmem:[%s1 + $0x1e8] sm:$0xff]
        %v357 = vld [vmem:[%s1 + $0x1f0] sm:$0xff]
        %v358 = vld [vmem:[%s1 + $0x1f8] sm:$0xff]
        %v359 = vld [vmem:[%s275] sm:$0xff]
        %v360 = vld [vmem:[%s275 + $0x8] sm:$0xff]
        %v361 = vld [vmem:[%s275 + $0x10] sm:$0xff]
        %v362 = vld [vmem:[%s275 + $0x18] sm:$0xff]
        %v363 = vld [vmem:[%s275 + $0x20] sm:$0xff]
        %v364 = vld [vmem:[%s275 + $0x28] sm:$0xff]
        %v365 = vld [vmem:[%s275 + $0x30] sm:$0xff]
        %v366 = vld [vmem:[%s275 + $0x38] sm:$0xff]
        %v367 = vld [vmem:[%s275 + $0x40] sm:$0xff]
        %v368 = vld [vmem:[%s275 + $0x48] sm:$0xff]
        %v369 = vld [vmem:[%s275 + $0x50] sm:$0xff]
        %v370 = vld [vmem:[%s275 + $0x58] sm:$0xff]
        %v371 = vld [vmem:[%s275 + $0x60] sm:$0xff]
        %v372 = vld [vmem:[%s275 + $0x68] sm:$0xff]
        %v373 = vld [vmem:[%s275 + $0x70] sm:$0xff]
        %v374 = vld [vmem:[%s275 + $0x78] sm:$0xff]
        %v375 = vld [vmem:[%s275 + $0x80] sm:$0xff]
        %v376 = vld [vmem:[%s275 + $0x88] sm:$0xff]
        %v377 = vld [vmem:[%s275 + $0x90] sm:$0xff]
        %v378 = vld [vmem:[%s275 + $0x98] sm:$0xff]
        %v379 = vld [vmem:[%s275 + $0xa0] sm:$0xff]
        %v380 = vld [vmem:[%s275 + $0xa8] sm:$0xff]
        %v381 = vld [vmem:[%s275 + $0xb0] sm:$0xff]
        %v382 = vld [vmem:[%s275 + $0xb8] sm:$0xff]
        %v383 = vld [vmem:[%s275 + $0xc0] sm:$0xff]
        %v384 = vld [vmem:[%s275 + $0xc8] sm:$0xff]
        %v385 = vld [vmem:[%s275 + $0xd0] sm:$0xff]
        %v386 = vld [vmem:[%s275 + $0xd8] sm:$0xff]
        %v387 = vld [vmem:[%s275 + $0xe0] sm:$0xff]
        %v388 = vld [vmem:[%s275 + $0xe8] sm:$0xff]
        %v389 = vld [vmem:[%s275 + $0xf0] sm:$0xff]
        %v390 = vld [vmem:[%s275 + $0xf8] sm:$0xff]
        %v391 = vpack.c.bf16 %v360, %v359
        %v392 = vpack.c.bf16 %v362, %v361
        %v393 = vpack.c.bf16 %v364, %v363
        %v394 = vpack.c.bf16 %v366, %v365
        %v395 = vpack.c.bf16 %v368, %v367
        %v396 = vpack.c.bf16 %v370, %v369
        %v397 = vpack.c.bf16 %v372, %v371
        %v398 = vpack.c.bf16 %v374, %v373
        %v399 = vpack.c.bf16 %v376, %v375
        %v400 = vpack.c.bf16 %v378, %v377
        %v401 = vpack.c.bf16 %v380, %v379
        %v402 = vpack.c.bf16 %v382, %v381
        %v403 = vpack.c.bf16 %v384, %v383
        %v404 = vpack.c.bf16 %v386, %v385
        %v405 = vpack.c.bf16 %v388, %v387
        %v406 = vpack.c.bf16 %v390, %v389
        %v407 = vpack.c.bf16 %v296, %v295
        %v408 = vpack.c.bf16 %v298, %v297
        %v409 = vpack.c.bf16 %v300, %v299
        %v410 = vpack.c.bf16 %v302, %v301
        %v411 = vpack.c.bf16 %v304, %v303
        %v412 = vpack.c.bf16 %v306, %v305
        %v413 = vpack.c.bf16 %v308, %v307
        %v414 = vpack.c.bf16 %v310, %v309
        %v415 = vpack.c.bf16 %v312, %v311
        %v416 = vpack.c.bf16 %v314, %v313
        %v417 = vpack.c.bf16 %v316, %v315
        %v418 = vpack.c.bf16 %v318, %v317
        %v419 = vpack.c.bf16 %v320, %v319
        %v420 = vpack.c.bf16 %v322, %v321
        %v421 = vpack.c.bf16 %v324, %v323
        %v422 = vpack.c.bf16 %v326, %v325
        %v423 = vpack.c.bf16 %v328, %v327
        %v424 = vpack.c.bf16 %v330, %v329
        %v425 = vpack.c.bf16 %v332, %v331
        %v426 = vpack.c.bf16 %v334, %v333
        %v427 = vpack.c.bf16 %v336, %v335
        %v428 = vpack.c.bf16 %v338, %v337
        %v429 = vpack.c.bf16 %v340, %v339
        %v430 = vpack.c.bf16 %v342, %v341
        %v431 = vpack.c.bf16 %v344, %v343
        %v432 = vpack.c.bf16 %v346, %v345
        %v433 = vpack.c.bf16 %v348, %v347
        %v434 = vpack.c.bf16 %v350, %v349
        %v435 = vpack.c.bf16 %v352, %v351
        %v436 = vpack.c.bf16 %v354, %v353
        %v437 = vpack.c.bf16 %v356, %v355
        %v438 = vpack.c.bf16 %v358, %v357
        %vm439 = vcmask 523264
        %v441 = vsel %vm439, %v391, 0
        %v444 = vsel %vm439, %v392, 0
        %v447 = vsel %vm439, %v393, 0
        %v450 = vsel %vm439, %v394, 0
        %v453 = vsel %vm439, %v395, 0
        %v456 = vsel %vm439, %v396, 0
        %v459 = vsel %vm439, %v397, 0
        %v462 = vsel %vm439, %v398, 0
        %v465 = vsel %vm439, %v399, 0
        %v468 = vsel %vm439, %v400, 0
        %v471 = vsel %vm439, %v401, 0
        %v474 = vsel %vm439, %v402, 0
        %v477 = vsel %vm439, %v403, 0
        %v480 = vsel %vm439, %v404, 0
        %v483 = vsel %vm439, %v405, 0
        %v486 = vsel %vm439, %v406, 0
        %v489 = vsel %vm439, %v407, 0
        %v492 = vsel %vm439, %v408, 0
        %v495 = vsel %vm439, %v409, 0
        %v498 = vsel %vm439, %v410, 0
        %v501 = vsel %vm439, %v411, 0
        %v504 = vsel %vm439, %v412, 0
        %v507 = vsel %vm439, %v413, 0
        %v510 = vsel %vm439, %v414, 0
        %v513 = vsel %vm439, %v415, 0
        %v516 = vsel %vm439, %v416, 0
        %v519 = vsel %vm439, %v417, 0
        %v522 = vsel %vm439, %v418, 0
        %v525 = vsel %vm439, %v419, 0
        %v528 = vsel %vm439, %v420, 0
        %v531 = vsel %vm439, %v421, 0
        %v534 = vsel %vm439, %v422, 0
        %v537 = vsel %vm439, %v423, 0
        %v540 = vsel %vm439, %v424, 0
        %v543 = vsel %vm439, %v425, 0
        %v546 = vsel %vm439, %v426, 0
        %v549 = vsel %vm439, %v427, 0
        %v552 = vsel %vm439, %v428, 0
        %v555 = vsel %vm439, %v429, 0
        %v558 = vsel %vm439, %v430, 0
        %v561 = vsel %vm439, %v431, 0
        %v564 = vsel %vm439, %v432, 0
        %v567 = vsel %vm439, %v433, 0
        %v570 = vsel %vm439, %v434, 0
        %v573 = vsel %vm439, %v435, 0
        %v576 = vsel %vm439, %v436, 0
        %v579 = vsel %vm439, %v437, 0
        %v582 = vsel %vm439, %v438, 0
        %584 = vmatprep.subr.bf16.mxu0 0
        %585 = vmatpush1.bf16.xpose.msra.mxu0 %v489
        %586 = vmatprep.subr.bf16.mxu0 0
        %587 = vmatpush1.bf16.xpose.msra.mxu0 %v492
        %588 = vmatprep.subr.bf16.mxu0 0
        %589 = vmatpush1.bf16.xpose.msra.mxu0 %v495
        %590 = vmatprep.subr.bf16.mxu0 0
        %591 = vmatpush1.bf16.xpose.msra.mxu0 %v498
        %592 = vmatprep.subr.bf16.mxu0 0
        %593 = vmatpush1.bf16.xpose.msra.mxu0 %v501
        %594 = vmatprep.subr.bf16.mxu0 0
        %595 = vmatpush1.bf16.xpose.msra.mxu0 %v504
        %596 = vmatprep.subr.bf16.mxu0 0
        %597 = vmatpush1.bf16.xpose.msra.mxu0 %v507
        %598 = vmatprep.subr.bf16.mxu0 0
        %599 = vmatpush1.bf16.xpose.msra.mxu0 %v510
        %600 = vmatprep.subr.bf16.mxu0 0
        %601 = vmatpush1.bf16.xpose.msra.mxu0 %v513
        %602 = vmatprep.subr.bf16.mxu0 0
        %603 = vmatpush1.bf16.xpose.msra.mxu0 %v516
        %604 = vmatprep.subr.bf16.mxu0 0
        %605 = vmatpush1.bf16.xpose.msra.mxu0 %v519
        %606 = vmatprep.subr.bf16.mxu0 0
        %607 = vmatpush1.bf16.xpose.msra.mxu0 %v522
        %608 = vmatprep.subr.bf16.mxu0 0
        %609 = vmatpush1.bf16.xpose.msra.mxu0 %v525
        %610 = vmatprep.subr.bf16.mxu0 0
        %611 = vmatpush1.bf16.xpose.msra.mxu0 %v528
        %612 = vmatprep.subr.bf16.mxu0 0
        %613 = vmatpush1.bf16.xpose.msra.mxu0 %v531
        %614 = vmatprep.subr.bf16.mxu0 0
        %615 = vmatpush1.bf16.xpose.msra.mxu0 %v534
        %616 = vmatprep.mubr.bf16.mxu0 0
        %617 = vmatmul.mubr.bf16.gmra.mrb[0].mxu0 %v441
        %v618 = vpop.f32.mrb[0].mxu0
        %v619 = vadd.f32 0.0, %v618
        %v620 = vpop.f32.mrb[0].mxu0
        %v621 = vadd.f32 0.0, %v620
        %v622 = vpop.f32.mrb[0].mxu0
        %v623 = vadd.f32 0.0, %v622
        %v624 = vpop.f32.mrb[0].mxu0
        %v625 = vadd.f32 0.0, %v624
        %626 = vmatprep.mubr.bf16.mxu0 0
        %627 = vmatmul.mubr.bf16.gmra.mrb[0].mxu0 %v444
        %v628 = vpop.f32.mrb[0].mxu0
        %v629 = vadd.f32 0.0, %v628
        %v630 = vpop.f32.mrb[0].mxu0
        %v631 = vadd.f32 0.0, %v630
        %v632 = vpop.f32.mrb[0].mxu0
        %v633 = vadd.f32 0.0, %v632
        %v634 = vpop.f32.mrb[0].mxu0
        %v635 = vadd.f32 0.0, %v634
        %636 = vmatprep.mubr.bf16.mxu0 0
        %637 = vmatmul.mubr.bf16.gmra.mrb[0].mxu0 %v447
        %v638 = vpop.f32.mrb[0].mxu0
        %v639 = vadd.f32 0.0, %v638
        %v640 = vpop.f32.mrb[0].mxu0
        %v641 = vadd.f32 0.0, %v640
        %v642 = vpop.f32.mrb[0].mxu0
        %v643 = vadd.f32 0.0, %v642
        %v644 = vpop.f32.mrb[0].mxu0
        %v645 = vadd.f32 0.0, %v644
        %646 = vmatprep.mubr.bf16.mxu0 0
        %647 = vmatmul.mubr.bf16.gmra.mrb[0].mxu0 %v450
        %v648 = vpop.f32.mrb[0].mxu0
        %v649 = vadd.f32 0.0, %v648
        %v650 = vpop.f32.mrb[0].mxu0
        %v651 = vadd.f32 0.0, %v650
        %v652 = vpop.f32.mrb[0].mxu0
        %v653 = vadd.f32 0.0, %v652
        %v654 = vpop.f32.mrb[0].mxu0
        %v655 = vadd.f32 0.0, %v654
        %656 = vmatprep.mubr.bf16.mxu0 0
        %657 = vmatmul.mubr.bf16.gmra.mrb[0].mxu0 %v453
        %v658 = vpop.f32.mrb[0].mxu0
        %v659 = vadd.f32 0.0, %v658
        %v660 = vpop.f32.mrb[0].mxu0
        %v661 = vadd.f32 0.0, %v660
        %v662 = vpop.f32.mrb[0].mxu0
        %v663 = vadd.f32 0.0, %v662
        %v664 = vpop.f32.mrb[0].mxu0
        %v665 = vadd.f32 0.0, %v664
        %666 = vmatprep.mubr.bf16.mxu0 0
        %667 = vmatmul.mubr.bf16.gmra.mrb[0].mxu0 %v456
        %v668 = vpop.f32.mrb[0].mxu0
        %v669 = vadd.f32 0.0, %v668
        %v670 = vpop.f32.mrb[0].mxu0
        %v671 = vadd.f32 0.0, %v670
        %v672 = vpop.f32.mrb[0].mxu0
        %v673 = vadd.f32 0.0, %v672
        %v674 = vpop.f32.mrb[0].mxu0
        %v675 = vadd.f32 0.0, %v674
        %676 = vmatprep.mubr.bf16.mxu0 0
        %677 = vmatmul.mubr.bf16.gmra.mrb[0].mxu0 %v459
        %v678 = vpop.f32.mrb[0].mxu0
        %v679 = vadd.f32 0.0, %v678
        %v680 = vpop.f32.mrb[0].mxu0
        %v681 = vadd.f32 0.0, %v680
        %v682 = vpop.f32.mrb[0].mxu0
        %v683 = vadd.f32 0.0, %v682
        %v684 = vpop.f32.mrb[0].mxu0
        %v685 = vadd.f32 0.0, %v684
        %686 = vmatprep.mubr.bf16.mxu0 0
        %687 = vmatmul.mubr.bf16.gmra.mrb[0].mxu0 %v462
        %v688 = vpop.f32.mrb[0].mxu0
        %v689 = vadd.f32 0.0, %v688
        %v690 = vpop.f32.mrb[0].mxu0
        %v691 = vadd.f32 0.0, %v690
        %v692 = vpop.f32.mrb[0].mxu0
        %v693 = vadd.f32 0.0, %v692
        %v694 = vpop.f32.mrb[0].mxu0
        %v695 = vadd.f32 0.0, %v694
        %696 = vmatprep.mubr.bf16.mxu0 0
        %697 = vmatmul.mubr.bf16.gmra.mrb[0].mxu0 %v465
        %v698 = vpop.f32.mrb[0].mxu0
        %v699 = vadd.f32 0.0, %v698
        %v700 = vpop.f32.mrb[0].mxu0
        %v701 = vadd.f32 0.0, %v700
        %v702 = vpop.f32.mrb[0].mxu0
        %v703 = vadd.f32 0.0, %v702
        %v704 = vpop.f32.mrb[0].mxu0
        %v705 = vadd.f32 0.0, %v704
        %706 = vmatprep.mubr.bf16.mxu0 0
        %707 = vmatmul.mubr.bf16.gmra.mrb[0].mxu0 %v468
        %v708 = vpop.f32.mrb[0].mxu0
        %v709 = vadd.f32 0.0, %v708
        %v710 = vpop.f32.mrb[0].mxu0
        %v711 = vadd.f32 0.0, %v710
        %v712 = vpop.f32.mrb[0].mxu0
        %v713 = vadd.f32 0.0, %v712
        %v714 = vpop.f32.mrb[0].mxu0
        %v715 = vadd.f32 0.0, %v714
        %716 = vmatprep.mubr.bf16.mxu0 0
        %717 = vmatmul.mubr.bf16.gmra.mrb[0].mxu0 %v471
        %v718 = vpop.f32.mrb[0].mxu0
        %v719 = vadd.f32 0.0, %v718
        %v720 = vpop.f32.mrb[0].mxu0
        %v721 = vadd.f32 0.0, %v720
        %v722 = vpop.f32.mrb[0].mxu0
        %v723 = vadd.f32 0.0, %v722
        %v724 = vpop.f32.mrb[0].mxu0
        %v725 = vadd.f32 0.0, %v724
        %726 = vmatprep.mubr.bf16.mxu0 0
        %727 = vmatmul.mubr.bf16.gmra.mrb[0].mxu0 %v474
        %v728 = vpop.f32.mrb[0].mxu0
        %v729 = vadd.f32 0.0, %v728
        %v730 = vpop.f32.mrb[0].mxu0
        %v731 = vadd.f32 0.0, %v730
        %v732 = vpop.f32.mrb[0].mxu0
        %v733 = vadd.f32 0.0, %v732
        %v734 = vpop.f32.mrb[0].mxu0
        %v735 = vadd.f32 0.0, %v734
        %736 = vmatprep.mubr.bf16.mxu0 0
        %737 = vmatmul.mubr.bf16.gmra.mrb[0].mxu0 %v477
        %v738 = vpop.f32.mrb[0].mxu0
        %v739 = vadd.f32 0.0, %v738
        %v740 = vpop.f32.mrb[0].mxu0
        %v741 = vadd.f32 0.0, %v740
        %v742 = vpop.f32.mrb[0].mxu0
        %v743 = vadd.f32 0.0, %v742
        %v744 = vpop.f32.mrb[0].mxu0
        %v745 = vadd.f32 0.0, %v744
        %746 = vmatprep.mubr.bf16.mxu0 0
        %747 = vmatmul.mubr.bf16.gmra.mrb[0].mxu0 %v480
        %v748 = vpop.f32.mrb[0].mxu0
        %v749 = vadd.f32 0.0, %v748
        %v750 = vpop.f32.mrb[0].mxu0
        %v751 = vadd.f32 0.0, %v750
        %v752 = vpop.f32.mrb[0].mxu0
        %v753 = vadd.f32 0.0, %v752
        %v754 = vpop.f32.mrb[0].mxu0
        %v755 = vadd.f32 0.0, %v754
        %756 = vmatprep.mubr.bf16.mxu0 0
        %757 = vmatmul.mubr.bf16.gmra.mrb[0].mxu0 %v483
        %v758 = vpop.f32.mrb[0].mxu0
        %v759 = vadd.f32 0.0, %v758
        %v760 = vpop.f32.mrb[0].mxu0
        %v761 = vadd.f32 0.0, %v760
        %v762 = vpop.f32.mrb[0].mxu0
        %v763 = vadd.f32 0.0, %v762
        %v764 = vpop.f32.mrb[0].mxu0
        %v765 = vadd.f32 0.0, %v764
        %766 = vmatprep.mubr.bf16.mxu0 0
        %767 = vmatmul.mubr.bf16.gmra.mrb[0].mxu0 %v486
        %v768 = vpop.f32.mrb[0].mxu0
        %v769 = vadd.f32 0.0, %v768
        %v770 = vpop.f32.mrb[0].mxu0
        %v771 = vadd.f32 0.0, %v770
        %v772 = vpop.f32.mrb[0].mxu0
        %v773 = vadd.f32 0.0, %v772
        %v774 = vpop.f32.mrb[0].mxu0
        %v775 = vadd.f32 0.0, %v774
        %776 = vdwg.mxu0
        %777 = vmatprep.subr.bf16.mxu0 0
        %778 = vmatpush1.bf16.xpose.msra.mxu0 %v537
        %779 = vmatprep.subr.bf16.mxu0 0
        %780 = vmatpush1.bf16.xpose.msra.mxu0 %v540
        %781 = vmatprep.subr.bf16.mxu0 0
        %782 = vmatpush1.bf16.xpose.msra.mxu0 %v543
        %783 = vmatprep.subr.bf16.mxu0 0
        %784 = vmatpush1.bf16.xpose.msra.mxu0 %v546
        %785 = vmatprep.subr.bf16.mxu0 0
        %786 = vmatpush1.bf16.xpose.msra.mxu0 %v549
        %787 = vmatprep.subr.bf16.mxu0 0
        %788 = vmatpush1.bf16.xpose.msra.mxu0 %v552
        %789 = vmatprep.subr.bf16.mxu0 0
        %790 = vmatpush1.bf16.xpose.msra.mxu0 %v555
        %791 = vmatprep.subr.bf16.mxu0 0
        %792 = vmatpush1.bf16.xpose.msra.mxu0 %v558
        %793 = vmatprep.subr.bf16.mxu0 0
        %794 = vmatpush1.bf16.xpose.msra.mxu0 %v561
        %795 = vmatprep.subr.bf16.mxu0 0
        %796 = vmatpush1.bf16.xpose.msra.mxu0 %v564
        %797 = vmatprep.subr.bf16.mxu0 0
        %798 = vmatpush1.bf16.xpose.msra.mxu0 %v567
        %799 = vmatprep.subr.bf16.mxu0 0
        %800 = vmatpush1.bf16.xpose.msra.mxu0 %v570
        %801 = vmatprep.subr.bf16.mxu0 0
        %802 = vmatpush1.bf16.xpose.msra.mxu0 %v573
        %803 = vmatprep.subr.bf16.mxu0 0
        %804 = vmatpush1.bf16.xpose.msra.mxu0 %v576
        %805 = vmatprep.subr.bf16.mxu0 0
        %806 = vmatpush1.bf16.xpose.msra.mxu0 %v579
        %807 = vmatprep.subr.bf16.mxu0 0
        %808 = vmatpush1.bf16.xpose.msra.mxu0 %v582
        %809 = vmatprep.mubr.bf16.mxu0 0
        %810 = vmatmul.mubr.bf16.gmra.mrb[0].mxu0 %v441
        %v811 = vpop.f32.mrb[0].mxu0
        %v812 = vadd.f32 0.0, %v811
        %v813 = vpop.f32.mrb[0].mxu0
        %v814 = vadd.f32 0.0, %v813
        %v815 = vpop.f32.mrb[0].mxu0
        %v816 = vadd.f32 0.0, %v815
        %v817 = vpop.f32.mrb[0].mxu0
        %v818 = vadd.f32 0.0, %v817
        %819 = vmatprep.mubr.bf16.mxu0 0
        %820 = vmatmul.mubr.bf16.gmra.mrb[0].mxu0 %v444
        %v821 = vpop.f32.mrb[0].mxu0
        %v822 = vadd.f32 0.0, %v821
        %v823 = vpop.f32.mrb[0].mxu0
        %v824 = vadd.f32 0.0, %v823
        %v825 = vpop.f32.mrb[0].mxu0
        %v826 = vadd.f32 0.0, %v825
        %v827 = vpop.f32.mrb[0].mxu0
        %v828 = vadd.f32 0.0, %v827
        %829 = vmatprep.mubr.bf16.mxu0 0
        %830 = vmatmul.mubr.bf16.gmra.mrb[0].mxu0 %v447
        %v831 = vpop.f32.mrb[0].mxu0
        %v832 = vadd.f32 0.0, %v831
        %v833 = vpop.f32.mrb[0].mxu0
        %v834 = vadd.f32 0.0, %v833
        %v835 = vpop.f32.mrb[0].mxu0
        %v836 = vadd.f32 0.0, %v835
        %v837 = vpop.f32.mrb[0].mxu0
        %v838 = vadd.f32 0.0, %v837
        %839 = vmatprep.mubr.bf16.mxu0 0
        %840 = vmatmul.mubr.bf16.gmra.mrb[0].mxu0 %v450
        %v841 = vpop.f32.mrb[0].mxu0
        %v842 = vadd.f32 0.0, %v841
        %v843 = vpop.f32.mrb[0].mxu0
        %v844 = vadd.f32 0.0, %v843
        %v845 = vpop.f32.mrb[0].mxu0
        %v846 = vadd.f32 0.0, %v845
        %v847 = vpop.f32.mrb[0].mxu0
        %v848 = vadd.f32 0.0, %v847
        %849 = vmatprep.mubr.bf16.mxu0 0
        %850 = vmatmul.mubr.bf16.gmra.mrb[0].mxu0 %v453
        %v851 = vpop.f32.mrb[0].mxu0
        %v852 = vadd.f32 0.0, %v851
        %v853 = vpop.f32.mrb[0].mxu0
        %v854 = vadd.f32 0.0, %v853
        %v855 = vpop.f32.mrb[0].mxu0
        %v856 = vadd.f32 0.0, %v855
        %v857 = vpop.f32.mrb[0].mxu0
        %v858 = vadd.f32 0.0, %v857
        %859 = vmatprep.mubr.bf16.mxu0 0
        %860 = vmatmul.mubr.bf16.gmra.mrb[0].mxu0 %v456
        %v861 = vpop.f32.mrb[0].mxu0
        %v862 = vadd.f32 0.0, %v861
        %v863 = vpop.f32.mrb[0].mxu0
        %v864 = vadd.f32 0.0, %v863
        %v865 = vpop.f32.mrb[0].mxu0
        %v866 = vadd.f32 0.0, %v865
        %v867 = vpop.f32.mrb[0].mxu0
        %v868 = vadd.f32 0.0, %v867
        %869 = vmatprep.mubr.bf16.mxu0 0
        %870 = vmatmul.mubr.bf16.gmra.mrb[0].mxu0 %v459
        %v871 = vpop.f32.mrb[0].mxu0
        %v872 = vadd.f32 0.0, %v871
        %v873 = vpop.f32.mrb[0].mxu0
        %v874 = vadd.f32 0.0, %v873
        %v875 = vpop.f32.mrb[0].mxu0
        %v876 = vadd.f32 0.0, %v875
        %v877 = vpop.f32.mrb[0].mxu0
        %v878 = vadd.f32 0.0, %v877
        %879 = vmatprep.mubr.bf16.mxu0 0
        %880 = vmatmul.mubr.bf16.gmra.mrb[0].mxu0 %v462
        %v881 = vpop.f32.mrb[0].mxu0
        %v882 = vadd.f32 0.0, %v881
        %v883 = vpop.f32.mrb[0].mxu0
        %v884 = vadd.f32 0.0, %v883
        %v885 = vpop.f32.mrb[0].mxu0
        %v886 = vadd.f32 0.0, %v885
        %v887 = vpop.f32.mrb[0].mxu0
        %v888 = vadd.f32 0.0, %v887
        %889 = vmatprep.mubr.bf16.mxu0 0
        %890 = vmatmul.mubr.bf16.gmra.mrb[0].mxu0 %v465
        %v891 = vpop.f32.mrb[0].mxu0
        %v892 = vadd.f32 0.0, %v891
        %v893 = vpop.f32.mrb[0].mxu0
        %v894 = vadd.f32 0.0, %v893
        %v895 = vpop.f32.mrb[0].mxu0
        %v896 = vadd.f32 0.0, %v895
        %v897 = vpop.f32.mrb[0].mxu0
        %v898 = vadd.f32 0.0, %v897
        %899 = vmatprep.mubr.bf16.mxu0 0
        %900 = vmatmul.mubr.bf16.gmra.mrb[0].mxu0 %v468
        %v901 = vpop.f32.mrb[0].mxu0
        %v902 = vadd.f32 0.0, %v901
        %v903 = vpop.f32.mrb[0].mxu0
        %v904 = vadd.f32 0.0, %v903
        %v905 = vpop.f32.mrb[0].mxu0
        %v906 = vadd.f32 0.0, %v905
        %v907 = vpop.f32.mrb[0].mxu0
        %v908 = vadd.f32 0.0, %v907
        %909 = vmatprep.mubr.bf16.mxu0 0
        %910 = vmatmul.mubr.bf16.gmra.mrb[0].mxu0 %v471
        %v911 = vpop.f32.mrb[0].mxu0
        %v912 = vadd.f32 0.0, %v911
        %v913 = vpop.f32.mrb[0].mxu0
        %v914 = vadd.f32 0.0, %v913
        %v915 = vpop.f32.mrb[0].mxu0
        %v916 = vadd.f32 0.0, %v915
        %v917 = vpop.f32.mrb[0].mxu0
        %v918 = vadd.f32 0.0, %v917
        %919 = vmatprep.mubr.bf16.mxu0 0
        %920 = vmatmul.mubr.bf16.gmra.mrb[0].mxu0 %v474
        %v921 = vpop.f32.mrb[0].mxu0
        %v922 = vadd.f32 0.0, %v921
        %v923 = vpop.f32.mrb[0].mxu0
        %v924 = vadd.f32 0.0, %v923
        %v925 = vpop.f32.mrb[0].mxu0
        %v926 = vadd.f32 0.0, %v925
        %v927 = vpop.f32.mrb[0].mxu0
        %v928 = vadd.f32 0.0, %v927
        %929 = vmatprep.mubr.bf16.mxu0 0
        %930 = vmatmul.mubr.bf16.gmra.mrb[0].mxu0 %v477
        %v931 = vpop.f32.mrb[0].mxu0
        %v932 = vadd.f32 0.0, %v931
        %v933 = vpop.f32.mrb[0].mxu0
        %v934 = vadd.f32 0.0, %v933
        %v935 = vpop.f32.mrb[0].mxu0
        %v936 = vadd.f32 0.0, %v935
        %v937 = vpop.f32.mrb[0].mxu0
        %v938 = vadd.f32 0.0, %v937
        %939 = vmatprep.mubr.bf16.mxu0 0
        %940 = vmatmul.mubr.bf16.gmra.mrb[0].mxu0 %v480
        %v941 = vpop.f32.mrb[0].mxu0
        %v942 = vadd.f32 0.0, %v941
        %v943 = vpop.f32.mrb[0].mxu0
        %v944 = vadd.f32 0.0, %v943
        %v945 = vpop.f32.mrb[0].mxu0
        %v946 = vadd.f32 0.0, %v945
        %v947 = vpop.f32.mrb[0].mxu0
        %v948 = vadd.f32 0.0, %v947
        %949 = vmatprep.mubr.bf16.mxu0 0
        %950 = vmatmul.mubr.bf16.gmra.mrb[0].mxu0 %v483
        %v951 = vpop.f32.mrb[0].mxu0
        %v952 = vadd.f32 0.0, %v951
        %v953 = vpop.f32.mrb[0].mxu0
        %v954 = vadd.f32 0.0, %v953
        %v955 = vpop.f32.mrb[0].mxu0
        %v956 = vadd.f32 0.0, %v955
        %v957 = vpop.f32.mrb[0].mxu0
        %v958 = vadd.f32 0.0, %v957
        %959 = vmatprep.mubr.bf16.mxu0 0
        %960 = vmatmul.mubr.bf16.gmra.mrb[0].mxu0 %v486
        %v961 = vpop.f32.mrb[0].mxu0
        %v962 = vadd.f32 0.0, %v961
        %v963 = vpop.f32.mrb[0].mxu0
        %v964 = vadd.f32 0.0, %v963
        %v965 = vpop.f32.mrb[0].mxu0
        %v966 = vadd.f32 0.0, %v965
        %v967 = vpop.f32.mrb[0].mxu0
        %v968 = vadd.f32 0.0, %v967
        %969 = vdwg.mxu0
        %v970 = vld [vmem:[%s2] sm:$0xf]
        %v971 = vmul.f32 %v619, 2.0
        %v972 = vmul.f32 %v621, 2.0
        %v973 = vmul.f32 %v812, 2.0
        %v974 = vmul.f32 %v814, 2.0
        %v975 = vmul.f32 %v623, 2.0
        %v976 = vmul.f32 %v625, 2.0
        %v977 = vmul.f32 %v816, 2.0
        %v978 = vmul.f32 %v818, 2.0
        %v979 = vmul.f32 %v629, 2.0
        %v980 = vmul.f32 %v631, 2.0
        %v981 = vmul.f32 %v822, 2.0
        %v982 = vmul.f32 %v824, 2.0
        %v983 = vmul.f32 %v633, 2.0
        %v984 = vmul.f32 %v635, 2.0
        %v985 = vmul.f32 %v826, 2.0
        %v986 = vmul.f32 %v828, 2.0
        %v987 = vmul.f32 %v639, 2.0
        %v988 = vmul.f32 %v641, 2.0
        %v989 = vmul.f32 %v832, 2.0
        %v990 = vmul.f32 %v834, 2.0
        %v991 = vmul.f32 %v643, 2.0
        %v992 = vmul.f32 %v645, 2.0
        %v993 = vmul.f32 %v836, 2.0
        %v994 = vmul.f32 %v838, 2.0
        %v995 = vmul.f32 %v649, 2.0
        %v996 = vmul.f32 %v651, 2.0
        %v997 = vmul.f32 %v842, 2.0
        %v998 = vmul.f32 %v844, 2.0
        %v999 = vmul.f32 %v653, 2.0
        %v1000 = vmul.f32 %v655, 2.0
        %v1001 = vmul.f32 %v846, 2.0
        %v1002 = vmul.f32 %v848, 2.0
        %v1003 = vmul.f32 %v659, 2.0
        %v1004 = vmul.f32 %v661, 2.0
        %v1005 = vmul.f32 %v852, 2.0
        %v1006 = vmul.f32 %v854, 2.0
        %v1007 = vmul.f32 %v663, 2.0
        %v1008 = vmul.f32 %v665, 2.0
        %v1009 = vmul.f32 %v856, 2.0
        %v1010 = vmul.f32 %v858, 2.0
        %v1011 = vmul.f32 %v669, 2.0
        %v1012 = vmul.f32 %v671, 2.0
        %v1013 = vmul.f32 %v862, 2.0
        %v1014 = vmul.f32 %v864, 2.0
        %v1015 = vmul.f32 %v673, 2.0
        %v1016 = vmul.f32 %v675, 2.0
        %v1017 = vmul.f32 %v866, 2.0
        %v1018 = vmul.f32 %v868, 2.0
        %v1019 = vmul.f32 %v679, 2.0
        %v1020 = vmul.f32 %v681, 2.0
        %v1021 = vmul.f32 %v872, 2.0
        %v1022 = vmul.f32 %v874, 2.0
        %v1023 = vmul.f32 %v683, 2.0
        %v1024 = vmul.f32 %v685, 2.0
        %v1025 = vmul.f32 %v876, 2.0
        %v1026 = vmul.f32 %v878, 2.0
        %v1027 = vmul.f32 %v689, 2.0
        %v1028 = vmul.f32 %v691, 2.0
        %v1029 = vmul.f32 %v882, 2.0
        %v1030 = vmul.f32 %v884, 2.0
        %v1031 = vmul.f32 %v693, 2.0
        %v1032 = vmul.f32 %v695, 2.0
        %v1033 = vmul.f32 %v886, 2.0
        %v1034 = vmul.f32 %v888, 2.0
        %v1035 = vmul.f32 %v699, 2.0
        %v1036 = vmul.f32 %v701, 2.0
        %v1037 = vmul.f32 %v892, 2.0
        %v1038 = vmul.f32 %v894, 2.0
        %v1039 = vmul.f32 %v703, 2.0
        %v1040 = vmul.f32 %v705, 2.0
        %v1041 = vmul.f32 %v896, 2.0
        %v1042 = vmul.f32 %v898, 2.0
        %v1043 = vmul.f32 %v709, 2.0
        %v1044 = vmul.f32 %v711, 2.0
        %v1045 = vmul.f32 %v902, 2.0
        %v1046 = vmul.f32 %v904, 2.0
        %v1047 = vmul.f32 %v713, 2.0
        %v1048 = vmul.f32 %v715, 2.0
        %v1049 = vmul.f32 %v906, 2.0
        %v1050 = vmul.f32 %v908, 2.0
        %v1051 = vmul.f32 %v719, 2.0
        %v1052 = vmul.f32 %v721, 2.0
        %v1053 = vmul.f32 %v912, 2.0
        %v1054 = vmul.f32 %v914, 2.0
        %v1055 = vmul.f32 %v723, 2.0
        %v1056 = vmul.f32 %v725, 2.0
        %v1057 = vmul.f32 %v916, 2.0
        %v1058 = vmul.f32 %v918, 2.0
        %v1059 = vmul.f32 %v729, 2.0
        %v1060 = vmul.f32 %v731, 2.0
        %v1061 = vmul.f32 %v922, 2.0
        %v1062 = vmul.f32 %v924, 2.0
        %v1063 = vmul.f32 %v733, 2.0
        %v1064 = vmul.f32 %v735, 2.0
        %v1065 = vmul.f32 %v926, 2.0
        %v1066 = vmul.f32 %v928, 2.0
        %v1067 = vmul.f32 %v739, 2.0
        %v1068 = vmul.f32 %v741, 2.0
        %v1069 = vmul.f32 %v932, 2.0
        %v1070 = vmul.f32 %v934, 2.0
        %v1071 = vmul.f32 %v743, 2.0
        %v1072 = vmul.f32 %v745, 2.0
        %v1073 = vmul.f32 %v936, 2.0
        %v1074 = vmul.f32 %v938, 2.0
        %v1075 = vmul.f32 %v749, 2.0
        %v1076 = vmul.f32 %v751, 2.0
        %v1077 = vmul.f32 %v942, 2.0
        %v1078 = vmul.f32 %v944, 2.0
        %v1079 = vmul.f32 %v753, 2.0
        %v1080 = vmul.f32 %v755, 2.0
        %v1081 = vmul.f32 %v946, 2.0
        %v1082 = vmul.f32 %v948, 2.0
        %v1083 = vmul.f32 %v759, 2.0
        %v1084 = vmul.f32 %v761, 2.0
        %v1085 = vmul.f32 %v952, 2.0
        %v1086 = vmul.f32 %v954, 2.0
        %v1087 = vmul.f32 %v763, 2.0
        %v1088 = vmul.f32 %v765, 2.0
        %v1089 = vmul.f32 %v956, 2.0
        %v1090 = vmul.f32 %v958, 2.0
        %v1091 = vmul.f32 %v769, 2.0
        %v1092 = vmul.f32 %v771, 2.0
        %v1093 = vmul.f32 %v962, 2.0
        %v1094 = vmul.f32 %v964, 2.0
        %v1095 = vmul.f32 %v773, 2.0
        %v1096 = vmul.f32 %v775, 2.0
        %v1097 = vmul.f32 %v966, 2.0
        %v1098 = vmul.f32 %v968, 2.0
        %v1100 = vlaneseq
        %v1101 = vshrl.u32 %v1100, 7
        %v1102 = vsub.s32 0, %v1101
        %v1103 = vrot.slane %v970, %v1102
        %v1104 = vlaneseq
        %v1105 = vshrl.u32 %v1104, 7
        %v1106 = vsub.s32 1, %v1105
        %v1107 = vrot.slane %v970, %v1106
        %v1108 = vlaneseq
        %v1109 = vshrl.u32 %v1108, 7
        %v1110 = vsub.s32 2, %v1109
        %v1111 = vrot.slane %v970, %v1110
        %v1112 = vlaneseq
        %v1113 = vshrl.u32 %v1112, 7
        %v1114 = vsub.s32 3, %v1113
        %v1115 = vrot.slane %v970, %v1114
        %v1120 = vsub.f32 %v1103, %v971
        %v1121 = vsub.f32 %v1107, %v972
        %v1122 = vsub.f32 %v1111, %v973
        %v1123 = vsub.f32 %v1115, %v974
        %v1124 = vsub.f32 %v1103, %v975
        %v1125 = vsub.f32 %v1107, %v976
        %v1126 = vsub.f32 %v1111, %v977
        %v1127 = vsub.f32 %v1115, %v978
        %v1128 = vsub.f32 %v1103, %v979
        %v1129 = vsub.f32 %v1107, %v980
        %v1130 = vsub.f32 %v1111, %v981
        %v1131 = vsub.f32 %v1115, %v982
        %v1132 = vsub.f32 %v1103, %v983
        %v1133 = vsub.f32 %v1107, %v984
        %v1134 = vsub.f32 %v1111, %v985
        %v1135 = vsub.f32 %v1115, %v986
        %v1136 = vsub.f32 %v1103, %v987
        %v1137 = vsub.f32 %v1107, %v988
        %v1138 = vsub.f32 %v1111, %v989
        %v1139 = vsub.f32 %v1115, %v990
        %v1140 = vsub.f32 %v1103, %v991
        %v1141 = vsub.f32 %v1107, %v992
        %v1142 = vsub.f32 %v1111, %v993
        %v1143 = vsub.f32 %v1115, %v994
        %v1144 = vsub.f32 %v1103, %v995
        %v1145 = vsub.f32 %v1107, %v996
        %v1146 = vsub.f32 %v1111, %v997
        %v1147 = vsub.f32 %v1115, %v998
        %v1148 = vsub.f32 %v1103, %v999
        %v1149 = vsub.f32 %v1107, %v1000
        %v1150 = vsub.f32 %v1111, %v1001
        %v1151 = vsub.f32 %v1115, %v1002
        %v1152 = vsub.f32 %v1103, %v1003
        %v1153 = vsub.f32 %v1107, %v1004
        %v1154 = vsub.f32 %v1111, %v1005
        %v1155 = vsub.f32 %v1115, %v1006
        %v1156 = vsub.f32 %v1103, %v1007
        %v1157 = vsub.f32 %v1107, %v1008
        %v1158 = vsub.f32 %v1111, %v1009
        %v1159 = vsub.f32 %v1115, %v1010
        %v1160 = vsub.f32 %v1103, %v1011
        %v1161 = vsub.f32 %v1107, %v1012
        %v1162 = vsub.f32 %v1111, %v1013
        %v1163 = vsub.f32 %v1115, %v1014
        %v1164 = vsub.f32 %v1103, %v1015
        %v1165 = vsub.f32 %v1107, %v1016
        %v1166 = vsub.f32 %v1111, %v1017
        %v1167 = vsub.f32 %v1115, %v1018
        %v1168 = vsub.f32 %v1103, %v1019
        %v1169 = vsub.f32 %v1107, %v1020
        %v1170 = vsub.f32 %v1111, %v1021
        %v1171 = vsub.f32 %v1115, %v1022
        %v1172 = vsub.f32 %v1103, %v1023
        %v1173 = vsub.f32 %v1107, %v1024
        %v1174 = vsub.f32 %v1111, %v1025
        %v1175 = vsub.f32 %v1115, %v1026
        %v1176 = vsub.f32 %v1103, %v1027
        %v1177 = vsub.f32 %v1107, %v1028
        %v1178 = vsub.f32 %v1111, %v1029
        %v1179 = vsub.f32 %v1115, %v1030
        %v1180 = vsub.f32 %v1103, %v1031
        %v1181 = vsub.f32 %v1107, %v1032
        %v1182 = vsub.f32 %v1111, %v1033
        %v1183 = vsub.f32 %v1115, %v1034
        %v1184 = vsub.f32 %v1103, %v1035
        %v1185 = vsub.f32 %v1107, %v1036
        %v1186 = vsub.f32 %v1111, %v1037
        %v1187 = vsub.f32 %v1115, %v1038
        %v1188 = vsub.f32 %v1103, %v1039
        %v1189 = vsub.f32 %v1107, %v1040
        %v1190 = vsub.f32 %v1111, %v1041
        %v1191 = vsub.f32 %v1115, %v1042
        %v1192 = vsub.f32 %v1103, %v1043
        %v1193 = vsub.f32 %v1107, %v1044
        %v1194 = vsub.f32 %v1111, %v1045
        %v1195 = vsub.f32 %v1115, %v1046
        %v1196 = vsub.f32 %v1103, %v1047
        %v1197 = vsub.f32 %v1107, %v1048
        %v1198 = vsub.f32 %v1111, %v1049
        %v1199 = vsub.f32 %v1115, %v1050
        %v1200 = vsub.f32 %v1103, %v1051
        %v1201 = vsub.f32 %v1107, %v1052
        %v1202 = vsub.f32 %v1111, %v1053
        %v1203 = vsub.f32 %v1115, %v1054
        %v1204 = vsub.f32 %v1103, %v1055
        %v1205 = vsub.f32 %v1107, %v1056
        %v1206 = vsub.f32 %v1111, %v1057
        %v1207 = vsub.f32 %v1115, %v1058
        %v1208 = vsub.f32 %v1103, %v1059
        %v1209 = vsub.f32 %v1107, %v1060
        %v1210 = vsub.f32 %v1111, %v1061
        %v1211 = vsub.f32 %v1115, %v1062
        %v1212 = vsub.f32 %v1103, %v1063
        %v1213 = vsub.f32 %v1107, %v1064
        %v1214 = vsub.f32 %v1111, %v1065
        %v1215 = vsub.f32 %v1115, %v1066
        %v1216 = vsub.f32 %v1103, %v1067
        %v1217 = vsub.f32 %v1107, %v1068
        %v1218 = vsub.f32 %v1111, %v1069
        %v1219 = vsub.f32 %v1115, %v1070
        %v1220 = vsub.f32 %v1103, %v1071
        %v1221 = vsub.f32 %v1107, %v1072
        %v1222 = vsub.f32 %v1111, %v1073
        %v1223 = vsub.f32 %v1115, %v1074
        %v1224 = vsub.f32 %v1103, %v1075
        %v1225 = vsub.f32 %v1107, %v1076
        %v1226 = vsub.f32 %v1111, %v1077
        %v1227 = vsub.f32 %v1115, %v1078
        %v1228 = vsub.f32 %v1103, %v1079
        %v1229 = vsub.f32 %v1107, %v1080
        %v1230 = vsub.f32 %v1111, %v1081
        %v1231 = vsub.f32 %v1115, %v1082
        %v1232 = vsub.f32 %v1103, %v1083
        %v1233 = vsub.f32 %v1107, %v1084
        %v1234 = vsub.f32 %v1111, %v1085
        %v1235 = vsub.f32 %v1115, %v1086
        %v1236 = vsub.f32 %v1103, %v1087
        %v1237 = vsub.f32 %v1107, %v1088
        %v1238 = vsub.f32 %v1111, %v1089
        %v1239 = vsub.f32 %v1115, %v1090
        %v1240 = vsub.f32 %v1103, %v1091
        %v1241 = vsub.f32 %v1107, %v1092
        %v1242 = vsub.f32 %v1111, %v1093
        %v1243 = vsub.f32 %v1115, %v1094
        %v1244 = vsub.f32 %v1103, %v1095
        %v1245 = vsub.f32 %v1107, %v1096
        %v1246 = vsub.f32 %v1111, %v1097
        %v1247 = vsub.f32 %v1115, %v1098
        %v1248 = vlaneseq
        %v1249 = vand.u32 %v1248, 127
        %v1250 = vadd.s32 %v1249, 128
        %vm1251 = vcmp.le.f32.partialorder %v1120, %v1121
        %v1252 = vsel %vm1251, %v1120, %v1121
        %v1253 = vsel %vm1251, %v1249, %v1250
        %v1254 = vadd.s32 %v1249, 256
        %vm1255 = vcmp.le.f32.partialorder %v1252, %v1122
        %v1256 = vsel %vm1255, %v1252, %v1122
        %v1257 = vsel %vm1255, %v1253, %v1254
        %v1258 = vadd.s32 %v1249, 384
        %vm1259 = vcmp.le.f32.partialorder %v1256, %v1123
        %v1260 = vsel %vm1259, %v1256, %v1123
        %v1261 = vsel %vm1259, %v1257, %v1258
        %1262 = vmin.index.xlane.f32.xlu0 %v1260
        %v1263 = vpop.xlane.xlu0 %1262
        %1264 = vset.pattern.permute.xlu0 %v1263
        %1265 = vperm.xlu0 %1264, %v1261
        %v1266 = vpop.permute.xlu0 %1265
        %vm1267 = vcmp.le.f32.partialorder %v1124, %v1125
        %v1268 = vsel %vm1267, %v1124, %v1125
        %v1269 = vsel %vm1267, %v1249, %v1250
        %vm1270 = vcmp.le.f32.partialorder %v1268, %v1126
        %v1271 = vsel %vm1270, %v1268, %v1126
        %v1272 = vsel %vm1270, %v1269, %v1254
        %vm1273 = vcmp.le.f32.partialorder %v1271, %v1127
        %v1274 = vsel %vm1273, %v1271, %v1127
        %v1275 = vsel %vm1273, %v1272, %v1258
        %1276 = vmin.index.xlane.f32.xlu0 %v1274
        %v1277 = vpop.xlane.xlu0 %1276
        %1278 = vset.pattern.permute.xlu0 %v1277
        %1279 = vperm.xlu0 %1278, %v1275
        %v1280 = vpop.permute.xlu0 %1279
        %vm1281 = vcmp.le.f32.partialorder %v1128, %v1129
        %v1282 = vsel %vm1281, %v1128, %v1129
        %v1283 = vsel %vm1281, %v1249, %v1250
        %vm1284 = vcmp.le.f32.partialorder %v1282, %v1130
        %v1285 = vsel %vm1284, %v1282, %v1130
        %v1286 = vsel %vm1284, %v1283, %v1254
        %vm1287 = vcmp.le.f32.partialorder %v1285, %v1131
        %v1288 = vsel %vm1287, %v1285, %v1131
        %v1289 = vsel %vm1287, %v1286, %v1258
        %1290 = vmin.index.xlane.f32.xlu0 %v1288
        %v1291 = vpop.xlane.xlu0 %1290
        %1292 = vset.pattern.permute.xlu0 %v1291
        %1293 = vperm.xlu0 %1292, %v1289
        %v1294 = vpop.permute.xlu0 %1293
        %vm1295 = vcmp.le.f32.partialorder %v1132, %v1133
        %v1296 = vsel %vm1295, %v1132, %v1133
        %v1297 = vsel %vm1295, %v1249, %v1250
        %vm1298 = vcmp.le.f32.partialorder %v1296, %v1134
        %v1299 = vsel %vm1298, %v1296, %v1134
        %v1300 = vsel %vm1298, %v1297, %v1254
        %vm1301 = vcmp.le.f32.partialorder %v1299, %v1135
        %v1302 = vsel %vm1301, %v1299, %v1135
        %v1303 = vsel %vm1301, %v1300, %v1258
        %1304 = vmin.index.xlane.f32.xlu0 %v1302
        %v1305 = vpop.xlane.xlu0 %1304
        %1306 = vset.pattern.permute.xlu0 %v1305
        %1307 = vperm.xlu0 %1306, %v1303
        %v1308 = vpop.permute.xlu0 %1307
        %vm1309 = vcmp.le.f32.partialorder %v1136, %v1137
        %v1310 = vsel %vm1309, %v1136, %v1137
        %v1311 = vsel %vm1309, %v1249, %v1250
        %vm1312 = vcmp.le.f32.partialorder %v1310, %v1138
        %v1313 = vsel %vm1312, %v1310, %v1138
        %v1314 = vsel %vm1312, %v1311, %v1254
        %vm1315 = vcmp.le.f32.partialorder %v1313, %v1139
        %v1316 = vsel %vm1315, %v1313, %v1139
        %v1317 = vsel %vm1315, %v1314, %v1258
        %1318 = vmin.index.xlane.f32.xlu0 %v1316
        %v1319 = vpop.xlane.xlu0 %1318
        %1320 = vset.pattern.permute.xlu0 %v1319
        %1321 = vperm.xlu0 %1320, %v1317
        %v1322 = vpop.permute.xlu0 %1321
        %vm1323 = vcmp.le.f32.partialorder %v1140, %v1141
        %v1324 = vsel %vm1323, %v1140, %v1141
        %v1325 = vsel %vm1323, %v1249, %v1250
        %vm1326 = vcmp.le.f32.partialorder %v1324, %v1142
        %v1327 = vsel %vm1326, %v1324, %v1142
        %v1328 = vsel %vm1326, %v1325, %v1254
        %vm1329 = vcmp.le.f32.partialorder %v1327, %v1143
        %v1330 = vsel %vm1329, %v1327, %v1143
        %v1331 = vsel %vm1329, %v1328, %v1258
        %1332 = vmin.index.xlane.f32.xlu0 %v1330
        %v1333 = vpop.xlane.xlu0 %1332
        %1334 = vset.pattern.permute.xlu0 %v1333
        %1335 = vperm.xlu0 %1334, %v1331
        %v1336 = vpop.permute.xlu0 %1335
        %vm1337 = vcmp.le.f32.partialorder %v1144, %v1145
        %v1338 = vsel %vm1337, %v1144, %v1145
        %v1339 = vsel %vm1337, %v1249, %v1250
        %vm1340 = vcmp.le.f32.partialorder %v1338, %v1146
        %v1341 = vsel %vm1340, %v1338, %v1146
        %v1342 = vsel %vm1340, %v1339, %v1254
        %vm1343 = vcmp.le.f32.partialorder %v1341, %v1147
        %v1344 = vsel %vm1343, %v1341, %v1147
        %v1345 = vsel %vm1343, %v1342, %v1258
        %1346 = vmin.index.xlane.f32.xlu0 %v1344
        %v1347 = vpop.xlane.xlu0 %1346
        %1348 = vset.pattern.permute.xlu0 %v1347
        %1349 = vperm.xlu0 %1348, %v1345
        %v1350 = vpop.permute.xlu0 %1349
        %vm1351 = vcmp.le.f32.partialorder %v1148, %v1149
        %v1352 = vsel %vm1351, %v1148, %v1149
        %v1353 = vsel %vm1351, %v1249, %v1250
        %vm1354 = vcmp.le.f32.partialorder %v1352, %v1150
        %v1355 = vsel %vm1354, %v1352, %v1150
        %v1356 = vsel %vm1354, %v1353, %v1254
        %vm1357 = vcmp.le.f32.partialorder %v1355, %v1151
        %v1358 = vsel %vm1357, %v1355, %v1151
        %v1359 = vsel %vm1357, %v1356, %v1258
        %1360 = vmin.index.xlane.f32.xlu0 %v1358
        %v1361 = vpop.xlane.xlu0 %1360
        %1362 = vset.pattern.permute.xlu0 %v1361
        %1363 = vperm.xlu0 %1362, %v1359
        %v1364 = vpop.permute.xlu0 %1363
        %vm1365 = vcmp.le.f32.partialorder %v1152, %v1153
        %v1366 = vsel %vm1365, %v1152, %v1153
        %v1367 = vsel %vm1365, %v1249, %v1250
        %vm1368 = vcmp.le.f32.partialorder %v1366, %v1154
        %v1369 = vsel %vm1368, %v1366, %v1154
        %v1370 = vsel %vm1368, %v1367, %v1254
        %vm1371 = vcmp.le.f32.partialorder %v1369, %v1155
        %v1372 = vsel %vm1371, %v1369, %v1155
        %v1373 = vsel %vm1371, %v1370, %v1258
        %1374 = vmin.index.xlane.f32.xlu0 %v1372
        %v1375 = vpop.xlane.xlu0 %1374
        %1376 = vset.pattern.permute.xlu0 %v1375
        %1377 = vperm.xlu0 %1376, %v1373
        %v1378 = vpop.permute.xlu0 %1377
        %vm1379 = vcmp.le.f32.partialorder %v1156, %v1157
        %v1380 = vsel %vm1379, %v1156, %v1157
        %v1381 = vsel %vm1379, %v1249, %v1250
        %vm1382 = vcmp.le.f32.partialorder %v1380, %v1158
        %v1383 = vsel %vm1382, %v1380, %v1158
        %v1384 = vsel %vm1382, %v1381, %v1254
        %vm1385 = vcmp.le.f32.partialorder %v1383, %v1159
        %v1386 = vsel %vm1385, %v1383, %v1159
        %v1387 = vsel %vm1385, %v1384, %v1258
        %1388 = vmin.index.xlane.f32.xlu0 %v1386
        %v1389 = vpop.xlane.xlu0 %1388
        %1390 = vset.pattern.permute.xlu0 %v1389
        %1391 = vperm.xlu0 %1390, %v1387
        %v1392 = vpop.permute.xlu0 %1391
        %vm1393 = vcmp.le.f32.partialorder %v1160, %v1161
        %v1394 = vsel %vm1393, %v1160, %v1161
        %v1395 = vsel %vm1393, %v1249, %v1250
        %vm1396 = vcmp.le.f32.partialorder %v1394, %v1162
        %v1397 = vsel %vm1396, %v1394, %v1162
        %v1398 = vsel %vm1396, %v1395, %v1254
        %vm1399 = vcmp.le.f32.partialorder %v1397, %v1163
        %v1400 = vsel %vm1399, %v1397, %v1163
        %v1401 = vsel %vm1399, %v1398, %v1258
        %1402 = vmin.index.xlane.f32.xlu0 %v1400
        %v1403 = vpop.xlane.xlu0 %1402
        %1404 = vset.pattern.permute.xlu0 %v1403
        %1405 = vperm.xlu0 %1404, %v1401
        %v1406 = vpop.permute.xlu0 %1405
        %vm1407 = vcmp.le.f32.partialorder %v1164, %v1165
        %v1408 = vsel %vm1407, %v1164, %v1165
        %v1409 = vsel %vm1407, %v1249, %v1250
        %vm1410 = vcmp.le.f32.partialorder %v1408, %v1166
        %v1411 = vsel %vm1410, %v1408, %v1166
        %v1412 = vsel %vm1410, %v1409, %v1254
        %vm1413 = vcmp.le.f32.partialorder %v1411, %v1167
        %v1414 = vsel %vm1413, %v1411, %v1167
        %v1415 = vsel %vm1413, %v1412, %v1258
        %1416 = vmin.index.xlane.f32.xlu0 %v1414
        %v1417 = vpop.xlane.xlu0 %1416
        %1418 = vset.pattern.permute.xlu0 %v1417
        %1419 = vperm.xlu0 %1418, %v1415
        %v1420 = vpop.permute.xlu0 %1419
        %vm1421 = vcmp.le.f32.partialorder %v1168, %v1169
        %v1422 = vsel %vm1421, %v1168, %v1169
        %v1423 = vsel %vm1421, %v1249, %v1250
        %vm1424 = vcmp.le.f32.partialorder %v1422, %v1170
        %v1425 = vsel %vm1424, %v1422, %v1170
        %v1426 = vsel %vm1424, %v1423, %v1254
        %vm1427 = vcmp.le.f32.partialorder %v1425, %v1171
        %v1428 = vsel %vm1427, %v1425, %v1171
        %v1429 = vsel %vm1427, %v1426, %v1258
        %1430 = vmin.index.xlane.f32.xlu0 %v1428
        %v1431 = vpop.xlane.xlu0 %1430
        %1432 = vset.pattern.permute.xlu0 %v1431
        %1433 = vperm.xlu0 %1432, %v1429
        %v1434 = vpop.permute.xlu0 %1433
        %vm1435 = vcmp.le.f32.partialorder %v1172, %v1173
        %v1436 = vsel %vm1435, %v1172, %v1173
        %v1437 = vsel %vm1435, %v1249, %v1250
        %vm1438 = vcmp.le.f32.partialorder %v1436, %v1174
        %v1439 = vsel %vm1438, %v1436, %v1174
        %v1440 = vsel %vm1438, %v1437, %v1254
        %vm1441 = vcmp.le.f32.partialorder %v1439, %v1175
        %v1442 = vsel %vm1441, %v1439, %v1175
        %v1443 = vsel %vm1441, %v1440, %v1258
        %1444 = vmin.index.xlane.f32.xlu0 %v1442
        %v1445 = vpop.xlane.xlu0 %1444
        %1446 = vset.pattern.permute.xlu0 %v1445
        %1447 = vperm.xlu0 %1446, %v1443
        %v1448 = vpop.permute.xlu0 %1447
        %vm1449 = vcmp.le.f32.partialorder %v1176, %v1177
        %v1450 = vsel %vm1449, %v1176, %v1177
        %v1451 = vsel %vm1449, %v1249, %v1250
        %vm1452 = vcmp.le.f32.partialorder %v1450, %v1178
        %v1453 = vsel %vm1452, %v1450, %v1178
        %v1454 = vsel %vm1452, %v1451, %v1254
        %vm1455 = vcmp.le.f32.partialorder %v1453, %v1179
        %v1456 = vsel %vm1455, %v1453, %v1179
        %v1457 = vsel %vm1455, %v1454, %v1258
        %1458 = vmin.index.xlane.f32.xlu0 %v1456
        %v1459 = vpop.xlane.xlu0 %1458
        %1460 = vset.pattern.permute.xlu0 %v1459
        %1461 = vperm.xlu0 %1460, %v1457
        %v1462 = vpop.permute.xlu0 %1461
        %vm1463 = vcmp.le.f32.partialorder %v1180, %v1181
        %v1464 = vsel %vm1463, %v1180, %v1181
        %v1465 = vsel %vm1463, %v1249, %v1250
        %vm1466 = vcmp.le.f32.partialorder %v1464, %v1182
        %v1467 = vsel %vm1466, %v1464, %v1182
        %v1468 = vsel %vm1466, %v1465, %v1254
        %vm1469 = vcmp.le.f32.partialorder %v1467, %v1183
        %v1470 = vsel %vm1469, %v1467, %v1183
        %v1471 = vsel %vm1469, %v1468, %v1258
        %1472 = vmin.index.xlane.f32.xlu0 %v1470
        %v1473 = vpop.xlane.xlu0 %1472
        %1474 = vset.pattern.permute.xlu0 %v1473
        %1475 = vperm.xlu0 %1474, %v1471
        %v1476 = vpop.permute.xlu0 %1475
        %vm1477 = vcmp.le.f32.partialorder %v1184, %v1185
        %v1478 = vsel %vm1477, %v1184, %v1185
        %v1479 = vsel %vm1477, %v1249, %v1250
        %vm1480 = vcmp.le.f32.partialorder %v1478, %v1186
        %v1481 = vsel %vm1480, %v1478, %v1186
        %v1482 = vsel %vm1480, %v1479, %v1254
        %vm1483 = vcmp.le.f32.partialorder %v1481, %v1187
        %v1484 = vsel %vm1483, %v1481, %v1187
        %v1485 = vsel %vm1483, %v1482, %v1258
        %1486 = vmin.index.xlane.f32.xlu0 %v1484
        %v1487 = vpop.xlane.xlu0 %1486
        %1488 = vset.pattern.permute.xlu0 %v1487
        %1489 = vperm.xlu0 %1488, %v1485
        %v1490 = vpop.permute.xlu0 %1489
        %vm1491 = vcmp.le.f32.partialorder %v1188, %v1189
        %v1492 = vsel %vm1491, %v1188, %v1189
        %v1493 = vsel %vm1491, %v1249, %v1250
        %vm1494 = vcmp.le.f32.partialorder %v1492, %v1190
        %v1495 = vsel %vm1494, %v1492, %v1190
        %v1496 = vsel %vm1494, %v1493, %v1254
        %vm1497 = vcmp.le.f32.partialorder %v1495, %v1191
        %v1498 = vsel %vm1497, %v1495, %v1191
        %v1499 = vsel %vm1497, %v1496, %v1258
        %1500 = vmin.index.xlane.f32.xlu0 %v1498
        %v1501 = vpop.xlane.xlu0 %1500
        %1502 = vset.pattern.permute.xlu0 %v1501
        %1503 = vperm.xlu0 %1502, %v1499
        %v1504 = vpop.permute.xlu0 %1503
        %vm1505 = vcmp.le.f32.partialorder %v1192, %v1193
        %v1506 = vsel %vm1505, %v1192, %v1193
        %v1507 = vsel %vm1505, %v1249, %v1250
        %vm1508 = vcmp.le.f32.partialorder %v1506, %v1194
        %v1509 = vsel %vm1508, %v1506, %v1194
        %v1510 = vsel %vm1508, %v1507, %v1254
        %vm1511 = vcmp.le.f32.partialorder %v1509, %v1195
        %v1512 = vsel %vm1511, %v1509, %v1195
        %v1513 = vsel %vm1511, %v1510, %v1258
        %1514 = vmin.index.xlane.f32.xlu0 %v1512
        %v1515 = vpop.xlane.xlu0 %1514
        %1516 = vset.pattern.permute.xlu0 %v1515
        %1517 = vperm.xlu0 %1516, %v1513
        %v1518 = vpop.permute.xlu0 %1517
        %vm1519 = vcmp.le.f32.partialorder %v1196, %v1197
        %v1520 = vsel %vm1519, %v1196, %v1197
        %v1521 = vsel %vm1519, %v1249, %v1250
        %vm1522 = vcmp.le.f32.partialorder %v1520, %v1198
        %v1523 = vsel %vm1522, %v1520, %v1198
        %v1524 = vsel %vm1522, %v1521, %v1254
        %vm1525 = vcmp.le.f32.partialorder %v1523, %v1199
        %v1526 = vsel %vm1525, %v1523, %v1199
        %v1527 = vsel %vm1525, %v1524, %v1258
        %1528 = vmin.index.xlane.f32.xlu0 %v1526
        %v1529 = vpop.xlane.xlu0 %1528
        %1530 = vset.pattern.permute.xlu0 %v1529
        %1531 = vperm.xlu0 %1530, %v1527
        %v1532 = vpop.permute.xlu0 %1531
        %vm1533 = vcmp.le.f32.partialorder %v1200, %v1201
        %v1534 = vsel %vm1533, %v1200, %v1201
        %v1535 = vsel %vm1533, %v1249, %v1250
        %vm1536 = vcmp.le.f32.partialorder %v1534, %v1202
        %v1537 = vsel %vm1536, %v1534, %v1202
        %v1538 = vsel %vm1536, %v1535, %v1254
        %vm1539 = vcmp.le.f32.partialorder %v1537, %v1203
        %v1540 = vsel %vm1539, %v1537, %v1203
        %v1541 = vsel %vm1539, %v1538, %v1258
        %1542 = vmin.index.xlane.f32.xlu0 %v1540
        %v1543 = vpop.xlane.xlu0 %1542
        %1544 = vset.pattern.permute.xlu0 %v1543
        %1545 = vperm.xlu0 %1544, %v1541
        %v1546 = vpop.permute.xlu0 %1545
        %vm1547 = vcmp.le.f32.partialorder %v1204, %v1205
        %v1548 = vsel %vm1547, %v1204, %v1205
        %v1549 = vsel %vm1547, %v1249, %v1250
        %vm1550 = vcmp.le.f32.partialorder %v1548, %v1206
        %v1551 = vsel %vm1550, %v1548, %v1206
        %v1552 = vsel %vm1550, %v1549, %v1254
        %vm1553 = vcmp.le.f32.partialorder %v1551, %v1207
        %v1554 = vsel %vm1553, %v1551, %v1207
        %v1555 = vsel %vm1553, %v1552, %v1258
        %1556 = vmin.index.xlane.f32.xlu0 %v1554
        %v1557 = vpop.xlane.xlu0 %1556
        %1558 = vset.pattern.permute.xlu0 %v1557
        %1559 = vperm.xlu0 %1558, %v1555
        %v1560 = vpop.permute.xlu0 %1559
        %vm1561 = vcmp.le.f32.partialorder %v1208, %v1209
        %v1562 = vsel %vm1561, %v1208, %v1209
        %v1563 = vsel %vm1561, %v1249, %v1250
        %vm1564 = vcmp.le.f32.partialorder %v1562, %v1210
        %v1565 = vsel %vm1564, %v1562, %v1210
        %v1566 = vsel %vm1564, %v1563, %v1254
        %vm1567 = vcmp.le.f32.partialorder %v1565, %v1211
        %v1568 = vsel %vm1567, %v1565, %v1211
        %v1569 = vsel %vm1567, %v1566, %v1258
        %1570 = vmin.index.xlane.f32.xlu0 %v1568
        %v1571 = vpop.xlane.xlu0 %1570
        %1572 = vset.pattern.permute.xlu0 %v1571
        %1573 = vperm.xlu0 %1572, %v1569
        %v1574 = vpop.permute.xlu0 %1573
        %vm1575 = vcmp.le.f32.partialorder %v1212, %v1213
        %v1576 = vsel %vm1575, %v1212, %v1213
        %v1577 = vsel %vm1575, %v1249, %v1250
        %vm1578 = vcmp.le.f32.partialorder %v1576, %v1214
        %v1579 = vsel %vm1578, %v1576, %v1214
        %v1580 = vsel %vm1578, %v1577, %v1254
        %vm1581 = vcmp.le.f32.partialorder %v1579, %v1215
        %v1582 = vsel %vm1581, %v1579, %v1215
        %v1583 = vsel %vm1581, %v1580, %v1258
        %1584 = vmin.index.xlane.f32.xlu0 %v1582
        %v1585 = vpop.xlane.xlu0 %1584
        %1586 = vset.pattern.permute.xlu0 %v1585
        %1587 = vperm.xlu0 %1586, %v1583
        %v1588 = vpop.permute.xlu0 %1587
        %vm1589 = vcmp.le.f32.partialorder %v1216, %v1217
        %v1590 = vsel %vm1589, %v1216, %v1217
        %v1591 = vsel %vm1589, %v1249, %v1250
        %vm1592 = vcmp.le.f32.partialorder %v1590, %v1218
        %v1593 = vsel %vm1592, %v1590, %v1218
        %v1594 = vsel %vm1592, %v1591, %v1254
        %vm1595 = vcmp.le.f32.partialorder %v1593, %v1219
        %v1596 = vsel %vm1595, %v1593, %v1219
        %v1597 = vsel %vm1595, %v1594, %v1258
        %1598 = vmin.index.xlane.f32.xlu0 %v1596
        %v1599 = vpop.xlane.xlu0 %1598
        %1600 = vset.pattern.permute.xlu0 %v1599
        %1601 = vperm.xlu0 %1600, %v1597
        %v1602 = vpop.permute.xlu0 %1601
        %vm1603 = vcmp.le.f32.partialorder %v1220, %v1221
        %v1604 = vsel %vm1603, %v1220, %v1221
        %v1605 = vsel %vm1603, %v1249, %v1250
        %vm1606 = vcmp.le.f32.partialorder %v1604, %v1222
        %v1607 = vsel %vm1606, %v1604, %v1222
        %v1608 = vsel %vm1606, %v1605, %v1254
        %vm1609 = vcmp.le.f32.partialorder %v1607, %v1223
        %v1610 = vsel %vm1609, %v1607, %v1223
        %v1611 = vsel %vm1609, %v1608, %v1258
        %1612 = vmin.index.xlane.f32.xlu0 %v1610
        %v1613 = vpop.xlane.xlu0 %1612
        %1614 = vset.pattern.permute.xlu0 %v1613
        %1615 = vperm.xlu0 %1614, %v1611
        %v1616 = vpop.permute.xlu0 %1615
        %vm1617 = vcmp.le.f32.partialorder %v1224, %v1225
        %v1618 = vsel %vm1617, %v1224, %v1225
        %v1619 = vsel %vm1617, %v1249, %v1250
        %vm1620 = vcmp.le.f32.partialorder %v1618, %v1226
        %v1621 = vsel %vm1620, %v1618, %v1226
        %v1622 = vsel %vm1620, %v1619, %v1254
        %vm1623 = vcmp.le.f32.partialorder %v1621, %v1227
        %v1624 = vsel %vm1623, %v1621, %v1227
        %v1625 = vsel %vm1623, %v1622, %v1258
        %1626 = vmin.index.xlane.f32.xlu0 %v1624
        %v1627 = vpop.xlane.xlu0 %1626
        %1628 = vset.pattern.permute.xlu0 %v1627
        %1629 = vperm.xlu0 %1628, %v1625
        %v1630 = vpop.permute.xlu0 %1629
        %vm1631 = vcmp.le.f32.partialorder %v1228, %v1229
        %v1632 = vsel %vm1631, %v1228, %v1229
        %v1633 = vsel %vm1631, %v1249, %v1250
        %vm1634 = vcmp.le.f32.partialorder %v1632, %v1230
        %v1635 = vsel %vm1634, %v1632, %v1230
        %v1636 = vsel %vm1634, %v1633, %v1254
        %vm1637 = vcmp.le.f32.partialorder %v1635, %v1231
        %v1638 = vsel %vm1637, %v1635, %v1231
        %v1639 = vsel %vm1637, %v1636, %v1258
        %1640 = vmin.index.xlane.f32.xlu0 %v1638
        %v1641 = vpop.xlane.xlu0 %1640
        %1642 = vset.pattern.permute.xlu0 %v1641
        %1643 = vperm.xlu0 %1642, %v1639
        %v1644 = vpop.permute.xlu0 %1643
        %vm1645 = vcmp.le.f32.partialorder %v1232, %v1233
        %v1646 = vsel %vm1645, %v1232, %v1233
        %v1647 = vsel %vm1645, %v1249, %v1250
        %vm1648 = vcmp.le.f32.partialorder %v1646, %v1234
        %v1649 = vsel %vm1648, %v1646, %v1234
        %v1650 = vsel %vm1648, %v1647, %v1254
        %vm1651 = vcmp.le.f32.partialorder %v1649, %v1235
        %v1652 = vsel %vm1651, %v1649, %v1235
        %v1653 = vsel %vm1651, %v1650, %v1258
        %1654 = vmin.index.xlane.f32.xlu0 %v1652
        %v1655 = vpop.xlane.xlu0 %1654
        %1656 = vset.pattern.permute.xlu0 %v1655
        %1657 = vperm.xlu0 %1656, %v1653
        %v1658 = vpop.permute.xlu0 %1657
        %vm1659 = vcmp.le.f32.partialorder %v1236, %v1237
        %v1660 = vsel %vm1659, %v1236, %v1237
        %v1661 = vsel %vm1659, %v1249, %v1250
        %vm1662 = vcmp.le.f32.partialorder %v1660, %v1238
        %v1663 = vsel %vm1662, %v1660, %v1238
        %v1664 = vsel %vm1662, %v1661, %v1254
        %vm1665 = vcmp.le.f32.partialorder %v1663, %v1239
        %v1666 = vsel %vm1665, %v1663, %v1239
        %v1667 = vsel %vm1665, %v1664, %v1258
        %1668 = vmin.index.xlane.f32.xlu0 %v1666
        %v1669 = vpop.xlane.xlu0 %1668
        %1670 = vset.pattern.permute.xlu0 %v1669
        %1671 = vperm.xlu0 %1670, %v1667
        %v1672 = vpop.permute.xlu0 %1671
        %vm1673 = vcmp.le.f32.partialorder %v1240, %v1241
        %v1674 = vsel %vm1673, %v1240, %v1241
        %v1675 = vsel %vm1673, %v1249, %v1250
        %vm1676 = vcmp.le.f32.partialorder %v1674, %v1242
        %v1677 = vsel %vm1676, %v1674, %v1242
        %v1678 = vsel %vm1676, %v1675, %v1254
        %vm1679 = vcmp.le.f32.partialorder %v1677, %v1243
        %v1680 = vsel %vm1679, %v1677, %v1243
        %v1681 = vsel %vm1679, %v1678, %v1258
        %1682 = vmin.index.xlane.f32.xlu0 %v1680
        %v1683 = vpop.xlane.xlu0 %1682
        %1684 = vset.pattern.permute.xlu0 %v1683
        %1685 = vperm.xlu0 %1684, %v1681
        %v1686 = vpop.permute.xlu0 %1685
        %vm1687 = vcmp.le.f32.partialorder %v1244, %v1245
        %v1688 = vsel %vm1687, %v1244, %v1245
        %v1689 = vsel %vm1687, %v1249, %v1250
        %vm1690 = vcmp.le.f32.partialorder %v1688, %v1246
        %v1691 = vsel %vm1690, %v1688, %v1246
        %v1692 = vsel %vm1690, %v1689, %v1254
        %vm1693 = vcmp.le.f32.partialorder %v1691, %v1247
        %v1694 = vsel %vm1693, %v1691, %v1247
        %v1695 = vsel %vm1693, %v1692, %v1258
        %1696 = vmin.index.xlane.f32.xlu0 %v1694
        %v1697 = vpop.xlane.xlu0 %1696
        %1698 = vset.pattern.permute.xlu0 %v1697
        %1699 = vperm.xlu0 %1698, %v1695
        %v1700 = vpop.permute.xlu0 %1699
        %vm1701 = vcmp.eq.s32.totalorder %v1249, %v1266
        %vm1702 = vcmp.eq.s32.totalorder %v1250, %v1266
        %vm1703 = vcmp.eq.s32.totalorder %v1254, %v1266
        %vm1704 = vcmp.eq.s32.totalorder %v1258, %v1266
        %vm1705 = vcmp.eq.s32.totalorder %v1249, %v1280
        %vm1706 = vcmp.eq.s32.totalorder %v1250, %v1280
        %vm1707 = vcmp.eq.s32.totalorder %v1254, %v1280
        %vm1708 = vcmp.eq.s32.totalorder %v1258, %v1280
        %vm1709 = vcmp.eq.s32.totalorder %v1249, %v1294
        %vm1710 = vcmp.eq.s32.totalorder %v1250, %v1294
        %vm1711 = vcmp.eq.s32.totalorder %v1254, %v1294
        %vm1712 = vcmp.eq.s32.totalorder %v1258, %v1294
        %vm1713 = vcmp.eq.s32.totalorder %v1249, %v1308
        %vm1714 = vcmp.eq.s32.totalorder %v1250, %v1308
        %vm1715 = vcmp.eq.s32.totalorder %v1254, %v1308
        %vm1716 = vcmp.eq.s32.totalorder %v1258, %v1308
        %vm1717 = vcmp.eq.s32.totalorder %v1249, %v1322
        %vm1718 = vcmp.eq.s32.totalorder %v1250, %v1322
        %vm1719 = vcmp.eq.s32.totalorder %v1254, %v1322
        %vm1720 = vcmp.eq.s32.totalorder %v1258, %v1322
        %vm1721 = vcmp.eq.s32.totalorder %v1249, %v1336
        %vm1722 = vcmp.eq.s32.totalorder %v1250, %v1336
        %vm1723 = vcmp.eq.s32.totalorder %v1254, %v1336
        %vm1724 = vcmp.eq.s32.totalorder %v1258, %v1336
        %vm1725 = vcmp.eq.s32.totalorder %v1249, %v1350
        %vm1726 = vcmp.eq.s32.totalorder %v1250, %v1350
        %vm1727 = vcmp.eq.s32.totalorder %v1254, %v1350
        %vm1728 = vcmp.eq.s32.totalorder %v1258, %v1350
        %vm1729 = vcmp.eq.s32.totalorder %v1249, %v1364
        %vm1730 = vcmp.eq.s32.totalorder %v1250, %v1364
        %vm1731 = vcmp.eq.s32.totalorder %v1254, %v1364
        %vm1732 = vcmp.eq.s32.totalorder %v1258, %v1364
        %vm1733 = vcmp.eq.s32.totalorder %v1249, %v1378
        %vm1734 = vcmp.eq.s32.totalorder %v1250, %v1378
        %vm1735 = vcmp.eq.s32.totalorder %v1254, %v1378
        %vm1736 = vcmp.eq.s32.totalorder %v1258, %v1378
        %vm1737 = vcmp.eq.s32.totalorder %v1249, %v1392
        %vm1738 = vcmp.eq.s32.totalorder %v1250, %v1392
        %vm1739 = vcmp.eq.s32.totalorder %v1254, %v1392
        %vm1740 = vcmp.eq.s32.totalorder %v1258, %v1392
        %vm1741 = vcmp.eq.s32.totalorder %v1249, %v1406
        %vm1742 = vcmp.eq.s32.totalorder %v1250, %v1406
        %vm1743 = vcmp.eq.s32.totalorder %v1254, %v1406
        %vm1744 = vcmp.eq.s32.totalorder %v1258, %v1406
        %vm1745 = vcmp.eq.s32.totalorder %v1249, %v1420
        %vm1746 = vcmp.eq.s32.totalorder %v1250, %v1420
        %vm1747 = vcmp.eq.s32.totalorder %v1254, %v1420
        %vm1748 = vcmp.eq.s32.totalorder %v1258, %v1420
        %vm1749 = vcmp.eq.s32.totalorder %v1249, %v1434
        %vm1750 = vcmp.eq.s32.totalorder %v1250, %v1434
        %vm1751 = vcmp.eq.s32.totalorder %v1254, %v1434
        %vm1752 = vcmp.eq.s32.totalorder %v1258, %v1434
        %vm1753 = vcmp.eq.s32.totalorder %v1249, %v1448
        %vm1754 = vcmp.eq.s32.totalorder %v1250, %v1448
        %vm1755 = vcmp.eq.s32.totalorder %v1254, %v1448
        %vm1756 = vcmp.eq.s32.totalorder %v1258, %v1448
        %vm1757 = vcmp.eq.s32.totalorder %v1249, %v1462
        %vm1758 = vcmp.eq.s32.totalorder %v1250, %v1462
        %vm1759 = vcmp.eq.s32.totalorder %v1254, %v1462
        %vm1760 = vcmp.eq.s32.totalorder %v1258, %v1462
        %vm1761 = vcmp.eq.s32.totalorder %v1249, %v1476
        %vm1762 = vcmp.eq.s32.totalorder %v1250, %v1476
        %vm1763 = vcmp.eq.s32.totalorder %v1254, %v1476
        %vm1764 = vcmp.eq.s32.totalorder %v1258, %v1476
        %vm1765 = vcmp.eq.s32.totalorder %v1249, %v1490
        %vm1766 = vcmp.eq.s32.totalorder %v1250, %v1490
        %vm1767 = vcmp.eq.s32.totalorder %v1254, %v1490
        %vm1768 = vcmp.eq.s32.totalorder %v1258, %v1490
        %vm1769 = vcmp.eq.s32.totalorder %v1249, %v1504
        %vm1770 = vcmp.eq.s32.totalorder %v1250, %v1504
        %vm1771 = vcmp.eq.s32.totalorder %v1254, %v1504
        %vm1772 = vcmp.eq.s32.totalorder %v1258, %v1504
        %vm1773 = vcmp.eq.s32.totalorder %v1249, %v1518
        %vm1774 = vcmp.eq.s32.totalorder %v1250, %v1518
        %vm1775 = vcmp.eq.s32.totalorder %v1254, %v1518
        %vm1776 = vcmp.eq.s32.totalorder %v1258, %v1518
        %vm1777 = vcmp.eq.s32.totalorder %v1249, %v1532
        %vm1778 = vcmp.eq.s32.totalorder %v1250, %v1532
        %vm1779 = vcmp.eq.s32.totalorder %v1254, %v1532
        %vm1780 = vcmp.eq.s32.totalorder %v1258, %v1532
        %vm1781 = vcmp.eq.s32.totalorder %v1249, %v1546
        %vm1782 = vcmp.eq.s32.totalorder %v1250, %v1546
        %vm1783 = vcmp.eq.s32.totalorder %v1254, %v1546
        %vm1784 = vcmp.eq.s32.totalorder %v1258, %v1546
        %vm1785 = vcmp.eq.s32.totalorder %v1249, %v1560
        %vm1786 = vcmp.eq.s32.totalorder %v1250, %v1560
        %vm1787 = vcmp.eq.s32.totalorder %v1254, %v1560
        %vm1788 = vcmp.eq.s32.totalorder %v1258, %v1560
        %vm1789 = vcmp.eq.s32.totalorder %v1249, %v1574
        %vm1790 = vcmp.eq.s32.totalorder %v1250, %v1574
        %vm1791 = vcmp.eq.s32.totalorder %v1254, %v1574
        %vm1792 = vcmp.eq.s32.totalorder %v1258, %v1574
        %vm1793 = vcmp.eq.s32.totalorder %v1249, %v1588
        %vm1794 = vcmp.eq.s32.totalorder %v1250, %v1588
        %vm1795 = vcmp.eq.s32.totalorder %v1254, %v1588
        %vm1796 = vcmp.eq.s32.totalorder %v1258, %v1588
        %vm1797 = vcmp.eq.s32.totalorder %v1249, %v1602
        %vm1798 = vcmp.eq.s32.totalorder %v1250, %v1602
        %vm1799 = vcmp.eq.s32.totalorder %v1254, %v1602
        %vm1800 = vcmp.eq.s32.totalorder %v1258, %v1602
        %vm1801 = vcmp.eq.s32.totalorder %v1249, %v1616
        %vm1802 = vcmp.eq.s32.totalorder %v1250, %v1616
        %vm1803 = vcmp.eq.s32.totalorder %v1254, %v1616
        %vm1804 = vcmp.eq.s32.totalorder %v1258, %v1616
        %vm1805 = vcmp.eq.s32.totalorder %v1249, %v1630
        %vm1806 = vcmp.eq.s32.totalorder %v1250, %v1630
        %vm1807 = vcmp.eq.s32.totalorder %v1254, %v1630
        %vm1808 = vcmp.eq.s32.totalorder %v1258, %v1630
        %vm1809 = vcmp.eq.s32.totalorder %v1249, %v1644
        %vm1810 = vcmp.eq.s32.totalorder %v1250, %v1644
        %vm1811 = vcmp.eq.s32.totalorder %v1254, %v1644
        %vm1812 = vcmp.eq.s32.totalorder %v1258, %v1644
        %vm1813 = vcmp.eq.s32.totalorder %v1249, %v1658
        %vm1814 = vcmp.eq.s32.totalorder %v1250, %v1658
        %vm1815 = vcmp.eq.s32.totalorder %v1254, %v1658
        %vm1816 = vcmp.eq.s32.totalorder %v1258, %v1658
        %vm1817 = vcmp.eq.s32.totalorder %v1249, %v1672
        %vm1818 = vcmp.eq.s32.totalorder %v1250, %v1672
        %vm1819 = vcmp.eq.s32.totalorder %v1254, %v1672
        %vm1820 = vcmp.eq.s32.totalorder %v1258, %v1672
        %vm1821 = vcmp.eq.s32.totalorder %v1249, %v1686
        %vm1822 = vcmp.eq.s32.totalorder %v1250, %v1686
        %vm1823 = vcmp.eq.s32.totalorder %v1254, %v1686
        %vm1824 = vcmp.eq.s32.totalorder %v1258, %v1686
        %vm1825 = vcmp.eq.s32.totalorder %v1249, %v1700
        %vm1826 = vcmp.eq.s32.totalorder %v1250, %v1700
        %vm1827 = vcmp.eq.s32.totalorder %v1254, %v1700
        %vm1828 = vcmp.eq.s32.totalorder %v1258, %v1700
        %v1829 = vsel %vm1701, 1, 0
        %v1830 = vsel %vm1702, 1, 0
        %v1831 = vsel %vm1703, 1, 0
        %v1832 = vsel %vm1704, 1, 0
        %v1833 = vsel %vm1705, 1, 0
        %v1834 = vsel %vm1706, 1, 0
        %v1835 = vsel %vm1707, 1, 0
        %v1836 = vsel %vm1708, 1, 0
        %v1837 = vsel %vm1709, 1, 0
        %v1838 = vsel %vm1710, 1, 0
        %v1839 = vsel %vm1711, 1, 0
        %v1840 = vsel %vm1712, 1, 0
        %v1841 = vsel %vm1713, 1, 0
        %v1842 = vsel %vm1714, 1, 0
        %v1843 = vsel %vm1715, 1, 0
        %v1844 = vsel %vm1716, 1, 0
        %v1845 = vsel %vm1717, 1, 0
        %v1846 = vsel %vm1718, 1, 0
        %v1847 = vsel %vm1719, 1, 0
        %v1848 = vsel %vm1720, 1, 0
        %v1849 = vsel %vm1721, 1, 0
        %v1850 = vsel %vm1722, 1, 0
        %v1851 = vsel %vm1723, 1, 0
        %v1852 = vsel %vm1724, 1, 0
        %v1853 = vsel %vm1725, 1, 0
        %v1854 = vsel %vm1726, 1, 0
        %v1855 = vsel %vm1727, 1, 0
        %v1856 = vsel %vm1728, 1, 0
        %v1857 = vsel %vm1729, 1, 0
        %v1858 = vsel %vm1730, 1, 0
        %v1859 = vsel %vm1731, 1, 0
        %v1860 = vsel %vm1732, 1, 0
        %v1861 = vsel %vm1733, 1, 0
        %v1862 = vsel %vm1734, 1, 0
        %v1863 = vsel %vm1735, 1, 0
        %v1864 = vsel %vm1736, 1, 0
        %v1865 = vsel %vm1737, 1, 0
        %v1866 = vsel %vm1738, 1, 0
        %v1867 = vsel %vm1739, 1, 0
        %v1868 = vsel %vm1740, 1, 0
        %v1869 = vsel %vm1741, 1, 0
        %v1870 = vsel %vm1742, 1, 0
        %v1871 = vsel %vm1743, 1, 0
        %v1872 = vsel %vm1744, 1, 0
        %v1873 = vsel %vm1745, 1, 0
        %v1874 = vsel %vm1746, 1, 0
        %v1875 = vsel %vm1747, 1, 0
        %v1876 = vsel %vm1748, 1, 0
        %v1877 = vsel %vm1749, 1, 0
        %v1878 = vsel %vm1750, 1, 0
        %v1879 = vsel %vm1751, 1, 0
        %v1880 = vsel %vm1752, 1, 0
        %v1881 = vsel %vm1753, 1, 0
        %v1882 = vsel %vm1754, 1, 0
        %v1883 = vsel %vm1755, 1, 0
        %v1884 = vsel %vm1756, 1, 0
        %v1885 = vsel %vm1757, 1, 0
        %v1886 = vsel %vm1758, 1, 0
        %v1887 = vsel %vm1759, 1, 0
        %v1888 = vsel %vm1760, 1, 0
        %v1889 = vsel %vm1761, 1, 0
        %v1890 = vsel %vm1762, 1, 0
        %v1891 = vsel %vm1763, 1, 0
        %v1892 = vsel %vm1764, 1, 0
        %v1893 = vsel %vm1765, 1, 0
        %v1894 = vsel %vm1766, 1, 0
        %v1895 = vsel %vm1767, 1, 0
        %v1896 = vsel %vm1768, 1, 0
        %v1897 = vsel %vm1769, 1, 0
        %v1898 = vsel %vm1770, 1, 0
        %v1899 = vsel %vm1771, 1, 0
        %v1900 = vsel %vm1772, 1, 0
        %v1901 = vsel %vm1773, 1, 0
        %v1902 = vsel %vm1774, 1, 0
        %v1903 = vsel %vm1775, 1, 0
        %v1904 = vsel %vm1776, 1, 0
        %v1905 = vsel %vm1777, 1, 0
        %v1906 = vsel %vm1778, 1, 0
        %v1907 = vsel %vm1779, 1, 0
        %v1908 = vsel %vm1780, 1, 0
        %v1909 = vsel %vm1781, 1, 0
        %v1910 = vsel %vm1782, 1, 0
        %v1911 = vsel %vm1783, 1, 0
        %v1912 = vsel %vm1784, 1, 0
        %v1913 = vsel %vm1785, 1, 0
        %v1914 = vsel %vm1786, 1, 0
        %v1915 = vsel %vm1787, 1, 0
        %v1916 = vsel %vm1788, 1, 0
        %v1917 = vsel %vm1789, 1, 0
        %v1918 = vsel %vm1790, 1, 0
        %v1919 = vsel %vm1791, 1, 0
        %v1920 = vsel %vm1792, 1, 0
        %v1921 = vsel %vm1793, 1, 0
        %v1922 = vsel %vm1794, 1, 0
        %v1923 = vsel %vm1795, 1, 0
        %v1924 = vsel %vm1796, 1, 0
        %v1925 = vsel %vm1797, 1, 0
        %v1926 = vsel %vm1798, 1, 0
        %v1927 = vsel %vm1799, 1, 0
        %v1928 = vsel %vm1800, 1, 0
        %v1929 = vsel %vm1801, 1, 0
        %v1930 = vsel %vm1802, 1, 0
        %v1931 = vsel %vm1803, 1, 0
        %v1932 = vsel %vm1804, 1, 0
        %v1933 = vsel %vm1805, 1, 0
        %v1934 = vsel %vm1806, 1, 0
        %v1935 = vsel %vm1807, 1, 0
        %v1936 = vsel %vm1808, 1, 0
        %v1937 = vsel %vm1809, 1, 0
        %v1938 = vsel %vm1810, 1, 0
        %v1939 = vsel %vm1811, 1, 0
        %v1940 = vsel %vm1812, 1, 0
        %v1941 = vsel %vm1813, 1, 0
        %v1942 = vsel %vm1814, 1, 0
        %v1943 = vsel %vm1815, 1, 0
        %v1944 = vsel %vm1816, 1, 0
        %v1945 = vsel %vm1817, 1, 0
        %v1946 = vsel %vm1818, 1, 0
        %v1947 = vsel %vm1819, 1, 0
        %v1948 = vsel %vm1820, 1, 0
        %v1949 = vsel %vm1821, 1, 0
        %v1950 = vsel %vm1822, 1, 0
        %v1951 = vsel %vm1823, 1, 0
        %v1952 = vsel %vm1824, 1, 0
        %v1953 = vsel %vm1825, 1, 0
        %v1954 = vsel %vm1826, 1, 0
        %v1955 = vsel %vm1827, 1, 0
        %v1956 = vsel %vm1828, 1, 0
        %v1957 = vcvt.s32.f32 %v1829
        %v1958 = vcvt.s32.f32 %v1830
        %v1959 = vcvt.s32.f32 %v1831
        %v1960 = vcvt.s32.f32 %v1832
        %v1961 = vcvt.s32.f32 %v1833
        %v1962 = vcvt.s32.f32 %v1834
        %v1963 = vcvt.s32.f32 %v1835
        %v1964 = vcvt.s32.f32 %v1836
        %v1965 = vcvt.s32.f32 %v1837
        %v1966 = vcvt.s32.f32 %v1838
        %v1967 = vcvt.s32.f32 %v1839
        %v1968 = vcvt.s32.f32 %v1840
        %v1969 = vcvt.s32.f32 %v1841
        %v1970 = vcvt.s32.f32 %v1842
        %v1971 = vcvt.s32.f32 %v1843
        %v1972 = vcvt.s32.f32 %v1844
        %v1973 = vcvt.s32.f32 %v1845
        %v1974 = vcvt.s32.f32 %v1846
        %v1975 = vcvt.s32.f32 %v1847
        %v1976 = vcvt.s32.f32 %v1848
        %v1977 = vcvt.s32.f32 %v1849
        %v1978 = vcvt.s32.f32 %v1850
        %v1979 = vcvt.s32.f32 %v1851
        %v1980 = vcvt.s32.f32 %v1852
        %v1981 = vcvt.s32.f32 %v1853
        %v1982 = vcvt.s32.f32 %v1854
        %v1983 = vcvt.s32.f32 %v1855
        %v1984 = vcvt.s32.f32 %v1856
        %v1985 = vcvt.s32.f32 %v1857
        %v1986 = vcvt.s32.f32 %v1858
        %v1987 = vcvt.s32.f32 %v1859
        %v1988 = vcvt.s32.f32 %v1860
        %v1989 = vcvt.s32.f32 %v1861
        %v1990 = vcvt.s32.f32 %v1862
        %v1991 = vcvt.s32.f32 %v1863
        %v1992 = vcvt.s32.f32 %v1864
        %v1993 = vcvt.s32.f32 %v1865
        %v1994 = vcvt.s32.f32 %v1866
        %v1995 = vcvt.s32.f32 %v1867
        %v1996 = vcvt.s32.f32 %v1868
        %v1997 = vcvt.s32.f32 %v1869
        %v1998 = vcvt.s32.f32 %v1870
        %v1999 = vcvt.s32.f32 %v1871
        %v2000 = vcvt.s32.f32 %v1872
        %v2001 = vcvt.s32.f32 %v1873
        %v2002 = vcvt.s32.f32 %v1874
        %v2003 = vcvt.s32.f32 %v1875
        %v2004 = vcvt.s32.f32 %v1876
        %v2005 = vcvt.s32.f32 %v1877
        %v2006 = vcvt.s32.f32 %v1878
        %v2007 = vcvt.s32.f32 %v1879
        %v2008 = vcvt.s32.f32 %v1880
        %v2009 = vcvt.s32.f32 %v1881
        %v2010 = vcvt.s32.f32 %v1882
        %v2011 = vcvt.s32.f32 %v1883
        %v2012 = vcvt.s32.f32 %v1884
        %v2013 = vcvt.s32.f32 %v1885
        %v2014 = vcvt.s32.f32 %v1886
        %v2015 = vcvt.s32.f32 %v1887
        %v2016 = vcvt.s32.f32 %v1888
        %v2017 = vcvt.s32.f32 %v1889
        %v2018 = vcvt.s32.f32 %v1890
        %v2019 = vcvt.s32.f32 %v1891
        %v2020 = vcvt.s32.f32 %v1892
        %v2021 = vcvt.s32.f32 %v1893
        %v2022 = vcvt.s32.f32 %v1894
        %v2023 = vcvt.s32.f32 %v1895
        %v2024 = vcvt.s32.f32 %v1896
        %v2025 = vcvt.s32.f32 %v1897
        %v2026 = vcvt.s32.f32 %v1898
        %v2027 = vcvt.s32.f32 %v1899
        %v2028 = vcvt.s32.f32 %v1900
        %v2029 = vcvt.s32.f32 %v1901
        %v2030 = vcvt.s32.f32 %v1902
        %v2031 = vcvt.s32.f32 %v1903
        %v2032 = vcvt.s32.f32 %v1904
        %v2033 = vcvt.s32.f32 %v1905
        %v2034 = vcvt.s32.f32 %v1906
        %v2035 = vcvt.s32.f32 %v1907
        %v2036 = vcvt.s32.f32 %v1908
        %v2037 = vcvt.s32.f32 %v1909
        %v2038 = vcvt.s32.f32 %v1910
        %v2039 = vcvt.s32.f32 %v1911
        %v2040 = vcvt.s32.f32 %v1912
        %v2041 = vcvt.s32.f32 %v1913
        %v2042 = vcvt.s32.f32 %v1914
        %v2043 = vcvt.s32.f32 %v1915
        %v2044 = vcvt.s32.f32 %v1916
        %v2045 = vcvt.s32.f32 %v1917
        %v2046 = vcvt.s32.f32 %v1918
        %v2047 = vcvt.s32.f32 %v1919
        %v2048 = vcvt.s32.f32 %v1920
        %v2049 = vcvt.s32.f32 %v1921
        %v2050 = vcvt.s32.f32 %v1922
        %v2051 = vcvt.s32.f32 %v1923
        %v2052 = vcvt.s32.f32 %v1924
        %v2053 = vcvt.s32.f32 %v1925
        %v2054 = vcvt.s32.f32 %v1926
        %v2055 = vcvt.s32.f32 %v1927
        %v2056 = vcvt.s32.f32 %v1928
        %v2057 = vcvt.s32.f32 %v1929
        %v2058 = vcvt.s32.f32 %v1930
        %v2059 = vcvt.s32.f32 %v1931
        %v2060 = vcvt.s32.f32 %v1932
        %v2061 = vcvt.s32.f32 %v1933
        %v2062 = vcvt.s32.f32 %v1934
        %v2063 = vcvt.s32.f32 %v1935
        %v2064 = vcvt.s32.f32 %v1936
        %v2065 = vcvt.s32.f32 %v1937
        %v2066 = vcvt.s32.f32 %v1938
        %v2067 = vcvt.s32.f32 %v1939
        %v2068 = vcvt.s32.f32 %v1940
        %v2069 = vcvt.s32.f32 %v1941
        %v2070 = vcvt.s32.f32 %v1942
        %v2071 = vcvt.s32.f32 %v1943
        %v2072 = vcvt.s32.f32 %v1944
        %v2073 = vcvt.s32.f32 %v1945
        %v2074 = vcvt.s32.f32 %v1946
        %v2075 = vcvt.s32.f32 %v1947
        %v2076 = vcvt.s32.f32 %v1948
        %v2077 = vcvt.s32.f32 %v1949
        %v2078 = vcvt.s32.f32 %v1950
        %v2079 = vcvt.s32.f32 %v1951
        %v2080 = vcvt.s32.f32 %v1952
        %v2081 = vcvt.s32.f32 %v1953
        %v2082 = vcvt.s32.f32 %v1954
        %v2083 = vcvt.s32.f32 %v1955
        %v2084 = vcvt.s32.f32 %v1956
        %2085 = vmatprep.subr.mxu0 0.0
        %2086 = vmatpush1.msra.mxu0 %v295
        %2087 = vmatprep.subr.mxu0 0.0
        %2088 = vmatpush1.msra.mxu0 %v296
        %2089 = vmatprep.subr.mxu0 0.0
        %2090 = vmatpush1.msra.mxu0 %v297
        %2091 = vmatprep.subr.mxu0 0.0
        %2092 = vmatpush1.msra.mxu0 %v298
        %2093 = vmatprep.subr.mxu0 0.0
        %2094 = vmatpush1.msra.mxu0 %v299
        %2095 = vmatprep.subr.mxu0 0.0
        %2096 = vmatpush1.msra.mxu0 %v300
        %2097 = vmatprep.subr.mxu0 0.0
        %2098 = vmatpush1.msra.mxu0 %v301
        %2099 = vmatprep.subr.mxu0 0.0
        %2100 = vmatpush1.msra.mxu0 %v302
        %2101 = vmatprep.subr.mxu0 0.0
        %2102 = vmatpush1.msra.mxu0 %v303
        %2103 = vmatprep.subr.mxu0 0.0
        %2104 = vmatpush1.msra.mxu0 %v304
        %2105 = vmatprep.subr.mxu0 0.0
        %2106 = vmatpush1.msra.mxu0 %v305
        %2107 = vmatprep.subr.mxu0 0.0
        %2108 = vmatpush1.msra.mxu0 %v306
        %2109 = vmatprep.subr.mxu0 0.0
        %2110 = vmatpush1.msra.mxu0 %v307
        %2111 = vmatprep.subr.mxu0 0.0
        %2112 = vmatpush1.msra.mxu0 %v308
        %2113 = vmatprep.subr.mxu0 0.0
        %2114 = vmatpush1.msra.mxu0 %v309
        %2115 = vmatprep.subr.mxu0 0.0
        %2116 = vmatpush1.msra.mxu0 %v310
        %2117 = vmatprep.subr.mxu0 0.0
        %2118 = vmatpush1.msra.mxu0 %v311
        %2119 = vmatprep.subr.mxu0 0.0
        %2120 = vmatpush1.msra.mxu0 %v312
        %2121 = vmatprep.subr.mxu0 0.0
        %2122 = vmatpush1.msra.mxu0 %v313
        %2123 = vmatprep.subr.mxu0 0.0
        %2124 = vmatpush1.msra.mxu0 %v314
        %2125 = vmatprep.subr.mxu0 0.0
        %2126 = vmatpush1.msra.mxu0 %v315
        %2127 = vmatprep.subr.mxu0 0.0
        %2128 = vmatpush1.msra.mxu0 %v316
        %2129 = vmatprep.subr.mxu0 0.0
        %2130 = vmatpush1.msra.mxu0 %v317
        %2131 = vmatprep.subr.mxu0 0.0
        %2132 = vmatpush1.msra.mxu0 %v318
        %2133 = vmatprep.subr.mxu0 0.0
        %2134 = vmatpush1.msra.mxu0 %v319
        %2135 = vmatprep.subr.mxu0 0.0
        %2136 = vmatpush1.msra.mxu0 %v320
        %2137 = vmatprep.subr.mxu0 0.0
        %2138 = vmatpush1.msra.mxu0 %v321
        %2139 = vmatprep.subr.mxu0 0.0
        %2140 = vmatpush1.msra.mxu0 %v322
        %2141 = vmatprep.subr.mxu0 0.0
        %2142 = vmatpush1.msra.mxu0 %v323
        %2143 = vmatprep.subr.mxu0 0.0
        %2144 = vmatpush1.msra.mxu0 %v324
        %2145 = vmatprep.subr.mxu0 0.0
        %2146 = vmatpush1.msra.mxu0 %v325
        %2147 = vmatprep.subr.mxu0 0.0
        %2148 = vmatpush1.msra.mxu0 %v326
        %2149 = vmatprep.mubr.f32.mxu0 %v1958
        %2150 = vmatmul.mubr.f32.gmra.mrb[0].mxu0 %v1957
        %v2151 = vpop.f32.mrb[0].mxu0
        %v2152 = vadd.f32 0.0, %v2151
        %v2153 = vpop.f32.mrb[0].mxu0
        %2154 = vmatprep.mubr.f32.mxu0 %v1962
        %2155 = vmatmul.mubr.f32.gmra.mrb[0].mxu0 %v1961
        %v2156 = vpop.f32.mrb[0].mxu0
        %v2157 = vadd.f32 0.0, %v2156
        %v2158 = vpop.f32.mrb[0].mxu0
        %2159 = vmatprep.mubr.f32.mxu0 %v1966
        %2160 = vmatmul.mubr.f32.gmra.mrb[0].mxu0 %v1965
        %v2161 = vpop.f32.mrb[0].mxu0
        %v2162 = vadd.f32 0.0, %v2161
        %v2163 = vpop.f32.mrb[0].mxu0
        %2164 = vmatprep.mubr.f32.mxu0 %v1970
        %2165 = vmatmul.mubr.f32.gmra.mrb[0].mxu0 %v1969
        %v2166 = vpop.f32.mrb[0].mxu0
        %v2167 = vadd.f32 0.0, %v2166
        %v2168 = vpop.f32.mrb[0].mxu0
        %2169 = vmatprep.mubr.f32.mxu0 %v1974
        %2170 = vmatmul.mubr.f32.gmra.mrb[0].mxu0 %v1973
        %v2171 = vpop.f32.mrb[0].mxu0
        %v2172 = vadd.f32 0.0, %v2171
        %v2173 = vpop.f32.mrb[0].mxu0
        %2174 = vmatprep.mubr.f32.mxu0 %v1978
        %2175 = vmatmul.mubr.f32.gmra.mrb[0].mxu0 %v1977
        %v2176 = vpop.f32.mrb[0].mxu0
        %v2177 = vadd.f32 0.0, %v2176
        %v2178 = vpop.f32.mrb[0].mxu0
        %2179 = vmatprep.mubr.f32.mxu0 %v1982
        %2180 = vmatmul.mubr.f32.gmra.mrb[0].mxu0 %v1981
        %v2181 = vpop.f32.mrb[0].mxu0
        %v2182 = vadd.f32 0.0, %v2181
        %v2183 = vpop.f32.mrb[0].mxu0
        %2184 = vmatprep.mubr.f32.mxu0 %v1986
        %2185 = vmatmul.mubr.f32.gmra.mrb[0].mxu0 %v1985
        %v2186 = vpop.f32.mrb[0].mxu0
        %v2187 = vadd.f32 0.0, %v2186
        %v2188 = vpop.f32.mrb[0].mxu0
        %2189 = vmatprep.mubr.f32.mxu0 %v1990
        %2190 = vmatmul.mubr.f32.gmra.mrb[0].mxu0 %v1989
        %v2191 = vpop.f32.mrb[0].mxu0
        %v2192 = vadd.f32 0.0, %v2191
        %v2193 = vpop.f32.mrb[0].mxu0
        %2194 = vmatprep.mubr.f32.mxu0 %v1994
        %2195 = vmatmul.mubr.f32.gmra.mrb[0].mxu0 %v1993
        %v2196 = vpop.f32.mrb[0].mxu0
        %v2197 = vadd.f32 0.0, %v2196
        %v2198 = vpop.f32.mrb[0].mxu0
        %2199 = vmatprep.mubr.f32.mxu0 %v1998
        %2200 = vmatmul.mubr.f32.gmra.mrb[0].mxu0 %v1997
        %v2201 = vpop.f32.mrb[0].mxu0
        %v2202 = vadd.f32 0.0, %v2201
        %v2203 = vpop.f32.mrb[0].mxu0
        %2204 = vmatprep.mubr.f32.mxu0 %v2002
        %2205 = vmatmul.mubr.f32.gmra.mrb[0].mxu0 %v2001
        %v2206 = vpop.f32.mrb[0].mxu0
        %v2207 = vadd.f32 0.0, %v2206
        %v2208 = vpop.f32.mrb[0].mxu0
        %2209 = vmatprep.mubr.f32.mxu0 %v2006
        %2210 = vmatmul.mubr.f32.gmra.mrb[0].mxu0 %v2005
        %v2211 = vpop.f32.mrb[0].mxu0
        %v2212 = vadd.f32 0.0, %v2211
        %v2213 = vpop.f32.mrb[0].mxu0
        %2214 = vmatprep.mubr.f32.mxu0 %v2010
        %2215 = vmatmul.mubr.f32.gmra.mrb[0].mxu0 %v2009
        %v2216 = vpop.f32.mrb[0].mxu0
        %v2217 = vadd.f32 0.0, %v2216
        %v2218 = vpop.f32.mrb[0].mxu0
        %2219 = vmatprep.mubr.f32.mxu0 %v2014
        %2220 = vmatmul.mubr.f32.gmra.mrb[0].mxu0 %v2013
        %v2221 = vpop.f32.mrb[0].mxu0
        %v2222 = vadd.f32 0.0, %v2221
        %v2223 = vpop.f32.mrb[0].mxu0
        %2224 = vmatprep.mubr.f32.mxu0 %v2018
        %2225 = vmatmul.mubr.f32.gmra.mrb[0].mxu0 %v2017
        %v2226 = vpop.f32.mrb[0].mxu0
        %v2227 = vadd.f32 0.0, %v2226
        %v2228 = vpop.f32.mrb[0].mxu0
        %2229 = vmatprep.mubr.f32.mxu0 %v2022
        %2230 = vmatmul.mubr.f32.gmra.mrb[0].mxu0 %v2021
        %v2231 = vpop.f32.mrb[0].mxu0
        %v2232 = vadd.f32 0.0, %v2231
        %v2233 = vpop.f32.mrb[0].mxu0
        %2234 = vmatprep.mubr.f32.mxu0 %v2026
        %2235 = vmatmul.mubr.f32.gmra.mrb[0].mxu0 %v2025
        %v2236 = vpop.f32.mrb[0].mxu0
        %v2237 = vadd.f32 0.0, %v2236
        %v2238 = vpop.f32.mrb[0].mxu0
        %2239 = vmatprep.mubr.f32.mxu0 %v2030
        %2240 = vmatmul.mubr.f32.gmra.mrb[0].mxu0 %v2029
        %v2241 = vpop.f32.mrb[0].mxu0
        %v2242 = vadd.f32 0.0, %v2241
        %v2243 = vpop.f32.mrb[0].mxu0
        %2244 = vmatprep.mubr.f32.mxu0 %v2034
        %2245 = vmatmul.mubr.f32.gmra.mrb[0].mxu0 %v2033
        %v2246 = vpop.f32.mrb[0].mxu0
        %v2247 = vadd.f32 0.0, %v2246
        %v2248 = vpop.f32.mrb[0].mxu0
        %2249 = vmatprep.mubr.f32.mxu0 %v2038
        %2250 = vmatmul.mubr.f32.gmra.mrb[0].mxu0 %v2037
        %v2251 = vpop.f32.mrb[0].mxu0
        %v2252 = vadd.f32 0.0, %v2251
        %v2253 = vpop.f32.mrb[0].mxu0
        %2254 = vmatprep.mubr.f32.mxu0 %v2042
        %2255 = vmatmul.mubr.f32.gmra.mrb[0].mxu0 %v2041
        %v2256 = vpop.f32.mrb[0].mxu0
        %v2257 = vadd.f32 0.0, %v2256
        %v2258 = vpop.f32.mrb[0].mxu0
        %2259 = vmatprep.mubr.f32.mxu0 %v2046
        %2260 = vmatmul.mubr.f32.gmra.mrb[0].mxu0 %v2045
        %v2261 = vpop.f32.mrb[0].mxu0
        %v2262 = vadd.f32 0.0, %v2261
        %v2263 = vpop.f32.mrb[0].mxu0
        %2264 = vmatprep.mubr.f32.mxu0 %v2050
        %2265 = vmatmul.mubr.f32.gmra.mrb[0].mxu0 %v2049
        %v2266 = vpop.f32.mrb[0].mxu0
        %v2267 = vadd.f32 0.0, %v2266
        %v2268 = vpop.f32.mrb[0].mxu0
        %2269 = vmatprep.mubr.f32.mxu0 %v2054
        %2270 = vmatmul.mubr.f32.gmra.mrb[0].mxu0 %v2053
        %v2271 = vpop.f32.mrb[0].mxu0
        %v2272 = vadd.f32 0.0, %v2271
        %v2273 = vpop.f32.mrb[0].mxu0
        %2274 = vmatprep.mubr.f32.mxu0 %v2058
        %2275 = vmatmul.mubr.f32.gmra.mrb[0].mxu0 %v2057
        %v2276 = vpop.f32.mrb[0].mxu0
        %v2277 = vadd.f32 0.0, %v2276
        %v2278 = vpop.f32.mrb[0].mxu0
        %2279 = vmatprep.mubr.f32.mxu0 %v2062
        %2280 = vmatmul.mubr.f32.gmra.mrb[0].mxu0 %v2061
        %v2281 = vpop.f32.mrb[0].mxu0
        %v2282 = vadd.f32 0.0, %v2281
        %v2283 = vpop.f32.mrb[0].mxu0
        %2284 = vmatprep.mubr.f32.mxu0 %v2066
        %2285 = vmatmul.mubr.f32.gmra.mrb[0].mxu0 %v2065
        %v2286 = vpop.f32.mrb[0].mxu0
        %v2287 = vadd.f32 0.0, %v2286
        %v2288 = vpop.f32.mrb[0].mxu0
        %2289 = vmatprep.mubr.f32.mxu0 %v2070
        %2290 = vmatmul.mubr.f32.gmra.mrb[0].mxu0 %v2069
        %v2291 = vpop.f32.mrb[0].mxu0
        %v2292 = vadd.f32 0.0, %v2291
        %v2293 = vpop.f32.mrb[0].mxu0
        %2294 = vmatprep.mubr.f32.mxu0 %v2074
        %2295 = vmatmul.mubr.f32.gmra.mrb[0].mxu0 %v2073
        %v2296 = vpop.f32.mrb[0].mxu0
        %v2297 = vadd.f32 0.0, %v2296
        %v2298 = vpop.f32.mrb[0].mxu0
        %2299 = vmatprep.mubr.f32.mxu0 %v2078
        %2300 = vmatmul.mubr.f32.gmra.mrb[0].mxu0 %v2077
        %v2301 = vpop.f32.mrb[0].mxu0
        %v2302 = vadd.f32 0.0, %v2301
        %v2303 = vpop.f32.mrb[0].mxu0
        %2304 = vmatprep.mubr.f32.mxu0 %v2082
        %2305 = vmatmul.mubr.f32.gmra.mrb[0].mxu0 %v2081
        %v2306 = vpop.f32.mrb[0].mxu0
        %v2307 = vadd.f32 0.0, %v2306
        %v2308 = vpop.f32.mrb[0].mxu0
        %2309 = vdwg.mxu0
        %2310 = vmatprep.subr.mxu0 0.0
        %2311 = vmatpush1.msra.mxu0 %v327
        %2312 = vmatprep.subr.mxu0 0.0
        %2313 = vmatpush1.msra.mxu0 %v328
        %2314 = vmatprep.subr.mxu0 0.0
        %2315 = vmatpush1.msra.mxu0 %v329
        %2316 = vmatprep.subr.mxu0 0.0
        %2317 = vmatpush1.msra.mxu0 %v330
        %2318 = vmatprep.subr.mxu0 0.0
        %2319 = vmatpush1.msra.mxu0 %v331
        %2320 = vmatprep.subr.mxu0 0.0
        %2321 = vmatpush1.msra.mxu0 %v332
        %2322 = vmatprep.subr.mxu0 0.0
        %2323 = vmatpush1.msra.mxu0 %v333
        %2324 = vmatprep.subr.mxu0 0.0
        %2325 = vmatpush1.msra.mxu0 %v334
        %2326 = vmatprep.subr.mxu0 0.0
        %2327 = vmatpush1.msra.mxu0 %v335
        %2328 = vmatprep.subr.mxu0 0.0
        %2329 = vmatpush1.msra.mxu0 %v336
        %2330 = vmatprep.subr.mxu0 0.0
        %2331 = vmatpush1.msra.mxu0 %v337
        %2332 = vmatprep.subr.mxu0 0.0
        %2333 = vmatpush1.msra.mxu0 %v338
        %2334 = vmatprep.subr.mxu0 0.0
        %2335 = vmatpush1.msra.mxu0 %v339
        %2336 = vmatprep.subr.mxu0 0.0
        %2337 = vmatpush1.msra.mxu0 %v340
        %2338 = vmatprep.subr.mxu0 0.0
        %2339 = vmatpush1.msra.mxu0 %v341
        %2340 = vmatprep.subr.mxu0 0.0
        %2341 = vmatpush1.msra.mxu0 %v342
        %2342 = vmatprep.subr.mxu0 0.0
        %2343 = vmatpush1.msra.mxu0 %v343
        %2344 = vmatprep.subr.mxu0 0.0
        %2345 = vmatpush1.msra.mxu0 %v344
        %2346 = vmatprep.subr.mxu0 0.0
        %2347 = vmatpush1.msra.mxu0 %v345
        %2348 = vmatprep.subr.mxu0 0.0
        %2349 = vmatpush1.msra.mxu0 %v346
        %2350 = vmatprep.subr.mxu0 0.0
        %2351 = vmatpush1.msra.mxu0 %v347
        %2352 = vmatprep.subr.mxu0 0.0
        %2353 = vmatpush1.msra.mxu0 %v348
        %2354 = vmatprep.subr.mxu0 0.0
        %2355 = vmatpush1.msra.mxu0 %v349
        %2356 = vmatprep.subr.mxu0 0.0
        %2357 = vmatpush1.msra.mxu0 %v350
        %2358 = vmatprep.subr.mxu0 0.0
        %2359 = vmatpush1.msra.mxu0 %v351
        %2360 = vmatprep.subr.mxu0 0.0
        %2361 = vmatpush1.msra.mxu0 %v352
        %2362 = vmatprep.subr.mxu0 0.0
        %2363 = vmatpush1.msra.mxu0 %v353
        %2364 = vmatprep.subr.mxu0 0.0
        %2365 = vmatpush1.msra.mxu0 %v354
        %2366 = vmatprep.subr.mxu0 0.0
        %2367 = vmatpush1.msra.mxu0 %v355
        %2368 = vmatprep.subr.mxu0 0.0
        %2369 = vmatpush1.msra.mxu0 %v356
        %2370 = vmatprep.subr.mxu0 0.0
        %2371 = vmatpush1.msra.mxu0 %v357
        %2372 = vmatprep.subr.mxu0 0.0
        %2373 = vmatpush1.msra.mxu0 %v358
        %2374 = vmatprep.mubr.f32.mxu0 %v1960
        %2375 = vmatmul.mubr.f32.gmra.mrb[0].mxu0 %v1959
        %v2376 = vpop.f32.mrb[0].mxu0
        %v2377 = vadd.f32 %v2152, %v2376
        %v2378 = vpop.f32.mrb[0].mxu0
        %2379 = vmatprep.mubr.f32.mxu0 %v1964
        %2380 = vmatmul.mubr.f32.gmra.mrb[0].mxu0 %v1963
        %v2381 = vpop.f32.mrb[0].mxu0
        %v2382 = vadd.f32 %v2157, %v2381
        %v2383 = vpop.f32.mrb[0].mxu0
        %2384 = vmatprep.mubr.f32.mxu0 %v1968
        %2385 = vmatmul.mubr.f32.gmra.mrb[0].mxu0 %v1967
        %v2386 = vpop.f32.mrb[0].mxu0
        %v2387 = vadd.f32 %v2162, %v2386
        %v2388 = vpop.f32.mrb[0].mxu0
        %2389 = vmatprep.mubr.f32.mxu0 %v1972
        %2390 = vmatmul.mubr.f32.gmra.mrb[0].mxu0 %v1971
        %v2391 = vpop.f32.mrb[0].mxu0
        %v2392 = vadd.f32 %v2167, %v2391
        %v2393 = vpop.f32.mrb[0].mxu0
        %2394 = vmatprep.mubr.f32.mxu0 %v1976
        %2395 = vmatmul.mubr.f32.gmra.mrb[0].mxu0 %v1975
        %v2396 = vpop.f32.mrb[0].mxu0
        %v2397 = vadd.f32 %v2172, %v2396
        %v2398 = vpop.f32.mrb[0].mxu0
        %2399 = vmatprep.mubr.f32.mxu0 %v1980
        %2400 = vmatmul.mubr.f32.gmra.mrb[0].mxu0 %v1979
        %v2401 = vpop.f32.mrb[0].mxu0
        %v2402 = vadd.f32 %v2177, %v2401
        %v2403 = vpop.f32.mrb[0].mxu0
        %2404 = vmatprep.mubr.f32.mxu0 %v1984
        %2405 = vmatmul.mubr.f32.gmra.mrb[0].mxu0 %v1983
        %v2406 = vpop.f32.mrb[0].mxu0
        %v2407 = vadd.f32 %v2182, %v2406
        %v2408 = vpop.f32.mrb[0].mxu0
        %2409 = vmatprep.mubr.f32.mxu0 %v1988
        %2410 = vmatmul.mubr.f32.gmra.mrb[0].mxu0 %v1987
        %v2411 = vpop.f32.mrb[0].mxu0
        %v2412 = vadd.f32 %v2187, %v2411
        %v2413 = vpop.f32.mrb[0].mxu0
        %2414 = vmatprep.mubr.f32.mxu0 %v1992
        %2415 = vmatmul.mubr.f32.gmra.mrb[0].mxu0 %v1991
        %v2416 = vpop.f32.mrb[0].mxu0
        %v2417 = vadd.f32 %v2192, %v2416
        %v2418 = vpop.f32.mrb[0].mxu0
        %2419 = vmatprep.mubr.f32.mxu0 %v1996
        %2420 = vmatmul.mubr.f32.gmra.mrb[0].mxu0 %v1995
        %v2421 = vpop.f32.mrb[0].mxu0
        %v2422 = vadd.f32 %v2197, %v2421
        %v2423 = vpop.f32.mrb[0].mxu0
        %2424 = vmatprep.mubr.f32.mxu0 %v2000
        %2425 = vmatmul.mubr.f32.gmra.mrb[0].mxu0 %v1999
        %v2426 = vpop.f32.mrb[0].mxu0
        %v2427 = vadd.f32 %v2202, %v2426
        %v2428 = vpop.f32.mrb[0].mxu0
        %2429 = vmatprep.mubr.f32.mxu0 %v2004
        %2430 = vmatmul.mubr.f32.gmra.mrb[0].mxu0 %v2003
        %v2431 = vpop.f32.mrb[0].mxu0
        %v2432 = vadd.f32 %v2207, %v2431
        %v2433 = vpop.f32.mrb[0].mxu0
        %2434 = vmatprep.mubr.f32.mxu0 %v2008
        %2435 = vmatmul.mubr.f32.gmra.mrb[0].mxu0 %v2007
        %v2436 = vpop.f32.mrb[0].mxu0
        %v2437 = vadd.f32 %v2212, %v2436
        %v2438 = vpop.f32.mrb[0].mxu0
        %2439 = vmatprep.mubr.f32.mxu0 %v2012
        %2440 = vmatmul.mubr.f32.gmra.mrb[0].mxu0 %v2011
        %v2441 = vpop.f32.mrb[0].mxu0
        %v2442 = vadd.f32 %v2217, %v2441
        %v2443 = vpop.f32.mrb[0].mxu0
        %2444 = vmatprep.mubr.f32.mxu0 %v2016
        %2445 = vmatmul.mubr.f32.gmra.mrb[0].mxu0 %v2015
        %v2446 = vpop.f32.mrb[0].mxu0
        %v2447 = vadd.f32 %v2222, %v2446
        %v2448 = vpop.f32.mrb[0].mxu0
        %2449 = vmatprep.mubr.f32.mxu0 %v2020
        %2450 = vmatmul.mubr.f32.gmra.mrb[0].mxu0 %v2019
        %v2451 = vpop.f32.mrb[0].mxu0
        %v2452 = vadd.f32 %v2227, %v2451
        %v2453 = vpop.f32.mrb[0].mxu0
        %2454 = vmatprep.mubr.f32.mxu0 %v2024
        %2455 = vmatmul.mubr.f32.gmra.mrb[0].mxu0 %v2023
        %v2456 = vpop.f32.mrb[0].mxu0
        %v2457 = vadd.f32 %v2232, %v2456
        %v2458 = vpop.f32.mrb[0].mxu0
        %2459 = vmatprep.mubr.f32.mxu0 %v2028
        %2460 = vmatmul.mubr.f32.gmra.mrb[0].mxu0 %v2027
        %v2461 = vpop.f32.mrb[0].mxu0
        %v2462 = vadd.f32 %v2237, %v2461
        %v2463 = vpop.f32.mrb[0].mxu0
        %2464 = vmatprep.mubr.f32.mxu0 %v2032
        %2465 = vmatmul.mubr.f32.gmra.mrb[0].mxu0 %v2031
        %v2466 = vpop.f32.mrb[0].mxu0
        %v2467 = vadd.f32 %v2242, %v2466
        %v2468 = vpop.f32.mrb[0].mxu0
        %2469 = vmatprep.mubr.f32.mxu0 %v2036
        %2470 = vmatmul.mubr.f32.gmra.mrb[0].mxu0 %v2035
        %v2471 = vpop.f32.mrb[0].mxu0
        %v2472 = vadd.f32 %v2247, %v2471
        %v2473 = vpop.f32.mrb[0].mxu0
        %2474 = vmatprep.mubr.f32.mxu0 %v2040
        %2475 = vmatmul.mubr.f32.gmra.mrb[0].mxu0 %v2039
        %v2476 = vpop.f32.mrb[0].mxu0
        %v2477 = vadd.f32 %v2252, %v2476
        %v2478 = vpop.f32.mrb[0].mxu0
        %2479 = vmatprep.mubr.f32.mxu0 %v2044
        %2480 = vmatmul.mubr.f32.gmra.mrb[0].mxu0 %v2043
        %v2481 = vpop.f32.mrb[0].mxu0
        %v2482 = vadd.f32 %v2257, %v2481
        %v2483 = vpop.f32.mrb[0].mxu0
        %2484 = vmatprep.mubr.f32.mxu0 %v2048
        %2485 = vmatmul.mubr.f32.gmra.mrb[0].mxu0 %v2047
        %v2486 = vpop.f32.mrb[0].mxu0
        %v2487 = vadd.f32 %v2262, %v2486
        %v2488 = vpop.f32.mrb[0].mxu0
        %2489 = vmatprep.mubr.f32.mxu0 %v2052
        %2490 = vmatmul.mubr.f32.gmra.mrb[0].mxu0 %v2051
        %v2491 = vpop.f32.mrb[0].mxu0
        %v2492 = vadd.f32 %v2267, %v2491
        %v2493 = vpop.f32.mrb[0].mxu0
        %2494 = vmatprep.mubr.f32.mxu0 %v2056
        %2495 = vmatmul.mubr.f32.gmra.mrb[0].mxu0 %v2055
        %v2496 = vpop.f32.mrb[0].mxu0
        %v2497 = vadd.f32 %v2272, %v2496
        %v2498 = vpop.f32.mrb[0].mxu0
        %2499 = vmatprep.mubr.f32.mxu0 %v2060
        %2500 = vmatmul.mubr.f32.gmra.mrb[0].mxu0 %v2059
        %v2501 = vpop.f32.mrb[0].mxu0
        %v2502 = vadd.f32 %v2277, %v2501
        %v2503 = vpop.f32.mrb[0].mxu0
        %2504 = vmatprep.mubr.f32.mxu0 %v2064
        %2505 = vmatmul.mubr.f32.gmra.mrb[0].mxu0 %v2063
        %v2506 = vpop.f32.mrb[0].mxu0
        %v2507 = vadd.f32 %v2282, %v2506
        %v2508 = vpop.f32.mrb[0].mxu0
        %2509 = vmatprep.mubr.f32.mxu0 %v2068
        %2510 = vmatmul.mubr.f32.gmra.mrb[0].mxu0 %v2067
        %v2511 = vpop.f32.mrb[0].mxu0
        %v2512 = vadd.f32 %v2287, %v2511
        %v2513 = vpop.f32.mrb[0].mxu0
        %2514 = vmatprep.mubr.f32.mxu0 %v2072
        %2515 = vmatmul.mubr.f32.gmra.mrb[0].mxu0 %v2071
        %v2516 = vpop.f32.mrb[0].mxu0
        %v2517 = vadd.f32 %v2292, %v2516
        %v2518 = vpop.f32.mrb[0].mxu0
        %2519 = vmatprep.mubr.f32.mxu0 %v2076
        %2520 = vmatmul.mubr.f32.gmra.mrb[0].mxu0 %v2075
        %v2521 = vpop.f32.mrb[0].mxu0
        %v2522 = vadd.f32 %v2297, %v2521
        %v2523 = vpop.f32.mrb[0].mxu0
        %2524 = vmatprep.mubr.f32.mxu0 %v2080
        %2525 = vmatmul.mubr.f32.gmra.mrb[0].mxu0 %v2079
        %v2526 = vpop.f32.mrb[0].mxu0
        %v2527 = vadd.f32 %v2302, %v2526
        %v2528 = vpop.f32.mrb[0].mxu0
        %2529 = vmatprep.mubr.f32.mxu0 %v2084
        %2530 = vmatmul.mubr.f32.gmra.mrb[0].mxu0 %v2083
        %v2531 = vpop.f32.mrb[0].mxu0
        %v2532 = vadd.f32 %v2307, %v2531
        %v2533 = vpop.f32.mrb[0].mxu0
        %2534 = vdwg.mxu0
        %2535 = vst.msk [vmem:[%s285] sm:$0xff] %vm439, %v2377
        %2536 = vst.msk [vmem:[%s285 + $0x8] sm:$0xff] %vm439, %v2382
        %2537 = vst.msk [vmem:[%s285 + $0x10] sm:$0xff] %vm439, %v2387
        %2538 = vst.msk [vmem:[%s285 + $0x18] sm:$0xff] %vm439, %v2392
        %2539 = vst.msk [vmem:[%s285 + $0x20] sm:$0xff] %vm439, %v2397
        %2540 = vst.msk [vmem:[%s285 + $0x28] sm:$0xff] %vm439, %v2402
        %2541 = vst.msk [vmem:[%s285 + $0x30] sm:$0xff] %vm439, %v2407
        %2542 = vst.msk [vmem:[%s285 + $0x38] sm:$0xff] %vm439, %v2412
        %2543 = vst.msk [vmem:[%s285 + $0x40] sm:$0xff] %vm439, %v2417
        %2544 = vst.msk [vmem:[%s285 + $0x48] sm:$0xff] %vm439, %v2422
        %2545 = vst.msk [vmem:[%s285 + $0x50] sm:$0xff] %vm439, %v2427
        %2546 = vst.msk [vmem:[%s285 + $0x58] sm:$0xff] %vm439, %v2432
        %2547 = vst.msk [vmem:[%s285 + $0x60] sm:$0xff] %vm439, %v2437
        %2548 = vst.msk [vmem:[%s285 + $0x68] sm:$0xff] %vm439, %v2442
        %2549 = vst.msk [vmem:[%s285 + $0x70] sm:$0xff] %vm439, %v2447
        %2550 = vst.msk [vmem:[%s285 + $0x78] sm:$0xff] %vm439, %v2452
        %2551 = vst.msk [vmem:[%s285 + $0x80] sm:$0xff] %vm439, %v2457
        %2552 = vst.msk [vmem:[%s285 + $0x88] sm:$0xff] %vm439, %v2462
        %2553 = vst.msk [vmem:[%s285 + $0x90] sm:$0xff] %vm439, %v2467
        %2554 = vst.msk [vmem:[%s285 + $0x98] sm:$0xff] %vm439, %v2472
        %2555 = vst.msk [vmem:[%s285 + $0xa0] sm:$0xff] %vm439, %v2477
        %2556 = vst.msk [vmem:[%s285 + $0xa8] sm:$0xff] %vm439, %v2482
        %2557 = vst.msk [vmem:[%s285 + $0xb0] sm:$0xff] %vm439, %v2487
        %2558 = vst.msk [vmem:[%s285 + $0xb8] sm:$0xff] %vm439, %v2492
        %2559 = vst.msk [vmem:[%s285 + $0xc0] sm:$0xff] %vm439, %v2497
        %2560 = vst.msk [vmem:[%s285 + $0xc8] sm:$0xff] %vm439, %v2502
        %2561 = vst.msk [vmem:[%s285 + $0xd0] sm:$0xff] %vm439, %v2507
        %2562 = vst.msk [vmem:[%s285 + $0xd8] sm:$0xff] %vm439, %v2512
        %2563 = vst.msk [vmem:[%s285 + $0xe0] sm:$0xff] %vm439, %v2517
        %2564 = vst.msk [vmem:[%s285 + $0xe8] sm:$0xff] %vm439, %v2522
        %2565 = vst.msk [vmem:[%s285 + $0xf0] sm:$0xff] %vm439, %v2527
        %2566 = vst.msk [vmem:[%s285 + $0xf8] sm:$0xff] %vm439, %v2532
        %v2567 = vlaneseq
        %v2568 = vshrl.u32 %v2567, 7
        %v2569 = vsub.s32 0, %v2568
        %v2570 = vrot.slane %v1266, %v2569
        %v2571 = vlaneseq
        %v2572 = vshrl.u32 %v2571, 7
        %v2573 = vsub.s32 1, %v2572
        %v2574 = vrot.slane %v1266, %v2573
        %v2575 = vlaneseq
        %v2576 = vshrl.u32 %v2575, 7
        %v2577 = vsub.s32 2, %v2576
        %v2578 = vrot.slane %v1266, %v2577
        %v2579 = vlaneseq
        %v2580 = vshrl.u32 %v2579, 7
        %v2581 = vsub.s32 3, %v2580
        %v2582 = vrot.slane %v1266, %v2581
        %v2583 = vlaneseq
        %v2584 = vshrl.u32 %v2583, 7
        %v2585 = vsub.s32 4, %v2584
        %v2586 = vrot.slane %v1266, %v2585
        %v2587 = vlaneseq
        %v2588 = vshrl.u32 %v2587, 7
        %v2589 = vsub.s32 5, %v2588
        %v2590 = vrot.slane %v1266, %v2589
        %v2591 = vlaneseq
        %v2592 = vshrl.u32 %v2591, 7
        %v2593 = vsub.s32 6, %v2592
        %v2594 = vrot.slane %v1266, %v2593
        %v2595 = vlaneseq
        %v2596 = vshrl.u32 %v2595, 7
        %v2597 = vsub.s32 7, %v2596
        %v2598 = vrot.slane %v1266, %v2597
        %v2599 = vlaneseq
        %v2600 = vshrl.u32 %v2599, 7
        %v2601 = vsub.s32 0, %v2600
        %v2602 = vrot.slane %v1280, %v2601
        %v2603 = vlaneseq
        %v2604 = vshrl.u32 %v2603, 7
        %v2605 = vsub.s32 1, %v2604
        %v2606 = vrot.slane %v1280, %v2605
        %v2607 = vlaneseq
        %v2608 = vshrl.u32 %v2607, 7
        %v2609 = vsub.s32 2, %v2608
        %v2610 = vrot.slane %v1280, %v2609
        %v2611 = vlaneseq
        %v2612 = vshrl.u32 %v2611, 7
        %v2613 = vsub.s32 3, %v2612
        %v2614 = vrot.slane %v1280, %v2613
        %v2615 = vlaneseq
        %v2616 = vshrl.u32 %v2615, 7
        %v2617 = vsub.s32 4, %v2616
        %v2618 = vrot.slane %v1280, %v2617
        %v2619 = vlaneseq
        %v2620 = vshrl.u32 %v2619, 7
        %v2621 = vsub.s32 5, %v2620
        %v2622 = vrot.slane %v1280, %v2621
        %v2623 = vlaneseq
        %v2624 = vshrl.u32 %v2623, 7
        %v2625 = vsub.s32 6, %v2624
        %v2626 = vrot.slane %v1280, %v2625
        %v2627 = vlaneseq
        %v2628 = vshrl.u32 %v2627, 7
        %v2629 = vsub.s32 7, %v2628
        %v2630 = vrot.slane %v1280, %v2629
        %v2631 = vlaneseq
        %v2632 = vshrl.u32 %v2631, 7
        %v2633 = vsub.s32 0, %v2632
        %v2634 = vrot.slane %v1294, %v2633
        %v2635 = vlaneseq
        %v2636 = vshrl.u32 %v2635, 7
        %v2637 = vsub.s32 1, %v2636
        %v2638 = vrot.slane %v1294, %v2637
        %v2639 = vlaneseq
        %v2640 = vshrl.u32 %v2639, 7
        %v2641 = vsub.s32 2, %v2640
        %v2642 = vrot.slane %v1294, %v2641
        %v2643 = vlaneseq
        %v2644 = vshrl.u32 %v2643, 7
        %v2645 = vsub.s32 3, %v2644
        %v2646 = vrot.slane %v1294, %v2645
        %v2647 = vlaneseq
        %v2648 = vshrl.u32 %v2647, 7
        %v2649 = vsub.s32 4, %v2648
        %v2650 = vrot.slane %v1294, %v2649
        %v2651 = vlaneseq
        %v2652 = vshrl.u32 %v2651, 7
        %v2653 = vsub.s32 5, %v2652
        %v2654 = vrot.slane %v1294, %v2653
        %v2655 = vlaneseq
        %v2656 = vshrl.u32 %v2655, 7
        %v2657 = vsub.s32 6, %v2656
        %v2658 = vrot.slane %v1294, %v2657
        %v2659 = vlaneseq
        %v2660 = vshrl.u32 %v2659, 7
        %v2661 = vsub.s32 7, %v2660
        %v2662 = vrot.slane %v1294, %v2661
        %v2663 = vlaneseq
        %v2664 = vshrl.u32 %v2663, 7
        %v2665 = vsub.s32 0, %v2664
        %v2666 = vrot.slane %v1308, %v2665
        %v2667 = vlaneseq
        %v2668 = vshrl.u32 %v2667, 7
        %v2669 = vsub.s32 1, %v2668
        %v2670 = vrot.slane %v1308, %v2669
        %v2671 = vlaneseq
        %v2672 = vshrl.u32 %v2671, 7
        %v2673 = vsub.s32 2, %v2672
        %v2674 = vrot.slane %v1308, %v2673
        %v2675 = vlaneseq
        %v2676 = vshrl.u32 %v2675, 7
        %v2677 = vsub.s32 3, %v2676
        %v2678 = vrot.slane %v1308, %v2677
        %v2679 = vlaneseq
        %v2680 = vshrl.u32 %v2679, 7
        %v2681 = vsub.s32 4, %v2680
        %v2682 = vrot.slane %v1308, %v2681
        %v2683 = vlaneseq
        %v2684 = vshrl.u32 %v2683, 7
        %v2685 = vsub.s32 5, %v2684
        %v2686 = vrot.slane %v1308, %v2685
        %v2687 = vlaneseq
        %v2688 = vshrl.u32 %v2687, 7
        %v2689 = vsub.s32 6, %v2688
        %v2690 = vrot.slane %v1308, %v2689
        %v2691 = vlaneseq
        %v2692 = vshrl.u32 %v2691, 7
        %v2693 = vsub.s32 7, %v2692
        %v2694 = vrot.slane %v1308, %v2693
        %v2695 = vlaneseq
        %v2696 = vshrl.u32 %v2695, 7
        %v2697 = vsub.s32 0, %v2696
        %v2698 = vrot.slane %v1322, %v2697
        %v2699 = vlaneseq
        %v2700 = vshrl.u32 %v2699, 7
        %v2701 = vsub.s32 1, %v2700
        %v2702 = vrot.slane %v1322, %v2701
        %v2703 = vlaneseq
        %v2704 = vshrl.u32 %v2703, 7
        %v2705 = vsub.s32 2, %v2704
        %v2706 = vrot.slane %v1322, %v2705
        %v2707 = vlaneseq
        %v2708 = vshrl.u32 %v2707, 7
        %v2709 = vsub.s32 3, %v2708
        %v2710 = vrot.slane %v1322, %v2709
        %v2711 = vlaneseq
        %v2712 = vshrl.u32 %v2711, 7
        %v2713 = vsub.s32 4, %v2712
        %v2714 = vrot.slane %v1322, %v2713
        %v2715 = vlaneseq
        %v2716 = vshrl.u32 %v2715, 7
        %v2717 = vsub.s32 5, %v2716
        %v2718 = vrot.slane %v1322, %v2717
        %v2719 = vlaneseq
        %v2720 = vshrl.u32 %v2719, 7
        %v2721 = vsub.s32 6, %v2720
        %v2722 = vrot.slane %v1322, %v2721
        %v2723 = vlaneseq
        %v2724 = vshrl.u32 %v2723, 7
        %v2725 = vsub.s32 7, %v2724
        %v2726 = vrot.slane %v1322, %v2725
        %v2727 = vlaneseq
        %v2728 = vshrl.u32 %v2727, 7
        %v2729 = vsub.s32 0, %v2728
        %v2730 = vrot.slane %v1336, %v2729
        %v2731 = vlaneseq
        %v2732 = vshrl.u32 %v2731, 7
        %v2733 = vsub.s32 1, %v2732
        %v2734 = vrot.slane %v1336, %v2733
        %v2735 = vlaneseq
        %v2736 = vshrl.u32 %v2735, 7
        %v2737 = vsub.s32 2, %v2736
        %v2738 = vrot.slane %v1336, %v2737
        %v2739 = vlaneseq
        %v2740 = vshrl.u32 %v2739, 7
        %v2741 = vsub.s32 3, %v2740
        %v2742 = vrot.slane %v1336, %v2741
        %v2743 = vlaneseq
        %v2744 = vshrl.u32 %v2743, 7
        %v2745 = vsub.s32 4, %v2744
        %v2746 = vrot.slane %v1336, %v2745
        %v2747 = vlaneseq
        %v2748 = vshrl.u32 %v2747, 7
        %v2749 = vsub.s32 5, %v2748
        %v2750 = vrot.slane %v1336, %v2749
        %v2751 = vlaneseq
        %v2752 = vshrl.u32 %v2751, 7
        %v2753 = vsub.s32 6, %v2752
        %v2754 = vrot.slane %v1336, %v2753
        %v2755 = vlaneseq
        %v2756 = vshrl.u32 %v2755, 7
        %v2757 = vsub.s32 7, %v2756
        %v2758 = vrot.slane %v1336, %v2757
        %v2759 = vlaneseq
        %v2760 = vshrl.u32 %v2759, 7
        %v2761 = vsub.s32 0, %v2760
        %v2762 = vrot.slane %v1350, %v2761
        %v2763 = vlaneseq
        %v2764 = vshrl.u32 %v2763, 7
        %v2765 = vsub.s32 1, %v2764
        %v2766 = vrot.slane %v1350, %v2765
        %v2767 = vlaneseq
        %v2768 = vshrl.u32 %v2767, 7
        %v2769 = vsub.s32 2, %v2768
        %v2770 = vrot.slane %v1350, %v2769
        %v2771 = vlaneseq
        %v2772 = vshrl.u32 %v2771, 7
        %v2773 = vsub.s32 3, %v2772
        %v2774 = vrot.slane %v1350, %v2773
        %v2775 = vlaneseq
        %v2776 = vshrl.u32 %v2775, 7
        %v2777 = vsub.s32 4, %v2776
        %v2778 = vrot.slane %v1350, %v2777
        %v2779 = vlaneseq
        %v2780 = vshrl.u32 %v2779, 7
        %v2781 = vsub.s32 5, %v2780
        %v2782 = vrot.slane %v1350, %v2781
        %v2783 = vlaneseq
        %v2784 = vshrl.u32 %v2783, 7
        %v2785 = vsub.s32 6, %v2784
        %v2786 = vrot.slane %v1350, %v2785
        %v2787 = vlaneseq
        %v2788 = vshrl.u32 %v2787, 7
        %v2789 = vsub.s32 7, %v2788
        %v2790 = vrot.slane %v1350, %v2789
        %v2791 = vlaneseq
        %v2792 = vshrl.u32 %v2791, 7
        %v2793 = vsub.s32 0, %v2792
        %v2794 = vrot.slane %v1364, %v2793
        %v2795 = vlaneseq
        %v2796 = vshrl.u32 %v2795, 7
        %v2797 = vsub.s32 1, %v2796
        %v2798 = vrot.slane %v1364, %v2797
        %v2799 = vlaneseq
        %v2800 = vshrl.u32 %v2799, 7
        %v2801 = vsub.s32 2, %v2800
        %v2802 = vrot.slane %v1364, %v2801
        %v2803 = vlaneseq
        %v2804 = vshrl.u32 %v2803, 7
        %v2805 = vsub.s32 3, %v2804
        %v2806 = vrot.slane %v1364, %v2805
        %v2807 = vlaneseq
        %v2808 = vshrl.u32 %v2807, 7
        %v2809 = vsub.s32 4, %v2808
        %v2810 = vrot.slane %v1364, %v2809
        %v2811 = vlaneseq
        %v2812 = vshrl.u32 %v2811, 7
        %v2813 = vsub.s32 5, %v2812
        %v2814 = vrot.slane %v1364, %v2813
        %v2815 = vlaneseq
        %v2816 = vshrl.u32 %v2815, 7
        %v2817 = vsub.s32 6, %v2816
        %v2818 = vrot.slane %v1364, %v2817
        %v2819 = vlaneseq
        %v2820 = vshrl.u32 %v2819, 7
        %v2821 = vsub.s32 7, %v2820
        %v2822 = vrot.slane %v1364, %v2821
        %v2823 = vlaneseq
        %v2824 = vshrl.u32 %v2823, 7
        %v2825 = vsub.s32 0, %v2824
        %v2826 = vrot.slane %v1378, %v2825
        %v2827 = vlaneseq
        %v2828 = vshrl.u32 %v2827, 7
        %v2829 = vsub.s32 1, %v2828
        %v2830 = vrot.slane %v1378, %v2829
        %v2831 = vlaneseq
        %v2832 = vshrl.u32 %v2831, 7
        %v2833 = vsub.s32 2, %v2832
        %v2834 = vrot.slane %v1378, %v2833
        %v2835 = vlaneseq
        %v2836 = vshrl.u32 %v2835, 7
        %v2837 = vsub.s32 3, %v2836
        %v2838 = vrot.slane %v1378, %v2837
        %v2839 = vlaneseq
        %v2840 = vshrl.u32 %v2839, 7
        %v2841 = vsub.s32 4, %v2840
        %v2842 = vrot.slane %v1378, %v2841
        %v2843 = vlaneseq
        %v2844 = vshrl.u32 %v2843, 7
        %v2845 = vsub.s32 5, %v2844
        %v2846 = vrot.slane %v1378, %v2845
        %v2847 = vlaneseq
        %v2848 = vshrl.u32 %v2847, 7
        %v2849 = vsub.s32 6, %v2848
        %v2850 = vrot.slane %v1378, %v2849
        %v2851 = vlaneseq
        %v2852 = vshrl.u32 %v2851, 7
        %v2853 = vsub.s32 7, %v2852
        %v2854 = vrot.slane %v1378, %v2853
        %v2855 = vlaneseq
        %v2856 = vshrl.u32 %v2855, 7
        %v2857 = vsub.s32 0, %v2856
        %v2858 = vrot.slane %v1392, %v2857
        %v2859 = vlaneseq
        %v2860 = vshrl.u32 %v2859, 7
        %v2861 = vsub.s32 1, %v2860
        %v2862 = vrot.slane %v1392, %v2861
        %v2863 = vlaneseq
        %v2864 = vshrl.u32 %v2863, 7
        %v2865 = vsub.s32 2, %v2864
        %v2866 = vrot.slane %v1392, %v2865
        %v2867 = vlaneseq
        %v2868 = vshrl.u32 %v2867, 7
        %v2869 = vsub.s32 3, %v2868
        %v2870 = vrot.slane %v1392, %v2869
        %v2871 = vlaneseq
        %v2872 = vshrl.u32 %v2871, 7
        %v2873 = vsub.s32 4, %v2872
        %v2874 = vrot.slane %v1392, %v2873
        %v2875 = vlaneseq
        %v2876 = vshrl.u32 %v2875, 7
        %v2877 = vsub.s32 5, %v2876
        %v2878 = vrot.slane %v1392, %v2877
        %v2879 = vlaneseq
        %v2880 = vshrl.u32 %v2879, 7
        %v2881 = vsub.s32 6, %v2880
        %v2882 = vrot.slane %v1392, %v2881
        %v2883 = vlaneseq
        %v2884 = vshrl.u32 %v2883, 7
        %v2885 = vsub.s32 7, %v2884
        %v2886 = vrot.slane %v1392, %v2885
        %v2887 = vlaneseq
        %v2888 = vshrl.u32 %v2887, 7
        %v2889 = vsub.s32 0, %v2888
        %v2890 = vrot.slane %v1406, %v2889
        %v2891 = vlaneseq
        %v2892 = vshrl.u32 %v2891, 7
        %v2893 = vsub.s32 1, %v2892
        %v2894 = vrot.slane %v1406, %v2893
        %v2895 = vlaneseq
        %v2896 = vshrl.u32 %v2895, 7
        %v2897 = vsub.s32 2, %v2896
        %v2898 = vrot.slane %v1406, %v2897
        %v2899 = vlaneseq
        %v2900 = vshrl.u32 %v2899, 7
        %v2901 = vsub.s32 3, %v2900
        %v2902 = vrot.slane %v1406, %v2901
        %v2903 = vlaneseq
        %v2904 = vshrl.u32 %v2903, 7
        %v2905 = vsub.s32 4, %v2904
        %v2906 = vrot.slane %v1406, %v2905
        %v2907 = vlaneseq
        %v2908 = vshrl.u32 %v2907, 7
        %v2909 = vsub.s32 5, %v2908
        %v2910 = vrot.slane %v1406, %v2909
        %v2911 = vlaneseq
        %v2912 = vshrl.u32 %v2911, 7
        %v2913 = vsub.s32 6, %v2912
        %v2914 = vrot.slane %v1406, %v2913
        %v2915 = vlaneseq
        %v2916 = vshrl.u32 %v2915, 7
        %v2917 = vsub.s32 7, %v2916
        %v2918 = vrot.slane %v1406, %v2917
        %v2919 = vlaneseq
        %v2920 = vshrl.u32 %v2919, 7
        %v2921 = vsub.s32 0, %v2920
        %v2922 = vrot.slane %v1420, %v2921
        %v2923 = vlaneseq
        %v2924 = vshrl.u32 %v2923, 7
        %v2925 = vsub.s32 1, %v2924
        %v2926 = vrot.slane %v1420, %v2925
        %v2927 = vlaneseq
        %v2928 = vshrl.u32 %v2927, 7
        %v2929 = vsub.s32 2, %v2928
        %v2930 = vrot.slane %v1420, %v2929
        %v2931 = vlaneseq
        %v2932 = vshrl.u32 %v2931, 7
        %v2933 = vsub.s32 3, %v2932
        %v2934 = vrot.slane %v1420, %v2933
        %v2935 = vlaneseq
        %v2936 = vshrl.u32 %v2935, 7
        %v2937 = vsub.s32 4, %v2936
        %v2938 = vrot.slane %v1420, %v2937
        %v2939 = vlaneseq
        %v2940 = vshrl.u32 %v2939, 7
        %v2941 = vsub.s32 5, %v2940
        %v2942 = vrot.slane %v1420, %v2941
        %v2943 = vlaneseq
        %v2944 = vshrl.u32 %v2943, 7
        %v2945 = vsub.s32 6, %v2944
        %v2946 = vrot.slane %v1420, %v2945
        %v2947 = vlaneseq
        %v2948 = vshrl.u32 %v2947, 7
        %v2949 = vsub.s32 7, %v2948
        %v2950 = vrot.slane %v1420, %v2949
        %v2951 = vlaneseq
        %v2952 = vshrl.u32 %v2951, 7
        %v2953 = vsub.s32 0, %v2952
        %v2954 = vrot.slane %v1434, %v2953
        %v2955 = vlaneseq
        %v2956 = vshrl.u32 %v2955, 7
        %v2957 = vsub.s32 1, %v2956
        %v2958 = vrot.slane %v1434, %v2957
        %v2959 = vlaneseq
        %v2960 = vshrl.u32 %v2959, 7
        %v2961 = vsub.s32 2, %v2960
        %v2962 = vrot.slane %v1434, %v2961
        %v2963 = vlaneseq
        %v2964 = vshrl.u32 %v2963, 7
        %v2965 = vsub.s32 3, %v2964
        %v2966 = vrot.slane %v1434, %v2965
        %v2967 = vlaneseq
        %v2968 = vshrl.u32 %v2967, 7
        %v2969 = vsub.s32 4, %v2968
        %v2970 = vrot.slane %v1434, %v2969
        %v2971 = vlaneseq
        %v2972 = vshrl.u32 %v2971, 7
        %v2973 = vsub.s32 5, %v2972
        %v2974 = vrot.slane %v1434, %v2973
        %v2975 = vlaneseq
        %v2976 = vshrl.u32 %v2975, 7
        %v2977 = vsub.s32 6, %v2976
        %v2978 = vrot.slane %v1434, %v2977
        %v2979 = vlaneseq
        %v2980 = vshrl.u32 %v2979, 7
        %v2981 = vsub.s32 7, %v2980
        %v2982 = vrot.slane %v1434, %v2981
        %v2983 = vlaneseq
        %v2984 = vshrl.u32 %v2983, 7
        %v2985 = vsub.s32 0, %v2984
        %v2986 = vrot.slane %v1448, %v2985
        %v2987 = vlaneseq
        %v2988 = vshrl.u32 %v2987, 7
        %v2989 = vsub.s32 1, %v2988
        %v2990 = vrot.slane %v1448, %v2989
        %v2991 = vlaneseq
        %v2992 = vshrl.u32 %v2991, 7
        %v2993 = vsub.s32 2, %v2992
        %v2994 = vrot.slane %v1448, %v2993
        %v2995 = vlaneseq
        %v2996 = vshrl.u32 %v2995, 7
        %v2997 = vsub.s32 3, %v2996
        %v2998 = vrot.slane %v1448, %v2997
        %v2999 = vlaneseq
        %v3000 = vshrl.u32 %v2999, 7
        %v3001 = vsub.s32 4, %v3000
        %v3002 = vrot.slane %v1448, %v3001
        %v3003 = vlaneseq
        %v3004 = vshrl.u32 %v3003, 7
        %v3005 = vsub.s32 5, %v3004
        %v3006 = vrot.slane %v1448, %v3005
        %v3007 = vlaneseq
        %v3008 = vshrl.u32 %v3007, 7
        %v3009 = vsub.s32 6, %v3008
        %v3010 = vrot.slane %v1448, %v3009
        %v3011 = vlaneseq
        %v3012 = vshrl.u32 %v3011, 7
        %v3013 = vsub.s32 7, %v3012
        %v3014 = vrot.slane %v1448, %v3013
        %v3015 = vlaneseq
        %v3016 = vshrl.u32 %v3015, 7
        %v3017 = vsub.s32 0, %v3016
        %v3018 = vrot.slane %v1462, %v3017
        %v3019 = vlaneseq
        %v3020 = vshrl.u32 %v3019, 7
        %v3021 = vsub.s32 1, %v3020
        %v3022 = vrot.slane %v1462, %v3021
        %v3023 = vlaneseq
        %v3024 = vshrl.u32 %v3023, 7
        %v3025 = vsub.s32 2, %v3024
        %v3026 = vrot.slane %v1462, %v3025
        %v3027 = vlaneseq
        %v3028 = vshrl.u32 %v3027, 7
        %v3029 = vsub.s32 3, %v3028
        %v3030 = vrot.slane %v1462, %v3029
        %v3031 = vlaneseq
        %v3032 = vshrl.u32 %v3031, 7
        %v3033 = vsub.s32 4, %v3032
        %v3034 = vrot.slane %v1462, %v3033
        %v3035 = vlaneseq
        %v3036 = vshrl.u32 %v3035, 7
        %v3037 = vsub.s32 5, %v3036
        %v3038 = vrot.slane %v1462, %v3037
        %v3039 = vlaneseq
        %v3040 = vshrl.u32 %v3039, 7
        %v3041 = vsub.s32 6, %v3040
        %v3042 = vrot.slane %v1462, %v3041
        %v3043 = vlaneseq
        %v3044 = vshrl.u32 %v3043, 7
        %v3045 = vsub.s32 7, %v3044
        %v3046 = vrot.slane %v1462, %v3045
        %v3047 = vlaneseq
        %v3048 = vshrl.u32 %v3047, 7
        %v3049 = vsub.s32 0, %v3048
        %v3050 = vrot.slane %v1476, %v3049
        %v3051 = vlaneseq
        %v3052 = vshrl.u32 %v3051, 7
        %v3053 = vsub.s32 1, %v3052
        %v3054 = vrot.slane %v1476, %v3053
        %v3055 = vlaneseq
        %v3056 = vshrl.u32 %v3055, 7
        %v3057 = vsub.s32 2, %v3056
        %v3058 = vrot.slane %v1476, %v3057
        %v3059 = vlaneseq
        %v3060 = vshrl.u32 %v3059, 7
        %v3061 = vsub.s32 3, %v3060
        %v3062 = vrot.slane %v1476, %v3061
        %v3063 = vlaneseq
        %v3064 = vshrl.u32 %v3063, 7
        %v3065 = vsub.s32 4, %v3064
        %v3066 = vrot.slane %v1476, %v3065
        %v3067 = vlaneseq
        %v3068 = vshrl.u32 %v3067, 7
        %v3069 = vsub.s32 5, %v3068
        %v3070 = vrot.slane %v1476, %v3069
        %v3071 = vlaneseq
        %v3072 = vshrl.u32 %v3071, 7
        %v3073 = vsub.s32 6, %v3072
        %v3074 = vrot.slane %v1476, %v3073
        %v3075 = vlaneseq
        %v3076 = vshrl.u32 %v3075, 7
        %v3077 = vsub.s32 7, %v3076
        %v3078 = vrot.slane %v1476, %v3077
        %v3079 = vlaneseq
        %v3080 = vshrl.u32 %v3079, 7
        %v3081 = vsub.s32 0, %v3080
        %v3082 = vrot.slane %v1490, %v3081
        %v3083 = vlaneseq
        %v3084 = vshrl.u32 %v3083, 7
        %v3085 = vsub.s32 1, %v3084
        %v3086 = vrot.slane %v1490, %v3085
        %v3087 = vlaneseq
        %v3088 = vshrl.u32 %v3087, 7
        %v3089 = vsub.s32 2, %v3088
        %v3090 = vrot.slane %v1490, %v3089
        %v3091 = vlaneseq
        %v3092 = vshrl.u32 %v3091, 7
        %v3093 = vsub.s32 3, %v3092
        %v3094 = vrot.slane %v1490, %v3093
        %v3095 = vlaneseq
        %v3096 = vshrl.u32 %v3095, 7
        %v3097 = vsub.s32 4, %v3096
        %v3098 = vrot.slane %v1490, %v3097
        %v3099 = vlaneseq
        %v3100 = vshrl.u32 %v3099, 7
        %v3101 = vsub.s32 5, %v3100
        %v3102 = vrot.slane %v1490, %v3101
        %v3103 = vlaneseq
        %v3104 = vshrl.u32 %v3103, 7
        %v3105 = vsub.s32 6, %v3104
        %v3106 = vrot.slane %v1490, %v3105
        %v3107 = vlaneseq
        %v3108 = vshrl.u32 %v3107, 7
        %v3109 = vsub.s32 7, %v3108
        %v3110 = vrot.slane %v1490, %v3109
        %v3111 = vlaneseq
        %v3112 = vshrl.u32 %v3111, 7
        %v3113 = vsub.s32 0, %v3112
        %v3114 = vrot.slane %v1504, %v3113
        %v3115 = vlaneseq
        %v3116 = vshrl.u32 %v3115, 7
        %v3117 = vsub.s32 1, %v3116
        %v3118 = vrot.slane %v1504, %v3117
        %v3119 = vlaneseq
        %v3120 = vshrl.u32 %v3119, 7
        %v3121 = vsub.s32 2, %v3120
        %v3122 = vrot.slane %v1504, %v3121
        %v3123 = vlaneseq
        %v3124 = vshrl.u32 %v3123, 7
        %v3125 = vsub.s32 3, %v3124
        %v3126 = vrot.slane %v1504, %v3125
        %v3127 = vlaneseq
        %v3128 = vshrl.u32 %v3127, 7
        %v3129 = vsub.s32 4, %v3128
        %v3130 = vrot.slane %v1504, %v3129
        %v3131 = vlaneseq
        %v3132 = vshrl.u32 %v3131, 7
        %v3133 = vsub.s32 5, %v3132
        %v3134 = vrot.slane %v1504, %v3133
        %v3135 = vlaneseq
        %v3136 = vshrl.u32 %v3135, 7
        %v3137 = vsub.s32 6, %v3136
        %v3138 = vrot.slane %v1504, %v3137
        %v3139 = vlaneseq
        %v3140 = vshrl.u32 %v3139, 7
        %v3141 = vsub.s32 7, %v3140
        %v3142 = vrot.slane %v1504, %v3141
        %v3143 = vlaneseq
        %v3144 = vshrl.u32 %v3143, 7
        %v3145 = vsub.s32 0, %v3144
        %v3146 = vrot.slane %v1518, %v3145
        %v3147 = vlaneseq
        %v3148 = vshrl.u32 %v3147, 7
        %v3149 = vsub.s32 1, %v3148
        %v3150 = vrot.slane %v1518, %v3149
        %v3151 = vlaneseq
        %v3152 = vshrl.u32 %v3151, 7
        %v3153 = vsub.s32 2, %v3152
        %v3154 = vrot.slane %v1518, %v3153
        %v3155 = vlaneseq
        %v3156 = vshrl.u32 %v3155, 7
        %v3157 = vsub.s32 3, %v3156
        %v3158 = vrot.slane %v1518, %v3157
        %v3159 = vlaneseq
        %v3160 = vshrl.u32 %v3159, 7
        %v3161 = vsub.s32 4, %v3160
        %v3162 = vrot.slane %v1518, %v3161
        %v3163 = vlaneseq
        %v3164 = vshrl.u32 %v3163, 7
        %v3165 = vsub.s32 5, %v3164
        %v3166 = vrot.slane %v1518, %v3165
        %v3167 = vlaneseq
        %v3168 = vshrl.u32 %v3167, 7
        %v3169 = vsub.s32 6, %v3168
        %v3170 = vrot.slane %v1518, %v3169
        %v3171 = vlaneseq
        %v3172 = vshrl.u32 %v3171, 7
        %v3173 = vsub.s32 7, %v3172
        %v3174 = vrot.slane %v1518, %v3173
        %v3175 = vlaneseq
        %v3176 = vshrl.u32 %v3175, 7
        %v3177 = vsub.s32 0, %v3176
        %v3178 = vrot.slane %v1532, %v3177
        %v3179 = vlaneseq
        %v3180 = vshrl.u32 %v3179, 7
        %v3181 = vsub.s32 1, %v3180
        %v3182 = vrot.slane %v1532, %v3181
        %v3183 = vlaneseq
        %v3184 = vshrl.u32 %v3183, 7
        %v3185 = vsub.s32 2, %v3184
        %v3186 = vrot.slane %v1532, %v3185
        %v3187 = vlaneseq
        %v3188 = vshrl.u32 %v3187, 7
        %v3189 = vsub.s32 3, %v3188
        %v3190 = vrot.slane %v1532, %v3189
        %v3191 = vlaneseq
        %v3192 = vshrl.u32 %v3191, 7
        %v3193 = vsub.s32 4, %v3192
        %v3194 = vrot.slane %v1532, %v3193
        %v3195 = vlaneseq
        %v3196 = vshrl.u32 %v3195, 7
        %v3197 = vsub.s32 5, %v3196
        %v3198 = vrot.slane %v1532, %v3197
        %v3199 = vlaneseq
        %v3200 = vshrl.u32 %v3199, 7
        %v3201 = vsub.s32 6, %v3200
        %v3202 = vrot.slane %v1532, %v3201
        %v3203 = vlaneseq
        %v3204 = vshrl.u32 %v3203, 7
        %v3205 = vsub.s32 7, %v3204
        %v3206 = vrot.slane %v1532, %v3205
        %v3207 = vlaneseq
        %v3208 = vshrl.u32 %v3207, 7
        %v3209 = vsub.s32 0, %v3208
        %v3210 = vrot.slane %v1546, %v3209
        %v3211 = vlaneseq
        %v3212 = vshrl.u32 %v3211, 7
        %v3213 = vsub.s32 1, %v3212
        %v3214 = vrot.slane %v1546, %v3213
        %v3215 = vlaneseq
        %v3216 = vshrl.u32 %v3215, 7
        %v3217 = vsub.s32 2, %v3216
        %v3218 = vrot.slane %v1546, %v3217
        %v3219 = vlaneseq
        %v3220 = vshrl.u32 %v3219, 7
        %v3221 = vsub.s32 3, %v3220
        %v3222 = vrot.slane %v1546, %v3221
        %v3223 = vlaneseq
        %v3224 = vshrl.u32 %v3223, 7
        %v3225 = vsub.s32 4, %v3224
        %v3226 = vrot.slane %v1546, %v3225
        %v3227 = vlaneseq
        %v3228 = vshrl.u32 %v3227, 7
        %v3229 = vsub.s32 5, %v3228
        %v3230 = vrot.slane %v1546, %v3229
        %v3231 = vlaneseq
        %v3232 = vshrl.u32 %v3231, 7
        %v3233 = vsub.s32 6, %v3232
        %v3234 = vrot.slane %v1546, %v3233
        %v3235 = vlaneseq
        %v3236 = vshrl.u32 %v3235, 7
        %v3237 = vsub.s32 7, %v3236
        %v3238 = vrot.slane %v1546, %v3237
        %v3239 = vlaneseq
        %v3240 = vshrl.u32 %v3239, 7
        %v3241 = vsub.s32 0, %v3240
        %v3242 = vrot.slane %v1560, %v3241
        %v3243 = vlaneseq
        %v3244 = vshrl.u32 %v3243, 7
        %v3245 = vsub.s32 1, %v3244
        %v3246 = vrot.slane %v1560, %v3245
        %v3247 = vlaneseq
        %v3248 = vshrl.u32 %v3247, 7
        %v3249 = vsub.s32 2, %v3248
        %v3250 = vrot.slane %v1560, %v3249
        %v3251 = vlaneseq
        %v3252 = vshrl.u32 %v3251, 7
        %v3253 = vsub.s32 3, %v3252
        %v3254 = vrot.slane %v1560, %v3253
        %v3255 = vlaneseq
        %v3256 = vshrl.u32 %v3255, 7
        %v3257 = vsub.s32 4, %v3256
        %v3258 = vrot.slane %v1560, %v3257
        %v3259 = vlaneseq
        %v3260 = vshrl.u32 %v3259, 7
        %v3261 = vsub.s32 5, %v3260
        %v3262 = vrot.slane %v1560, %v3261
        %v3263 = vlaneseq
        %v3264 = vshrl.u32 %v3263, 7
        %v3265 = vsub.s32 6, %v3264
        %v3266 = vrot.slane %v1560, %v3265
        %v3267 = vlaneseq
        %v3268 = vshrl.u32 %v3267, 7
        %v3269 = vsub.s32 7, %v3268
        %v3270 = vrot.slane %v1560, %v3269
        %v3271 = vlaneseq
        %v3272 = vshrl.u32 %v3271, 7
        %v3273 = vsub.s32 0, %v3272
        %v3274 = vrot.slane %v1574, %v3273
        %v3275 = vlaneseq
        %v3276 = vshrl.u32 %v3275, 7
        %v3277 = vsub.s32 1, %v3276
        %v3278 = vrot.slane %v1574, %v3277
        %v3279 = vlaneseq
        %v3280 = vshrl.u32 %v3279, 7
        %v3281 = vsub.s32 2, %v3280
        %v3282 = vrot.slane %v1574, %v3281
        %v3283 = vlaneseq
        %v3284 = vshrl.u32 %v3283, 7
        %v3285 = vsub.s32 3, %v3284
        %v3286 = vrot.slane %v1574, %v3285
        %v3287 = vlaneseq
        %v3288 = vshrl.u32 %v3287, 7
        %v3289 = vsub.s32 4, %v3288
        %v3290 = vrot.slane %v1574, %v3289
        %v3291 = vlaneseq
        %v3292 = vshrl.u32 %v3291, 7
        %v3293 = vsub.s32 5, %v3292
        %v3294 = vrot.slane %v1574, %v3293
        %v3295 = vlaneseq
        %v3296 = vshrl.u32 %v3295, 7
        %v3297 = vsub.s32 6, %v3296
        %v3298 = vrot.slane %v1574, %v3297
        %v3299 = vlaneseq
        %v3300 = vshrl.u32 %v3299, 7
        %v3301 = vsub.s32 7, %v3300
        %v3302 = vrot.slane %v1574, %v3301
        %v3303 = vlaneseq
        %v3304 = vshrl.u32 %v3303, 7
        %v3305 = vsub.s32 0, %v3304
        %v3306 = vrot.slane %v1588, %v3305
        %v3307 = vlaneseq
        %v3308 = vshrl.u32 %v3307, 7
        %v3309 = vsub.s32 1, %v3308
        %v3310 = vrot.slane %v1588, %v3309
        %v3311 = vlaneseq
        %v3312 = vshrl.u32 %v3311, 7
        %v3313 = vsub.s32 2, %v3312
        %v3314 = vrot.slane %v1588, %v3313
        %v3315 = vlaneseq
        %v3316 = vshrl.u32 %v3315, 7
        %v3317 = vsub.s32 3, %v3316
        %v3318 = vrot.slane %v1588, %v3317
        %v3319 = vlaneseq
        %v3320 = vshrl.u32 %v3319, 7
        %v3321 = vsub.s32 4, %v3320
        %v3322 = vrot.slane %v1588, %v3321
        %v3323 = vlaneseq
        %v3324 = vshrl.u32 %v3323, 7
        %v3325 = vsub.s32 5, %v3324
        %v3326 = vrot.slane %v1588, %v3325
        %v3327 = vlaneseq
        %v3328 = vshrl.u32 %v3327, 7
        %v3329 = vsub.s32 6, %v3328
        %v3330 = vrot.slane %v1588, %v3329
        %v3331 = vlaneseq
        %v3332 = vshrl.u32 %v3331, 7
        %v3333 = vsub.s32 7, %v3332
        %v3334 = vrot.slane %v1588, %v3333
        %v3335 = vlaneseq
        %v3336 = vshrl.u32 %v3335, 7
        %v3337 = vsub.s32 0, %v3336
        %v3338 = vrot.slane %v1602, %v3337
        %v3339 = vlaneseq
        %v3340 = vshrl.u32 %v3339, 7
        %v3341 = vsub.s32 1, %v3340
        %v3342 = vrot.slane %v1602, %v3341
        %v3343 = vlaneseq
        %v3344 = vshrl.u32 %v3343, 7
        %v3345 = vsub.s32 2, %v3344
        %v3346 = vrot.slane %v1602, %v3345
        %v3347 = vlaneseq
        %v3348 = vshrl.u32 %v3347, 7
        %v3349 = vsub.s32 3, %v3348
        %v3350 = vrot.slane %v1602, %v3349
        %v3351 = vlaneseq
        %v3352 = vshrl.u32 %v3351, 7
        %v3353 = vsub.s32 4, %v3352
        %v3354 = vrot.slane %v1602, %v3353
        %v3355 = vlaneseq
        %v3356 = vshrl.u32 %v3355, 7
        %v3357 = vsub.s32 5, %v3356
        %v3358 = vrot.slane %v1602, %v3357
        %v3359 = vlaneseq
        %v3360 = vshrl.u32 %v3359, 7
        %v3361 = vsub.s32 6, %v3360
        %v3362 = vrot.slane %v1602, %v3361
        %v3363 = vlaneseq
        %v3364 = vshrl.u32 %v3363, 7
        %v3365 = vsub.s32 7, %v3364
        %v3366 = vrot.slane %v1602, %v3365
        %v3367 = vlaneseq
        %v3368 = vshrl.u32 %v3367, 7
        %v3369 = vsub.s32 0, %v3368
        %v3370 = vrot.slane %v1616, %v3369
        %v3371 = vlaneseq
        %v3372 = vshrl.u32 %v3371, 7
        %v3373 = vsub.s32 1, %v3372
        %v3374 = vrot.slane %v1616, %v3373
        %v3375 = vlaneseq
        %v3376 = vshrl.u32 %v3375, 7
        %v3377 = vsub.s32 2, %v3376
        %v3378 = vrot.slane %v1616, %v3377
        %v3379 = vlaneseq
        %v3380 = vshrl.u32 %v3379, 7
        %v3381 = vsub.s32 3, %v3380
        %v3382 = vrot.slane %v1616, %v3381
        %v3383 = vlaneseq
        %v3384 = vshrl.u32 %v3383, 7
        %v3385 = vsub.s32 4, %v3384
        %v3386 = vrot.slane %v1616, %v3385
        %v3387 = vlaneseq
        %v3388 = vshrl.u32 %v3387, 7
        %v3389 = vsub.s32 5, %v3388
        %v3390 = vrot.slane %v1616, %v3389
        %v3391 = vlaneseq
        %v3392 = vshrl.u32 %v3391, 7
        %v3393 = vsub.s32 6, %v3392
        %v3394 = vrot.slane %v1616, %v3393
        %v3395 = vlaneseq
        %v3396 = vshrl.u32 %v3395, 7
        %v3397 = vsub.s32 7, %v3396
        %v3398 = vrot.slane %v1616, %v3397
        %v3399 = vlaneseq
        %v3400 = vshrl.u32 %v3399, 7
        %v3401 = vsub.s32 0, %v3400
        %v3402 = vrot.slane %v1630, %v3401
        %v3403 = vlaneseq
        %v3404 = vshrl.u32 %v3403, 7
        %v3405 = vsub.s32 1, %v3404
        %v3406 = vrot.slane %v1630, %v3405
        %v3407 = vlaneseq
        %v3408 = vshrl.u32 %v3407, 7
        %v3409 = vsub.s32 2, %v3408
        %v3410 = vrot.slane %v1630, %v3409
        %v3411 = vlaneseq
        %v3412 = vshrl.u32 %v3411, 7
        %v3413 = vsub.s32 3, %v3412
        %v3414 = vrot.slane %v1630, %v3413
        %v3415 = vlaneseq
        %v3416 = vshrl.u32 %v3415, 7
        %v3417 = vsub.s32 4, %v3416
        %v3418 = vrot.slane %v1630, %v3417
        %v3419 = vlaneseq
        %v3420 = vshrl.u32 %v3419, 7
        %v3421 = vsub.s32 5, %v3420
        %v3422 = vrot.slane %v1630, %v3421
        %v3423 = vlaneseq
        %v3424 = vshrl.u32 %v3423, 7
        %v3425 = vsub.s32 6, %v3424
        %v3426 = vrot.slane %v1630, %v3425
        %v3427 = vlaneseq
        %v3428 = vshrl.u32 %v3427, 7
        %v3429 = vsub.s32 7, %v3428
        %v3430 = vrot.slane %v1630, %v3429
        %v3431 = vlaneseq
        %v3432 = vshrl.u32 %v3431, 7
        %v3433 = vsub.s32 0, %v3432
        %v3434 = vrot.slane %v1644, %v3433
        %v3435 = vlaneseq
        %v3436 = vshrl.u32 %v3435, 7
        %v3437 = vsub.s32 1, %v3436
        %v3438 = vrot.slane %v1644, %v3437
        %v3439 = vlaneseq
        %v3440 = vshrl.u32 %v3439, 7
        %v3441 = vsub.s32 2, %v3440
        %v3442 = vrot.slane %v1644, %v3441
        %v3443 = vlaneseq
        %v3444 = vshrl.u32 %v3443, 7
        %v3445 = vsub.s32 3, %v3444
        %v3446 = vrot.slane %v1644, %v3445
        %v3447 = vlaneseq
        %v3448 = vshrl.u32 %v3447, 7
        %v3449 = vsub.s32 4, %v3448
        %v3450 = vrot.slane %v1644, %v3449
        %v3451 = vlaneseq
        %v3452 = vshrl.u32 %v3451, 7
        %v3453 = vsub.s32 5, %v3452
        %v3454 = vrot.slane %v1644, %v3453
        %v3455 = vlaneseq
        %v3456 = vshrl.u32 %v3455, 7
        %v3457 = vsub.s32 6, %v3456
        %v3458 = vrot.slane %v1644, %v3457
        %v3459 = vlaneseq
        %v3460 = vshrl.u32 %v3459, 7
        %v3461 = vsub.s32 7, %v3460
        %v3462 = vrot.slane %v1644, %v3461
        %v3463 = vlaneseq
        %v3464 = vshrl.u32 %v3463, 7
        %v3465 = vsub.s32 0, %v3464
        %v3466 = vrot.slane %v1658, %v3465
        %v3467 = vlaneseq
        %v3468 = vshrl.u32 %v3467, 7
        %v3469 = vsub.s32 1, %v3468
        %v3470 = vrot.slane %v1658, %v3469
        %v3471 = vlaneseq
        %v3472 = vshrl.u32 %v3471, 7
        %v3473 = vsub.s32 2, %v3472
        %v3474 = vrot.slane %v1658, %v3473
        %v3475 = vlaneseq
        %v3476 = vshrl.u32 %v3475, 7
        %v3477 = vsub.s32 3, %v3476
        %v3478 = vrot.slane %v1658, %v3477
        %v3479 = vlaneseq
        %v3480 = vshrl.u32 %v3479, 7
        %v3481 = vsub.s32 4, %v3480
        %v3482 = vrot.slane %v1658, %v3481
        %v3483 = vlaneseq
        %v3484 = vshrl.u32 %v3483, 7
        %v3485 = vsub.s32 5, %v3484
        %v3486 = vrot.slane %v1658, %v3485
        %v3487 = vlaneseq
        %v3488 = vshrl.u32 %v3487, 7
        %v3489 = vsub.s32 6, %v3488
        %v3490 = vrot.slane %v1658, %v3489
        %v3491 = vlaneseq
        %v3492 = vshrl.u32 %v3491, 7
        %v3493 = vsub.s32 7, %v3492
        %v3494 = vrot.slane %v1658, %v3493
        %v3495 = vlaneseq
        %v3496 = vshrl.u32 %v3495, 7
        %v3497 = vsub.s32 0, %v3496
        %v3498 = vrot.slane %v1672, %v3497
        %v3499 = vlaneseq
        %v3500 = vshrl.u32 %v3499, 7
        %v3501 = vsub.s32 1, %v3500
        %v3502 = vrot.slane %v1672, %v3501
        %v3503 = vlaneseq
        %v3504 = vshrl.u32 %v3503, 7
        %v3505 = vsub.s32 2, %v3504
        %v3506 = vrot.slane %v1672, %v3505
        %v3507 = vlaneseq
        %v3508 = vshrl.u32 %v3507, 7
        %v3509 = vsub.s32 3, %v3508
        %v3510 = vrot.slane %v1672, %v3509
        %v3511 = vlaneseq
        %v3512 = vshrl.u32 %v3511, 7
        %v3513 = vsub.s32 4, %v3512
        %v3514 = vrot.slane %v1672, %v3513
        %v3515 = vlaneseq
        %v3516 = vshrl.u32 %v3515, 7
        %v3517 = vsub.s32 5, %v3516
        %v3518 = vrot.slane %v1672, %v3517
        %v3519 = vlaneseq
        %v3520 = vshrl.u32 %v3519, 7
        %v3521 = vsub.s32 6, %v3520
        %v3522 = vrot.slane %v1672, %v3521
        %v3523 = vlaneseq
        %v3524 = vshrl.u32 %v3523, 7
        %v3525 = vsub.s32 7, %v3524
        %v3526 = vrot.slane %v1672, %v3525
        %v3527 = vlaneseq
        %v3528 = vshrl.u32 %v3527, 7
        %v3529 = vsub.s32 0, %v3528
        %v3530 = vrot.slane %v1686, %v3529
        %v3531 = vlaneseq
        %v3532 = vshrl.u32 %v3531, 7
        %v3533 = vsub.s32 1, %v3532
        %v3534 = vrot.slane %v1686, %v3533
        %v3535 = vlaneseq
        %v3536 = vshrl.u32 %v3535, 7
        %v3537 = vsub.s32 2, %v3536
        %v3538 = vrot.slane %v1686, %v3537
        %v3539 = vlaneseq
        %v3540 = vshrl.u32 %v3539, 7
        %v3541 = vsub.s32 3, %v3540
        %v3542 = vrot.slane %v1686, %v3541
        %v3543 = vlaneseq
        %v3544 = vshrl.u32 %v3543, 7
        %v3545 = vsub.s32 4, %v3544
        %v3546 = vrot.slane %v1686, %v3545
        %v3547 = vlaneseq
        %v3548 = vshrl.u32 %v3547, 7
        %v3549 = vsub.s32 5, %v3548
        %v3550 = vrot.slane %v1686, %v3549
        %v3551 = vlaneseq
        %v3552 = vshrl.u32 %v3551, 7
        %v3553 = vsub.s32 6, %v3552
        %v3554 = vrot.slane %v1686, %v3553
        %v3555 = vlaneseq
        %v3556 = vshrl.u32 %v3555, 7
        %v3557 = vsub.s32 7, %v3556
        %v3558 = vrot.slane %v1686, %v3557
        %v3559 = vlaneseq
        %v3560 = vshrl.u32 %v3559, 7
        %v3561 = vsub.s32 0, %v3560
        %v3562 = vrot.slane %v1700, %v3561
        %v3563 = vlaneseq
        %v3564 = vshrl.u32 %v3563, 7
        %v3565 = vsub.s32 1, %v3564
        %v3566 = vrot.slane %v1700, %v3565
        %v3567 = vlaneseq
        %v3568 = vshrl.u32 %v3567, 7
        %v3569 = vsub.s32 2, %v3568
        %v3570 = vrot.slane %v1700, %v3569
        %v3571 = vlaneseq
        %v3572 = vshrl.u32 %v3571, 7
        %v3573 = vsub.s32 3, %v3572
        %v3574 = vrot.slane %v1700, %v3573
        %v3575 = vlaneseq
        %v3576 = vshrl.u32 %v3575, 7
        %v3577 = vsub.s32 4, %v3576
        %v3578 = vrot.slane %v1700, %v3577
        %v3579 = vlaneseq
        %v3580 = vshrl.u32 %v3579, 7
        %v3581 = vsub.s32 5, %v3580
        %v3582 = vrot.slane %v1700, %v3581
        %v3583 = vlaneseq
        %v3584 = vshrl.u32 %v3583, 7
        %v3585 = vsub.s32 6, %v3584
        %v3586 = vrot.slane %v1700, %v3585
        %v3587 = vlaneseq
        %v3588 = vshrl.u32 %v3587, 7
        %v3589 = vsub.s32 7, %v3588
        %v3590 = vrot.slane %v1700, %v3589
        %v3591 = vcombine.low %v2570, %v2574
        %v3592 = vcombine.low %v2578, %v2582
        %v3593 = vcombine.low %v2586, %v2590
        %v3594 = vcombine.low %v2594, %v2598
        %v3596 = vunpack.c.l.s4 1966171168
        %v3597 = vunpack.c.0.s8 %v3596
        %v3598 = vlaneseq
        %v3599 = vshrl.u32 %v3598, 7
        %v3600 = vsub.s32 %v3597, %v3599
        %v3601 = vrot.slane %v3591, %v3600
        %v3603 = vunpack.c.l.s4 1966171168
        %v3604 = vunpack.c.0.s8 %v3603
        %v3605 = vlaneseq
        %v3606 = vshrl.u32 %v3605, 7
        %v3607 = vsub.s32 %v3604, %v3606
        %v3608 = vrot.slane %v3592, %v3607
        %v3610 = vunpack.c.l.s4 1966171168
        %v3611 = vunpack.c.0.s8 %v3610
        %v3612 = vlaneseq
        %v3613 = vshrl.u32 %v3612, 7
        %v3614 = vsub.s32 %v3611, %v3613
        %v3615 = vrot.slane %v3593, %v3614
        %v3617 = vunpack.c.l.s4 1966171168
        %v3618 = vunpack.c.0.s8 %v3617
        %v3619 = vlaneseq
        %v3620 = vshrl.u32 %v3619, 7
        %v3621 = vsub.s32 %v3618, %v3620
        %v3622 = vrot.slane %v3594, %v3621
        %v3623 = vcombine.low %v3601, %v3608
        %v3624 = vcombine.low %v3615, %v3622
        %v3626 = vunpack.c.l.s4 1966171168
        %v3627 = vunpack.c.0.s8 %v3626
        %v3628 = vlaneseq
        %v3629 = vshrl.u32 %v3628, 7
        %v3630 = vsub.s32 %v3627, %v3629
        %v3631 = vrot.slane %v3623, %v3630
        %v3633 = vunpack.c.l.s4 1966171168
        %v3634 = vunpack.c.0.s8 %v3633
        %v3635 = vlaneseq
        %v3636 = vshrl.u32 %v3635, 7
        %v3637 = vsub.s32 %v3634, %v3636
        %v3638 = vrot.slane %v3624, %v3637
        %v3639 = vcombine.low %v3631, %v3638
        %v3640 = vcombine.low %v2602, %v2606
        %v3641 = vcombine.low %v2610, %v2614
        %v3642 = vcombine.low %v2618, %v2622
        %v3643 = vcombine.low %v2626, %v2630
        %v3645 = vunpack.c.l.s4 1966171168
        %v3646 = vunpack.c.0.s8 %v3645
        %v3647 = vlaneseq
        %v3648 = vshrl.u32 %v3647, 7
        %v3649 = vsub.s32 %v3646, %v3648
        %v3650 = vrot.slane %v3640, %v3649
        %v3652 = vunpack.c.l.s4 1966171168
        %v3653 = vunpack.c.0.s8 %v3652
        %v3654 = vlaneseq
        %v3655 = vshrl.u32 %v3654, 7
        %v3656 = vsub.s32 %v3653, %v3655
        %v3657 = vrot.slane %v3641, %v3656
        %v3659 = vunpack.c.l.s4 1966171168
        %v3660 = vunpack.c.0.s8 %v3659
        %v3661 = vlaneseq
        %v3662 = vshrl.u32 %v3661, 7
        %v3663 = vsub.s32 %v3660, %v3662
        %v3664 = vrot.slane %v3642, %v3663
        %v3666 = vunpack.c.l.s4 1966171168
        %v3667 = vunpack.c.0.s8 %v3666
        %v3668 = vlaneseq
        %v3669 = vshrl.u32 %v3668, 7
        %v3670 = vsub.s32 %v3667, %v3669
        %v3671 = vrot.slane %v3643, %v3670
        %v3672 = vcombine.low %v3650, %v3657
        %v3673 = vcombine.low %v3664, %v3671
        %v3675 = vunpack.c.l.s4 1966171168
        %v3676 = vunpack.c.0.s8 %v3675
        %v3677 = vlaneseq
        %v3678 = vshrl.u32 %v3677, 7
        %v3679 = vsub.s32 %v3676, %v3678
        %v3680 = vrot.slane %v3672, %v3679
        %v3682 = vunpack.c.l.s4 1966171168
        %v3683 = vunpack.c.0.s8 %v3682
        %v3684 = vlaneseq
        %v3685 = vshrl.u32 %v3684, 7
        %v3686 = vsub.s32 %v3683, %v3685
        %v3687 = vrot.slane %v3673, %v3686
        %v3688 = vcombine.low %v3680, %v3687
        %v3689 = vcombine.low %v2634, %v2638
        %v3690 = vcombine.low %v2642, %v2646
        %v3691 = vcombine.low %v2650, %v2654
        %v3692 = vcombine.low %v2658, %v2662
        %v3694 = vunpack.c.l.s4 1966171168
        %v3695 = vunpack.c.0.s8 %v3694
        %v3696 = vlaneseq
        %v3697 = vshrl.u32 %v3696, 7
        %v3698 = vsub.s32 %v3695, %v3697
        %v3699 = vrot.slane %v3689, %v3698
        %v3701 = vunpack.c.l.s4 1966171168
        %v3702 = vunpack.c.0.s8 %v3701
        %v3703 = vlaneseq
        %v3704 = vshrl.u32 %v3703, 7
        %v3705 = vsub.s32 %v3702, %v3704
        %v3706 = vrot.slane %v3690, %v3705
        %v3708 = vunpack.c.l.s4 1966171168
        %v3709 = vunpack.c.0.s8 %v3708
        %v3710 = vlaneseq
        %v3711 = vshrl.u32 %v3710, 7
        %v3712 = vsub.s32 %v3709, %v3711
        %v3713 = vrot.slane %v3691, %v3712
        %v3715 = vunpack.c.l.s4 1966171168
        %v3716 = vunpack.c.0.s8 %v3715
        %v3717 = vlaneseq
        %v3718 = vshrl.u32 %v3717, 7
        %v3719 = vsub.s32 %v3716, %v3718
        %v3720 = vrot.slane %v3692, %v3719
        %v3721 = vcombine.low %v3699, %v3706
        %v3722 = vcombine.low %v3713, %v3720
        %v3724 = vunpack.c.l.s4 1966171168
        %v3725 = vunpack.c.0.s8 %v3724
        %v3726 = vlaneseq
        %v3727 = vshrl.u32 %v3726, 7
        %v3728 = vsub.s32 %v3725, %v3727
        %v3729 = vrot.slane %v3721, %v3728
        %v3731 = vunpack.c.l.s4 1966171168
        %v3732 = vunpack.c.0.s8 %v3731
        %v3733 = vlaneseq
        %v3734 = vshrl.u32 %v3733, 7
        %v3735 = vsub.s32 %v3732, %v3734
        %v3736 = vrot.slane %v3722, %v3735
        %v3737 = vcombine.low %v3729, %v3736
        %v3738 = vcombine.low %v2666, %v2670
        %v3739 = vcombine.low %v2674, %v2678
        %v3740 = vcombine.low %v2682, %v2686
        %v3741 = vcombine.low %v2690, %v2694
        %v3743 = vunpack.c.l.s4 1966171168
        %v3744 = vunpack.c.0.s8 %v3743
        %v3745 = vlaneseq
        %v3746 = vshrl.u32 %v3745, 7
        %v3747 = vsub.s32 %v3744, %v3746
        %v3748 = vrot.slane %v3738, %v3747
        %v3750 = vunpack.c.l.s4 1966171168
        %v3751 = vunpack.c.0.s8 %v3750
        %v3752 = vlaneseq
        %v3753 = vshrl.u32 %v3752, 7
        %v3754 = vsub.s32 %v3751, %v3753
        %v3755 = vrot.slane %v3739, %v3754
        %v3757 = vunpack.c.l.s4 1966171168
        %v3758 = vunpack.c.0.s8 %v3757
        %v3759 = vlaneseq
        %v3760 = vshrl.u32 %v3759, 7
        %v3761 = vsub.s32 %v3758, %v3760
        %v3762 = vrot.slane %v3740, %v3761
        %v3764 = vunpack.c.l.s4 1966171168
        %v3765 = vunpack.c.0.s8 %v3764
        %v3766 = vlaneseq
        %v3767 = vshrl.u32 %v3766, 7
        %v3768 = vsub.s32 %v3765, %v3767
        %v3769 = vrot.slane %v3741, %v3768
        %v3770 = vcombine.low %v3748, %v3755
        %v3771 = vcombine.low %v3762, %v3769
        %v3773 = vunpack.c.l.s4 1966171168
        %v3774 = vunpack.c.0.s8 %v3773
        %v3775 = vlaneseq
        %v3776 = vshrl.u32 %v3775, 7
        %v3777 = vsub.s32 %v3774, %v3776
        %v3778 = vrot.slane %v3770, %v3777
        %v3780 = vunpack.c.l.s4 1966171168
        %v3781 = vunpack.c.0.s8 %v3780
        %v3782 = vlaneseq
        %v3783 = vshrl.u32 %v3782, 7
        %v3784 = vsub.s32 %v3781, %v3783
        %v3785 = vrot.slane %v3771, %v3784
        %v3786 = vcombine.low %v3778, %v3785
        %v3787 = vcombine.low %v2698, %v2702
        %v3788 = vcombine.low %v2706, %v2710
        %v3789 = vcombine.low %v2714, %v2718
        %v3790 = vcombine.low %v2722, %v2726
        %v3792 = vunpack.c.l.s4 1966171168
        %v3793 = vunpack.c.0.s8 %v3792
        %v3794 = vlaneseq
        %v3795 = vshrl.u32 %v3794, 7
        %v3796 = vsub.s32 %v3793, %v3795
        %v3797 = vrot.slane %v3787, %v3796
        %v3799 = vunpack.c.l.s4 1966171168
        %v3800 = vunpack.c.0.s8 %v3799
        %v3801 = vlaneseq
        %v3802 = vshrl.u32 %v3801, 7
        %v3803 = vsub.s32 %v3800, %v3802
        %v3804 = vrot.slane %v3788, %v3803
        %v3806 = vunpack.c.l.s4 1966171168
        %v3807 = vunpack.c.0.s8 %v3806
        %v3808 = vlaneseq
        %v3809 = vshrl.u32 %v3808, 7
        %v3810 = vsub.s32 %v3807, %v3809
        %v3811 = vrot.slane %v3789, %v3810
        %v3813 = vunpack.c.l.s4 1966171168
        %v3814 = vunpack.c.0.s8 %v3813
        %v3815 = vlaneseq
        %v3816 = vshrl.u32 %v3815, 7
        %v3817 = vsub.s32 %v3814, %v3816
        %v3818 = vrot.slane %v3790, %v3817
        %v3819 = vcombine.low %v3797, %v3804
        %v3820 = vcombine.low %v3811, %v3818
        %v3822 = vunpack.c.l.s4 1966171168
        %v3823 = vunpack.c.0.s8 %v3822
        %v3824 = vlaneseq
        %v3825 = vshrl.u32 %v3824, 7
        %v3826 = vsub.s32 %v3823, %v3825
        %v3827 = vrot.slane %v3819, %v3826
        %v3829 = vunpack.c.l.s4 1966171168
        %v3830 = vunpack.c.0.s8 %v3829
        %v3831 = vlaneseq
        %v3832 = vshrl.u32 %v3831, 7
        %v3833 = vsub.s32 %v3830, %v3832
        %v3834 = vrot.slane %v3820, %v3833
        %v3835 = vcombine.low %v3827, %v3834
        %v3836 = vcombine.low %v2730, %v2734
        %v3837 = vcombine.low %v2738, %v2742
        %v3838 = vcombine.low %v2746, %v2750
        %v3839 = vcombine.low %v2754, %v2758
        %v3841 = vunpack.c.l.s4 1966171168
        %v3842 = vunpack.c.0.s8 %v3841
        %v3843 = vlaneseq
        %v3844 = vshrl.u32 %v3843, 7
        %v3845 = vsub.s32 %v3842, %v3844
        %v3846 = vrot.slane %v3836, %v3845
        %v3848 = vunpack.c.l.s4 1966171168
        %v3849 = vunpack.c.0.s8 %v3848
        %v3850 = vlaneseq
        %v3851 = vshrl.u32 %v3850, 7
        %v3852 = vsub.s32 %v3849, %v3851
        %v3853 = vrot.slane %v3837, %v3852
        %v3855 = vunpack.c.l.s4 1966171168
        %v3856 = vunpack.c.0.s8 %v3855
        %v3857 = vlaneseq
        %v3858 = vshrl.u32 %v3857, 7
        %v3859 = vsub.s32 %v3856, %v3858
        %v3860 = vrot.slane %v3838, %v3859
        %v3862 = vunpack.c.l.s4 1966171168
        %v3863 = vunpack.c.0.s8 %v3862
        %v3864 = vlaneseq
        %v3865 = vshrl.u32 %v3864, 7
        %v3866 = vsub.s32 %v3863, %v3865
        %v3867 = vrot.slane %v3839, %v3866
        %v3868 = vcombine.low %v3846, %v3853
        %v3869 = vcombine.low %v3860, %v3867
        %v3871 = vunpack.c.l.s4 1966171168
        %v3872 = vunpack.c.0.s8 %v3871
        %v3873 = vlaneseq
        %v3874 = vshrl.u32 %v3873, 7
        %v3875 = vsub.s32 %v3872, %v3874
        %v3876 = vrot.slane %v3868, %v3875
        %v3878 = vunpack.c.l.s4 1966171168
        %v3879 = vunpack.c.0.s8 %v3878
        %v3880 = vlaneseq
        %v3881 = vshrl.u32 %v3880, 7
        %v3882 = vsub.s32 %v3879, %v3881
        %v3883 = vrot.slane %v3869, %v3882
        %v3884 = vcombine.low %v3876, %v3883
        %v3885 = vcombine.low %v2762, %v2766
        %v3886 = vcombine.low %v2770, %v2774
        %v3887 = vcombine.low %v2778, %v2782
        %v3888 = vcombine.low %v2786, %v2790
        %v3890 = vunpack.c.l.s4 1966171168
        %v3891 = vunpack.c.0.s8 %v3890
        %v3892 = vlaneseq
        %v3893 = vshrl.u32 %v3892, 7
        %v3894 = vsub.s32 %v3891, %v3893
        %v3895 = vrot.slane %v3885, %v3894
        %v3897 = vunpack.c.l.s4 1966171168
        %v3898 = vunpack.c.0.s8 %v3897
        %v3899 = vlaneseq
        %v3900 = vshrl.u32 %v3899, 7
        %v3901 = vsub.s32 %v3898, %v3900
        %v3902 = vrot.slane %v3886, %v3901
        %v3904 = vunpack.c.l.s4 1966171168
        %v3905 = vunpack.c.0.s8 %v3904
        %v3906 = vlaneseq
        %v3907 = vshrl.u32 %v3906, 7
        %v3908 = vsub.s32 %v3905, %v3907
        %v3909 = vrot.slane %v3887, %v3908
        %v3911 = vunpack.c.l.s4 1966171168
        %v3912 = vunpack.c.0.s8 %v3911
        %v3913 = vlaneseq
        %v3914 = vshrl.u32 %v3913, 7
        %v3915 = vsub.s32 %v3912, %v3914
        %v3916 = vrot.slane %v3888, %v3915
        %v3917 = vcombine.low %v3895, %v3902
        %v3918 = vcombine.low %v3909, %v3916
        %v3920 = vunpack.c.l.s4 1966171168
        %v3921 = vunpack.c.0.s8 %v3920
        %v3922 = vlaneseq
        %v3923 = vshrl.u32 %v3922, 7
        %v3924 = vsub.s32 %v3921, %v3923
        %v3925 = vrot.slane %v3917, %v3924
        %v3927 = vunpack.c.l.s4 1966171168
        %v3928 = vunpack.c.0.s8 %v3927
        %v3929 = vlaneseq
        %v3930 = vshrl.u32 %v3929, 7
        %v3931 = vsub.s32 %v3928, %v3930
        %v3932 = vrot.slane %v3918, %v3931
        %v3933 = vcombine.low %v3925, %v3932
        %v3934 = vcombine.low %v2794, %v2798
        %v3935 = vcombine.low %v2802, %v2806
        %v3936 = vcombine.low %v2810, %v2814
        %v3937 = vcombine.low %v2818, %v2822
        %v3939 = vunpack.c.l.s4 1966171168
        %v3940 = vunpack.c.0.s8 %v3939
        %v3941 = vlaneseq
        %v3942 = vshrl.u32 %v3941, 7
        %v3943 = vsub.s32 %v3940, %v3942
        %v3944 = vrot.slane %v3934, %v3943
        %v3946 = vunpack.c.l.s4 1966171168
        %v3947 = vunpack.c.0.s8 %v3946
        %v3948 = vlaneseq
        %v3949 = vshrl.u32 %v3948, 7
        %v3950 = vsub.s32 %v3947, %v3949
        %v3951 = vrot.slane %v3935, %v3950
        %v3953 = vunpack.c.l.s4 1966171168
        %v3954 = vunpack.c.0.s8 %v3953
        %v3955 = vlaneseq
        %v3956 = vshrl.u32 %v3955, 7
        %v3957 = vsub.s32 %v3954, %v3956
        %v3958 = vrot.slane %v3936, %v3957
        %v3960 = vunpack.c.l.s4 1966171168
        %v3961 = vunpack.c.0.s8 %v3960
        %v3962 = vlaneseq
        %v3963 = vshrl.u32 %v3962, 7
        %v3964 = vsub.s32 %v3961, %v3963
        %v3965 = vrot.slane %v3937, %v3964
        %v3966 = vcombine.low %v3944, %v3951
        %v3967 = vcombine.low %v3958, %v3965
        %v3969 = vunpack.c.l.s4 1966171168
        %v3970 = vunpack.c.0.s8 %v3969
        %v3971 = vlaneseq
        %v3972 = vshrl.u32 %v3971, 7
        %v3973 = vsub.s32 %v3970, %v3972
        %v3974 = vrot.slane %v3966, %v3973
        %v3976 = vunpack.c.l.s4 1966171168
        %v3977 = vunpack.c.0.s8 %v3976
        %v3978 = vlaneseq
        %v3979 = vshrl.u32 %v3978, 7
        %v3980 = vsub.s32 %v3977, %v3979
        %v3981 = vrot.slane %v3967, %v3980
        %v3982 = vcombine.low %v3974, %v3981
        %v3983 = vcombine.low %v2826, %v2830
        %v3984 = vcombine.low %v2834, %v2838
        %v3985 = vcombine.low %v2842, %v2846
        %v3986 = vcombine.low %v2850, %v2854
        %v3988 = vunpack.c.l.s4 1966171168
        %v3989 = vunpack.c.0.s8 %v3988
        %v3990 = vlaneseq
        %v3991 = vshrl.u32 %v3990, 7
        %v3992 = vsub.s32 %v3989, %v3991
        %v3993 = vrot.slane %v3983, %v3992
        %v3995 = vunpack.c.l.s4 1966171168
        %v3996 = vunpack.c.0.s8 %v3995
        %v3997 = vlaneseq
        %v3998 = vshrl.u32 %v3997, 7
        %v3999 = vsub.s32 %v3996, %v3998
        %v4000 = vrot.slane %v3984, %v3999
        %v4002 = vunpack.c.l.s4 1966171168
        %v4003 = vunpack.c.0.s8 %v4002
        %v4004 = vlaneseq
        %v4005 = vshrl.u32 %v4004, 7
        %v4006 = vsub.s32 %v4003, %v4005
        %v4007 = vrot.slane %v3985, %v4006
        %v4009 = vunpack.c.l.s4 1966171168
        %v4010 = vunpack.c.0.s8 %v4009
        %v4011 = vlaneseq
        %v4012 = vshrl.u32 %v4011, 7
        %v4013 = vsub.s32 %v4010, %v4012
        %v4014 = vrot.slane %v3986, %v4013
        %v4015 = vcombine.low %v3993, %v4000
        %v4016 = vcombine.low %v4007, %v4014
        %v4018 = vunpack.c.l.s4 1966171168
        %v4019 = vunpack.c.0.s8 %v4018
        %v4020 = vlaneseq
        %v4021 = vshrl.u32 %v4020, 7
        %v4022 = vsub.s32 %v4019, %v4021
        %v4023 = vrot.slane %v4015, %v4022
        %v4025 = vunpack.c.l.s4 1966171168
        %v4026 = vunpack.c.0.s8 %v4025
        %v4027 = vlaneseq
        %v4028 = vshrl.u32 %v4027, 7
        %v4029 = vsub.s32 %v4026, %v4028
        %v4030 = vrot.slane %v4016, %v4029
        %v4031 = vcombine.low %v4023, %v4030
        %v4032 = vcombine.low %v2858, %v2862
        %v4033 = vcombine.low %v2866, %v2870
        %v4034 = vcombine.low %v2874, %v2878
        %v4035 = vcombine.low %v2882, %v2886
        %v4037 = vunpack.c.l.s4 1966171168
        %v4038 = vunpack.c.0.s8 %v4037
        %v4039 = vlaneseq
        %v4040 = vshrl.u32 %v4039, 7
        %v4041 = vsub.s32 %v4038, %v4040
        %v4042 = vrot.slane %v4032, %v4041
        %v4044 = vunpack.c.l.s4 1966171168
        %v4045 = vunpack.c.0.s8 %v4044
        %v4046 = vlaneseq
        %v4047 = vshrl.u32 %v4046, 7
        %v4048 = vsub.s32 %v4045, %v4047
        %v4049 = vrot.slane %v4033, %v4048
        %v4051 = vunpack.c.l.s4 1966171168
        %v4052 = vunpack.c.0.s8 %v4051
        %v4053 = vlaneseq
        %v4054 = vshrl.u32 %v4053, 7
        %v4055 = vsub.s32 %v4052, %v4054
        %v4056 = vrot.slane %v4034, %v4055
        %v4058 = vunpack.c.l.s4 1966171168
        %v4059 = vunpack.c.0.s8 %v4058
        %v4060 = vlaneseq
        %v4061 = vshrl.u32 %v4060, 7
        %v4062 = vsub.s32 %v4059, %v4061
        %v4063 = vrot.slane %v4035, %v4062
        %v4064 = vcombine.low %v4042, %v4049
        %v4065 = vcombine.low %v4056, %v4063
        %v4067 = vunpack.c.l.s4 1966171168
        %v4068 = vunpack.c.0.s8 %v4067
        %v4069 = vlaneseq
        %v4070 = vshrl.u32 %v4069, 7
        %v4071 = vsub.s32 %v4068, %v4070
        %v4072 = vrot.slane %v4064, %v4071
        %v4074 = vunpack.c.l.s4 1966171168
        %v4075 = vunpack.c.0.s8 %v4074
        %v4076 = vlaneseq
        %v4077 = vshrl.u32 %v4076, 7
        %v4078 = vsub.s32 %v4075, %v4077
        %v4079 = vrot.slane %v4065, %v4078
        %v4080 = vcombine.low %v4072, %v4079
        %v4081 = vcombine.low %v2890, %v2894
        %v4082 = vcombine.low %v2898, %v2902
        %v4083 = vcombine.low %v2906, %v2910
        %v4084 = vcombine.low %v2914, %v2918
        %v4086 = vunpack.c.l.s4 1966171168
        %v4087 = vunpack.c.0.s8 %v4086
        %v4088 = vlaneseq
        %v4089 = vshrl.u32 %v4088, 7
        %v4090 = vsub.s32 %v4087, %v4089
        %v4091 = vrot.slane %v4081, %v4090
        %v4093 = vunpack.c.l.s4 1966171168
        %v4094 = vunpack.c.0.s8 %v4093
        %v4095 = vlaneseq
        %v4096 = vshrl.u32 %v4095, 7
        %v4097 = vsub.s32 %v4094, %v4096
        %v4098 = vrot.slane %v4082, %v4097
        %v4100 = vunpack.c.l.s4 1966171168
        %v4101 = vunpack.c.0.s8 %v4100
        %v4102 = vlaneseq
        %v4103 = vshrl.u32 %v4102, 7
        %v4104 = vsub.s32 %v4101, %v4103
        %v4105 = vrot.slane %v4083, %v4104
        %v4107 = vunpack.c.l.s4 1966171168
        %v4108 = vunpack.c.0.s8 %v4107
        %v4109 = vlaneseq
        %v4110 = vshrl.u32 %v4109, 7
        %v4111 = vsub.s32 %v4108, %v4110
        %v4112 = vrot.slane %v4084, %v4111
        %v4113 = vcombine.low %v4091, %v4098
        %v4114 = vcombine.low %v4105, %v4112
        %v4116 = vunpack.c.l.s4 1966171168
        %v4117 = vunpack.c.0.s8 %v4116
        %v4118 = vlaneseq
        %v4119 = vshrl.u32 %v4118, 7
        %v4120 = vsub.s32 %v4117, %v4119
        %v4121 = vrot.slane %v4113, %v4120
        %v4123 = vunpack.c.l.s4 1966171168
        %v4124 = vunpack.c.0.s8 %v4123
        %v4125 = vlaneseq
        %v4126 = vshrl.u32 %v4125, 7
        %v4127 = vsub.s32 %v4124, %v4126
        %v4128 = vrot.slane %v4114, %v4127
        %v4129 = vcombine.low %v4121, %v4128
        %v4130 = vcombine.low %v2922, %v2926
        %v4131 = vcombine.low %v2930, %v2934
        %v4132 = vcombine.low %v2938, %v2942
        %v4133 = vcombine.low %v2946, %v2950
        %v4135 = vunpack.c.l.s4 1966171168
        %v4136 = vunpack.c.0.s8 %v4135
        %v4137 = vlaneseq
        %v4138 = vshrl.u32 %v4137, 7
        %v4139 = vsub.s32 %v4136, %v4138
        %v4140 = vrot.slane %v4130, %v4139
        %v4142 = vunpack.c.l.s4 1966171168
        %v4143 = vunpack.c.0.s8 %v4142
        %v4144 = vlaneseq
        %v4145 = vshrl.u32 %v4144, 7
        %v4146 = vsub.s32 %v4143, %v4145
        %v4147 = vrot.slane %v4131, %v4146
        %v4149 = vunpack.c.l.s4 1966171168
        %v4150 = vunpack.c.0.s8 %v4149
        %v4151 = vlaneseq
        %v4152 = vshrl.u32 %v4151, 7
        %v4153 = vsub.s32 %v4150, %v4152
        %v4154 = vrot.slane %v4132, %v4153
        %v4156 = vunpack.c.l.s4 1966171168
        %v4157 = vunpack.c.0.s8 %v4156
        %v4158 = vlaneseq
        %v4159 = vshrl.u32 %v4158, 7
        %v4160 = vsub.s32 %v4157, %v4159
        %v4161 = vrot.slane %v4133, %v4160
        %v4162 = vcombine.low %v4140, %v4147
        %v4163 = vcombine.low %v4154, %v4161
        %v4165 = vunpack.c.l.s4 1966171168
        %v4166 = vunpack.c.0.s8 %v4165
        %v4167 = vlaneseq
        %v4168 = vshrl.u32 %v4167, 7
        %v4169 = vsub.s32 %v4166, %v4168
        %v4170 = vrot.slane %v4162, %v4169
        %v4172 = vunpack.c.l.s4 1966171168
        %v4173 = vunpack.c.0.s8 %v4172
        %v4174 = vlaneseq
        %v4175 = vshrl.u32 %v4174, 7
        %v4176 = vsub.s32 %v4173, %v4175
        %v4177 = vrot.slane %v4163, %v4176
        %v4178 = vcombine.low %v4170, %v4177
        %v4179 = vcombine.low %v2954, %v2958
        %v4180 = vcombine.low %v2962, %v2966
        %v4181 = vcombine.low %v2970, %v2974
        %v4182 = vcombine.low %v2978, %v2982
        %v4184 = vunpack.c.l.s4 1966171168
        %v4185 = vunpack.c.0.s8 %v4184
        %v4186 = vlaneseq
        %v4187 = vshrl.u32 %v4186, 7
        %v4188 = vsub.s32 %v4185, %v4187
        %v4189 = vrot.slane %v4179, %v4188
        %v4191 = vunpack.c.l.s4 1966171168
        %v4192 = vunpack.c.0.s8 %v4191
        %v4193 = vlaneseq
        %v4194 = vshrl.u32 %v4193, 7
        %v4195 = vsub.s32 %v4192, %v4194
        %v4196 = vrot.slane %v4180, %v4195
        %v4198 = vunpack.c.l.s4 1966171168
        %v4199 = vunpack.c.0.s8 %v4198
        %v4200 = vlaneseq
        %v4201 = vshrl.u32 %v4200, 7
        %v4202 = vsub.s32 %v4199, %v4201
        %v4203 = vrot.slane %v4181, %v4202
        %v4205 = vunpack.c.l.s4 1966171168
        %v4206 = vunpack.c.0.s8 %v4205
        %v4207 = vlaneseq
        %v4208 = vshrl.u32 %v4207, 7
        %v4209 = vsub.s32 %v4206, %v4208
        %v4210 = vrot.slane %v4182, %v4209
        %v4211 = vcombine.low %v4189, %v4196
        %v4212 = vcombine.low %v4203, %v4210
        %v4214 = vunpack.c.l.s4 1966171168
        %v4215 = vunpack.c.0.s8 %v4214
        %v4216 = vlaneseq
        %v4217 = vshrl.u32 %v4216, 7
        %v4218 = vsub.s32 %v4215, %v4217
        %v4219 = vrot.slane %v4211, %v4218
        %v4221 = vunpack.c.l.s4 1966171168
        %v4222 = vunpack.c.0.s8 %v4221
        %v4223 = vlaneseq
        %v4224 = vshrl.u32 %v4223, 7
        %v4225 = vsub.s32 %v4222, %v4224
        %v4226 = vrot.slane %v4212, %v4225
        %v4227 = vcombine.low %v4219, %v4226
        %v4228 = vcombine.low %v2986, %v2990
        %v4229 = vcombine.low %v2994, %v2998
        %v4230 = vcombine.low %v3002, %v3006
        %v4231 = vcombine.low %v3010, %v3014
        %v4233 = vunpack.c.l.s4 1966171168
        %v4234 = vunpack.c.0.s8 %v4233
        %v4235 = vlaneseq
        %v4236 = vshrl.u32 %v4235, 7
        %v4237 = vsub.s32 %v4234, %v4236
        %v4238 = vrot.slane %v4228, %v4237
        %v4240 = vunpack.c.l.s4 1966171168
        %v4241 = vunpack.c.0.s8 %v4240
        %v4242 = vlaneseq
        %v4243 = vshrl.u32 %v4242, 7
        %v4244 = vsub.s32 %v4241, %v4243
        %v4245 = vrot.slane %v4229, %v4244
        %v4247 = vunpack.c.l.s4 1966171168
        %v4248 = vunpack.c.0.s8 %v4247
        %v4249 = vlaneseq
        %v4250 = vshrl.u32 %v4249, 7
        %v4251 = vsub.s32 %v4248, %v4250
        %v4252 = vrot.slane %v4230, %v4251
        %v4254 = vunpack.c.l.s4 1966171168
        %v4255 = vunpack.c.0.s8 %v4254
        %v4256 = vlaneseq
        %v4257 = vshrl.u32 %v4256, 7
        %v4258 = vsub.s32 %v4255, %v4257
        %v4259 = vrot.slane %v4231, %v4258
        %v4260 = vcombine.low %v4238, %v4245
        %v4261 = vcombine.low %v4252, %v4259
        %v4263 = vunpack.c.l.s4 1966171168
        %v4264 = vunpack.c.0.s8 %v4263
        %v4265 = vlaneseq
        %v4266 = vshrl.u32 %v4265, 7
        %v4267 = vsub.s32 %v4264, %v4266
        %v4268 = vrot.slane %v4260, %v4267
        %v4270 = vunpack.c.l.s4 1966171168
        %v4271 = vunpack.c.0.s8 %v4270
        %v4272 = vlaneseq
        %v4273 = vshrl.u32 %v4272, 7
        %v4274 = vsub.s32 %v4271, %v4273
        %v4275 = vrot.slane %v4261, %v4274
        %v4276 = vcombine.low %v4268, %v4275
        %v4277 = vcombine.low %v3018, %v3022
        %v4278 = vcombine.low %v3026, %v3030
        %v4279 = vcombine.low %v3034, %v3038
        %v4280 = vcombine.low %v3042, %v3046
        %v4282 = vunpack.c.l.s4 1966171168
        %v4283 = vunpack.c.0.s8 %v4282
        %v4284 = vlaneseq
        %v4285 = vshrl.u32 %v4284, 7
        %v4286 = vsub.s32 %v4283, %v4285
        %v4287 = vrot.slane %v4277, %v4286
        %v4289 = vunpack.c.l.s4 1966171168
        %v4290 = vunpack.c.0.s8 %v4289
        %v4291 = vlaneseq
        %v4292 = vshrl.u32 %v4291, 7
        %v4293 = vsub.s32 %v4290, %v4292
        %v4294 = vrot.slane %v4278, %v4293
        %v4296 = vunpack.c.l.s4 1966171168
        %v4297 = vunpack.c.0.s8 %v4296
        %v4298 = vlaneseq
        %v4299 = vshrl.u32 %v4298, 7
        %v4300 = vsub.s32 %v4297, %v4299
        %v4301 = vrot.slane %v4279, %v4300
        %v4303 = vunpack.c.l.s4 1966171168
        %v4304 = vunpack.c.0.s8 %v4303
        %v4305 = vlaneseq
        %v4306 = vshrl.u32 %v4305, 7
        %v4307 = vsub.s32 %v4304, %v4306
        %v4308 = vrot.slane %v4280, %v4307
        %v4309 = vcombine.low %v4287, %v4294
        %v4310 = vcombine.low %v4301, %v4308
        %v4312 = vunpack.c.l.s4 1966171168
        %v4313 = vunpack.c.0.s8 %v4312
        %v4314 = vlaneseq
        %v4315 = vshrl.u32 %v4314, 7
        %v4316 = vsub.s32 %v4313, %v4315
        %v4317 = vrot.slane %v4309, %v4316
        %v4319 = vunpack.c.l.s4 1966171168
        %v4320 = vunpack.c.0.s8 %v4319
        %v4321 = vlaneseq
        %v4322 = vshrl.u32 %v4321, 7
        %v4323 = vsub.s32 %v4320, %v4322
        %v4324 = vrot.slane %v4310, %v4323
        %v4325 = vcombine.low %v4317, %v4324
        %v4326 = vcombine.low %v3050, %v3054
        %v4327 = vcombine.low %v3058, %v3062
        %v4328 = vcombine.low %v3066, %v3070
        %v4329 = vcombine.low %v3074, %v3078
        %v4331 = vunpack.c.l.s4 1966171168
        %v4332 = vunpack.c.0.s8 %v4331
        %v4333 = vlaneseq
        %v4334 = vshrl.u32 %v4333, 7
        %v4335 = vsub.s32 %v4332, %v4334
        %v4336 = vrot.slane %v4326, %v4335
        %v4338 = vunpack.c.l.s4 1966171168
        %v4339 = vunpack.c.0.s8 %v4338
        %v4340 = vlaneseq
        %v4341 = vshrl.u32 %v4340, 7
        %v4342 = vsub.s32 %v4339, %v4341
        %v4343 = vrot.slane %v4327, %v4342
        %v4345 = vunpack.c.l.s4 1966171168
        %v4346 = vunpack.c.0.s8 %v4345
        %v4347 = vlaneseq
        %v4348 = vshrl.u32 %v4347, 7
        %v4349 = vsub.s32 %v4346, %v4348
        %v4350 = vrot.slane %v4328, %v4349
        %v4352 = vunpack.c.l.s4 1966171168
        %v4353 = vunpack.c.0.s8 %v4352
        %v4354 = vlaneseq
        %v4355 = vshrl.u32 %v4354, 7
        %v4356 = vsub.s32 %v4353, %v4355
        %v4357 = vrot.slane %v4329, %v4356
        %v4358 = vcombine.low %v4336, %v4343
        %v4359 = vcombine.low %v4350, %v4357
        %v4361 = vunpack.c.l.s4 1966171168
        %v4362 = vunpack.c.0.s8 %v4361
        %v4363 = vlaneseq
        %v4364 = vshrl.u32 %v4363, 7
        %v4365 = vsub.s32 %v4362, %v4364
        %v4366 = vrot.slane %v4358, %v4365
        %v4368 = vunpack.c.l.s4 1966171168
        %v4369 = vunpack.c.0.s8 %v4368
        %v4370 = vlaneseq
        %v4371 = vshrl.u32 %v4370, 7
        %v4372 = vsub.s32 %v4369, %v4371
        %v4373 = vrot.slane %v4359, %v4372
        %v4374 = vcombine.low %v4366, %v4373
        %v4375 = vcombine.low %v3082, %v3086
        %v4376 = vcombine.low %v3090, %v3094
        %v4377 = vcombine.low %v3098, %v3102
        %v4378 = vcombine.low %v3106, %v3110
        %v4380 = vunpack.c.l.s4 1966171168
        %v4381 = vunpack.c.0.s8 %v4380
        %v4382 = vlaneseq
        %v4383 = vshrl.u32 %v4382, 7
        %v4384 = vsub.s32 %v4381, %v4383
        %v4385 = vrot.slane %v4375, %v4384
        %v4387 = vunpack.c.l.s4 1966171168
        %v4388 = vunpack.c.0.s8 %v4387
        %v4389 = vlaneseq
        %v4390 = vshrl.u32 %v4389, 7
        %v4391 = vsub.s32 %v4388, %v4390
        %v4392 = vrot.slane %v4376, %v4391
        %v4394 = vunpack.c.l.s4 1966171168
        %v4395 = vunpack.c.0.s8 %v4394
        %v4396 = vlaneseq
        %v4397 = vshrl.u32 %v4396, 7
        %v4398 = vsub.s32 %v4395, %v4397
        %v4399 = vrot.slane %v4377, %v4398
        %v4401 = vunpack.c.l.s4 1966171168
        %v4402 = vunpack.c.0.s8 %v4401
        %v4403 = vlaneseq
        %v4404 = vshrl.u32 %v4403, 7
        %v4405 = vsub.s32 %v4402, %v4404
        %v4406 = vrot.slane %v4378, %v4405
        %v4407 = vcombine.low %v4385, %v4392
        %v4408 = vcombine.low %v4399, %v4406
        %v4410 = vunpack.c.l.s4 1966171168
        %v4411 = vunpack.c.0.s8 %v4410
        %v4412 = vlaneseq
        %v4413 = vshrl.u32 %v4412, 7
        %v4414 = vsub.s32 %v4411, %v4413
        %v4415 = vrot.slane %v4407, %v4414
        %v4417 = vunpack.c.l.s4 1966171168
        %v4418 = vunpack.c.0.s8 %v4417
        %v4419 = vlaneseq
        %v4420 = vshrl.u32 %v4419, 7
        %v4421 = vsub.s32 %v4418, %v4420
        %v4422 = vrot.slane %v4408, %v4421
        %v4423 = vcombine.low %v4415, %v4422
        %v4424 = vcombine.low %v3114, %v3118
        %v4425 = vcombine.low %v3122, %v3126
        %v4426 = vcombine.low %v3130, %v3134
        %v4427 = vcombine.low %v3138, %v3142
        %v4429 = vunpack.c.l.s4 1966171168
        %v4430 = vunpack.c.0.s8 %v4429
        %v4431 = vlaneseq
        %v4432 = vshrl.u32 %v4431, 7
        %v4433 = vsub.s32 %v4430, %v4432
        %v4434 = vrot.slane %v4424, %v4433
        %v4436 = vunpack.c.l.s4 1966171168
        %v4437 = vunpack.c.0.s8 %v4436
        %v4438 = vlaneseq
        %v4439 = vshrl.u32 %v4438, 7
        %v4440 = vsub.s32 %v4437, %v4439
        %v4441 = vrot.slane %v4425, %v4440
        %v4443 = vunpack.c.l.s4 1966171168
        %v4444 = vunpack.c.0.s8 %v4443
        %v4445 = vlaneseq
        %v4446 = vshrl.u32 %v4445, 7
        %v4447 = vsub.s32 %v4444, %v4446
        %v4448 = vrot.slane %v4426, %v4447
        %v4450 = vunpack.c.l.s4 1966171168
        %v4451 = vunpack.c.0.s8 %v4450
        %v4452 = vlaneseq
        %v4453 = vshrl.u32 %v4452, 7
        %v4454 = vsub.s32 %v4451, %v4453
        %v4455 = vrot.slane %v4427, %v4454
        %v4456 = vcombine.low %v4434, %v4441
        %v4457 = vcombine.low %v4448, %v4455
        %v4459 = vunpack.c.l.s4 1966171168
        %v4460 = vunpack.c.0.s8 %v4459
        %v4461 = vlaneseq
        %v4462 = vshrl.u32 %v4461, 7
        %v4463 = vsub.s32 %v4460, %v4462
        %v4464 = vrot.slane %v4456, %v4463
        %v4466 = vunpack.c.l.s4 1966171168
        %v4467 = vunpack.c.0.s8 %v4466
        %v4468 = vlaneseq
        %v4469 = vshrl.u32 %v4468, 7
        %v4470 = vsub.s32 %v4467, %v4469
        %v4471 = vrot.slane %v4457, %v4470
        %v4472 = vcombine.low %v4464, %v4471
        %v4473 = vcombine.low %v3146, %v3150
        %v4474 = vcombine.low %v3154, %v3158
        %v4475 = vcombine.low %v3162, %v3166
        %v4476 = vcombine.low %v3170, %v3174
        %v4478 = vunpack.c.l.s4 1966171168
        %v4479 = vunpack.c.0.s8 %v4478
        %v4480 = vlaneseq
        %v4481 = vshrl.u32 %v4480, 7
        %v4482 = vsub.s32 %v4479, %v4481
        %v4483 = vrot.slane %v4473, %v4482
        %v4485 = vunpack.c.l.s4 1966171168
        %v4486 = vunpack.c.0.s8 %v4485
        %v4487 = vlaneseq
        %v4488 = vshrl.u32 %v4487, 7
        %v4489 = vsub.s32 %v4486, %v4488
        %v4490 = vrot.slane %v4474, %v4489
        %v4492 = vunpack.c.l.s4 1966171168
        %v4493 = vunpack.c.0.s8 %v4492
        %v4494 = vlaneseq
        %v4495 = vshrl.u32 %v4494, 7
        %v4496 = vsub.s32 %v4493, %v4495
        %v4497 = vrot.slane %v4475, %v4496
        %v4499 = vunpack.c.l.s4 1966171168
        %v4500 = vunpack.c.0.s8 %v4499
        %v4501 = vlaneseq
        %v4502 = vshrl.u32 %v4501, 7
        %v4503 = vsub.s32 %v4500, %v4502
        %v4504 = vrot.slane %v4476, %v4503
        %v4505 = vcombine.low %v4483, %v4490
        %v4506 = vcombine.low %v4497, %v4504
        %v4508 = vunpack.c.l.s4 1966171168
        %v4509 = vunpack.c.0.s8 %v4508
        %v4510 = vlaneseq
        %v4511 = vshrl.u32 %v4510, 7
        %v4512 = vsub.s32 %v4509, %v4511
        %v4513 = vrot.slane %v4505, %v4512
        %v4515 = vunpack.c.l.s4 1966171168
        %v4516 = vunpack.c.0.s8 %v4515
        %v4517 = vlaneseq
        %v4518 = vshrl.u32 %v4517, 7
        %v4519 = vsub.s32 %v4516, %v4518
        %v4520 = vrot.slane %v4506, %v4519
        %v4521 = vcombine.low %v4513, %v4520
        %v4522 = vcombine.low %v3178, %v3182
        %v4523 = vcombine.low %v3186, %v3190
        %v4524 = vcombine.low %v3194, %v3198
        %v4525 = vcombine.low %v3202, %v3206
        %v4527 = vunpack.c.l.s4 1966171168
        %v4528 = vunpack.c.0.s8 %v4527
        %v4529 = vlaneseq
        %v4530 = vshrl.u32 %v4529, 7
        %v4531 = vsub.s32 %v4528, %v4530
        %v4532 = vrot.slane %v4522, %v4531
        %v4534 = vunpack.c.l.s4 1966171168
        %v4535 = vunpack.c.0.s8 %v4534
        %v4536 = vlaneseq
        %v4537 = vshrl.u32 %v4536, 7
        %v4538 = vsub.s32 %v4535, %v4537
        %v4539 = vrot.slane %v4523, %v4538
        %v4541 = vunpack.c.l.s4 1966171168
        %v4542 = vunpack.c.0.s8 %v4541
        %v4543 = vlaneseq
        %v4544 = vshrl.u32 %v4543, 7
        %v4545 = vsub.s32 %v4542, %v4544
        %v4546 = vrot.slane %v4524, %v4545
        %v4548 = vunpack.c.l.s4 1966171168
        %v4549 = vunpack.c.0.s8 %v4548
        %v4550 = vlaneseq
        %v4551 = vshrl.u32 %v4550, 7
        %v4552 = vsub.s32 %v4549, %v4551
        %v4553 = vrot.slane %v4525, %v4552
        %v4554 = vcombine.low %v4532, %v4539
        %v4555 = vcombine.low %v4546, %v4553
        %v4557 = vunpack.c.l.s4 1966171168
        %v4558 = vunpack.c.0.s8 %v4557
        %v4559 = vlaneseq
        %v4560 = vshrl.u32 %v4559, 7
        %v4561 = vsub.s32 %v4558, %v4560
        %v4562 = vrot.slane %v4554, %v4561
        %v4564 = vunpack.c.l.s4 1966171168
        %v4565 = vunpack.c.0.s8 %v4564
        %v4566 = vlaneseq
        %v4567 = vshrl.u32 %v4566, 7
        %v4568 = vsub.s32 %v4565, %v4567
        %v4569 = vrot.slane %v4555, %v4568
        %v4570 = vcombine.low %v4562, %v4569
        %v4571 = vcombine.low %v3210, %v3214
        %v4572 = vcombine.low %v3218, %v3222
        %v4573 = vcombine.low %v3226, %v3230
        %v4574 = vcombine.low %v3234, %v3238
        %v4576 = vunpack.c.l.s4 1966171168
        %v4577 = vunpack.c.0.s8 %v4576
        %v4578 = vlaneseq
        %v4579 = vshrl.u32 %v4578, 7
        %v4580 = vsub.s32 %v4577, %v4579
        %v4581 = vrot.slane %v4571, %v4580
        %v4583 = vunpack.c.l.s4 1966171168
        %v4584 = vunpack.c.0.s8 %v4583
        %v4585 = vlaneseq
        %v4586 = vshrl.u32 %v4585, 7
        %v4587 = vsub.s32 %v4584, %v4586
        %v4588 = vrot.slane %v4572, %v4587
        %v4590 = vunpack.c.l.s4 1966171168
        %v4591 = vunpack.c.0.s8 %v4590
        %v4592 = vlaneseq
        %v4593 = vshrl.u32 %v4592, 7
        %v4594 = vsub.s32 %v4591, %v4593
        %v4595 = vrot.slane %v4573, %v4594
        %v4597 = vunpack.c.l.s4 1966171168
        %v4598 = vunpack.c.0.s8 %v4597
        %v4599 = vlaneseq
        %v4600 = vshrl.u32 %v4599, 7
        %v4601 = vsub.s32 %v4598, %v4600
        %v4602 = vrot.slane %v4574, %v4601
        %v4603 = vcombine.low %v4581, %v4588
        %v4604 = vcombine.low %v4595, %v4602
        %v4606 = vunpack.c.l.s4 1966171168
        %v4607 = vunpack.c.0.s8 %v4606
        %v4608 = vlaneseq
        %v4609 = vshrl.u32 %v4608, 7
        %v4610 = vsub.s32 %v4607, %v4609
        %v4611 = vrot.slane %v4603, %v4610
        %v4613 = vunpack.c.l.s4 1966171168
        %v4614 = vunpack.c.0.s8 %v4613
        %v4615 = vlaneseq
        %v4616 = vshrl.u32 %v4615, 7
        %v4617 = vsub.s32 %v4614, %v4616
        %v4618 = vrot.slane %v4604, %v4617
        %v4619 = vcombine.low %v4611, %v4618
        %v4620 = vcombine.low %v3242, %v3246
        %v4621 = vcombine.low %v3250, %v3254
        %v4622 = vcombine.low %v3258, %v3262
        %v4623 = vcombine.low %v3266, %v3270
        %v4625 = vunpack.c.l.s4 1966171168
        %v4626 = vunpack.c.0.s8 %v4625
        %v4627 = vlaneseq
        %v4628 = vshrl.u32 %v4627, 7
        %v4629 = vsub.s32 %v4626, %v4628
        %v4630 = vrot.slane %v4620, %v4629
        %v4632 = vunpack.c.l.s4 1966171168
        %v4633 = vunpack.c.0.s8 %v4632
        %v4634 = vlaneseq
        %v4635 = vshrl.u32 %v4634, 7
        %v4636 = vsub.s32 %v4633, %v4635
        %v4637 = vrot.slane %v4621, %v4636
        %v4639 = vunpack.c.l.s4 1966171168
        %v4640 = vunpack.c.0.s8 %v4639
        %v4641 = vlaneseq
        %v4642 = vshrl.u32 %v4641, 7
        %v4643 = vsub.s32 %v4640, %v4642
        %v4644 = vrot.slane %v4622, %v4643
        %v4646 = vunpack.c.l.s4 1966171168
        %v4647 = vunpack.c.0.s8 %v4646
        %v4648 = vlaneseq
        %v4649 = vshrl.u32 %v4648, 7
        %v4650 = vsub.s32 %v4647, %v4649
        %v4651 = vrot.slane %v4623, %v4650
        %v4652 = vcombine.low %v4630, %v4637
        %v4653 = vcombine.low %v4644, %v4651
        %v4655 = vunpack.c.l.s4 1966171168
        %v4656 = vunpack.c.0.s8 %v4655
        %v4657 = vlaneseq
        %v4658 = vshrl.u32 %v4657, 7
        %v4659 = vsub.s32 %v4656, %v4658
        %v4660 = vrot.slane %v4652, %v4659
        %v4662 = vunpack.c.l.s4 1966171168
        %v4663 = vunpack.c.0.s8 %v4662
        %v4664 = vlaneseq
        %v4665 = vshrl.u32 %v4664, 7
        %v4666 = vsub.s32 %v4663, %v4665
        %v4667 = vrot.slane %v4653, %v4666
        %v4668 = vcombine.low %v4660, %v4667
        %v4669 = vcombine.low %v3274, %v3278
        %v4670 = vcombine.low %v3282, %v3286
        %v4671 = vcombine.low %v3290, %v3294
        %v4672 = vcombine.low %v3298, %v3302
        %v4674 = vunpack.c.l.s4 1966171168
        %v4675 = vunpack.c.0.s8 %v4674
        %v4676 = vlaneseq
        %v4677 = vshrl.u32 %v4676, 7
        %v4678 = vsub.s32 %v4675, %v4677
        %v4679 = vrot.slane %v4669, %v4678
        %v4681 = vunpack.c.l.s4 1966171168
        %v4682 = vunpack.c.0.s8 %v4681
        %v4683 = vlaneseq
        %v4684 = vshrl.u32 %v4683, 7
        %v4685 = vsub.s32 %v4682, %v4684
        %v4686 = vrot.slane %v4670, %v4685
        %v4688 = vunpack.c.l.s4 1966171168
        %v4689 = vunpack.c.0.s8 %v4688
        %v4690 = vlaneseq
        %v4691 = vshrl.u32 %v4690, 7
        %v4692 = vsub.s32 %v4689, %v4691
        %v4693 = vrot.slane %v4671, %v4692
        %v4695 = vunpack.c.l.s4 1966171168
        %v4696 = vunpack.c.0.s8 %v4695
        %v4697 = vlaneseq
        %v4698 = vshrl.u32 %v4697, 7
        %v4699 = vsub.s32 %v4696, %v4698
        %v4700 = vrot.slane %v4672, %v4699
        %v4701 = vcombine.low %v4679, %v4686
        %v4702 = vcombine.low %v4693, %v4700
        %v4704 = vunpack.c.l.s4 1966171168
        %v4705 = vunpack.c.0.s8 %v4704
        %v4706 = vlaneseq
        %v4707 = vshrl.u32 %v4706, 7
        %v4708 = vsub.s32 %v4705, %v4707
        %v4709 = vrot.slane %v4701, %v4708
        %v4711 = vunpack.c.l.s4 1966171168
        %v4712 = vunpack.c.0.s8 %v4711
        %v4713 = vlaneseq
        %v4714 = vshrl.u32 %v4713, 7
        %v4715 = vsub.s32 %v4712, %v4714
        %v4716 = vrot.slane %v4702, %v4715
        %v4717 = vcombine.low %v4709, %v4716
        %v4718 = vcombine.low %v3306, %v3310
        %v4719 = vcombine.low %v3314, %v3318
        %v4720 = vcombine.low %v3322, %v3326
        %v4721 = vcombine.low %v3330, %v3334
        %v4723 = vunpack.c.l.s4 1966171168
        %v4724 = vunpack.c.0.s8 %v4723
        %v4725 = vlaneseq
        %v4726 = vshrl.u32 %v4725, 7
        %v4727 = vsub.s32 %v4724, %v4726
        %v4728 = vrot.slane %v4718, %v4727
        %v4730 = vunpack.c.l.s4 1966171168
        %v4731 = vunpack.c.0.s8 %v4730
        %v4732 = vlaneseq
        %v4733 = vshrl.u32 %v4732, 7
        %v4734 = vsub.s32 %v4731, %v4733
        %v4735 = vrot.slane %v4719, %v4734
        %v4737 = vunpack.c.l.s4 1966171168
        %v4738 = vunpack.c.0.s8 %v4737
        %v4739 = vlaneseq
        %v4740 = vshrl.u32 %v4739, 7
        %v4741 = vsub.s32 %v4738, %v4740
        %v4742 = vrot.slane %v4720, %v4741
        %v4744 = vunpack.c.l.s4 1966171168
        %v4745 = vunpack.c.0.s8 %v4744
        %v4746 = vlaneseq
        %v4747 = vshrl.u32 %v4746, 7
        %v4748 = vsub.s32 %v4745, %v4747
        %v4749 = vrot.slane %v4721, %v4748
        %v4750 = vcombine.low %v4728, %v4735
        %v4751 = vcombine.low %v4742, %v4749
        %v4753 = vunpack.c.l.s4 1966171168
        %v4754 = vunpack.c.0.s8 %v4753
        %v4755 = vlaneseq
        %v4756 = vshrl.u32 %v4755, 7
        %v4757 = vsub.s32 %v4754, %v4756
        %v4758 = vrot.slane %v4750, %v4757
        %v4760 = vunpack.c.l.s4 1966171168
        %v4761 = vunpack.c.0.s8 %v4760
        %v4762 = vlaneseq
        %v4763 = vshrl.u32 %v4762, 7
        %v4764 = vsub.s32 %v4761, %v4763
        %v4765 = vrot.slane %v4751, %v4764
        %v4766 = vcombine.low %v4758, %v4765
        %v4767 = vcombine.low %v3338, %v3342
        %v4768 = vcombine.low %v3346, %v3350
        %v4769 = vcombine.low %v3354, %v3358
        %v4770 = vcombine.low %v3362, %v3366
        %v4772 = vunpack.c.l.s4 1966171168
        %v4773 = vunpack.c.0.s8 %v4772
        %v4774 = vlaneseq
        %v4775 = vshrl.u32 %v4774, 7
        %v4776 = vsub.s32 %v4773, %v4775
        %v4777 = vrot.slane %v4767, %v4776
        %v4779 = vunpack.c.l.s4 1966171168
        %v4780 = vunpack.c.0.s8 %v4779
        %v4781 = vlaneseq
        %v4782 = vshrl.u32 %v4781, 7
        %v4783 = vsub.s32 %v4780, %v4782
        %v4784 = vrot.slane %v4768, %v4783
        %v4786 = vunpack.c.l.s4 1966171168
        %v4787 = vunpack.c.0.s8 %v4786
        %v4788 = vlaneseq
        %v4789 = vshrl.u32 %v4788, 7
        %v4790 = vsub.s32 %v4787, %v4789
        %v4791 = vrot.slane %v4769, %v4790
        %v4793 = vunpack.c.l.s4 1966171168
        %v4794 = vunpack.c.0.s8 %v4793
        %v4795 = vlaneseq
        %v4796 = vshrl.u32 %v4795, 7
        %v4797 = vsub.s32 %v4794, %v4796
        %v4798 = vrot.slane %v4770, %v4797
        %v4799 = vcombine.low %v4777, %v4784
        %v4800 = vcombine.low %v4791, %v4798
        %v4802 = vunpack.c.l.s4 1966171168
        %v4803 = vunpack.c.0.s8 %v4802
        %v4804 = vlaneseq
        %v4805 = vshrl.u32 %v4804, 7
        %v4806 = vsub.s32 %v4803, %v4805
        %v4807 = vrot.slane %v4799, %v4806
        %v4809 = vunpack.c.l.s4 1966171168
        %v4810 = vunpack.c.0.s8 %v4809
        %v4811 = vlaneseq
        %v4812 = vshrl.u32 %v4811, 7
        %v4813 = vsub.s32 %v4810, %v4812
        %v4814 = vrot.slane %v4800, %v4813
        %v4815 = vcombine.low %v4807, %v4814
        %v4816 = vcombine.low %v3370, %v3374
        %v4817 = vcombine.low %v3378, %v3382
        %v4818 = vcombine.low %v3386, %v3390
        %v4819 = vcombine.low %v3394, %v3398
        %v4821 = vunpack.c.l.s4 1966171168
        %v4822 = vunpack.c.0.s8 %v4821
        %v4823 = vlaneseq
        %v4824 = vshrl.u32 %v4823, 7
        %v4825 = vsub.s32 %v4822, %v4824
        %v4826 = vrot.slane %v4816, %v4825
        %v4828 = vunpack.c.l.s4 1966171168
        %v4829 = vunpack.c.0.s8 %v4828
        %v4830 = vlaneseq
        %v4831 = vshrl.u32 %v4830, 7
        %v4832 = vsub.s32 %v4829, %v4831
        %v4833 = vrot.slane %v4817, %v4832
        %v4835 = vunpack.c.l.s4 1966171168
        %v4836 = vunpack.c.0.s8 %v4835
        %v4837 = vlaneseq
        %v4838 = vshrl.u32 %v4837, 7
        %v4839 = vsub.s32 %v4836, %v4838
        %v4840 = vrot.slane %v4818, %v4839
        %v4842 = vunpack.c.l.s4 1966171168
        %v4843 = vunpack.c.0.s8 %v4842
        %v4844 = vlaneseq
        %v4845 = vshrl.u32 %v4844, 7
        %v4846 = vsub.s32 %v4843, %v4845
        %v4847 = vrot.slane %v4819, %v4846
        %v4848 = vcombine.low %v4826, %v4833
        %v4849 = vcombine.low %v4840, %v4847
        %v4851 = vunpack.c.l.s4 1966171168
        %v4852 = vunpack.c.0.s8 %v4851
        %v4853 = vlaneseq
        %v4854 = vshrl.u32 %v4853, 7
        %v4855 = vsub.s32 %v4852, %v4854
        %v4856 = vrot.slane %v4848, %v4855
        %v4858 = vunpack.c.l.s4 1966171168
        %v4859 = vunpack.c.0.s8 %v4858
        %v4860 = vlaneseq
        %v4861 = vshrl.u32 %v4860, 7
        %v4862 = vsub.s32 %v4859, %v4861
        %v4863 = vrot.slane %v4849, %v4862
        %v4864 = vcombine.low %v4856, %v4863
        %v4865 = vcombine.low %v3402, %v3406
        %v4866 = vcombine.low %v3410, %v3414
        %v4867 = vcombine.low %v3418, %v3422
        %v4868 = vcombine.low %v3426, %v3430
        %v4870 = vunpack.c.l.s4 1966171168
        %v4871 = vunpack.c.0.s8 %v4870
        %v4872 = vlaneseq
        %v4873 = vshrl.u32 %v4872, 7
        %v4874 = vsub.s32 %v4871, %v4873
        %v4875 = vrot.slane %v4865, %v4874
        %v4877 = vunpack.c.l.s4 1966171168
        %v4878 = vunpack.c.0.s8 %v4877
        %v4879 = vlaneseq
        %v4880 = vshrl.u32 %v4879, 7
        %v4881 = vsub.s32 %v4878, %v4880
        %v4882 = vrot.slane %v4866, %v4881
        %v4884 = vunpack.c.l.s4 1966171168
        %v4885 = vunpack.c.0.s8 %v4884
        %v4886 = vlaneseq
        %v4887 = vshrl.u32 %v4886, 7
        %v4888 = vsub.s32 %v4885, %v4887
        %v4889 = vrot.slane %v4867, %v4888
        %v4891 = vunpack.c.l.s4 1966171168
        %v4892 = vunpack.c.0.s8 %v4891
        %v4893 = vlaneseq
        %v4894 = vshrl.u32 %v4893, 7
        %v4895 = vsub.s32 %v4892, %v4894
        %v4896 = vrot.slane %v4868, %v4895
        %v4897 = vcombine.low %v4875, %v4882
        %v4898 = vcombine.low %v4889, %v4896
        %v4900 = vunpack.c.l.s4 1966171168
        %v4901 = vunpack.c.0.s8 %v4900
        %v4902 = vlaneseq
        %v4903 = vshrl.u32 %v4902, 7
        %v4904 = vsub.s32 %v4901, %v4903
        %v4905 = vrot.slane %v4897, %v4904
        %v4907 = vunpack.c.l.s4 1966171168
        %v4908 = vunpack.c.0.s8 %v4907
        %v4909 = vlaneseq
        %v4910 = vshrl.u32 %v4909, 7
        %v4911 = vsub.s32 %v4908, %v4910
        %v4912 = vrot.slane %v4898, %v4911
        %v4913 = vcombine.low %v4905, %v4912
        %v4914 = vcombine.low %v3434, %v3438
        %v4915 = vcombine.low %v3442, %v3446
        %v4916 = vcombine.low %v3450, %v3454
        %v4917 = vcombine.low %v3458, %v3462
        %v4919 = vunpack.c.l.s4 1966171168
        %v4920 = vunpack.c.0.s8 %v4919
        %v4921 = vlaneseq
        %v4922 = vshrl.u32 %v4921, 7
        %v4923 = vsub.s32 %v4920, %v4922
        %v4924 = vrot.slane %v4914, %v4923
        %v4926 = vunpack.c.l.s4 1966171168
        %v4927 = vunpack.c.0.s8 %v4926
        %v4928 = vlaneseq
        %v4929 = vshrl.u32 %v4928, 7
        %v4930 = vsub.s32 %v4927, %v4929
        %v4931 = vrot.slane %v4915, %v4930
        %v4933 = vunpack.c.l.s4 1966171168
        %v4934 = vunpack.c.0.s8 %v4933
        %v4935 = vlaneseq
        %v4936 = vshrl.u32 %v4935, 7
        %v4937 = vsub.s32 %v4934, %v4936
        %v4938 = vrot.slane %v4916, %v4937
        %v4940 = vunpack.c.l.s4 1966171168
        %v4941 = vunpack.c.0.s8 %v4940
        %v4942 = vlaneseq
        %v4943 = vshrl.u32 %v4942, 7
        %v4944 = vsub.s32 %v4941, %v4943
        %v4945 = vrot.slane %v4917, %v4944
        %v4946 = vcombine.low %v4924, %v4931
        %v4947 = vcombine.low %v4938, %v4945
        %v4949 = vunpack.c.l.s4 1966171168
        %v4950 = vunpack.c.0.s8 %v4949
        %v4951 = vlaneseq
        %v4952 = vshrl.u32 %v4951, 7
        %v4953 = vsub.s32 %v4950, %v4952
        %v4954 = vrot.slane %v4946, %v4953
        %v4956 = vunpack.c.l.s4 1966171168
        %v4957 = vunpack.c.0.s8 %v4956
        %v4958 = vlaneseq
        %v4959 = vshrl.u32 %v4958, 7
        %v4960 = vsub.s32 %v4957, %v4959
        %v4961 = vrot.slane %v4947, %v4960
        %v4962 = vcombine.low %v4954, %v4961
        %v4963 = vcombine.low %v3466, %v3470
        %v4964 = vcombine.low %v3474, %v3478
        %v4965 = vcombine.low %v3482, %v3486
        %v4966 = vcombine.low %v3490, %v3494
        %v4968 = vunpack.c.l.s4 1966171168
        %v4969 = vunpack.c.0.s8 %v4968
        %v4970 = vlaneseq
        %v4971 = vshrl.u32 %v4970, 7
        %v4972 = vsub.s32 %v4969, %v4971
        %v4973 = vrot.slane %v4963, %v4972
        %v4975 = vunpack.c.l.s4 1966171168
        %v4976 = vunpack.c.0.s8 %v4975
        %v4977 = vlaneseq
        %v4978 = vshrl.u32 %v4977, 7
        %v4979 = vsub.s32 %v4976, %v4978
        %v4980 = vrot.slane %v4964, %v4979
        %v4982 = vunpack.c.l.s4 1966171168
        %v4983 = vunpack.c.0.s8 %v4982
        %v4984 = vlaneseq
        %v4985 = vshrl.u32 %v4984, 7
        %v4986 = vsub.s32 %v4983, %v4985
        %v4987 = vrot.slane %v4965, %v4986
        %v4989 = vunpack.c.l.s4 1966171168
        %v4990 = vunpack.c.0.s8 %v4989
        %v4991 = vlaneseq
        %v4992 = vshrl.u32 %v4991, 7
        %v4993 = vsub.s32 %v4990, %v4992
        %v4994 = vrot.slane %v4966, %v4993
        %v4995 = vcombine.low %v4973, %v4980
        %v4996 = vcombine.low %v4987, %v4994
        %v4998 = vunpack.c.l.s4 1966171168
        %v4999 = vunpack.c.0.s8 %v4998
        %v5000 = vlaneseq
        %v5001 = vshrl.u32 %v5000, 7
        %v5002 = vsub.s32 %v4999, %v5001
        %v5003 = vrot.slane %v4995, %v5002
        %v5005 = vunpack.c.l.s4 1966171168
        %v5006 = vunpack.c.0.s8 %v5005
        %v5007 = vlaneseq
        %v5008 = vshrl.u32 %v5007, 7
        %v5009 = vsub.s32 %v5006, %v5008
        %v5010 = vrot.slane %v4996, %v5009
        %v5011 = vcombine.low %v5003, %v5010
        %v5012 = vcombine.low %v3498, %v3502
        %v5013 = vcombine.low %v3506, %v3510
        %v5014 = vcombine.low %v3514, %v3518
        %v5015 = vcombine.low %v3522, %v3526
        %v5017 = vunpack.c.l.s4 1966171168
        %v5018 = vunpack.c.0.s8 %v5017
        %v5019 = vlaneseq
        %v5020 = vshrl.u32 %v5019, 7
        %v5021 = vsub.s32 %v5018, %v5020
        %v5022 = vrot.slane %v5012, %v5021
        %v5024 = vunpack.c.l.s4 1966171168
        %v5025 = vunpack.c.0.s8 %v5024
        %v5026 = vlaneseq
        %v5027 = vshrl.u32 %v5026, 7
        %v5028 = vsub.s32 %v5025, %v5027
        %v5029 = vrot.slane %v5013, %v5028
        %v5031 = vunpack.c.l.s4 1966171168
        %v5032 = vunpack.c.0.s8 %v5031
        %v5033 = vlaneseq
        %v5034 = vshrl.u32 %v5033, 7
        %v5035 = vsub.s32 %v5032, %v5034
        %v5036 = vrot.slane %v5014, %v5035
        %v5038 = vunpack.c.l.s4 1966171168
        %v5039 = vunpack.c.0.s8 %v5038
        %v5040 = vlaneseq
        %v5041 = vshrl.u32 %v5040, 7
        %v5042 = vsub.s32 %v5039, %v5041
        %v5043 = vrot.slane %v5015, %v5042
        %v5044 = vcombine.low %v5022, %v5029
        %v5045 = vcombine.low %v5036, %v5043
        %v5047 = vunpack.c.l.s4 1966171168
        %v5048 = vunpack.c.0.s8 %v5047
        %v5049 = vlaneseq
        %v5050 = vshrl.u32 %v5049, 7
        %v5051 = vsub.s32 %v5048, %v5050
        %v5052 = vrot.slane %v5044, %v5051
        %v5054 = vunpack.c.l.s4 1966171168
        %v5055 = vunpack.c.0.s8 %v5054
        %v5056 = vlaneseq
        %v5057 = vshrl.u32 %v5056, 7
        %v5058 = vsub.s32 %v5055, %v5057
        %v5059 = vrot.slane %v5045, %v5058
        %v5060 = vcombine.low %v5052, %v5059
        %v5061 = vcombine.low %v3530, %v3534
        %v5062 = vcombine.low %v3538, %v3542
        %v5063 = vcombine.low %v3546, %v3550
        %v5064 = vcombine.low %v3554, %v3558
        %v5066 = vunpack.c.l.s4 1966171168
        %v5067 = vunpack.c.0.s8 %v5066
        %v5068 = vlaneseq
        %v5069 = vshrl.u32 %v5068, 7
        %v5070 = vsub.s32 %v5067, %v5069
        %v5071 = vrot.slane %v5061, %v5070
        %v5073 = vunpack.c.l.s4 1966171168
        %v5074 = vunpack.c.0.s8 %v5073
        %v5075 = vlaneseq
        %v5076 = vshrl.u32 %v5075, 7
        %v5077 = vsub.s32 %v5074, %v5076
        %v5078 = vrot.slane %v5062, %v5077
        %v5080 = vunpack.c.l.s4 1966171168
        %v5081 = vunpack.c.0.s8 %v5080
        %v5082 = vlaneseq
        %v5083 = vshrl.u32 %v5082, 7
        %v5084 = vsub.s32 %v5081, %v5083
        %v5085 = vrot.slane %v5063, %v5084
        %v5087 = vunpack.c.l.s4 1966171168
        %v5088 = vunpack.c.0.s8 %v5087
        %v5089 = vlaneseq
        %v5090 = vshrl.u32 %v5089, 7
        %v5091 = vsub.s32 %v5088, %v5090
        %v5092 = vrot.slane %v5064, %v5091
        %v5093 = vcombine.low %v5071, %v5078
        %v5094 = vcombine.low %v5085, %v5092
        %v5096 = vunpack.c.l.s4 1966171168
        %v5097 = vunpack.c.0.s8 %v5096
        %v5098 = vlaneseq
        %v5099 = vshrl.u32 %v5098, 7
        %v5100 = vsub.s32 %v5097, %v5099
        %v5101 = vrot.slane %v5093, %v5100
        %v5103 = vunpack.c.l.s4 1966171168
        %v5104 = vunpack.c.0.s8 %v5103
        %v5105 = vlaneseq
        %v5106 = vshrl.u32 %v5105, 7
        %v5107 = vsub.s32 %v5104, %v5106
        %v5108 = vrot.slane %v5094, %v5107
        %v5109 = vcombine.low %v5101, %v5108
        %v5110 = vcombine.low %v3562, %v3566
        %v5111 = vcombine.low %v3570, %v3574
        %v5112 = vcombine.low %v3578, %v3582
        %v5113 = vcombine.low %v3586, %v3590
        %v5115 = vunpack.c.l.s4 1966171168
        %v5116 = vunpack.c.0.s8 %v5115
        %v5117 = vlaneseq
        %v5118 = vshrl.u32 %v5117, 7
        %v5119 = vsub.s32 %v5116, %v5118
        %v5120 = vrot.slane %v5110, %v5119
        %v5122 = vunpack.c.l.s4 1966171168
        %v5123 = vunpack.c.0.s8 %v5122
        %v5124 = vlaneseq
        %v5125 = vshrl.u32 %v5124, 7
        %v5126 = vsub.s32 %v5123, %v5125
        %v5127 = vrot.slane %v5111, %v5126
        %v5129 = vunpack.c.l.s4 1966171168
        %v5130 = vunpack.c.0.s8 %v5129
        %v5131 = vlaneseq
        %v5132 = vshrl.u32 %v5131, 7
        %v5133 = vsub.s32 %v5130, %v5132
        %v5134 = vrot.slane %v5112, %v5133
        %v5136 = vunpack.c.l.s4 1966171168
        %v5137 = vunpack.c.0.s8 %v5136
        %v5138 = vlaneseq
        %v5139 = vshrl.u32 %v5138, 7
        %v5140 = vsub.s32 %v5137, %v5139
        %v5141 = vrot.slane %v5113, %v5140
        %v5142 = vcombine.low %v5120, %v5127
        %v5143 = vcombine.low %v5134, %v5141
        %v5145 = vunpack.c.l.s4 1966171168
        %v5146 = vunpack.c.0.s8 %v5145
        %v5147 = vlaneseq
        %v5148 = vshrl.u32 %v5147, 7
        %v5149 = vsub.s32 %v5146, %v5148
        %v5150 = vrot.slane %v5142, %v5149
        %v5152 = vunpack.c.l.s4 1966171168
        %v5153 = vunpack.c.0.s8 %v5152
        %v5154 = vlaneseq
        %v5155 = vshrl.u32 %v5154, 7
        %v5156 = vsub.s32 %v5153, %v5155
        %v5157 = vrot.slane %v5143, %v5156
        %v5158 = vcombine.low %v5150, %v5157
        %5159 = vset.pattern.permute.xlu0 0
        %5160 = vperm.xlu0 %5159, %v3639
        %v5161 = vpop.permute.xlu0 %5160
        %5162 = vset.pattern.permute.xlu0 0
        %5163 = vperm.xlu0 %5162, %v3688
        %v5164 = vpop.permute.xlu0 %5163
        %5165 = vset.pattern.permute.xlu0 0
        %5166 = vperm.xlu0 %5165, %v3737
        %v5167 = vpop.permute.xlu0 %5166
        %5168 = vset.pattern.permute.xlu0 0
        %5169 = vperm.xlu0 %5168, %v3786
        %v5170 = vpop.permute.xlu0 %5169
        %5171 = vset.pattern.permute.xlu0 0
        %5172 = vperm.xlu0 %5171, %v3835
        %v5173 = vpop.permute.xlu0 %5172
        %5174 = vset.pattern.permute.xlu0 0
        %5175 = vperm.xlu0 %5174, %v3884
        %v5176 = vpop.permute.xlu0 %5175
        %5177 = vset.pattern.permute.xlu0 0
        %5178 = vperm.xlu0 %5177, %v3933
        %v5179 = vpop.permute.xlu0 %5178
        %5180 = vset.pattern.permute.xlu0 0
        %5181 = vperm.xlu0 %5180, %v3982
        %v5182 = vpop.permute.xlu0 %5181
        %5183 = vset.pattern.permute.xlu0 0
        %5184 = vperm.xlu0 %5183, %v4031
        %v5185 = vpop.permute.xlu0 %5184
        %5186 = vset.pattern.permute.xlu0 0
        %5187 = vperm.xlu0 %5186, %v4080
        %v5188 = vpop.permute.xlu0 %5187
        %5189 = vset.pattern.permute.xlu0 0
        %5190 = vperm.xlu0 %5189, %v4129
        %v5191 = vpop.permute.xlu0 %5190
        %5192 = vset.pattern.permute.xlu0 0
        %5193 = vperm.xlu0 %5192, %v4178
        %v5194 = vpop.permute.xlu0 %5193
        %5195 = vset.pattern.permute.xlu0 0
        %5196 = vperm.xlu0 %5195, %v4227
        %v5197 = vpop.permute.xlu0 %5196
        %5198 = vset.pattern.permute.xlu0 0
        %5199 = vperm.xlu0 %5198, %v4276
        %v5200 = vpop.permute.xlu0 %5199
        %5201 = vset.pattern.permute.xlu0 0
        %5202 = vperm.xlu0 %5201, %v4325
        %v5203 = vpop.permute.xlu0 %5202
        %5204 = vset.pattern.permute.xlu0 0
        %5205 = vperm.xlu0 %5204, %v4374
        %v5206 = vpop.permute.xlu0 %5205
        %5207 = vset.pattern.permute.xlu0 0
        %5208 = vperm.xlu0 %5207, %v4423
        %v5209 = vpop.permute.xlu0 %5208
        %5210 = vset.pattern.permute.xlu0 0
        %5211 = vperm.xlu0 %5210, %v4472
        %v5212 = vpop.permute.xlu0 %5211
        %5213 = vset.pattern.permute.xlu0 0
        %5214 = vperm.xlu0 %5213, %v4521
        %v5215 = vpop.permute.xlu0 %5214
        %5216 = vset.pattern.permute.xlu0 0
        %5217 = vperm.xlu0 %5216, %v4570
        %v5218 = vpop.permute.xlu0 %5217
        %5219 = vset.pattern.permute.xlu0 0
        %5220 = vperm.xlu0 %5219, %v4619
        %v5221 = vpop.permute.xlu0 %5220
        %5222 = vset.pattern.permute.xlu0 0
        %5223 = vperm.xlu0 %5222, %v4668
        %v5224 = vpop.permute.xlu0 %5223
        %5225 = vset.pattern.permute.xlu0 0
        %5226 = vperm.xlu0 %5225, %v4717
        %v5227 = vpop.permute.xlu0 %5226
        %5228 = vset.pattern.permute.xlu0 0
        %5229 = vperm.xlu0 %5228, %v4766
        %v5230 = vpop.permute.xlu0 %5229
        %5231 = vset.pattern.permute.xlu0 0
        %5232 = vperm.xlu0 %5231, %v4815
        %v5233 = vpop.permute.xlu0 %5232
        %5234 = vset.pattern.permute.xlu0 0
        %5235 = vperm.xlu0 %5234, %v4864
        %v5236 = vpop.permute.xlu0 %5235
        %5237 = vset.pattern.permute.xlu0 0
        %5238 = vperm.xlu0 %5237, %v4913
        %v5239 = vpop.permute.xlu0 %5238
        %5240 = vset.pattern.permute.xlu0 0
        %5241 = vperm.xlu0 %5240, %v4962
        %v5242 = vpop.permute.xlu0 %5241
        %5243 = vset.pattern.permute.xlu0 0
        %5244 = vperm.xlu0 %5243, %v5011
        %v5245 = vpop.permute.xlu0 %5244
        %5246 = vset.pattern.permute.xlu0 0
        %5247 = vperm.xlu0 %5246, %v5060
        %v5248 = vpop.permute.xlu0 %5247
        %5249 = vset.pattern.permute.xlu0 0
        %5250 = vperm.xlu0 %5249, %v5109
        %v5251 = vpop.permute.xlu0 %5250
        %5252 = vset.pattern.permute.xlu0 0
        %5253 = vperm.xlu0 %5252, %v5158
        %v5254 = vpop.permute.xlu0 %5253
        %v5255 = vlaneseq
        %v5256 = vshrl.u32 %v5255, 7
        %v5257 = vsub.s32 %v1249, %v5256
        %v5258 = vrot.slane %v5161, %v5257
        %v5259 = vadd.s32 %v1249, 4294967288
        %v5260 = vlaneseq
        %v5261 = vshrl.u32 %v5260, 7
        %v5262 = vsub.s32 %v5259, %v5261
        %v5263 = vrot.slane %v5164, %v5262
        %vm5264 = vcmask 130112
        %v5265 = vsel %vm5264, %v5263, %v5258
        %v5266 = vadd.s32 %v1249, 4294967280
        %v5267 = vlaneseq
        %v5268 = vshrl.u32 %v5267, 7
        %v5269 = vsub.s32 %v5266, %v5268
        %v5270 = vrot.slane %v5167, %v5269
        %vm5271 = vcmask 195712
        %v5272 = vsel %vm5271, %v5270, %v5265
        %v5273 = vadd.s32 %v1249, 4294967272
        %v5274 = vlaneseq
        %v5275 = vshrl.u32 %v5274, 7
        %v5276 = vsub.s32 %v5273, %v5275
        %v5277 = vrot.slane %v5170, %v5276
        %vm5278 = vcmask 261312
        %v5279 = vsel %vm5278, %v5277, %v5272
        %v5280 = vadd.s32 %v1249, 4294967264
        %v5281 = vlaneseq
        %v5282 = vshrl.u32 %v5281, 7
        %v5283 = vsub.s32 %v5280, %v5282
        %v5284 = vrot.slane %v5173, %v5283
        %vm5285 = vcmask 326912
        %v5286 = vsel %vm5285, %v5284, %v5279
        %v5287 = vadd.s32 %v1249, 4294967256
        %v5288 = vlaneseq
        %v5289 = vshrl.u32 %v5288, 7
        %v5290 = vsub.s32 %v5287, %v5289
        %v5291 = vrot.slane %v5176, %v5290
        %vm5292 = vcmask 392512
        %v5293 = vsel %vm5292, %v5291, %v5286
        %v5294 = vadd.s32 %v1249, 4294967248
        %v5295 = vlaneseq
        %v5296 = vshrl.u32 %v5295, 7
        %v5297 = vsub.s32 %v5294, %v5296
        %v5298 = vrot.slane %v5179, %v5297
        %vm5299 = vcmask 458112
        %v5300 = vsel %vm5299, %v5298, %v5293
        %v5301 = vadd.s32 %v1249, 4294967240
        %v5302 = vlaneseq
        %v5303 = vshrl.u32 %v5302, 7
        %v5304 = vsub.s32 %v5301, %v5303
        %v5305 = vrot.slane %v5182, %v5304
        %vm5306 = vcmask 523712
        %v5307 = vsel %vm5306, %v5305, %v5300
        %v5308 = vadd.s32 %v1249, 4294967232
        %v5309 = vlaneseq
        %v5310 = vshrl.u32 %v5309, 7
        %v5311 = vsub.s32 %v5308, %v5310
        %v5312 = vrot.slane %v5185, %v5311
        %vm5313 = vcmask 589312
        %v5314 = vsel %vm5313, %v5312, %v5307
        %v5315 = vadd.s32 %v1249, 4294967224
        %v5316 = vlaneseq
        %v5317 = vshrl.u32 %v5316, 7
        %v5318 = vsub.s32 %v5315, %v5317
        %v5319 = vrot.slane %v5188, %v5318
        %vm5320 = vcmask 654912
        %v5321 = vsel %vm5320, %v5319, %v5314
        %v5322 = vadd.s32 %v1249, 4294967216
        %v5323 = vlaneseq
        %v5324 = vshrl.u32 %v5323, 7
        %v5325 = vsub.s32 %v5322, %v5324
        %v5326 = vrot.slane %v5191, %v5325
        %vm5327 = vcmask 720512
        %v5328 = vsel %vm5327, %v5326, %v5321
        %v5329 = vadd.s32 %v1249, 4294967208
        %v5330 = vlaneseq
        %v5331 = vshrl.u32 %v5330, 7
        %v5332 = vsub.s32 %v5329, %v5331
        %v5333 = vrot.slane %v5194, %v5332
        %vm5334 = vcmask 786112
        %v5335 = vsel %vm5334, %v5333, %v5328
        %v5336 = vadd.s32 %v1249, 4294967200
        %v5337 = vlaneseq
        %v5338 = vshrl.u32 %v5337, 7
        %v5339 = vsub.s32 %v5336, %v5338
        %v5340 = vrot.slane %v5197, %v5339
        %vm5341 = vcmask 851712
        %v5342 = vsel %vm5341, %v5340, %v5335
        %v5343 = vadd.s32 %v1249, 4294967192
        %v5344 = vlaneseq
        %v5345 = vshrl.u32 %v5344, 7
        %v5346 = vsub.s32 %v5343, %v5345
        %v5347 = vrot.slane %v5200, %v5346
        %vm5348 = vcmask 917312
        %v5349 = vsel %vm5348, %v5347, %v5342
        %v5350 = vadd.s32 %v1249, 4294967184
        %v5351 = vlaneseq
        %v5352 = vshrl.u32 %v5351, 7
        %v5353 = vsub.s32 %v5350, %v5352
        %v5354 = vrot.slane %v5203, %v5353
        %vm5355 = vcmask 982912
        %v5356 = vsel %vm5355, %v5354, %v5349
        %v5357 = vadd.s32 %v1249, 4294967176
        %v5358 = vlaneseq
        %v5359 = vshrl.u32 %v5358, 7
        %v5360 = vsub.s32 %v5357, %v5359
        %v5361 = vrot.slane %v5206, %v5360
        %vm5362 = vcmask 1048512
        %v5363 = vsel %vm5362, %v5361, %v5356
        %v5364 = vlaneseq
        %v5365 = vshrl.u32 %v5364, 7
        %v5366 = vsub.s32 %v1249, %v5365
        %v5367 = vrot.slane %v5209, %v5366
        %v5368 = vlaneseq
        %v5369 = vshrl.u32 %v5368, 7
        %v5370 = vsub.s32 %v5259, %v5369
        %v5371 = vrot.slane %v5212, %v5370
        %v5372 = vsel %vm5264, %v5371, %v5367
        %v5373 = vlaneseq
        %v5374 = vshrl.u32 %v5373, 7
        %v5375 = vsub.s32 %v5266, %v5374
        %v5376 = vrot.slane %v5215, %v5375
        %v5377 = vsel %vm5271, %v5376, %v5372
        %v5378 = vlaneseq
        %v5379 = vshrl.u32 %v5378, 7
        %v5380 = vsub.s32 %v5273, %v5379
        %v5381 = vrot.slane %v5218, %v5380
        %v5382 = vsel %vm5278, %v5381, %v5377
        %v5383 = vlaneseq
        %v5384 = vshrl.u32 %v5383, 7
        %v5385 = vsub.s32 %v5280, %v5384
        %v5386 = vrot.slane %v5221, %v5385
        %v5387 = vsel %vm5285, %v5386, %v5382
        %v5388 = vlaneseq
        %v5389 = vshrl.u32 %v5388, 7
        %v5390 = vsub.s32 %v5287, %v5389
        %v5391 = vrot.slane %v5224, %v5390
        %v5392 = vsel %vm5292, %v5391, %v5387
        %v5393 = vlaneseq
        %v5394 = vshrl.u32 %v5393, 7
        %v5395 = vsub.s32 %v5294, %v5394
        %v5396 = vrot.slane %v5227, %v5395
        %v5397 = vsel %vm5299, %v5396, %v5392
        %v5398 = vlaneseq
        %v5399 = vshrl.u32 %v5398, 7
        %v5400 = vsub.s32 %v5301, %v5399
        %v5401 = vrot.slane %v5230, %v5400
        %v5402 = vsel %vm5306, %v5401, %v5397
        %v5403 = vlaneseq
        %v5404 = vshrl.u32 %v5403, 7
        %v5405 = vsub.s32 %v5308, %v5404
        %v5406 = vrot.slane %v5233, %v5405
        %v5407 = vsel %vm5313, %v5406, %v5402
        %v5408 = vlaneseq
        %v5409 = vshrl.u32 %v5408, 7
        %v5410 = vsub.s32 %v5315, %v5409
        %v5411 = vrot.slane %v5236, %v5410
        %v5412 = vsel %vm5320, %v5411, %v5407
        %v5413 = vlaneseq
        %v5414 = vshrl.u32 %v5413, 7
        %v5415 = vsub.s32 %v5322, %v5414
        %v5416 = vrot.slane %v5239, %v5415
        %v5417 = vsel %vm5327, %v5416, %v5412
        %v5418 = vlaneseq
        %v5419 = vshrl.u32 %v5418, 7
        %v5420 = vsub.s32 %v5329, %v5419
        %v5421 = vrot.slane %v5242, %v5420
        %v5422 = vsel %vm5334, %v5421, %v5417
        %v5423 = vlaneseq
        %v5424 = vshrl.u32 %v5423, 7
        %v5425 = vsub.s32 %v5336, %v5424
        %v5426 = vrot.slane %v5245, %v5425
        %v5427 = vsel %vm5341, %v5426, %v5422
        %v5428 = vlaneseq
        %v5429 = vshrl.u32 %v5428, 7
        %v5430 = vsub.s32 %v5343, %v5429
        %v5431 = vrot.slane %v5248, %v5430
        %v5432 = vsel %vm5348, %v5431, %v5427
        %v5433 = vlaneseq
        %v5434 = vshrl.u32 %v5433, 7
        %v5435 = vsub.s32 %v5350, %v5434
        %v5436 = vrot.slane %v5251, %v5435
        %v5437 = vsel %vm5355, %v5436, %v5432
        %v5438 = vlaneseq
        %v5439 = vshrl.u32 %v5438, 7
        %v5440 = vsub.s32 %v5357, %v5439
        %v5441 = vrot.slane %v5254, %v5440
        %v5442 = vsel %vm5362, %v5441, %v5437
        %v5443 = vcombine.low %v5363, %v5442
        %v5445 = vunpack.c.l.s4 1966171168
        %v5446 = vunpack.c.0.s8 %v5445
        %v5447 = vlaneseq
        %v5448 = vshrl.u32 %v5447, 7
        %v5449 = vsub.s32 %v5446, %v5448
        %v5450 = vrot.slane %v5443, %v5449
        %v5452 = vunpack.c.l.s4 1966171168
        %v5453 = vunpack.c.0.s8 %v5452
        %v5454 = vlaneseq
        %v5455 = vshrl.u32 %v5454, 7
        %v5456 = vsub.s32 %v5453, %v5455
        %v5457 = vrot.slane %v5450, %v5456
        %v5458 = vlaneseq
        %vm5459 = vcmp.ge.s32.totalorder %v5458, 0
        %vm5460 = vcmp.lt.s32.totalorder %v5458, 256
        %vm5461 = vmand %vm5459, %vm5460
        %5462 = vst.msk [vmem:[%s258] sm:$0x3] %vm5461, %v5457
        %s5463 = smul.u32 %s25, 256
        %v5464 = vlaneseq
        %v5465 = vshrl.u32 %v5464, 7
        %v5466 = vadd.s32 %v5465, 8
        %v5467 = vadd.s32 %v5465, 16
        %v5468 = vadd.s32 %v5465, 24
        %v5469 = vadd.s32 %v5465, 32
        %v5470 = vadd.s32 %v5465, 40
        %v5471 = vadd.s32 %v5465, 48
        %v5472 = vadd.s32 %v5465, 56
        %v5473 = vadd.s32 %v5465, 64
        %v5474 = vadd.s32 %v5465, 72
        %v5475 = vadd.s32 %v5465, 80
        %v5476 = vadd.s32 %v5465, 88
        %v5477 = vadd.s32 %v5465, 96
        %v5478 = vadd.s32 %v5465, 104
        %v5479 = vadd.s32 %v5465, 112
        %v5480 = vadd.s32 %v5465, 120
        %v5481 = vadd.s32 %v5465, 128
        %v5482 = vadd.s32 %v5465, 136
        %v5483 = vadd.s32 %v5465, 144
        %v5484 = vadd.s32 %v5465, 152
        %v5485 = vadd.s32 %v5465, 160
        %v5486 = vadd.s32 %v5465, 168
        %v5487 = vadd.s32 %v5465, 176
        %v5488 = vadd.s32 %v5465, 184
        %v5489 = vadd.s32 %v5465, 192
        %v5490 = vadd.s32 %v5465, 200
        %v5491 = vadd.s32 %v5465, 208
        %v5492 = vadd.s32 %v5465, 216
        %v5493 = vadd.s32 %v5465, 224
        %v5494 = vadd.s32 %v5465, 232
        %v5495 = vadd.s32 %v5465, 240
        %v5496 = vadd.s32 %v5465, 248
        %v5497 = vstv %s5463
        %v5498 = vadd.s32 %v5497, %v5465
        %v5499 = vadd.s32 %v5497, %v5466
        %v5500 = vadd.s32 %v5497, %v5467
        %v5501 = vadd.s32 %v5497, %v5468
        %v5502 = vadd.s32 %v5497, %v5469
        %v5503 = vadd.s32 %v5497, %v5470
        %v5504 = vadd.s32 %v5497, %v5471
        %v5505 = vadd.s32 %v5497, %v5472
        %v5506 = vadd.s32 %v5497, %v5473
        %v5507 = vadd.s32 %v5497, %v5474
        %v5508 = vadd.s32 %v5497, %v5475
        %v5509 = vadd.s32 %v5497, %v5476
        %v5510 = vadd.s32 %v5497, %v5477
        %v5511 = vadd.s32 %v5497, %v5478
        %v5512 = vadd.s32 %v5497, %v5479
        %v5513 = vadd.s32 %v5497, %v5480
        %v5514 = vadd.s32 %v5497, %v5481
        %v5515 = vadd.s32 %v5497, %v5482
        %v5516 = vadd.s32 %v5497, %v5483
        %v5517 = vadd.s32 %v5497, %v5484
        %v5518 = vadd.s32 %v5497, %v5485
        %v5519 = vadd.s32 %v5497, %v5486
        %v5520 = vadd.s32 %v5497, %v5487
        %v5521 = vadd.s32 %v5497, %v5488
        %v5522 = vadd.s32 %v5497, %v5489
        %v5523 = vadd.s32 %v5497, %v5490
        %v5524 = vadd.s32 %v5497, %v5491
        %v5525 = vadd.s32 %v5497, %v5492
        %v5526 = vadd.s32 %v5497, %v5493
        %v5527 = vadd.s32 %v5497, %v5494
        %v5528 = vadd.s32 %v5497, %v5495
        %v5529 = vadd.s32 %v5497, %v5496
        %v5530 = vsub.f32 %v2377, %v359
        %v5531 = vsub.f32 %v2382, %v360
        %v5532 = vsub.f32 %v2387, %v361
        %v5533 = vsub.f32 %v2392, %v362
        %v5534 = vsub.f32 %v2397, %v363
        %v5535 = vsub.f32 %v2402, %v364
        %v5536 = vsub.f32 %v2407, %v365
        %v5537 = vsub.f32 %v2412, %v366
        %v5538 = vsub.f32 %v2417, %v367
        %v5539 = vsub.f32 %v2422, %v368
        %v5540 = vsub.f32 %v2427, %v369
        %v5541 = vsub.f32 %v2432, %v370
        %v5542 = vsub.f32 %v2437, %v371
        %v5543 = vsub.f32 %v2442, %v372
        %v5544 = vsub.f32 %v2447, %v373
        %v5545 = vsub.f32 %v2452, %v374
        %v5546 = vsub.f32 %v2457, %v375
        %v5547 = vsub.f32 %v2462, %v376
        %v5548 = vsub.f32 %v2467, %v377
        %v5549 = vsub.f32 %v2472, %v378
        %v5550 = vsub.f32 %v2477, %v379
        %v5551 = vsub.f32 %v2482, %v380
        %v5552 = vsub.f32 %v2487, %v381
        %v5553 = vsub.f32 %v2492, %v382
        %v5554 = vsub.f32 %v2497, %v383
        %v5555 = vsub.f32 %v2502, %v384
        %v5556 = vsub.f32 %v2507, %v385
        %v5557 = vsub.f32 %v2512, %v386
        %v5558 = vsub.f32 %v2517, %v387
        %v5559 = vsub.f32 %v2522, %v388
        %v5560 = vsub.f32 %v2527, %v389
        %v5561 = vsub.f32 %v2532, %v390
        %vm5562 = vcmp.lt.s32.totalorder %v5498, 256
        %vm5563 = vcmp.lt.s32.totalorder %v5499, 256
        %vm5564 = vcmp.lt.s32.totalorder %v5500, 256
        %vm5565 = vcmp.lt.s32.totalorder %v5501, 256
        %vm5566 = vcmp.lt.s32.totalorder %v5502, 256
        %vm5567 = vcmp.lt.s32.totalorder %v5503, 256
        %vm5568 = vcmp.lt.s32.totalorder %v5504, 256
        %vm5569 = vcmp.lt.s32.totalorder %v5505, 256
        %vm5570 = vcmp.lt.s32.totalorder %v5506, 256
        %vm5571 = vcmp.lt.s32.totalorder %v5507, 256
        %vm5572 = vcmp.lt.s32.totalorder %v5508, 256
        %vm5573 = vcmp.lt.s32.totalorder %v5509, 256
        %vm5574 = vcmp.lt.s32.totalorder %v5510, 256
        %vm5575 = vcmp.lt.s32.totalorder %v5511, 256
        %vm5576 = vcmp.lt.s32.totalorder %v5512, 256
        %vm5577 = vcmp.lt.s32.totalorder %v5513, 256
        %vm5578 = vcmp.lt.s32.totalorder %v5514, 256
        %vm5579 = vcmp.lt.s32.totalorder %v5515, 256
        %vm5580 = vcmp.lt.s32.totalorder %v5516, 256
        %vm5581 = vcmp.lt.s32.totalorder %v5517, 256
        %vm5582 = vcmp.lt.s32.totalorder %v5518, 256
        %vm5583 = vcmp.lt.s32.totalorder %v5519, 256
        %vm5584 = vcmp.lt.s32.totalorder %v5520, 256
        %vm5585 = vcmp.lt.s32.totalorder %v5521, 256
        %vm5586 = vcmp.lt.s32.totalorder %v5522, 256
        %vm5587 = vcmp.lt.s32.totalorder %v5523, 256
        %vm5588 = vcmp.lt.s32.totalorder %v5524, 256
        %vm5589 = vcmp.lt.s32.totalorder %v5525, 256
        %vm5590 = vcmp.lt.s32.totalorder %v5526, 256
        %vm5591 = vcmp.lt.s32.totalorder %v5527, 256
        %vm5592 = vcmp.lt.s32.totalorder %v5528, 256
        %vm5593 = vcmp.lt.s32.totalorder %v5529, 256
        %v5594 = vmul.f32 %v5530, %v5530
        %v5595 = vmul.f32 %v5531, %v5531
        %v5596 = vmul.f32 %v5532, %v5532
        %v5597 = vmul.f32 %v5533, %v5533
        %v5598 = vmul.f32 %v5534, %v5534
        %v5599 = vmul.f32 %v5535, %v5535
        %v5600 = vmul.f32 %v5536, %v5536
        %v5601 = vmul.f32 %v5537, %v5537
        %v5602 = vmul.f32 %v5538, %v5538
        %v5603 = vmul.f32 %v5539, %v5539
        %v5604 = vmul.f32 %v5540, %v5540
        %v5605 = vmul.f32 %v5541, %v5541
        %v5606 = vmul.f32 %v5542, %v5542
        %v5607 = vmul.f32 %v5543, %v5543
        %v5608 = vmul.f32 %v5544, %v5544
        %v5609 = vmul.f32 %v5545, %v5545
        %v5610 = vmul.f32 %v5546, %v5546
        %v5611 = vmul.f32 %v5547, %v5547
        %v5612 = vmul.f32 %v5548, %v5548
        %v5613 = vmul.f32 %v5549, %v5549
        %v5614 = vmul.f32 %v5550, %v5550
        %v5615 = vmul.f32 %v5551, %v5551
        %v5616 = vmul.f32 %v5552, %v5552
        %v5617 = vmul.f32 %v5553, %v5553
        %v5618 = vmul.f32 %v5554, %v5554
        %v5619 = vmul.f32 %v5555, %v5555
        %v5620 = vmul.f32 %v5556, %v5556
        %v5621 = vmul.f32 %v5557, %v5557
        %v5622 = vmul.f32 %v5558, %v5558
        %v5623 = vmul.f32 %v5559, %v5559
        %v5624 = vmul.f32 %v5560, %v5560
        %v5625 = vmul.f32 %v5561, %v5561
        %v5626 = vsel %vm5562, 1, 0
        %v5627 = vsel %vm5563, 1, 0
        %v5628 = vsel %vm5564, 1, 0
        %v5629 = vsel %vm5565, 1, 0
        %v5630 = vsel %vm5566, 1, 0
        %v5631 = vsel %vm5567, 1, 0
        %v5632 = vsel %vm5568, 1, 0
        %v5633 = vsel %vm5569, 1, 0
        %v5634 = vsel %vm5570, 1, 0
        %v5635 = vsel %vm5571, 1, 0
        %v5636 = vsel %vm5572, 1, 0
        %v5637 = vsel %vm5573, 1, 0
        %v5638 = vsel %vm5574, 1, 0
        %v5639 = vsel %vm5575, 1, 0
        %v5640 = vsel %vm5576, 1, 0
        %v5641 = vsel %vm5577, 1, 0
        %v5642 = vsel %vm5578, 1, 0
        %v5643 = vsel %vm5579, 1, 0
        %v5644 = vsel %vm5580, 1, 0
        %v5645 = vsel %vm5581, 1, 0
        %v5646 = vsel %vm5582, 1, 0
        %v5647 = vsel %vm5583, 1, 0
        %v5648 = vsel %vm5584, 1, 0
        %v5649 = vsel %vm5585, 1, 0
        %v5650 = vsel %vm5586, 1, 0
        %v5651 = vsel %vm5587, 1, 0
        %v5652 = vsel %vm5588, 1, 0
        %v5653 = vsel %vm5589, 1, 0
        %v5654 = vsel %vm5590, 1, 0
        %v5655 = vsel %vm5591, 1, 0
        %v5656 = vsel %vm5592, 1, 0
        %v5657 = vsel %vm5593, 1, 0
        %vm5658 = vcmp.eq.s32.totalorder %v5626, 1
        %vm5659 = vcmp.eq.s32.totalorder %v5627, 1
        %vm5660 = vcmp.eq.s32.totalorder %v5628, 1
        %vm5661 = vcmp.eq.s32.totalorder %v5629, 1
        %vm5662 = vcmp.eq.s32.totalorder %v5630, 1
        %vm5663 = vcmp.eq.s32.totalorder %v5631, 1
        %vm5664 = vcmp.eq.s32.totalorder %v5632, 1
        %vm5665 = vcmp.eq.s32.totalorder %v5633, 1
        %vm5666 = vcmp.eq.s32.totalorder %v5634, 1
        %vm5667 = vcmp.eq.s32.totalorder %v5635, 1
        %vm5668 = vcmp.eq.s32.totalorder %v5636, 1
        %vm5669 = vcmp.eq.s32.totalorder %v5637, 1
        %vm5670 = vcmp.eq.s32.totalorder %v5638, 1
        %vm5671 = vcmp.eq.s32.totalorder %v5639, 1
        %vm5672 = vcmp.eq.s32.totalorder %v5640, 1
        %vm5673 = vcmp.eq.s32.totalorder %v5641, 1
        %vm5674 = vcmp.eq.s32.totalorder %v5642, 1
        %vm5675 = vcmp.eq.s32.totalorder %v5643, 1
        %vm5676 = vcmp.eq.s32.totalorder %v5644, 1
        %vm5677 = vcmp.eq.s32.totalorder %v5645, 1
        %vm5678 = vcmp.eq.s32.totalorder %v5646, 1
        %vm5679 = vcmp.eq.s32.totalorder %v5647, 1
        %vm5680 = vcmp.eq.s32.totalorder %v5648, 1
        %vm5681 = vcmp.eq.s32.totalorder %v5649, 1
        %vm5682 = vcmp.eq.s32.totalorder %v5650, 1
        %vm5683 = vcmp.eq.s32.totalorder %v5651, 1
        %vm5684 = vcmp.eq.s32.totalorder %v5652, 1
        %vm5685 = vcmp.eq.s32.totalorder %v5653, 1
        %vm5686 = vcmp.eq.s32.totalorder %v5654, 1
        %vm5687 = vcmp.eq.s32.totalorder %v5655, 1
        %vm5688 = vcmp.eq.s32.totalorder %v5656, 1
        %vm5689 = vcmp.eq.s32.totalorder %v5657, 1
        %v5690 = vsel %vm5658, %v5594, 0.0
        %v5691 = vsel %vm5659, %v5595, 0.0
        %v5692 = vsel %vm5660, %v5596, 0.0
        %v5693 = vsel %vm5661, %v5597, 0.0
        %v5694 = vsel %vm5662, %v5598, 0.0
        %v5695 = vsel %vm5663, %v5599, 0.0
        %v5696 = vsel %vm5664, %v5600, 0.0
        %v5697 = vsel %vm5665, %v5601, 0.0
        %v5698 = vsel %vm5666, %v5602, 0.0
        %v5699 = vsel %vm5667, %v5603, 0.0
        %v5700 = vsel %vm5668, %v5604, 0.0
        %v5701 = vsel %vm5669, %v5605, 0.0
        %v5702 = vsel %vm5670, %v5606, 0.0
        %v5703 = vsel %vm5671, %v5607, 0.0
        %v5704 = vsel %vm5672, %v5608, 0.0
        %v5705 = vsel %vm5673, %v5609, 0.0
        %v5706 = vsel %vm5674, %v5610, 0.0
        %v5707 = vsel %vm5675, %v5611, 0.0
        %v5708 = vsel %vm5676, %v5612, 0.0
        %v5709 = vsel %vm5677, %v5613, 0.0
        %v5710 = vsel %vm5678, %v5614, 0.0
        %v5711 = vsel %vm5679, %v5615, 0.0
        %v5712 = vsel %vm5680, %v5616, 0.0
        %v5713 = vsel %vm5681, %v5617, 0.0
        %v5714 = vsel %vm5682, %v5618, 0.0
        %v5715 = vsel %vm5683, %v5619, 0.0
        %v5716 = vsel %vm5684, %v5620, 0.0
        %v5717 = vsel %vm5685, %v5621, 0.0
        %v5718 = vsel %vm5686, %v5622, 0.0
        %v5719 = vsel %vm5687, %v5623, 0.0
        %v5720 = vsel %vm5688, %v5624, 0.0
        %v5721 = vsel %vm5689, %v5625, 0.0
        %v5722 = vsel %vm439, %v5690, 0.0
        %v5723 = vsel %vm439, %v5691, 0.0
        %v5724 = vadd.f32 %v5722, %v5723
        %v5725 = vsel %vm439, %v5692, 0.0
        %v5726 = vadd.f32 %v5724, %v5725
        %v5727 = vsel %vm439, %v5693, 0.0
        %v5728 = vadd.f32 %v5726, %v5727
        %v5729 = vsel %vm439, %v5694, 0.0
        %v5730 = vadd.f32 %v5728, %v5729
        %v5731 = vsel %vm439, %v5695, 0.0
        %v5732 = vadd.f32 %v5730, %v5731
        %v5733 = vsel %vm439, %v5696, 0.0
        %v5734 = vadd.f32 %v5732, %v5733
        %v5735 = vsel %vm439, %v5697, 0.0
        %v5736 = vadd.f32 %v5734, %v5735
        %v5737 = vsel %vm439, %v5698, 0.0
        %v5738 = vadd.f32 %v5736, %v5737
        %v5739 = vsel %vm439, %v5699, 0.0
        %v5740 = vadd.f32 %v5738, %v5739
        %v5741 = vsel %vm439, %v5700, 0.0
        %v5742 = vadd.f32 %v5740, %v5741
        %v5743 = vsel %vm439, %v5701, 0.0
        %v5744 = vadd.f32 %v5742, %v5743
        %v5745 = vsel %vm439, %v5702, 0.0
        %v5746 = vadd.f32 %v5744, %v5745
        %v5747 = vsel %vm439, %v5703, 0.0
        %v5748 = vadd.f32 %v5746, %v5747
        %v5749 = vsel %vm439, %v5704, 0.0
        %v5750 = vadd.f32 %v5748, %v5749
        %v5751 = vsel %vm439, %v5705, 0.0
        %v5752 = vadd.f32 %v5750, %v5751
        %v5753 = vsel %vm439, %v5706, 0.0
        %v5754 = vadd.f32 %v5752, %v5753
        %v5755 = vsel %vm439, %v5707, 0.0
        %v5756 = vadd.f32 %v5754, %v5755
        %v5757 = vsel %vm439, %v5708, 0.0
        %v5758 = vadd.f32 %v5756, %v5757
        %v5759 = vsel %vm439, %v5709, 0.0
        %v5760 = vadd.f32 %v5758, %v5759
        %v5761 = vsel %vm439, %v5710, 0.0
        %v5762 = vadd.f32 %v5760, %v5761
        %v5763 = vsel %vm439, %v5711, 0.0
        %v5764 = vadd.f32 %v5762, %v5763
        %v5765 = vsel %vm439, %v5712, 0.0
        %v5766 = vadd.f32 %v5764, %v5765
        %v5767 = vsel %vm439, %v5713, 0.0
        %v5768 = vadd.f32 %v5766, %v5767
        %v5769 = vsel %vm439, %v5714, 0.0
        %v5770 = vadd.f32 %v5768, %v5769
        %v5771 = vsel %vm439, %v5715, 0.0
        %v5772 = vadd.f32 %v5770, %v5771
        %v5773 = vsel %vm439, %v5716, 0.0
        %v5774 = vadd.f32 %v5772, %v5773
        %v5775 = vsel %vm439, %v5717, 0.0
        %v5776 = vadd.f32 %v5774, %v5775
        %v5777 = vsel %vm439, %v5718, 0.0
        %v5778 = vadd.f32 %v5776, %v5777
        %v5779 = vsel %vm439, %v5719, 0.0
        %v5780 = vadd.f32 %v5778, %v5779
        %v5781 = vsel %vm439, %v5720, 0.0
        %v5782 = vadd.f32 %v5780, %v5781
        %v5783 = vsel %vm439, %v5721, 0.0
        %v5784 = vadd.f32 %v5782, %v5783
        %5785 = vadd.xlane.f32.xlu0 %v5784
        %v5786 = vpop.xlane.xlu0 %5785
        %v5787 = vrot.slane %v5786, 4
        %v5788 = vadd.f32 %v5786, %v5787
        %v5789 = vrot.slane %v5788, 2
        %v5790 = vadd.f32 %v5788, %v5789
        %v5791 = vrot.slane %v5790, 1
        %v5792 = vadd.f32 %v5790, %v5791
        %s5793 = vtos %v5792
        %v5794 = vstv %s5793
        %vm5795 = vcmask 0
        %5796 = vst.msk [vmem:[%s293] sm:$0x1] %vm5795, %v5794
        %s5797 = smul.u32 32, %s25
        %p5798 = scmp.lt.s32.totalorder %s24, 1
        %s5799 = scalar_select %p5798, %s24, 1
        %p5800 = scmp.lt.s32.totalorder %s5797, 31
        %s5801 = scalar_select %p5800, %s5797, 31
        %s5802 = smul.addr %s5799, 32
        %s5803 = sadd.s32 %s5801, %s5802
        %s5804 = smul.addr %s5803, 8
        %s5805 = scalar_lea.vmem %s3, %s5804
        %s5806 = sand.u32 %s140, 1
        %s5807 = scalar_lea.sflag [#allocation3], %s5806
        %s5808 = sand.u32 %s140, 1
        %s5809 = smul.addr %s5808, 2
        %s5810 = scalar_lea.vmem [#allocation2], %s5809
        %p5811 = scmp.lt.s32.totalorder %s24, 1
        %s5812 = scalar_select %p5811, %s24, 1
        %p5813 = scmp.lt.s32.totalorder %s25, 0
        %s5814 = scalar_select %p5813, %s25, 0
        %s5815 = sadd.s32 %s5814, %s5812
        %s5816 = scalar_lea.vmem %s5, %s5815
        // Predicated region
        $region33: #{tpu_custom_call.1} parent=31 // pred_check
          %p5817 = pneg %p122
        $region34: #{tpu_custom_call.1} parent=31 // pred_check_branch
          %5819 = sbr.rel (%p5817) target = $region36
        $region35: #{tpu_custom_call.1} parent=31 // pred_region
          %s5820 = smul.u32 32, %s25
        $region36: #{tpu_custom_call.1} parent=31 // pred_fallthru
          _
        // Predicated region
        $region37: #{tpu_custom_call.1} parent=31 // pred_check
          %p5821 = pneg %p150
        $region38: #{tpu_custom_call.1} parent=31 // pred_check_branch
          %5823 = sbr.rel (%p5821) target = $region40
        $region39: #{tpu_custom_call.1} parent=31 // pred_region
          %s5824 = smul.u32 2, %s25
          %s5826 = ssub.s32 32, 32
          %5827 = vsyncadd %s5807, %s5826
          %s5828 = smul.addr %s24, 2
          %s5829 = sadd.s32 %s5824, %s5828
          %s5830 = smul.addr %s5829, 16
          %s5831 = scalar_lea.hbm %s4, %s5830
          %s5833 = sshll.u32 %s5810, 4
          %s5834 = int_to_ptr.vmem [resolvable:$true] %s5833
          %5836 = dma.vmem_to_hbm [thread:$0]  %s5834, 32, %s5831, %s5807
        $region40: #{tpu_custom_call.1} parent=31 // pred_fallthru
          _
        // Predicated region
        $region41: #{tpu_custom_call.1} parent=31 // pred_check
          %p5837 = pneg %p178
        $region42: #{tpu_custom_call.1} parent=31 // pred_check_branch
          %5839 = sbr.rel (%p5837) target = $region44
        $region43: #{tpu_custom_call.1} parent=31 // pred_region
          _
        $region44: #{tpu_custom_call.1} parent=31 // pred_fallthru
          _
      $region32: #{tpu_custom_call.1} parent=5 // pred_fallthru
        _
      %p5840 = scmp.le.s32.totalorder 2, %s15
      // Predicated region
      $region45: #{tpu_custom_call.1} parent=5 // pred_check
        %p5841 = pneg %p5840
      $region46: #{tpu_custom_call.1} parent=5 // pred_check_branch
        %5843 = sbr.rel (%p5841) target = $region48
      $region47: #{tpu_custom_call.1} parent=5 // pred_region
        %s5844 = ssub.s32 %s15, 2
        // Predicated region
        $region49: #{tpu_custom_call.1} parent=47 // pred_check
          %p5845 = pneg %p128
        $region50: #{tpu_custom_call.1} parent=47 // pred_check_branch
          %5847 = sbr.rel (%p5845) target = $region52
        $region51: #{tpu_custom_call.1} parent=47 // pred_region
          %s5848 = smul.u32 32, %s27
          %p5849 = scmp.lt.s32.totalorder %s26, 1
          %s5850 = scalar_select %p5849, %s26, 1
          %p5851 = scmp.lt.s32.totalorder %s5848, 31
          %s5852 = scalar_select %p5851, %s5848, 31
          %s5853 = smul.addr %s5850, 32
          %s5854 = sadd.s32 %s5852, %s5853
          %s5855 = smul.addr %s5854, 8
          %s5856 = scalar_lea.vmem %s3, %s5855
        $region52: #{tpu_custom_call.1} parent=47 // pred_fallthru
          _
        // Predicated region
        $region53: #{tpu_custom_call.1} parent=47 // pred_check
          %p5857 = pneg %p156
        $region54: #{tpu_custom_call.1} parent=47 // pred_check_branch
          %5859 = sbr.rel (%p5857) target = $region56
        $region55: #{tpu_custom_call.1} parent=47 // pred_region
          %s5860 = sand.u32 %s141, 1
          %s5861 = scalar_lea.sflag [#allocation3], %s5860
          %s5862 = sand.u32 %s141, 1
          %s5863 = smul.addr %s5862, 2
          %s5864 = scalar_lea.vmem [#allocation2], %s5863
          %5865 = dma.done %s5861, 32
        $region56: #{tpu_custom_call.1} parent=47 // pred_fallthru
          _
        // Predicated region
        $region57: #{tpu_custom_call.1} parent=47 // pred_check
          %p5866 = pneg %p184
        $region58: #{tpu_custom_call.1} parent=47 // pred_check_branch
          %5868 = sbr.rel (%p5866) target = $region60
        $region59: #{tpu_custom_call.1} parent=47 // pred_region
          %p5869 = scmp.lt.s32.totalorder %s26, 1
          %s5870 = scalar_select %p5869, %s26, 1
          %p5871 = scmp.lt.s32.totalorder %s27, 0
          %s5872 = scalar_select %p5871, %s27, 0
          %s5873 = sadd.s32 %s5872, %s5870
          %s5874 = scalar_lea.vmem %s5, %s5873
        $region60: #{tpu_custom_call.1} parent=47 // pred_fallthru
          _
      $region48: #{tpu_custom_call.1} parent=5 // pred_fallthru
        _
    $region6: #{tpu_custom_call.1} parent=1 // loop_footer
      %s19 = sadd.s32 1, %s15
    $region7: #{tpu_custom_call.1} parent=1 // loop_footer_branch
      %14 = sbr.rel target = $region3
    $region8: #{tpu_custom_call.1} parent=1 // loop_exit
      _
    %5875 = vsyncpa [#allocation3], 1
    %s5876 = scalar_lea.sflag [#allocation3], 1
    %5877 = vsyncpa %s5876, 1

</llo_original>
